<compile_context>
chip_gen: v5e
topology: v5e:2x2
jax: 0.10.0
libtpu: 0.0.40
codegen_flags: <defaults>
</compile_context>

<pallas_src>
import functools
import math

import jax
import jax.numpy as jnp
from jax.experimental import pallas as pl
from jax.experimental.pallas import tpu as pltpu

# Model / problem sizes (small, consistent with the module's forward)
BATCH = 2
SEQ = 8
EMBED = 32
HEADS = 4
HEAD_DIM = EMBED // HEADS

_HIGHEST = jax.lax.Precision.HIGHEST


def _mha_math(x, wq, wk, wv, bq, bk, bv, wp, bp):
    """Core MHA math on loaded VMEM values.

    x        : (B, S, E)
    wq/wk/wv : (N, E, Dh)  with N = H*B (weights pre-replicated over batch;
                            the 1/sqrt(Dh) scale is folded into wq/bq)
    bq/bk/bv : (N, 1, Dh)
    wp       : (N, Dh, E)
    bp       : (1, 1, E)
    returns out (B, S, E) f32, probs (N, S, S) f32 with n = h*B + b.
    """
    b, s, e = x.shape
    n, _, dh = wq.shape
    h = n // b

    dot = functools.partial(jnp.einsum, precision=_HIGHEST,
                            preferred_element_type=jnp.float32)

    # Heads onto the leading/batch axis via a leading-dim broadcast + merge
    # (vreg replication only; no cross-lane data movement).
    xb = jnp.broadcast_to(x[None], (h, b, s, e)).reshape(n, s, e)

    # QKV projections: batched (S, E) @ (E, Dh) per (head, batch) on the MXU.
    q = dot('nse,ned->nsd', xb, wq) + bq
    k = dot('nse,ned->nsd', xb, wk) + bk
    v = dot('nse,ned->nsd', xb, wv) + bv

    # Scaled-dot-product attention, batched over n = h*B + b.
    scores = dot('nqd,nkd->nqk', q, k)                       # (N, S, S)
    m = jnp.max(scores, axis=-1, keepdims=True)
    ex = jnp.exp(scores - m)
    probs = ex / jnp.sum(ex, axis=-1, keepdims=True)         # exact softmax

    ctx = dot('nqk,nkd->nqd', probs, v)                      # (N, S, Dh)

    # Output projection: contract Dh per (head, batch) on the MXU, then merge
    # heads with a leading-axis sum (no lane-axis concat).
    outp = dot('nsd,nde->nse', ctx, wp)                      # (N, S, E)
    out = jnp.sum(outp.reshape(h, b, s, e), axis=0) + bp     # (B, S, E)
    return out, probs


def _mha_kernel_with_attn(x_ref, wq_ref, wk_ref, wv_ref, bq_ref, bk_ref,
                          bv_ref, wp_ref, bp_ref, out_ref, attn_ref):
    out, probs = _mha_math(x_ref[...], wq_ref[...], wk_ref[...], wv_ref[...],
                           bq_ref[...], bk_ref[...], bv_ref[...],
                           wp_ref[...], bp_ref[...])
    out_ref[...] = out.astype(out_ref.dtype)
    attn_ref[...] = probs.astype(attn_ref.dtype)


def _mha_kernel_no_attn(x_ref, wq_ref, wk_ref, wv_ref, bq_ref, bk_ref,
                        bv_ref, wp_ref, bp_ref, out_ref):
    out, _ = _mha_math(x_ref[...], wq_ref[...], wk_ref[...], wv_ref[...],
                       bq_ref[...], bk_ref[...], bv_ref[...],
                       wp_ref[...], bp_ref[...])
    out_ref[...] = out.astype(out_ref.dtype)


def _prep_params(wqkv, bqkv, wproj, bproj, num_heads, batch):
    """Trace-time (wrapper-side) weight permutation — costs nothing on-chip."""
    e = wqkv.shape[0]
    dh = e // num_heads
    scale = 1.0 / math.sqrt(dh)

    # wqkv: (E, 3E), column index = c*E + h*Dh + d  ->  (3, H, E, Dh)
    w3 = jnp.transpose(wqkv.reshape(e, 3, num_heads, dh), (1, 2, 0, 3))
    b3 = bqkv.reshape(3, num_heads, 1, dh)                   # (3, H, 1, Dh)

    def rep(a):  # (H, ...) -> (H*B, ...) replicated over batch
        tgt = (num_heads, batch) + a.shape[1:]
        return jnp.broadcast_to(a[:, None], tgt).reshape(
            (num_heads * batch,) + a.shape[1:])

    wq = rep(w3[0] * scale)      # fold the softmax scale into q
    wk = rep(w3[1])
    wv = rep(w3[2])
    bq = rep(b3[0] * scale)
    bk = rep(b3[1])
    bv = rep(b3[2])
    wp = rep(wproj.reshape(num_heads, dh, e))                # (H*B, Dh, E)
    bp = bproj.reshape(1, 1, e)
    return wq, wk, wv, bq, bk, bv, wp, bp


def multi_head_attention(x, wqkv, bqkv, wproj, bproj, *, num_heads=HEADS,
                         return_attention=True):
    b, s, e = x.shape
    params = _prep_params(wqkv, bqkv, wproj, bproj, num_heads, b)

    vmem = pl.BlockSpec(memory_space=pltpu.MemorySpace.VMEM)
    in_specs = [vmem] * 9

    if return_attention:
        out_shape = (
            jax.ShapeDtypeStruct((b, s, e), jnp.float32),              # output
            jax.ShapeDtypeStruct((num_heads * b, s, s), jnp.float32),  # attn
        )
        out, attn = pl.pallas_call(
            _mha_kernel_with_attn,
            out_shape=out_shape,
            in_specs=in_specs,
            out_specs=(vmem, vmem),
        )(x, *params)
        # Kernel stores attn stacked as n = h*B + b; reorder to (B, H, S, S)
        # outside the kernel (module semantics for attention_maps).
        attn = jnp.transpose(attn.reshape(num_heads, b, s, s), (1, 0, 2, 3))
        return out, attn

    out = pl.pallas_call(
        _mha_kernel_no_attn,
        out_shape=jax.ShapeDtypeStruct((b, s, e), jnp.float32),
        in_specs=in_specs,
        out_specs=vmem,
    )(x, *params)
    return out


def reference_mha(x, wqkv, bqkv, wproj, bproj, num_heads=HEADS):
    """Plain-JAX reference matching the PyTorch forward."""
    b, s, e = x.shape
    dh = e // num_heads
    qkv = jnp.einsum('bse,ef->bsf', x, wqkv, precision=_HIGHEST) + bqkv
    qkv = qkv.reshape(b, s, 3, num_heads, dh)
    qkv = jnp.transpose(qkv, (2, 0, 3, 1, 4))                # (3, B, H, S, Dh)
    q, k, v = qkv[0], qkv[1], qkv[2]
    scores = jnp.einsum('bhqd,bhkd->bhqk', q, k,
                        precision=_HIGHEST) / math.sqrt(dh)
    probs = jax.nn.softmax(scores, axis=-1)
    ctx = jnp.einsum('bhqk,bhkd->bhqd', probs, v, precision=_HIGHEST)
    ctx = jnp.transpose(ctx, (0, 2, 1, 3)).reshape(b, s, e)
    out = jnp.einsum('bse,ef->bsf', ctx, wproj, precision=_HIGHEST) + bproj
    return out, probs


if __name__ == "__main__":
    key = jax.random.PRNGKey(0)
    kx, k1, k2, k3, k4 = jax.random.split(key, 5)

    x = jax.random.normal(kx, (BATCH, SEQ, EMBED), dtype=jnp.float32)

    # Deterministic parameter init (PyTorch Linear default: U(-1/sqrt(in), 1/sqrt(in)))
    bound = 1.0 / math.sqrt(EMBED)
    wqkv = jax.random.uniform(k1, (EMBED, 3 * EMBED), jnp.float32, -bound, bound)
    bqkv = jax.random.uniform(k2, (3 * EMBED,), jnp.float32, -bound, bound)
    wproj = jax.random.uniform(k3, (EMBED, EMBED), jnp.float32, -bound, bound)
    bproj = jax.random.uniform(k4, (EMBED,), jnp.float32, -bound, bound)

    # Variant with attention maps (matches the module, which keeps attention_maps).
    out, attn = multi_head_attention(x, wqkv, bqkv, wproj, bproj)
    out = jax.block_until_ready(out)
    attn = jax.block_until_ready(attn)

    # Variant without the attention-maps output (no narrow store / extra writeback).
    out_only = jax.block_until_ready(
        multi_head_attention(x, wqkv, bqkv, wproj, bproj, return_attention=False))

    ref_out, ref_attn = reference_mha(x, wqkv, bqkv, wproj, bproj)

    assert jnp.allclose(out, ref_out, atol=3e-5, rtol=3e-5)
    assert jnp.allclose(attn, ref_attn, atol=3e-5, rtol=3e-5)
    assert jnp.allclose(out_only, ref_out, atol=3e-5, rtol=3e-5)
    assert bool(jnp.all(jnp.isfinite(out)))

    print("KERNEL_OK")
</pallas_src>

<mosaic_0001>
module attributes {stable_mosaic.version = 11 : i64} {
  func.func @_mha_kernel_with_attn(%arg0: memref<2x8x32xf32, #tpu.memory_space<vmem>>, %arg1: memref<8x32x8xf32, #tpu.memory_space<vmem>>, %arg2: memref<8x32x8xf32, #tpu.memory_space<vmem>>, %arg3: memref<8x32x8xf32, #tpu.memory_space<vmem>>, %arg4: memref<8x1x8xf32, #tpu.memory_space<vmem>>, %arg5: memref<8x1x8xf32, #tpu.memory_space<vmem>>, %arg6: memref<8x1x8xf32, #tpu.memory_space<vmem>>, %arg7: memref<8x8x32xf32, #tpu.memory_space<vmem>>, %arg8: memref<1x1x32xf32, #tpu.memory_space<vmem>>, %arg9: memref<2x8x32xf32, #tpu.memory_space<vmem>>, %arg10: memref<8x8x8xf32, #tpu.memory_space<vmem>>) attributes {dimension_semantics = [], scalar_prefetch = 0 : i64, scratch_operands = 0 : i64, tpu.core_type = #tpu.core_type<tc>} {
    %c0 = arith.constant 0 : index
    %c0_0 = arith.constant 0 : index
    %c0_1 = arith.constant 0 : index
    %0 = vector.load %arg0[%c0, %c0_0, %c0_1] : memref<2x8x32xf32, #tpu.memory_space<vmem>>, vector<2x8x32xf32>
    %c0_2 = arith.constant 0 : index
    %c0_3 = arith.constant 0 : index
    %c0_4 = arith.constant 0 : index
    %1 = vector.load %arg1[%c0_2, %c0_3, %c0_4] : memref<8x32x8xf32, #tpu.memory_space<vmem>>, vector<8x32x8xf32>
    %c0_5 = arith.constant 0 : index
    %c0_6 = arith.constant 0 : index
    %c0_7 = arith.constant 0 : index
    %2 = vector.load %arg2[%c0_5, %c0_6, %c0_7] : memref<8x32x8xf32, #tpu.memory_space<vmem>>, vector<8x32x8xf32>
    %c0_8 = arith.constant 0 : index
    %c0_9 = arith.constant 0 : index
    %c0_10 = arith.constant 0 : index
    %3 = vector.load %arg3[%c0_8, %c0_9, %c0_10] : memref<8x32x8xf32, #tpu.memory_space<vmem>>, vector<8x32x8xf32>
    %c0_11 = arith.constant 0 : index
    %c0_12 = arith.constant 0 : index
    %c0_13 = arith.constant 0 : index
    %4 = vector.load %arg4[%c0_11, %c0_12, %c0_13] : memref<8x1x8xf32, #tpu.memory_space<vmem>>, vector<8x1x8xf32>
    %c0_14 = arith.constant 0 : index
    %c0_15 = arith.constant 0 : index
    %c0_16 = arith.constant 0 : index
    %5 = vector.load %arg5[%c0_14, %c0_15, %c0_16] : memref<8x1x8xf32, #tpu.memory_space<vmem>>, vector<8x1x8xf32>
    %c0_17 = arith.constant 0 : index
    %c0_18 = arith.constant 0 : index
    %c0_19 = arith.constant 0 : index
    %6 = vector.load %arg6[%c0_17, %c0_18, %c0_19] : memref<8x1x8xf32, #tpu.memory_space<vmem>>, vector<8x1x8xf32>
    %c0_20 = arith.constant 0 : index
    %c0_21 = arith.constant 0 : index
    %c0_22 = arith.constant 0 : index
    %7 = vector.load %arg7[%c0_20, %c0_21, %c0_22] : memref<8x8x32xf32, #tpu.memory_space<vmem>>, vector<8x8x32xf32>
    %c0_23 = arith.constant 0 : index
    %c0_24 = arith.constant 0 : index
    %c0_25 = arith.constant 0 : index
    %8 = vector.load %arg8[%c0_23, %c0_24, %c0_25] : memref<1x1x32xf32, #tpu.memory_space<vmem>>, vector<1x1x32xf32>
    %9 = vector.shape_cast %0 : vector<2x8x32xf32> to vector<1x2x8x32xf32>
    %10 = vector.shape_cast %9 : vector<1x2x8x32xf32> to vector<1x2x8x32xf32>
    %11 = vector.broadcast %10 : vector<1x2x8x32xf32> to vector<4x2x8x32xf32>
    %12 = vector.shape_cast %11 : vector<4x2x8x32xf32> to vector<8x8x32xf32>
    "tpu.trace_start"() <{level = 10 : i32, message = "nse,ned->nsd"}> : () -> ()
    %cst = arith.constant dense<0.000000e+00> : vector<8x8x8xf32>
    %13 = tpu.matmul %12, %1, %cst {dimension_numbers = #tpu.dot_dimension_numbers<[2], [1], [1], [2], [0, 0, 0, 1, 1, 2], [0], [0]>, precision = #tpu.contract_precision<fp32>} : vector<8x8x32xf32>, vector<8x32x8xf32>, vector<8x8x8xf32> -> vector<8x8x8xf32>
    "tpu.trace_stop"() : () -> ()
    %14 = vector.broadcast %4 : vector<8x1x8xf32> to vector<8x8x8xf32>
    %15 = arith.addf %13, %14 : vector<8x8x8xf32>
    "tpu.trace_start"() <{level = 10 : i32, message = "nse,ned->nsd"}> : () -> ()
    %cst_26 = arith.constant dense<0.000000e+00> : vector<8x8x8xf32>
    %16 = tpu.matmul %12, %2, %cst_26 {dimension_numbers = #tpu.dot_dimension_numbers<[2], [1], [1], [2], [0, 0, 0, 1, 1, 2], [0], [0]>, precision = #tpu.contract_precision<fp32>} : vector<8x8x32xf32>, vector<8x32x8xf32>, vector<8x8x8xf32> -> vector<8x8x8xf32>
    "tpu.trace_stop"() : () -> ()
    %17 = vector.broadcast %5 : vector<8x1x8xf32> to vector<8x8x8xf32>
    %18 = arith.addf %16, %17 : vector<8x8x8xf32>
    "tpu.trace_start"() <{level = 10 : i32, message = "nse,ned->nsd"}> : () -> ()
    %cst_27 = arith.constant dense<0.000000e+00> : vector<8x8x8xf32>
    %19 = tpu.matmul %12, %3, %cst_27 {dimension_numbers = #tpu.dot_dimension_numbers<[2], [1], [1], [2], [0, 0, 0, 1, 1, 2], [0], [0]>, precision = #tpu.contract_precision<fp32>} : vector<8x8x32xf32>, vector<8x32x8xf32>, vector<8x8x8xf32> -> vector<8x8x8xf32>
    "tpu.trace_stop"() : () -> ()
    %20 = vector.broadcast %6 : vector<8x1x8xf32> to vector<8x8x8xf32>
    %21 = arith.addf %19, %20 : vector<8x8x8xf32>
    "tpu.trace_start"() <{level = 10 : i32, message = "nqd,nkd->nqk"}> : () -> ()
    %cst_28 = arith.constant dense<0.000000e+00> : vector<8x8x8xf32>
    %22 = tpu.matmul %15, %18, %cst_28 {dimension_numbers = #tpu.dot_dimension_numbers<[2], [2], [1], [1], [0, 0, 0, 1, 1, 1], [0], [0]>, precision = #tpu.contract_precision<fp32>} : vector<8x8x8xf32>, vector<8x8x8xf32>, vector<8x8x8xf32> -> vector<8x8x8xf32>
    "tpu.trace_stop"() : () -> ()
    %cst_29 = arith.constant dense<0xFF800000> : vector<8x8xf32>
    %23 = vector.multi_reduction <maximumf>, %22, %cst_29 [2] : vector<8x8x8xf32> to vector<8x8xf32>
    %24 = vector.shape_cast %23 : vector<8x8xf32> to vector<8x8x1xf32>
    %25 = vector.broadcast %24 : vector<8x8x1xf32> to vector<8x8x8xf32>
    %26 = arith.subf %22, %25 : vector<8x8x8xf32>
    %27 = math.exp %26 : vector<8x8x8xf32>
    %cst_30 = arith.constant dense<0.000000e+00> : vector<8x8xf32>
    %28 = vector.multi_reduction <add>, %27, %cst_30 [2] : vector<8x8x8xf32> to vector<8x8xf32>
    %29 = vector.shape_cast %28 : vector<8x8xf32> to vector<8x8x1xf32>
    %30 = vector.broadcast %29 : vector<8x8x1xf32> to vector<8x8x8xf32>
    %31 = arith.divf %27, %30 : vector<8x8x8xf32>
    "tpu.trace_start"() <{level = 10 : i32, message = "nqk,nkd->nqd"}> : () -> ()
    %cst_31 = arith.constant dense<0.000000e+00> : vector<8x8x8xf32>
    %32 = tpu.matmul %31, %21, %cst_31 {dimension_numbers = #tpu.dot_dimension_numbers<[2], [1], [1], [2], [0, 0, 0, 1, 1, 2], [0], [0]>, precision = #tpu.contract_precision<fp32>} : vector<8x8x8xf32>, vector<8x8x8xf32>, vector<8x8x8xf32> -> vector<8x8x8xf32>
    "tpu.trace_stop"() : () -> ()
    "tpu.trace_start"() <{level = 10 : i32, message = "nsd,nde->nse"}> : () -> ()
    %cst_32 = arith.constant dense<0.000000e+00> : vector<8x8x32xf32>
    %33 = tpu.matmul %32, %7, %cst_32 {dimension_numbers = #tpu.dot_dimension_numbers<[2], [1], [1], [2], [0, 0, 0, 1, 1, 2], [0], [0]>, precision = #tpu.contract_precision<fp32>} : vector<8x8x8xf32>, vector<8x8x32xf32>, vector<8x8x32xf32> -> vector<8x8x32xf32>
    "tpu.trace_stop"() : () -> ()
    %34 = vector.shape_cast %33 : vector<8x8x32xf32> to vector<4x2x8x32xf32>
    %cst_33 = arith.constant dense<0.000000e+00> : vector<2x8x32xf32>
    %35 = vector.multi_reduction <add>, %34, %cst_33 [0] : vector<4x2x8x32xf32> to vector<2x8x32xf32>
    %36 = vector.broadcast %8 : vector<1x1x32xf32> to vector<2x8x32xf32>
    %37 = arith.addf %35, %36 : vector<2x8x32xf32>
    %c0_34 = arith.constant 0 : index
    %c0_35 = arith.constant 0 : index
    %c0_36 = arith.constant 0 : index
    %38 = vector.load %arg9[%c0_34, %c0_35, %c0_36] : memref<2x8x32xf32, #tpu.memory_space<vmem>>, vector<2x8x32xf32>
    tpu.vector_store %arg9[%c0_34, %c0_35, %c0_36], %37 {strides = array<i32>} : memref<2x8x32xf32, #tpu.memory_space<vmem>>, vector<2x8x32xf32>,
    %c0_37 = arith.constant 0 : index
    %c0_38 = arith.constant 0 : index
    %c0_39 = arith.constant 0 : index
    %39 = vector.load %arg10[%c0_37, %c0_38, %c0_39] : memref<8x8x8xf32, #tpu.memory_space<vmem>>, vector<8x8x8xf32>
    tpu.vector_store %arg10[%c0_37, %c0_38, %c0_39], %31 {strides = array<i32>} : memref<8x8x8xf32, #tpu.memory_space<vmem>>, vector<8x8x8xf32>,
    return
  }
}

</mosaic_0001>

<llo_original>
// kernel: tpu_custom_call.1
$region0: #{tpu_custom_call.1}
  #allocation0 [shape = 'u32[]', space=smem, size = 0x4, offset = 0x4, fixed_abs, tag = 'smem constant byte address 0x4 - core index']
  #allocation1 [shape = 'u32[72,128]{1,0:T(1,128)}', space=vmem, size = 0x9000, scoped, tag = 'internal scratch']
  %s0 = inlined_call_operand.vmem [shape: f32[2,8,32], index: 0, kind: input, shape index: {}]
  %s1 = inlined_call_operand.vmem [shape: f32[8,32,8], index: 1, kind: input, shape index: {}]
  %s2 = inlined_call_operand.vmem [shape: f32[8,32,8], index: 2, kind: input, shape index: {}]
  %s3 = inlined_call_operand.vmem [shape: f32[8,32,8], index: 3, kind: input, shape index: {}]
  %s4 = inlined_call_operand.vmem [shape: f32[8,1,8], index: 4, kind: input, shape index: {}]
  %s5 = inlined_call_operand.vmem [shape: f32[8,1,8], index: 5, kind: input, shape index: {}]
  %s6 = inlined_call_operand.vmem [shape: f32[8,1,8], index: 6, kind: input, shape index: {}]
  %s7 = inlined_call_operand.vmem [shape: f32[8,8,32], index: 7, kind: input, shape index: {}]
  %s8 = inlined_call_operand.vmem [shape: f32[1,1,32], index: 8, kind: input, shape index: {}]
  %s9 = inlined_call_operand.hbm [shape: f32[2,8,32], index: 9, kind: output, shape index: {0}]
  %s10 = inlined_call_operand.hbm [shape: f32[8,8,8], index: 10, kind: output, shape index: {1}]
  %11 = xla_tuple %s9, %s10
  %s12 = sld [smem:[#allocation0]]
  $region54: #{tpu_custom_call.1} parent=0
    _
  %s14 = ssub.s32 1, %s12
  %s15 = scalar_select 0, %s14, %s12
  $region1: #{tpu_custom_call.1} parent=0
    #allocation2 [shape = 'u8[8192]{0}', space=vmem, size = 0x2000, scoped, tag = 'output window, operand 0, single buffered']
    #allocation3 [shape = 's32[1]{0}', space=sflag, size = 0x4, scoped, tag = 'scoped memory for tpu_custom_call.1']
    #allocation4 [shape = 'u8[32768]{0}', space=vmem, size = 0x8000, scoped, tag = 'output window, operand 1, single buffered']
    #allocation5 [shape = 's32[1]{0}', space=sflag, size = 0x4, scoped, tag = 'scoped memory for tpu_custom_call.1']
    %16 = vsyncpa [#allocation3], 0
    %17 = vsyncpa [#allocation5], 0
    // Predicated region
    $region2: #{tpu_custom_call.1} parent=1 // pred_check
      _
    $region3: #{tpu_custom_call.1} parent=1 // pred_check_branch
      %19 = sbr.rel (0) target = $region5
    $region4: #{tpu_custom_call.1} parent=1 // pred_region
      _
    $region5: #{tpu_custom_call.1} parent=1 // pred_fallthru
      _
    // Predicated region
    $region6: #{tpu_custom_call.1} parent=1 // pred_check
      _
    $region7: #{tpu_custom_call.1} parent=1 // pred_check_branch
      %21 = sbr.rel (0) target = $region9
    $region8: #{tpu_custom_call.1} parent=1 // pred_region
      _
    $region9: #{tpu_custom_call.1} parent=1 // pred_fallthru
      _
    // Predicated region
    $region10: #{tpu_custom_call.1} parent=1 // pred_check
      _
    $region11: #{tpu_custom_call.1} parent=1 // pred_check_branch
      %23 = sbr.rel (0) target = $region13
    $region12: #{tpu_custom_call.1} parent=1 // pred_region
      _
    $region13: #{tpu_custom_call.1} parent=1 // pred_fallthru
      _
    // Predicated region
    $region14: #{tpu_custom_call.1} parent=1 // pred_check
      _
    $region15: #{tpu_custom_call.1} parent=1 // pred_check_branch
      %25 = sbr.rel (0) target = $region17
    $region16: #{tpu_custom_call.1} parent=1 // pred_region
      _
    $region17: #{tpu_custom_call.1} parent=1 // pred_fallthru
      _
    // Predicated region
    $region18: #{tpu_custom_call.1} parent=1 // pred_check
      _
    $region19: #{tpu_custom_call.1} parent=1 // pred_check_branch
      %27 = sbr.rel (0) target = $region21
    $region20: #{tpu_custom_call.1} parent=1 // pred_region
      _
    $region21: #{tpu_custom_call.1} parent=1 // pred_fallthru
      _
    // Predicated region
    $region22: #{tpu_custom_call.1} parent=1 // pred_check
      _
    $region23: #{tpu_custom_call.1} parent=1 // pred_check_branch
      %29 = sbr.rel (0) target = $region25
    $region24: #{tpu_custom_call.1} parent=1 // pred_region
      _
    $region25: #{tpu_custom_call.1} parent=1 // pred_fallthru
      _
    // Predicated region
    $region26: #{tpu_custom_call.1} parent=1 // pred_check
      _
    $region27: #{tpu_custom_call.1} parent=1 // pred_check_branch
      %31 = sbr.rel (0) target = $region29
    $region28: #{tpu_custom_call.1} parent=1 // pred_region
      _
    $region29: #{tpu_custom_call.1} parent=1 // pred_fallthru
      _
    // Predicated region
    $region30: #{tpu_custom_call.1} parent=1 // pred_check
      _
    $region31: #{tpu_custom_call.1} parent=1 // pred_check_branch
      %33 = sbr.rel (0) target = $region33
    $region32: #{tpu_custom_call.1} parent=1 // pred_region
      _
    $region33: #{tpu_custom_call.1} parent=1 // pred_fallthru
      _
    // Predicated region
    $region34: #{tpu_custom_call.1} parent=1 // pred_check
      _
    $region35: #{tpu_custom_call.1} parent=1 // pred_check_branch
      %35 = sbr.rel (0) target = $region37
    $region36: #{tpu_custom_call.1} parent=1 // pred_region
      _
    $region37: #{tpu_custom_call.1} parent=1 // pred_fallthru
      _
    %v36 = vld [vmem:[%s0] sm:$0xff]
    %v37 = vld [vmem:[%s0 + $0x8] sm:$0xff]
    %v38 = vld [vmem:[%s1] sm:$0xff]
    %v39 = vld [vmem:[%s1 + $0x8] sm:$0xff]
    %v40 = vld [vmem:[%s1 + $0x10] sm:$0xff]
    %v41 = vld [vmem:[%s1 + $0x18] sm:$0xff]
    %v42 = vld [vmem:[%s1 + $0x20] sm:$0xff]
    %v43 = vld [vmem:[%s1 + $0x28] sm:$0xff]
    %v44 = vld [vmem:[%s1 + $0x30] sm:$0xff]
    %v45 = vld [vmem:[%s1 + $0x38] sm:$0xff]
    %v46 = vld [vmem:[%s1 + $0x40] sm:$0xff]
    %v47 = vld [vmem:[%s1 + $0x48] sm:$0xff]
    %v48 = vld [vmem:[%s1 + $0x50] sm:$0xff]
    %v49 = vld [vmem:[%s1 + $0x58] sm:$0xff]
    %v50 = vld [vmem:[%s1 + $0x60] sm:$0xff]
    %v51 = vld [vmem:[%s1 + $0x68] sm:$0xff]
    %v52 = vld [vmem:[%s1 + $0x70] sm:$0xff]
    %v53 = vld [vmem:[%s1 + $0x78] sm:$0xff]
    %v54 = vld [vmem:[%s1 + $0x80] sm:$0xff]
    %v55 = vld [vmem:[%s1 + $0x88] sm:$0xff]
    %v56 = vld [vmem:[%s1 + $0x90] sm:$0xff]
    %v57 = vld [vmem:[%s1 + $0x98] sm:$0xff]
    %v58 = vld [vmem:[%s1 + $0xa0] sm:$0xff]
    %v59 = vld [vmem:[%s1 + $0xa8] sm:$0xff]
    %v60 = vld [vmem:[%s1 + $0xb0] sm:$0xff]
    %v61 = vld [vmem:[%s1 + $0xb8] sm:$0xff]
    %v62 = vld [vmem:[%s1 + $0xc0] sm:$0xff]
    %v63 = vld [vmem:[%s1 + $0xc8] sm:$0xff]
    %v64 = vld [vmem:[%s1 + $0xd0] sm:$0xff]
    %v65 = vld [vmem:[%s1 + $0xd8] sm:$0xff]
    %v66 = vld [vmem:[%s1 + $0xe0] sm:$0xff]
    %v67 = vld [vmem:[%s1 + $0xe8] sm:$0xff]
    %v68 = vld [vmem:[%s1 + $0xf0] sm:$0xff]
    %v69 = vld [vmem:[%s1 + $0xf8] sm:$0xff]
    %v70 = vld [vmem:[%s2] sm:$0xff]
    %v71 = vld [vmem:[%s2 + $0x8] sm:$0xff]
    %v72 = vld [vmem:[%s2 + $0x10] sm:$0xff]
    %v73 = vld [vmem:[%s2 + $0x18] sm:$0xff]
    %v74 = vld [vmem:[%s2 + $0x20] sm:$0xff]
    %v75 = vld [vmem:[%s2 + $0x28] sm:$0xff]
    %v76 = vld [vmem:[%s2 + $0x30] sm:$0xff]
    %v77 = vld [vmem:[%s2 + $0x38] sm:$0xff]
    %v78 = vld [vmem:[%s2 + $0x40] sm:$0xff]
    %v79 = vld [vmem:[%s2 + $0x48] sm:$0xff]
    %v80 = vld [vmem:[%s2 + $0x50] sm:$0xff]
    %v81 = vld [vmem:[%s2 + $0x58] sm:$0xff]
    %v82 = vld [vmem:[%s2 + $0x60] sm:$0xff]
    %v83 = vld [vmem:[%s2 + $0x68] sm:$0xff]
    %v84 = vld [vmem:[%s2 + $0x70] sm:$0xff]
    %v85 = vld [vmem:[%s2 + $0x78] sm:$0xff]
    %v86 = vld [vmem:[%s2 + $0x80] sm:$0xff]
    %v87 = vld [vmem:[%s2 + $0x88] sm:$0xff]
    %v88 = vld [vmem:[%s2 + $0x90] sm:$0xff]
    %v89 = vld [vmem:[%s2 + $0x98] sm:$0xff]
    %v90 = vld [vmem:[%s2 + $0xa0] sm:$0xff]
    %v91 = vld [vmem:[%s2 + $0xa8] sm:$0xff]
    %v92 = vld [vmem:[%s2 + $0xb0] sm:$0xff]
    %v93 = vld [vmem:[%s2 + $0xb8] sm:$0xff]
    %v94 = vld [vmem:[%s2 + $0xc0] sm:$0xff]
    %v95 = vld [vmem:[%s2 + $0xc8] sm:$0xff]
    %v96 = vld [vmem:[%s2 + $0xd0] sm:$0xff]
    %v97 = vld [vmem:[%s2 + $0xd8] sm:$0xff]
    %v98 = vld [vmem:[%s2 + $0xe0] sm:$0xff]
    %v99 = vld [vmem:[%s2 + $0xe8] sm:$0xff]
    %v100 = vld [vmem:[%s2 + $0xf0] sm:$0xff]
    %v101 = vld [vmem:[%s2 + $0xf8] sm:$0xff]
    %v102 = vld [vmem:[%s3] sm:$0xff]
    %v103 = vld [vmem:[%s3 + $0x8] sm:$0xff]
    %v104 = vld [vmem:[%s3 + $0x10] sm:$0xff]
    %v105 = vld [vmem:[%s3 + $0x18] sm:$0xff]
    %v106 = vld [vmem:[%s3 + $0x20] sm:$0xff]
    %v107 = vld [vmem:[%s3 + $0x28] sm:$0xff]
    %v108 = vld [vmem:[%s3 + $0x30] sm:$0xff]
    %v109 = vld [vmem:[%s3 + $0x38] sm:$0xff]
    %v110 = vld [vmem:[%s3 + $0x40] sm:$0xff]
    %v111 = vld [vmem:[%s3 + $0x48] sm:$0xff]
    %v112 = vld [vmem:[%s3 + $0x50] sm:$0xff]
    %v113 = vld [vmem:[%s3 + $0x58] sm:$0xff]
    %v114 = vld [vmem:[%s3 + $0x60] sm:$0xff]
    %v115 = vld [vmem:[%s3 + $0x68] sm:$0xff]
    %v116 = vld [vmem:[%s3 + $0x70] sm:$0xff]
    %v117 = vld [vmem:[%s3 + $0x78] sm:$0xff]
    %v118 = vld [vmem:[%s3 + $0x80] sm:$0xff]
    %v119 = vld [vmem:[%s3 + $0x88] sm:$0xff]
    %v120 = vld [vmem:[%s3 + $0x90] sm:$0xff]
    %v121 = vld [vmem:[%s3 + $0x98] sm:$0xff]
    %v122 = vld [vmem:[%s3 + $0xa0] sm:$0xff]
    %v123 = vld [vmem:[%s3 + $0xa8] sm:$0xff]
    %v124 = vld [vmem:[%s3 + $0xb0] sm:$0xff]
    %v125 = vld [vmem:[%s3 + $0xb8] sm:$0xff]
    %v126 = vld [vmem:[%s3 + $0xc0] sm:$0xff]
    %v127 = vld [vmem:[%s3 + $0xc8] sm:$0xff]
    %v128 = vld [vmem:[%s3 + $0xd0] sm:$0xff]
    %v129 = vld [vmem:[%s3 + $0xd8] sm:$0xff]
    %v130 = vld [vmem:[%s3 + $0xe0] sm:$0xff]
    %v131 = vld [vmem:[%s3 + $0xe8] sm:$0xff]
    %v132 = vld [vmem:[%s3 + $0xf0] sm:$0xff]
    %v133 = vld [vmem:[%s3 + $0xf8] sm:$0xff]
    %v134 = vld [vmem:[%s4] sm:$0x1]
    %v135 = vld [vmem:[%s4 + $0x1] sm:$0x1]
    %v136 = vld [vmem:[%s4 + $0x2] sm:$0x1]
    %v137 = vld [vmem:[%s4 + $0x3] sm:$0x1]
    %v138 = vld [vmem:[%s4 + $0x4] sm:$0x1]
    %v139 = vld [vmem:[%s4 + $0x5] sm:$0x1]
    %v140 = vld [vmem:[%s4 + $0x6] sm:$0x1]
    %v141 = vld [vmem:[%s4 + $0x7] sm:$0x1]
    %v142 = vld [vmem:[%s5] sm:$0x1]
    %v143 = vld [vmem:[%s5 + $0x1] sm:$0x1]
    %v144 = vld [vmem:[%s5 + $0x2] sm:$0x1]
    %v145 = vld [vmem:[%s5 + $0x3] sm:$0x1]
    %v146 = vld [vmem:[%s5 + $0x4] sm:$0x1]
    %v147 = vld [vmem:[%s5 + $0x5] sm:$0x1]
    %v148 = vld [vmem:[%s5 + $0x6] sm:$0x1]
    %v149 = vld [vmem:[%s5 + $0x7] sm:$0x1]
    %v150 = vld [vmem:[%s6] sm:$0x1]
    %v151 = vld [vmem:[%s6 + $0x1] sm:$0x1]
    %v152 = vld [vmem:[%s6 + $0x2] sm:$0x1]
    %v153 = vld [vmem:[%s6 + $0x3] sm:$0x1]
    %v154 = vld [vmem:[%s6 + $0x4] sm:$0x1]
    %v155 = vld [vmem:[%s6 + $0x5] sm:$0x1]
    %v156 = vld [vmem:[%s6 + $0x6] sm:$0x1]
    %v157 = vld [vmem:[%s6 + $0x7] sm:$0x1]
    %v158 = vld [vmem:[%s7] sm:$0xff]
    %v159 = vld [vmem:[%s7 + $0x8] sm:$0xff]
    %v160 = vld [vmem:[%s7 + $0x10] sm:$0xff]
    %v161 = vld [vmem:[%s7 + $0x18] sm:$0xff]
    %v162 = vld [vmem:[%s7 + $0x20] sm:$0xff]
    %v163 = vld [vmem:[%s7 + $0x28] sm:$0xff]
    %v164 = vld [vmem:[%s7 + $0x30] sm:$0xff]
    %v165 = vld [vmem:[%s7 + $0x38] sm:$0xff]
    %v166 = vld [vmem:[%s8] sm:$0x1]
    %v175 = vperm.slane %v134, 0
    %v176 = vperm.slane %v135, 0
    %v177 = vperm.slane %v136, 0
    %v178 = vperm.slane %v137, 0
    %v179 = vperm.slane %v138, 0
    %v180 = vperm.slane %v139, 0
    %v181 = vperm.slane %v140, 0
    %v182 = vperm.slane %v141, 0
    %vm191 = vcmask 261120
    %v193 = vsel %vm191, %v36, 0
    %195 = vmatpush.msra.mxu0 0.0
    %196 = vmatpush.msra.mxu0 0.0
    %197 = vmatpush.msra.mxu0 0.0
    %198 = vmatpush.msra.mxu0 0.0
    %199 = vmatpush.msra.mxu0 0.0
    %200 = vmatpush.msra.mxu0 0.0
    %201 = vmatpush.msra.mxu0 0.0
    %202 = vmatpush.msra.mxu0 0.0
    %203 = vmatpush.msra.mxu0 0.0
    %204 = vmatpush.msra.mxu0 0.0
    %205 = vmatpush.msra.mxu0 0.0
    %206 = vmatpush.msra.mxu0 0.0
    %v207 = vand.u32 %v41, 4294901760
    %208 = vmatpush.msra.mxu0 %v207
    %v209 = vand.u32 %v40, 4294901760
    %210 = vmatpush.msra.mxu0 %v209
    %v211 = vand.u32 %v39, 4294901760
    %212 = vmatpush.msra.mxu0 %v211
    %v213 = vand.u32 %v38, 4294901760
    %214 = vmatpush.msra.mxu0 %v213
    %v215 = vand.u32 %v193, 4294901760
    %v216 = vsub.f32 %v193, %v215
    %v217 = vand.u32 %v216, 4294901760
    %v218 = vsub.f32 %v216, %v217
    %v219 = vand.u32 %v218, 4294901760
    %220 = vmatmul.f32.gmra.mxu0 %v219
    %v221 = vpop.f32.mrf.mxu0
    %v222 = vadd.f32 %v175, %v221
    %223 = vdwg.mxu0
    %224 = vmatpush.msra.mxu0 0.0
    %225 = vmatpush.msra.mxu0 0.0
    %226 = vmatpush.msra.mxu0 0.0
    %227 = vmatpush.msra.mxu0 0.0
    %228 = vmatpush.msra.mxu0 0.0
    %229 = vmatpush.msra.mxu0 0.0
    %230 = vmatpush.msra.mxu0 0.0
    %231 = vmatpush.msra.mxu0 0.0
    %232 = vmatpush.msra.mxu0 0.0
    %233 = vmatpush.msra.mxu0 0.0
    %234 = vmatpush.msra.mxu0 0.0
    %235 = vmatpush.msra.mxu0 0.0
    %v236 = vand.u32 %v41, 4294901760
    %v237 = vsub.f32 %v41, %v236
    %v238 = vand.u32 %v237, 4294901760
    %v239 = vsub.f32 %v237, %v238
    %v240 = vand.u32 %v239, 4294901760
    %241 = vmatpush.msra.mxu0 %v240
    %v242 = vand.u32 %v40, 4294901760
    %v243 = vsub.f32 %v40, %v242
    %v244 = vand.u32 %v243, 4294901760
    %v245 = vsub.f32 %v243, %v244
    %v246 = vand.u32 %v245, 4294901760
    %247 = vmatpush.msra.mxu0 %v246
    %v248 = vand.u32 %v39, 4294901760
    %v249 = vsub.f32 %v39, %v248
    %v250 = vand.u32 %v249, 4294901760
    %v251 = vsub.f32 %v249, %v250
    %v252 = vand.u32 %v251, 4294901760
    %253 = vmatpush.msra.mxu0 %v252
    %v254 = vand.u32 %v38, 4294901760
    %v255 = vsub.f32 %v38, %v254
    %v256 = vand.u32 %v255, 4294901760
    %v257 = vsub.f32 %v255, %v256
    %v258 = vand.u32 %v257, 4294901760
    %259 = vmatpush.msra.mxu0 %v258
    %v260 = vand.u32 %v193, 4294901760
    %261 = vmatmul.f32.gmra.mxu0 %v260
    %v262 = vpop.f32.mrf.mxu0
    %v263 = vadd.f32 %v222, %v262
    %264 = vdwg.mxu0
    %265 = vmatpush.msra.mxu0 0.0
    %266 = vmatpush.msra.mxu0 0.0
    %267 = vmatpush.msra.mxu0 0.0
    %268 = vmatpush.msra.mxu0 0.0
    %269 = vmatpush.msra.mxu0 0.0
    %270 = vmatpush.msra.mxu0 0.0
    %271 = vmatpush.msra.mxu0 0.0
    %272 = vmatpush.msra.mxu0 0.0
    %273 = vmatpush.msra.mxu0 0.0
    %274 = vmatpush.msra.mxu0 0.0
    %275 = vmatpush.msra.mxu0 0.0
    %276 = vmatpush.msra.mxu0 0.0
    %v277 = vand.u32 %v41, 4294901760
    %v278 = vsub.f32 %v41, %v277
    %279 = vmatpush.msra.mxu0 %v278
    %v280 = vand.u32 %v40, 4294901760
    %v281 = vsub.f32 %v40, %v280
    %282 = vmatpush.msra.mxu0 %v281
    %v283 = vand.u32 %v39, 4294901760
    %v284 = vsub.f32 %v39, %v283
    %285 = vmatpush.msra.mxu0 %v284
    %v286 = vand.u32 %v38, 4294901760
    %v287 = vsub.f32 %v38, %v286
    %288 = vmatpush.msra.mxu0 %v287
    %v289 = vand.u32 %v193, 4294901760
    %v290 = vsub.f32 %v193, %v289
    %291 = vmatmul.f32.gmra.mxu0 %v290
    %v292 = vpop.f32.mrf.mxu0
    %v293 = vadd.f32 %v263, %v292
    %294 = vdwg.mxu0
    %295 = vmatpush.msra.mxu0 0.0
    %296 = vmatpush.msra.mxu0 0.0
    %297 = vmatpush.msra.mxu0 0.0
    %298 = vmatpush.msra.mxu0 0.0
    %299 = vmatpush.msra.mxu0 0.0
    %300 = vmatpush.msra.mxu0 0.0
    %301 = vmatpush.msra.mxu0 0.0
    %302 = vmatpush.msra.mxu0 0.0
    %303 = vmatpush.msra.mxu0 0.0
    %304 = vmatpush.msra.mxu0 0.0
    %305 = vmatpush.msra.mxu0 0.0
    %306 = vmatpush.msra.mxu0 0.0
    %v307 = vand.u32 %v41, 4294901760
    %308 = vmatpush.msra.mxu0 %v307
    %v309 = vand.u32 %v40, 4294901760
    %310 = vmatpush.msra.mxu0 %v309
    %v311 = vand.u32 %v39, 4294901760
    %312 = vmatpush.msra.mxu0 %v311
    %v313 = vand.u32 %v38, 4294901760
    %314 = vmatpush.msra.mxu0 %v313
    %v315 = vand.u32 %v193, 4294901760
    %v316 = vsub.f32 %v193, %v315
    %v317 = vand.u32 %v316, 4294901760
    %318 = vmatmul.f32.gmra.mxu0 %v317
    %v319 = vpop.f32.mrf.mxu0
    %v320 = vadd.f32 %v293, %v319
    %321 = vdwg.mxu0
    %322 = vmatpush.msra.mxu0 0.0
    %323 = vmatpush.msra.mxu0 0.0
    %324 = vmatpush.msra.mxu0 0.0
    %325 = vmatpush.msra.mxu0 0.0
    %326 = vmatpush.msra.mxu0 0.0
    %327 = vmatpush.msra.mxu0 0.0
    %328 = vmatpush.msra.mxu0 0.0
    %329 = vmatpush.msra.mxu0 0.0
    %330 = vmatpush.msra.mxu0 0.0
    %331 = vmatpush.msra.mxu0 0.0
    %332 = vmatpush.msra.mxu0 0.0
    %333 = vmatpush.msra.mxu0 0.0
    %v334 = vand.u32 %v41, 4294901760
    %v335 = vsub.f32 %v41, %v334
    %v336 = vand.u32 %v335, 4294901760
    %337 = vmatpush.msra.mxu0 %v336
    %v338 = vand.u32 %v40, 4294901760
    %v339 = vsub.f32 %v40, %v338
    %v340 = vand.u32 %v339, 4294901760
    %341 = vmatpush.msra.mxu0 %v340
    %v342 = vand.u32 %v39, 4294901760
    %v343 = vsub.f32 %v39, %v342
    %v344 = vand.u32 %v343, 4294901760
    %345 = vmatpush.msra.mxu0 %v344
    %v346 = vand.u32 %v38, 4294901760
    %v347 = vsub.f32 %v38, %v346
    %v348 = vand.u32 %v347, 4294901760
    %349 = vmatpush.msra.mxu0 %v348
    %v350 = vand.u32 %v193, 4294901760
    %351 = vmatmul.f32.gmra.mxu0 %v350
    %v352 = vpop.f32.mrf.mxu0
    %v353 = vadd.f32 %v320, %v352
    %354 = vdwg.mxu0
    %355 = vmatpush.msra.mxu0 0.0
    %356 = vmatpush.msra.mxu0 0.0
    %357 = vmatpush.msra.mxu0 0.0
    %358 = vmatpush.msra.mxu0 0.0
    %359 = vmatpush.msra.mxu0 0.0
    %360 = vmatpush.msra.mxu0 0.0
    %361 = vmatpush.msra.mxu0 0.0
    %362 = vmatpush.msra.mxu0 0.0
    %363 = vmatpush.msra.mxu0 0.0
    %364 = vmatpush.msra.mxu0 0.0
    %365 = vmatpush.msra.mxu0 0.0
    %366 = vmatpush.msra.mxu0 0.0
    %v367 = vand.u32 %v41, 4294901760
    %368 = vmatpush.msra.mxu0 %v367
    %v369 = vand.u32 %v40, 4294901760
    %370 = vmatpush.msra.mxu0 %v369
    %v371 = vand.u32 %v39, 4294901760
    %372 = vmatpush.msra.mxu0 %v371
    %v373 = vand.u32 %v38, 4294901760
    %374 = vmatpush.msra.mxu0 %v373
    %v375 = vand.u32 %v193, 4294901760
    %376 = vmatmul.f32.gmra.mxu0 %v375
    %v377 = vpop.f32.mrf.mxu0
    %v378 = vadd.f32 %v353, %v377
    %379 = vdwg.mxu0
    %v381 = vsel %vm191, %v37, 0
    %383 = vmatpush.msra.mxu0 0.0
    %384 = vmatpush.msra.mxu0 0.0
    %385 = vmatpush.msra.mxu0 0.0
    %386 = vmatpush.msra.mxu0 0.0
    %387 = vmatpush.msra.mxu0 0.0
    %388 = vmatpush.msra.mxu0 0.0
    %389 = vmatpush.msra.mxu0 0.0
    %390 = vmatpush.msra.mxu0 0.0
    %391 = vmatpush.msra.mxu0 0.0
    %392 = vmatpush.msra.mxu0 0.0
    %393 = vmatpush.msra.mxu0 0.0
    %394 = vmatpush.msra.mxu0 0.0
    %v395 = vand.u32 %v45, 4294901760
    %396 = vmatpush.msra.mxu0 %v395
    %v397 = vand.u32 %v44, 4294901760
    %398 = vmatpush.msra.mxu0 %v397
    %v399 = vand.u32 %v43, 4294901760
    %400 = vmatpush.msra.mxu0 %v399
    %v401 = vand.u32 %v42, 4294901760
    %402 = vmatpush.msra.mxu0 %v401
    %v403 = vand.u32 %v381, 4294901760
    %v404 = vsub.f32 %v381, %v403
    %v405 = vand.u32 %v404, 4294901760
    %v406 = vsub.f32 %v404, %v405
    %v407 = vand.u32 %v406, 4294901760
    %408 = vmatmul.f32.gmra.mxu0 %v407
    %v409 = vpop.f32.mrf.mxu0
    %v410 = vadd.f32 %v176, %v409
    %411 = vdwg.mxu0
    %412 = vmatpush.msra.mxu0 0.0
    %413 = vmatpush.msra.mxu0 0.0
    %414 = vmatpush.msra.mxu0 0.0
    %415 = vmatpush.msra.mxu0 0.0
    %416 = vmatpush.msra.mxu0 0.0
    %417 = vmatpush.msra.mxu0 0.0
    %418 = vmatpush.msra.mxu0 0.0
    %419 = vmatpush.msra.mxu0 0.0
    %420 = vmatpush.msra.mxu0 0.0
    %421 = vmatpush.msra.mxu0 0.0
    %422 = vmatpush.msra.mxu0 0.0
    %423 = vmatpush.msra.mxu0 0.0
    %v424 = vand.u32 %v45, 4294901760
    %v425 = vsub.f32 %v45, %v424
    %v426 = vand.u32 %v425, 4294901760
    %v427 = vsub.f32 %v425, %v426
    %v428 = vand.u32 %v427, 4294901760
    %429 = vmatpush.msra.mxu0 %v428
    %v430 = vand.u32 %v44, 4294901760
    %v431 = vsub.f32 %v44, %v430
    %v432 = vand.u32 %v431, 4294901760
    %v433 = vsub.f32 %v431, %v432
    %v434 = vand.u32 %v433, 4294901760
    %435 = vmatpush.msra.mxu0 %v434
    %v436 = vand.u32 %v43, 4294901760
    %v437 = vsub.f32 %v43, %v436
    %v438 = vand.u32 %v437, 4294901760
    %v439 = vsub.f32 %v437, %v438
    %v440 = vand.u32 %v439, 4294901760
    %441 = vmatpush.msra.mxu0 %v440
    %v442 = vand.u32 %v42, 4294901760
    %v443 = vsub.f32 %v42, %v442
    %v444 = vand.u32 %v443, 4294901760
    %v445 = vsub.f32 %v443, %v444
    %v446 = vand.u32 %v445, 4294901760
    %447 = vmatpush.msra.mxu0 %v446
    %v448 = vand.u32 %v381, 4294901760
    %449 = vmatmul.f32.gmra.mxu0 %v448
    %v450 = vpop.f32.mrf.mxu0
    %v451 = vadd.f32 %v410, %v450
    %452 = vdwg.mxu0
    %453 = vmatpush.msra.mxu0 0.0
    %454 = vmatpush.msra.mxu0 0.0
    %455 = vmatpush.msra.mxu0 0.0
    %456 = vmatpush.msra.mxu0 0.0
    %457 = vmatpush.msra.mxu0 0.0
    %458 = vmatpush.msra.mxu0 0.0
    %459 = vmatpush.msra.mxu0 0.0
    %460 = vmatpush.msra.mxu0 0.0
    %461 = vmatpush.msra.mxu0 0.0
    %462 = vmatpush.msra.mxu0 0.0
    %463 = vmatpush.msra.mxu0 0.0
    %464 = vmatpush.msra.mxu0 0.0
    %v465 = vand.u32 %v45, 4294901760
    %v466 = vsub.f32 %v45, %v465
    %467 = vmatpush.msra.mxu0 %v466
    %v468 = vand.u32 %v44, 4294901760
    %v469 = vsub.f32 %v44, %v468
    %470 = vmatpush.msra.mxu0 %v469
    %v471 = vand.u32 %v43, 4294901760
    %v472 = vsub.f32 %v43, %v471
    %473 = vmatpush.msra.mxu0 %v472
    %v474 = vand.u32 %v42, 4294901760
    %v475 = vsub.f32 %v42, %v474
    %476 = vmatpush.msra.mxu0 %v475
    %v477 = vand.u32 %v381, 4294901760
    %v478 = vsub.f32 %v381, %v477
    %479 = vmatmul.f32.gmra.mxu0 %v478
    %v480 = vpop.f32.mrf.mxu0
    %v481 = vadd.f32 %v451, %v480
    %482 = vdwg.mxu0
    %483 = vmatpush.msra.mxu0 0.0
    %484 = vmatpush.msra.mxu0 0.0
    %485 = vmatpush.msra.mxu0 0.0
    %486 = vmatpush.msra.mxu0 0.0
    %487 = vmatpush.msra.mxu0 0.0
    %488 = vmatpush.msra.mxu0 0.0
    %489 = vmatpush.msra.mxu0 0.0
    %490 = vmatpush.msra.mxu0 0.0
    %491 = vmatpush.msra.mxu0 0.0
    %492 = vmatpush.msra.mxu0 0.0
    %493 = vmatpush.msra.mxu0 0.0
    %494 = vmatpush.msra.mxu0 0.0
    %v495 = vand.u32 %v45, 4294901760
    %496 = vmatpush.msra.mxu0 %v495
    %v497 = vand.u32 %v44, 4294901760
    %498 = vmatpush.msra.mxu0 %v497
    %v499 = vand.u32 %v43, 4294901760
    %500 = vmatpush.msra.mxu0 %v499
    %v501 = vand.u32 %v42, 4294901760
    %502 = vmatpush.msra.mxu0 %v501
    %v503 = vand.u32 %v381, 4294901760
    %v504 = vsub.f32 %v381, %v503
    %v505 = vand.u32 %v504, 4294901760
    %506 = vmatmul.f32.gmra.mxu0 %v505
    %v507 = vpop.f32.mrf.mxu0
    %v508 = vadd.f32 %v481, %v507
    %509 = vdwg.mxu0
    %510 = vmatpush.msra.mxu0 0.0
    %511 = vmatpush.msra.mxu0 0.0
    %512 = vmatpush.msra.mxu0 0.0
    %513 = vmatpush.msra.mxu0 0.0
    %514 = vmatpush.msra.mxu0 0.0
    %515 = vmatpush.msra.mxu0 0.0
    %516 = vmatpush.msra.mxu0 0.0
    %517 = vmatpush.msra.mxu0 0.0
    %518 = vmatpush.msra.mxu0 0.0
    %519 = vmatpush.msra.mxu0 0.0
    %520 = vmatpush.msra.mxu0 0.0
    %521 = vmatpush.msra.mxu0 0.0
    %v522 = vand.u32 %v45, 4294901760
    %v523 = vsub.f32 %v45, %v522
    %v524 = vand.u32 %v523, 4294901760
    %525 = vmatpush.msra.mxu0 %v524
    %v526 = vand.u32 %v44, 4294901760
    %v527 = vsub.f32 %v44, %v526
    %v528 = vand.u32 %v527, 4294901760
    %529 = vmatpush.msra.mxu0 %v528
    %v530 = vand.u32 %v43, 4294901760
    %v531 = vsub.f32 %v43, %v530
    %v532 = vand.u32 %v531, 4294901760
    %533 = vmatpush.msra.mxu0 %v532
    %v534 = vand.u32 %v42, 4294901760
    %v535 = vsub.f32 %v42, %v534
    %v536 = vand.u32 %v535, 4294901760
    %537 = vmatpush.msra.mxu0 %v536
    %v538 = vand.u32 %v381, 4294901760
    %539 = vmatmul.f32.gmra.mxu0 %v538
    %v540 = vpop.f32.mrf.mxu0
    %v541 = vadd.f32 %v508, %v540
    %542 = vdwg.mxu0
    %543 = vmatpush.msra.mxu0 0.0
    %544 = vmatpush.msra.mxu0 0.0
    %545 = vmatpush.msra.mxu0 0.0
    %546 = vmatpush.msra.mxu0 0.0
    %547 = vmatpush.msra.mxu0 0.0
    %548 = vmatpush.msra.mxu0 0.0
    %549 = vmatpush.msra.mxu0 0.0
    %550 = vmatpush.msra.mxu0 0.0
    %551 = vmatpush.msra.mxu0 0.0
    %552 = vmatpush.msra.mxu0 0.0
    %553 = vmatpush.msra.mxu0 0.0
    %554 = vmatpush.msra.mxu0 0.0
    %v555 = vand.u32 %v45, 4294901760
    %556 = vmatpush.msra.mxu0 %v555
    %v557 = vand.u32 %v44, 4294901760
    %558 = vmatpush.msra.mxu0 %v557
    %v559 = vand.u32 %v43, 4294901760
    %560 = vmatpush.msra.mxu0 %v559
    %v561 = vand.u32 %v42, 4294901760
    %562 = vmatpush.msra.mxu0 %v561
    %v563 = vand.u32 %v381, 4294901760
    %564 = vmatmul.f32.gmra.mxu0 %v563
    %v565 = vpop.f32.mrf.mxu0
    %v566 = vadd.f32 %v541, %v565
    %567 = vdwg.mxu0
    %568 = vmatpush.msra.mxu0 0.0
    %569 = vmatpush.msra.mxu0 0.0
    %570 = vmatpush.msra.mxu0 0.0
    %571 = vmatpush.msra.mxu0 0.0
    %572 = vmatpush.msra.mxu0 0.0
    %573 = vmatpush.msra.mxu0 0.0
    %574 = vmatpush.msra.mxu0 0.0
    %575 = vmatpush.msra.mxu0 0.0
    %576 = vmatpush.msra.mxu0 0.0
    %577 = vmatpush.msra.mxu0 0.0
    %578 = vmatpush.msra.mxu0 0.0
    %579 = vmatpush.msra.mxu0 0.0
    %v580 = vand.u32 %v49, 4294901760
    %581 = vmatpush.msra.mxu0 %v580
    %v582 = vand.u32 %v48, 4294901760
    %583 = vmatpush.msra.mxu0 %v582
    %v584 = vand.u32 %v47, 4294901760
    %585 = vmatpush.msra.mxu0 %v584
    %v586 = vand.u32 %v46, 4294901760
    %587 = vmatpush.msra.mxu0 %v586
    %v588 = vand.u32 %v193, 4294901760
    %v589 = vsub.f32 %v193, %v588
    %v590 = vand.u32 %v589, 4294901760
    %v591 = vsub.f32 %v589, %v590
    %v592 = vand.u32 %v591, 4294901760
    %593 = vmatmul.f32.gmra.mxu0 %v592
    %v594 = vpop.f32.mrf.mxu0
    %v595 = vadd.f32 %v177, %v594
    %596 = vdwg.mxu0
    %597 = vmatpush.msra.mxu0 0.0
    %598 = vmatpush.msra.mxu0 0.0
    %599 = vmatpush.msra.mxu0 0.0
    %600 = vmatpush.msra.mxu0 0.0
    %601 = vmatpush.msra.mxu0 0.0
    %602 = vmatpush.msra.mxu0 0.0
    %603 = vmatpush.msra.mxu0 0.0
    %604 = vmatpush.msra.mxu0 0.0
    %605 = vmatpush.msra.mxu0 0.0
    %606 = vmatpush.msra.mxu0 0.0
    %607 = vmatpush.msra.mxu0 0.0
    %608 = vmatpush.msra.mxu0 0.0
    %v609 = vand.u32 %v49, 4294901760
    %v610 = vsub.f32 %v49, %v609
    %v611 = vand.u32 %v610, 4294901760
    %v612 = vsub.f32 %v610, %v611
    %v613 = vand.u32 %v612, 4294901760
    %614 = vmatpush.msra.mxu0 %v613
    %v615 = vand.u32 %v48, 4294901760
    %v616 = vsub.f32 %v48, %v615
    %v617 = vand.u32 %v616, 4294901760
    %v618 = vsub.f32 %v616, %v617
    %v619 = vand.u32 %v618, 4294901760
    %620 = vmatpush.msra.mxu0 %v619
    %v621 = vand.u32 %v47, 4294901760
    %v622 = vsub.f32 %v47, %v621
    %v623 = vand.u32 %v622, 4294901760
    %v624 = vsub.f32 %v622, %v623
    %v625 = vand.u32 %v624, 4294901760
    %626 = vmatpush.msra.mxu0 %v625
    %v627 = vand.u32 %v46, 4294901760
    %v628 = vsub.f32 %v46, %v627
    %v629 = vand.u32 %v628, 4294901760
    %v630 = vsub.f32 %v628, %v629
    %v631 = vand.u32 %v630, 4294901760
    %632 = vmatpush.msra.mxu0 %v631
    %v633 = vand.u32 %v193, 4294901760
    %634 = vmatmul.f32.gmra.mxu0 %v633
    %v635 = vpop.f32.mrf.mxu0
    %v636 = vadd.f32 %v595, %v635
    %637 = vdwg.mxu0
    %638 = vmatpush.msra.mxu0 0.0
    %639 = vmatpush.msra.mxu0 0.0
    %640 = vmatpush.msra.mxu0 0.0
    %641 = vmatpush.msra.mxu0 0.0
    %642 = vmatpush.msra.mxu0 0.0
    %643 = vmatpush.msra.mxu0 0.0
    %644 = vmatpush.msra.mxu0 0.0
    %645 = vmatpush.msra.mxu0 0.0
    %646 = vmatpush.msra.mxu0 0.0
    %647 = vmatpush.msra.mxu0 0.0
    %648 = vmatpush.msra.mxu0 0.0
    %649 = vmatpush.msra.mxu0 0.0
    %v650 = vand.u32 %v49, 4294901760
    %v651 = vsub.f32 %v49, %v650
    %652 = vmatpush.msra.mxu0 %v651
    %v653 = vand.u32 %v48, 4294901760
    %v654 = vsub.f32 %v48, %v653
    %655 = vmatpush.msra.mxu0 %v654
    %v656 = vand.u32 %v47, 4294901760
    %v657 = vsub.f32 %v47, %v656
    %658 = vmatpush.msra.mxu0 %v657
    %v659 = vand.u32 %v46, 4294901760
    %v660 = vsub.f32 %v46, %v659
    %661 = vmatpush.msra.mxu0 %v660
    %v662 = vand.u32 %v193, 4294901760
    %v663 = vsub.f32 %v193, %v662
    %664 = vmatmul.f32.gmra.mxu0 %v663
    %v665 = vpop.f32.mrf.mxu0
    %v666 = vadd.f32 %v636, %v665
    %667 = vdwg.mxu0
    %668 = vmatpush.msra.mxu0 0.0
    %669 = vmatpush.msra.mxu0 0.0
    %670 = vmatpush.msra.mxu0 0.0
    %671 = vmatpush.msra.mxu0 0.0
    %672 = vmatpush.msra.mxu0 0.0
    %673 = vmatpush.msra.mxu0 0.0
    %674 = vmatpush.msra.mxu0 0.0
    %675 = vmatpush.msra.mxu0 0.0
    %676 = vmatpush.msra.mxu0 0.0
    %677 = vmatpush.msra.mxu0 0.0
    %678 = vmatpush.msra.mxu0 0.0
    %679 = vmatpush.msra.mxu0 0.0
    %v680 = vand.u32 %v49, 4294901760
    %681 = vmatpush.msra.mxu0 %v680
    %v682 = vand.u32 %v48, 4294901760
    %683 = vmatpush.msra.mxu0 %v682
    %v684 = vand.u32 %v47, 4294901760
    %685 = vmatpush.msra.mxu0 %v684
    %v686 = vand.u32 %v46, 4294901760
    %687 = vmatpush.msra.mxu0 %v686
    %v688 = vand.u32 %v193, 4294901760
    %v689 = vsub.f32 %v193, %v688
    %v690 = vand.u32 %v689, 4294901760
    %691 = vmatmul.f32.gmra.mxu0 %v690
    %v692 = vpop.f32.mrf.mxu0
    %v693 = vadd.f32 %v666, %v692
    %694 = vdwg.mxu0
    %695 = vmatpush.msra.mxu0 0.0
    %696 = vmatpush.msra.mxu0 0.0
    %697 = vmatpush.msra.mxu0 0.0
    %698 = vmatpush.msra.mxu0 0.0
    %699 = vmatpush.msra.mxu0 0.0
    %700 = vmatpush.msra.mxu0 0.0
    %701 = vmatpush.msra.mxu0 0.0
    %702 = vmatpush.msra.mxu0 0.0
    %703 = vmatpush.msra.mxu0 0.0
    %704 = vmatpush.msra.mxu0 0.0
    %705 = vmatpush.msra.mxu0 0.0
    %706 = vmatpush.msra.mxu0 0.0
    %v707 = vand.u32 %v49, 4294901760
    %v708 = vsub.f32 %v49, %v707
    %v709 = vand.u32 %v708, 4294901760
    %710 = vmatpush.msra.mxu0 %v709
    %v711 = vand.u32 %v48, 4294901760
    %v712 = vsub.f32 %v48, %v711
    %v713 = vand.u32 %v712, 4294901760
    %714 = vmatpush.msra.mxu0 %v713
    %v715 = vand.u32 %v47, 4294901760
    %v716 = vsub.f32 %v47, %v715
    %v717 = vand.u32 %v716, 4294901760
    %718 = vmatpush.msra.mxu0 %v717
    %v719 = vand.u32 %v46, 4294901760
    %v720 = vsub.f32 %v46, %v719
    %v721 = vand.u32 %v720, 4294901760
    %722 = vmatpush.msra.mxu0 %v721
    %v723 = vand.u32 %v193, 4294901760
    %724 = vmatmul.f32.gmra.mxu0 %v723
    %v725 = vpop.f32.mrf.mxu0
    %v726 = vadd.f32 %v693, %v725
    %727 = vdwg.mxu0
    %728 = vmatpush.msra.mxu0 0.0
    %729 = vmatpush.msra.mxu0 0.0
    %730 = vmatpush.msra.mxu0 0.0
    %731 = vmatpush.msra.mxu0 0.0
    %732 = vmatpush.msra.mxu0 0.0
    %733 = vmatpush.msra.mxu0 0.0
    %734 = vmatpush.msra.mxu0 0.0
    %735 = vmatpush.msra.mxu0 0.0
    %736 = vmatpush.msra.mxu0 0.0
    %737 = vmatpush.msra.mxu0 0.0
    %738 = vmatpush.msra.mxu0 0.0
    %739 = vmatpush.msra.mxu0 0.0
    %v740 = vand.u32 %v49, 4294901760
    %741 = vmatpush.msra.mxu0 %v740
    %v742 = vand.u32 %v48, 4294901760
    %743 = vmatpush.msra.mxu0 %v742
    %v744 = vand.u32 %v47, 4294901760
    %745 = vmatpush.msra.mxu0 %v744
    %v746 = vand.u32 %v46, 4294901760
    %747 = vmatpush.msra.mxu0 %v746
    %v748 = vand.u32 %v193, 4294901760
    %749 = vmatmul.f32.gmra.mxu0 %v748
    %v750 = vpop.f32.mrf.mxu0
    %v751 = vadd.f32 %v726, %v750
    %752 = vdwg.mxu0
    %753 = vmatpush.msra.mxu0 0.0
    %754 = vmatpush.msra.mxu0 0.0
    %755 = vmatpush.msra.mxu0 0.0
    %756 = vmatpush.msra.mxu0 0.0
    %757 = vmatpush.msra.mxu0 0.0
    %758 = vmatpush.msra.mxu0 0.0
    %759 = vmatpush.msra.mxu0 0.0
    %760 = vmatpush.msra.mxu0 0.0
    %761 = vmatpush.msra.mxu0 0.0
    %762 = vmatpush.msra.mxu0 0.0
    %763 = vmatpush.msra.mxu0 0.0
    %764 = vmatpush.msra.mxu0 0.0
    %v765 = vand.u32 %v53, 4294901760
    %766 = vmatpush.msra.mxu0 %v765
    %v767 = vand.u32 %v52, 4294901760
    %768 = vmatpush.msra.mxu0 %v767
    %v769 = vand.u32 %v51, 4294901760
    %770 = vmatpush.msra.mxu0 %v769
    %v771 = vand.u32 %v50, 4294901760
    %772 = vmatpush.msra.mxu0 %v771
    %v773 = vand.u32 %v381, 4294901760
    %v774 = vsub.f32 %v381, %v773
    %v775 = vand.u32 %v774, 4294901760
    %v776 = vsub.f32 %v774, %v775
    %v777 = vand.u32 %v776, 4294901760
    %778 = vmatmul.f32.gmra.mxu0 %v777
    %v779 = vpop.f32.mrf.mxu0
    %v780 = vadd.f32 %v178, %v779
    %781 = vdwg.mxu0
    %782 = vmatpush.msra.mxu0 0.0
    %783 = vmatpush.msra.mxu0 0.0
    %784 = vmatpush.msra.mxu0 0.0
    %785 = vmatpush.msra.mxu0 0.0
    %786 = vmatpush.msra.mxu0 0.0
    %787 = vmatpush.msra.mxu0 0.0
    %788 = vmatpush.msra.mxu0 0.0
    %789 = vmatpush.msra.mxu0 0.0
    %790 = vmatpush.msra.mxu0 0.0
    %791 = vmatpush.msra.mxu0 0.0
    %792 = vmatpush.msra.mxu0 0.0
    %793 = vmatpush.msra.mxu0 0.0
    %v794 = vand.u32 %v53, 4294901760
    %v795 = vsub.f32 %v53, %v794
    %v796 = vand.u32 %v795, 4294901760
    %v797 = vsub.f32 %v795, %v796
    %v798 = vand.u32 %v797, 4294901760
    %799 = vmatpush.msra.mxu0 %v798
    %v800 = vand.u32 %v52, 4294901760
    %v801 = vsub.f32 %v52, %v800
    %v802 = vand.u32 %v801, 4294901760
    %v803 = vsub.f32 %v801, %v802
    %v804 = vand.u32 %v803, 4294901760
    %805 = vmatpush.msra.mxu0 %v804
    %v806 = vand.u32 %v51, 4294901760
    %v807 = vsub.f32 %v51, %v806
    %v808 = vand.u32 %v807, 4294901760
    %v809 = vsub.f32 %v807, %v808
    %v810 = vand.u32 %v809, 4294901760
    %811 = vmatpush.msra.mxu0 %v810
    %v812 = vand.u32 %v50, 4294901760
    %v813 = vsub.f32 %v50, %v812
    %v814 = vand.u32 %v813, 4294901760
    %v815 = vsub.f32 %v813, %v814
    %v816 = vand.u32 %v815, 4294901760
    %817 = vmatpush.msra.mxu0 %v816
    %v818 = vand.u32 %v381, 4294901760
    %819 = vmatmul.f32.gmra.mxu0 %v818
    %v820 = vpop.f32.mrf.mxu0
    %v821 = vadd.f32 %v780, %v820
    %822 = vdwg.mxu0
    %823 = vmatpush.msra.mxu0 0.0
    %824 = vmatpush.msra.mxu0 0.0
    %825 = vmatpush.msra.mxu0 0.0
    %826 = vmatpush.msra.mxu0 0.0
    %827 = vmatpush.msra.mxu0 0.0
    %828 = vmatpush.msra.mxu0 0.0
    %829 = vmatpush.msra.mxu0 0.0
    %830 = vmatpush.msra.mxu0 0.0
    %831 = vmatpush.msra.mxu0 0.0
    %832 = vmatpush.msra.mxu0 0.0
    %833 = vmatpush.msra.mxu0 0.0
    %834 = vmatpush.msra.mxu0 0.0
    %v835 = vand.u32 %v53, 4294901760
    %v836 = vsub.f32 %v53, %v835
    %837 = vmatpush.msra.mxu0 %v836
    %v838 = vand.u32 %v52, 4294901760
    %v839 = vsub.f32 %v52, %v838
    %840 = vmatpush.msra.mxu0 %v839
    %v841 = vand.u32 %v51, 4294901760
    %v842 = vsub.f32 %v51, %v841
    %843 = vmatpush.msra.mxu0 %v842
    %v844 = vand.u32 %v50, 4294901760
    %v845 = vsub.f32 %v50, %v844
    %846 = vmatpush.msra.mxu0 %v845
    %v847 = vand.u32 %v381, 4294901760
    %v848 = vsub.f32 %v381, %v847
    %849 = vmatmul.f32.gmra.mxu0 %v848
    %v850 = vpop.f32.mrf.mxu0
    %v851 = vadd.f32 %v821, %v850
    %852 = vdwg.mxu0
    %853 = vmatpush.msra.mxu0 0.0
    %854 = vmatpush.msra.mxu0 0.0
    %855 = vmatpush.msra.mxu0 0.0
    %856 = vmatpush.msra.mxu0 0.0
    %857 = vmatpush.msra.mxu0 0.0
    %858 = vmatpush.msra.mxu0 0.0
    %859 = vmatpush.msra.mxu0 0.0
    %860 = vmatpush.msra.mxu0 0.0
    %861 = vmatpush.msra.mxu0 0.0
    %862 = vmatpush.msra.mxu0 0.0
    %863 = vmatpush.msra.mxu0 0.0
    %864 = vmatpush.msra.mxu0 0.0
    %v865 = vand.u32 %v53, 4294901760
    %866 = vmatpush.msra.mxu0 %v865
    %v867 = vand.u32 %v52, 4294901760
    %868 = vmatpush.msra.mxu0 %v867
    %v869 = vand.u32 %v51, 4294901760
    %870 = vmatpush.msra.mxu0 %v869
    %v871 = vand.u32 %v50, 4294901760
    %872 = vmatpush.msra.mxu0 %v871
    %v873 = vand.u32 %v381, 4294901760
    %v874 = vsub.f32 %v381, %v873
    %v875 = vand.u32 %v874, 4294901760
    %876 = vmatmul.f32.gmra.mxu0 %v875
    %v877 = vpop.f32.mrf.mxu0
    %v878 = vadd.f32 %v851, %v877
    %879 = vdwg.mxu0
    %880 = vmatpush.msra.mxu0 0.0
    %881 = vmatpush.msra.mxu0 0.0
    %882 = vmatpush.msra.mxu0 0.0
    %883 = vmatpush.msra.mxu0 0.0
    %884 = vmatpush.msra.mxu0 0.0
    %885 = vmatpush.msra.mxu0 0.0
    %886 = vmatpush.msra.mxu0 0.0
    %887 = vmatpush.msra.mxu0 0.0
    %888 = vmatpush.msra.mxu0 0.0
    %889 = vmatpush.msra.mxu0 0.0
    %890 = vmatpush.msra.mxu0 0.0
    %891 = vmatpush.msra.mxu0 0.0
    %v892 = vand.u32 %v53, 4294901760
    %v893 = vsub.f32 %v53, %v892
    %v894 = vand.u32 %v893, 4294901760
    %895 = vmatpush.msra.mxu0 %v894
    %v896 = vand.u32 %v52, 4294901760
    %v897 = vsub.f32 %v52, %v896
    %v898 = vand.u32 %v897, 4294901760
    %899 = vmatpush.msra.mxu0 %v898
    %v900 = vand.u32 %v51, 4294901760
    %v901 = vsub.f32 %v51, %v900
    %v902 = vand.u32 %v901, 4294901760
    %903 = vmatpush.msra.mxu0 %v902
    %v904 = vand.u32 %v50, 4294901760
    %v905 = vsub.f32 %v50, %v904
    %v906 = vand.u32 %v905, 4294901760
    %907 = vmatpush.msra.mxu0 %v906
    %v908 = vand.u32 %v381, 4294901760
    %909 = vmatmul.f32.gmra.mxu0 %v908
    %v910 = vpop.f32.mrf.mxu0
    %v911 = vadd.f32 %v878, %v910
    %912 = vdwg.mxu0
    %913 = vmatpush.msra.mxu0 0.0
    %914 = vmatpush.msra.mxu0 0.0
    %915 = vmatpush.msra.mxu0 0.0
    %916 = vmatpush.msra.mxu0 0.0
    %917 = vmatpush.msra.mxu0 0.0
    %918 = vmatpush.msra.mxu0 0.0
    %919 = vmatpush.msra.mxu0 0.0
    %920 = vmatpush.msra.mxu0 0.0
    %921 = vmatpush.msra.mxu0 0.0
    %922 = vmatpush.msra.mxu0 0.0
    %923 = vmatpush.msra.mxu0 0.0
    %924 = vmatpush.msra.mxu0 0.0
    %v925 = vand.u32 %v53, 4294901760
    %926 = vmatpush.msra.mxu0 %v925
    %v927 = vand.u32 %v52, 4294901760
    %928 = vmatpush.msra.mxu0 %v927
    %v929 = vand.u32 %v51, 4294901760
    %930 = vmatpush.msra.mxu0 %v929
    %v931 = vand.u32 %v50, 4294901760
    %932 = vmatpush.msra.mxu0 %v931
    %v933 = vand.u32 %v381, 4294901760
    %934 = vmatmul.f32.gmra.mxu0 %v933
    %v935 = vpop.f32.mrf.mxu0
    %v936 = vadd.f32 %v911, %v935
    %937 = vdwg.mxu0
    %938 = vmatpush.msra.mxu0 0.0
    %939 = vmatpush.msra.mxu0 0.0
    %940 = vmatpush.msra.mxu0 0.0
    %941 = vmatpush.msra.mxu0 0.0
    %942 = vmatpush.msra.mxu0 0.0
    %943 = vmatpush.msra.mxu0 0.0
    %944 = vmatpush.msra.mxu0 0.0
    %945 = vmatpush.msra.mxu0 0.0
    %946 = vmatpush.msra.mxu0 0.0
    %947 = vmatpush.msra.mxu0 0.0
    %948 = vmatpush.msra.mxu0 0.0
    %949 = vmatpush.msra.mxu0 0.0
    %v950 = vand.u32 %v57, 4294901760
    %951 = vmatpush.msra.mxu0 %v950
    %v952 = vand.u32 %v56, 4294901760
    %953 = vmatpush.msra.mxu0 %v952
    %v954 = vand.u32 %v55, 4294901760
    %955 = vmatpush.msra.mxu0 %v954
    %v956 = vand.u32 %v54, 4294901760
    %957 = vmatpush.msra.mxu0 %v956
    %v958 = vand.u32 %v193, 4294901760
    %v959 = vsub.f32 %v193, %v958
    %v960 = vand.u32 %v959, 4294901760
    %v961 = vsub.f32 %v959, %v960
    %v962 = vand.u32 %v961, 4294901760
    %963 = vmatmul.f32.gmra.mxu0 %v962
    %v964 = vpop.f32.mrf.mxu0
    %v965 = vadd.f32 %v179, %v964
    %966 = vdwg.mxu0
    %967 = vmatpush.msra.mxu0 0.0
    %968 = vmatpush.msra.mxu0 0.0
    %969 = vmatpush.msra.mxu0 0.0
    %970 = vmatpush.msra.mxu0 0.0
    %971 = vmatpush.msra.mxu0 0.0
    %972 = vmatpush.msra.mxu0 0.0
    %973 = vmatpush.msra.mxu0 0.0
    %974 = vmatpush.msra.mxu0 0.0
    %975 = vmatpush.msra.mxu0 0.0
    %976 = vmatpush.msra.mxu0 0.0
    %977 = vmatpush.msra.mxu0 0.0
    %978 = vmatpush.msra.mxu0 0.0
    %v979 = vand.u32 %v57, 4294901760
    %v980 = vsub.f32 %v57, %v979
    %v981 = vand.u32 %v980, 4294901760
    %v982 = vsub.f32 %v980, %v981
    %v983 = vand.u32 %v982, 4294901760
    %984 = vmatpush.msra.mxu0 %v983
    %v985 = vand.u32 %v56, 4294901760
    %v986 = vsub.f32 %v56, %v985
    %v987 = vand.u32 %v986, 4294901760
    %v988 = vsub.f32 %v986, %v987
    %v989 = vand.u32 %v988, 4294901760
    %990 = vmatpush.msra.mxu0 %v989
    %v991 = vand.u32 %v55, 4294901760
    %v992 = vsub.f32 %v55, %v991
    %v993 = vand.u32 %v992, 4294901760
    %v994 = vsub.f32 %v992, %v993
    %v995 = vand.u32 %v994, 4294901760
    %996 = vmatpush.msra.mxu0 %v995
    %v997 = vand.u32 %v54, 4294901760
    %v998 = vsub.f32 %v54, %v997
    %v999 = vand.u32 %v998, 4294901760
    %v1000 = vsub.f32 %v998, %v999
    %v1001 = vand.u32 %v1000, 4294901760
    %1002 = vmatpush.msra.mxu0 %v1001
    %v1003 = vand.u32 %v193, 4294901760
    %1004 = vmatmul.f32.gmra.mxu0 %v1003
    %v1005 = vpop.f32.mrf.mxu0
    %v1006 = vadd.f32 %v965, %v1005
    %1007 = vdwg.mxu0
    %1008 = vmatpush.msra.mxu0 0.0
    %1009 = vmatpush.msra.mxu0 0.0
    %1010 = vmatpush.msra.mxu0 0.0
    %1011 = vmatpush.msra.mxu0 0.0
    %1012 = vmatpush.msra.mxu0 0.0
    %1013 = vmatpush.msra.mxu0 0.0
    %1014 = vmatpush.msra.mxu0 0.0
    %1015 = vmatpush.msra.mxu0 0.0
    %1016 = vmatpush.msra.mxu0 0.0
    %1017 = vmatpush.msra.mxu0 0.0
    %1018 = vmatpush.msra.mxu0 0.0
    %1019 = vmatpush.msra.mxu0 0.0
    %v1020 = vand.u32 %v57, 4294901760
    %v1021 = vsub.f32 %v57, %v1020
    %1022 = vmatpush.msra.mxu0 %v1021
    %v1023 = vand.u32 %v56, 4294901760
    %v1024 = vsub.f32 %v56, %v1023
    %1025 = vmatpush.msra.mxu0 %v1024
    %v1026 = vand.u32 %v55, 4294901760
    %v1027 = vsub.f32 %v55, %v1026
    %1028 = vmatpush.msra.mxu0 %v1027
    %v1029 = vand.u32 %v54, 4294901760
    %v1030 = vsub.f32 %v54, %v1029
    %1031 = vmatpush.msra.mxu0 %v1030
    %v1032 = vand.u32 %v193, 4294901760
    %v1033 = vsub.f32 %v193, %v1032
    %1034 = vmatmul.f32.gmra.mxu0 %v1033
    %v1035 = vpop.f32.mrf.mxu0
    %v1036 = vadd.f32 %v1006, %v1035
    %1037 = vdwg.mxu0
    %1038 = vmatpush.msra.mxu0 0.0
    %1039 = vmatpush.msra.mxu0 0.0
    %1040 = vmatpush.msra.mxu0 0.0
    %1041 = vmatpush.msra.mxu0 0.0
    %1042 = vmatpush.msra.mxu0 0.0
    %1043 = vmatpush.msra.mxu0 0.0
    %1044 = vmatpush.msra.mxu0 0.0
    %1045 = vmatpush.msra.mxu0 0.0
    %1046 = vmatpush.msra.mxu0 0.0
    %1047 = vmatpush.msra.mxu0 0.0
    %1048 = vmatpush.msra.mxu0 0.0
    %1049 = vmatpush.msra.mxu0 0.0
    %v1050 = vand.u32 %v57, 4294901760
    %1051 = vmatpush.msra.mxu0 %v1050
    %v1052 = vand.u32 %v56, 4294901760
    %1053 = vmatpush.msra.mxu0 %v1052
    %v1054 = vand.u32 %v55, 4294901760
    %1055 = vmatpush.msra.mxu0 %v1054
    %v1056 = vand.u32 %v54, 4294901760
    %1057 = vmatpush.msra.mxu0 %v1056
    %v1058 = vand.u32 %v193, 4294901760
    %v1059 = vsub.f32 %v193, %v1058
    %v1060 = vand.u32 %v1059, 4294901760
    %1061 = vmatmul.f32.gmra.mxu0 %v1060
    %v1062 = vpop.f32.mrf.mxu0
    %v1063 = vadd.f32 %v1036, %v1062
    %1064 = vdwg.mxu0
    %1065 = vmatpush.msra.mxu0 0.0
    %1066 = vmatpush.msra.mxu0 0.0
    %1067 = vmatpush.msra.mxu0 0.0
    %1068 = vmatpush.msra.mxu0 0.0
    %1069 = vmatpush.msra.mxu0 0.0
    %1070 = vmatpush.msra.mxu0 0.0
    %1071 = vmatpush.msra.mxu0 0.0
    %1072 = vmatpush.msra.mxu0 0.0
    %1073 = vmatpush.msra.mxu0 0.0
    %1074 = vmatpush.msra.mxu0 0.0
    %1075 = vmatpush.msra.mxu0 0.0
    %1076 = vmatpush.msra.mxu0 0.0
    %v1077 = vand.u32 %v57, 4294901760
    %v1078 = vsub.f32 %v57, %v1077
    %v1079 = vand.u32 %v1078, 4294901760
    %1080 = vmatpush.msra.mxu0 %v1079
    %v1081 = vand.u32 %v56, 4294901760
    %v1082 = vsub.f32 %v56, %v1081
    %v1083 = vand.u32 %v1082, 4294901760
    %1084 = vmatpush.msra.mxu0 %v1083
    %v1085 = vand.u32 %v55, 4294901760
    %v1086 = vsub.f32 %v55, %v1085
    %v1087 = vand.u32 %v1086, 4294901760
    %1088 = vmatpush.msra.mxu0 %v1087
    %v1089 = vand.u32 %v54, 4294901760
    %v1090 = vsub.f32 %v54, %v1089
    %v1091 = vand.u32 %v1090, 4294901760
    %1092 = vmatpush.msra.mxu0 %v1091
    %v1093 = vand.u32 %v193, 4294901760
    %1094 = vmatmul.f32.gmra.mxu0 %v1093
    %v1095 = vpop.f32.mrf.mxu0
    %v1096 = vadd.f32 %v1063, %v1095
    %1097 = vdwg.mxu0
    %1098 = vmatpush.msra.mxu0 0.0
    %1099 = vmatpush.msra.mxu0 0.0
    %1100 = vmatpush.msra.mxu0 0.0
    %1101 = vmatpush.msra.mxu0 0.0
    %1102 = vmatpush.msra.mxu0 0.0
    %1103 = vmatpush.msra.mxu0 0.0
    %1104 = vmatpush.msra.mxu0 0.0
    %1105 = vmatpush.msra.mxu0 0.0
    %1106 = vmatpush.msra.mxu0 0.0
    %1107 = vmatpush.msra.mxu0 0.0
    %1108 = vmatpush.msra.mxu0 0.0
    %1109 = vmatpush.msra.mxu0 0.0
    %v1110 = vand.u32 %v57, 4294901760
    %1111 = vmatpush.msra.mxu0 %v1110
    %v1112 = vand.u32 %v56, 4294901760
    %1113 = vmatpush.msra.mxu0 %v1112
    %v1114 = vand.u32 %v55, 4294901760
    %1115 = vmatpush.msra.mxu0 %v1114
    %v1116 = vand.u32 %v54, 4294901760
    %1117 = vmatpush.msra.mxu0 %v1116
    %v1118 = vand.u32 %v193, 4294901760
    %1119 = vmatmul.f32.gmra.mxu0 %v1118
    %v1120 = vpop.f32.mrf.mxu0
    %v1121 = vadd.f32 %v1096, %v1120
    %1122 = vdwg.mxu0
    %1123 = vmatpush.msra.mxu0 0.0
    %1124 = vmatpush.msra.mxu0 0.0
    %1125 = vmatpush.msra.mxu0 0.0
    %1126 = vmatpush.msra.mxu0 0.0
    %1127 = vmatpush.msra.mxu0 0.0
    %1128 = vmatpush.msra.mxu0 0.0
    %1129 = vmatpush.msra.mxu0 0.0
    %1130 = vmatpush.msra.mxu0 0.0
    %1131 = vmatpush.msra.mxu0 0.0
    %1132 = vmatpush.msra.mxu0 0.0
    %1133 = vmatpush.msra.mxu0 0.0
    %1134 = vmatpush.msra.mxu0 0.0
    %v1135 = vand.u32 %v61, 4294901760
    %1136 = vmatpush.msra.mxu0 %v1135
    %v1137 = vand.u32 %v60, 4294901760
    %1138 = vmatpush.msra.mxu0 %v1137
    %v1139 = vand.u32 %v59, 4294901760
    %1140 = vmatpush.msra.mxu0 %v1139
    %v1141 = vand.u32 %v58, 4294901760
    %1142 = vmatpush.msra.mxu0 %v1141
    %v1143 = vand.u32 %v381, 4294901760
    %v1144 = vsub.f32 %v381, %v1143
    %v1145 = vand.u32 %v1144, 4294901760
    %v1146 = vsub.f32 %v1144, %v1145
    %v1147 = vand.u32 %v1146, 4294901760
    %1148 = vmatmul.f32.gmra.mxu0 %v1147
    %v1149 = vpop.f32.mrf.mxu0
    %v1150 = vadd.f32 %v180, %v1149
    %1151 = vdwg.mxu0
    %1152 = vmatpush.msra.mxu0 0.0
    %1153 = vmatpush.msra.mxu0 0.0
    %1154 = vmatpush.msra.mxu0 0.0
    %1155 = vmatpush.msra.mxu0 0.0
    %1156 = vmatpush.msra.mxu0 0.0
    %1157 = vmatpush.msra.mxu0 0.0
    %1158 = vmatpush.msra.mxu0 0.0
    %1159 = vmatpush.msra.mxu0 0.0
    %1160 = vmatpush.msra.mxu0 0.0
    %1161 = vmatpush.msra.mxu0 0.0
    %1162 = vmatpush.msra.mxu0 0.0
    %1163 = vmatpush.msra.mxu0 0.0
    %v1164 = vand.u32 %v61, 4294901760
    %v1165 = vsub.f32 %v61, %v1164
    %v1166 = vand.u32 %v1165, 4294901760
    %v1167 = vsub.f32 %v1165, %v1166
    %v1168 = vand.u32 %v1167, 4294901760
    %1169 = vmatpush.msra.mxu0 %v1168
    %v1170 = vand.u32 %v60, 4294901760
    %v1171 = vsub.f32 %v60, %v1170
    %v1172 = vand.u32 %v1171, 4294901760
    %v1173 = vsub.f32 %v1171, %v1172
    %v1174 = vand.u32 %v1173, 4294901760
    %1175 = vmatpush.msra.mxu0 %v1174
    %v1176 = vand.u32 %v59, 4294901760
    %v1177 = vsub.f32 %v59, %v1176
    %v1178 = vand.u32 %v1177, 4294901760
    %v1179 = vsub.f32 %v1177, %v1178
    %v1180 = vand.u32 %v1179, 4294901760
    %1181 = vmatpush.msra.mxu0 %v1180
    %v1182 = vand.u32 %v58, 4294901760
    %v1183 = vsub.f32 %v58, %v1182
    %v1184 = vand.u32 %v1183, 4294901760
    %v1185 = vsub.f32 %v1183, %v1184
    %v1186 = vand.u32 %v1185, 4294901760
    %1187 = vmatpush.msra.mxu0 %v1186
    %v1188 = vand.u32 %v381, 4294901760
    %1189 = vmatmul.f32.gmra.mxu0 %v1188
    %v1190 = vpop.f32.mrf.mxu0
    %v1191 = vadd.f32 %v1150, %v1190
    %1192 = vdwg.mxu0
    %1193 = vmatpush.msra.mxu0 0.0
    %1194 = vmatpush.msra.mxu0 0.0
    %1195 = vmatpush.msra.mxu0 0.0
    %1196 = vmatpush.msra.mxu0 0.0
    %1197 = vmatpush.msra.mxu0 0.0
    %1198 = vmatpush.msra.mxu0 0.0
    %1199 = vmatpush.msra.mxu0 0.0
    %1200 = vmatpush.msra.mxu0 0.0
    %1201 = vmatpush.msra.mxu0 0.0
    %1202 = vmatpush.msra.mxu0 0.0
    %1203 = vmatpush.msra.mxu0 0.0
    %1204 = vmatpush.msra.mxu0 0.0
    %v1205 = vand.u32 %v61, 4294901760
    %v1206 = vsub.f32 %v61, %v1205
    %1207 = vmatpush.msra.mxu0 %v1206
    %v1208 = vand.u32 %v60, 4294901760
    %v1209 = vsub.f32 %v60, %v1208
    %1210 = vmatpush.msra.mxu0 %v1209
    %v1211 = vand.u32 %v59, 4294901760
    %v1212 = vsub.f32 %v59, %v1211
    %1213 = vmatpush.msra.mxu0 %v1212
    %v1214 = vand.u32 %v58, 4294901760
    %v1215 = vsub.f32 %v58, %v1214
    %1216 = vmatpush.msra.mxu0 %v1215
    %v1217 = vand.u32 %v381, 4294901760
    %v1218 = vsub.f32 %v381, %v1217
    %1219 = vmatmul.f32.gmra.mxu0 %v1218
    %v1220 = vpop.f32.mrf.mxu0
    %v1221 = vadd.f32 %v1191, %v1220
    %1222 = vdwg.mxu0
    %1223 = vmatpush.msra.mxu0 0.0
    %1224 = vmatpush.msra.mxu0 0.0
    %1225 = vmatpush.msra.mxu0 0.0
    %1226 = vmatpush.msra.mxu0 0.0
    %1227 = vmatpush.msra.mxu0 0.0
    %1228 = vmatpush.msra.mxu0 0.0
    %1229 = vmatpush.msra.mxu0 0.0
    %1230 = vmatpush.msra.mxu0 0.0
    %1231 = vmatpush.msra.mxu0 0.0
    %1232 = vmatpush.msra.mxu0 0.0
    %1233 = vmatpush.msra.mxu0 0.0
    %1234 = vmatpush.msra.mxu0 0.0
    %v1235 = vand.u32 %v61, 4294901760
    %1236 = vmatpush.msra.mxu0 %v1235
    %v1237 = vand.u32 %v60, 4294901760
    %1238 = vmatpush.msra.mxu0 %v1237
    %v1239 = vand.u32 %v59, 4294901760
    %1240 = vmatpush.msra.mxu0 %v1239
    %v1241 = vand.u32 %v58, 4294901760
    %1242 = vmatpush.msra.mxu0 %v1241
    %v1243 = vand.u32 %v381, 4294901760
    %v1244 = vsub.f32 %v381, %v1243
    %v1245 = vand.u32 %v1244, 4294901760
    %1246 = vmatmul.f32.gmra.mxu0 %v1245
    %v1247 = vpop.f32.mrf.mxu0
    %v1248 = vadd.f32 %v1221, %v1247
    %1249 = vdwg.mxu0
    %1250 = vmatpush.msra.mxu0 0.0
    %1251 = vmatpush.msra.mxu0 0.0
    %1252 = vmatpush.msra.mxu0 0.0
    %1253 = vmatpush.msra.mxu0 0.0
    %1254 = vmatpush.msra.mxu0 0.0
    %1255 = vmatpush.msra.mxu0 0.0
    %1256 = vmatpush.msra.mxu0 0.0
    %1257 = vmatpush.msra.mxu0 0.0
    %1258 = vmatpush.msra.mxu0 0.0
    %1259 = vmatpush.msra.mxu0 0.0
    %1260 = vmatpush.msra.mxu0 0.0
    %1261 = vmatpush.msra.mxu0 0.0
    %v1262 = vand.u32 %v61, 4294901760
    %v1263 = vsub.f32 %v61, %v1262
    %v1264 = vand.u32 %v1263, 4294901760
    %1265 = vmatpush.msra.mxu0 %v1264
    %v1266 = vand.u32 %v60, 4294901760
    %v1267 = vsub.f32 %v60, %v1266
    %v1268 = vand.u32 %v1267, 4294901760
    %1269 = vmatpush.msra.mxu0 %v1268
    %v1270 = vand.u32 %v59, 4294901760
    %v1271 = vsub.f32 %v59, %v1270
    %v1272 = vand.u32 %v1271, 4294901760
    %1273 = vmatpush.msra.mxu0 %v1272
    %v1274 = vand.u32 %v58, 4294901760
    %v1275 = vsub.f32 %v58, %v1274
    %v1276 = vand.u32 %v1275, 4294901760
    %1277 = vmatpush.msra.mxu0 %v1276
    %v1278 = vand.u32 %v381, 4294901760
    %1279 = vmatmul.f32.gmra.mxu0 %v1278
    %v1280 = vpop.f32.mrf.mxu0
    %v1281 = vadd.f32 %v1248, %v1280
    %1282 = vdwg.mxu0
    %1283 = vmatpush.msra.mxu0 0.0
    %1284 = vmatpush.msra.mxu0 0.0
    %1285 = vmatpush.msra.mxu0 0.0
    %1286 = vmatpush.msra.mxu0 0.0
    %1287 = vmatpush.msra.mxu0 0.0
    %1288 = vmatpush.msra.mxu0 0.0
    %1289 = vmatpush.msra.mxu0 0.0
    %1290 = vmatpush.msra.mxu0 0.0
    %1291 = vmatpush.msra.mxu0 0.0
    %1292 = vmatpush.msra.mxu0 0.0
    %1293 = vmatpush.msra.mxu0 0.0
    %1294 = vmatpush.msra.mxu0 0.0
    %v1295 = vand.u32 %v61, 4294901760
    %1296 = vmatpush.msra.mxu0 %v1295
    %v1297 = vand.u32 %v60, 4294901760
    %1298 = vmatpush.msra.mxu0 %v1297
    %v1299 = vand.u32 %v59, 4294901760
    %1300 = vmatpush.msra.mxu0 %v1299
    %v1301 = vand.u32 %v58, 4294901760
    %1302 = vmatpush.msra.mxu0 %v1301
    %v1303 = vand.u32 %v381, 4294901760
    %1304 = vmatmul.f32.gmra.mxu0 %v1303
    %v1305 = vpop.f32.mrf.mxu0
    %v1306 = vadd.f32 %v1281, %v1305
    %1307 = vdwg.mxu0
    %1308 = vmatpush.msra.mxu0 0.0
    %1309 = vmatpush.msra.mxu0 0.0
    %1310 = vmatpush.msra.mxu0 0.0
    %1311 = vmatpush.msra.mxu0 0.0
    %1312 = vmatpush.msra.mxu0 0.0
    %1313 = vmatpush.msra.mxu0 0.0
    %1314 = vmatpush.msra.mxu0 0.0
    %1315 = vmatpush.msra.mxu0 0.0
    %1316 = vmatpush.msra.mxu0 0.0
    %1317 = vmatpush.msra.mxu0 0.0
    %1318 = vmatpush.msra.mxu0 0.0
    %1319 = vmatpush.msra.mxu0 0.0
    %v1320 = vand.u32 %v65, 4294901760
    %1321 = vmatpush.msra.mxu0 %v1320
    %v1322 = vand.u32 %v64, 4294901760
    %1323 = vmatpush.msra.mxu0 %v1322
    %v1324 = vand.u32 %v63, 4294901760
    %1325 = vmatpush.msra.mxu0 %v1324
    %v1326 = vand.u32 %v62, 4294901760
    %1327 = vmatpush.msra.mxu0 %v1326
    %v1328 = vand.u32 %v193, 4294901760
    %v1329 = vsub.f32 %v193, %v1328
    %v1330 = vand.u32 %v1329, 4294901760
    %v1331 = vsub.f32 %v1329, %v1330
    %v1332 = vand.u32 %v1331, 4294901760
    %1333 = vmatmul.f32.gmra.mxu0 %v1332
    %v1334 = vpop.f32.mrf.mxu0
    %v1335 = vadd.f32 %v181, %v1334
    %1336 = vdwg.mxu0
    %1337 = vmatpush.msra.mxu0 0.0
    %1338 = vmatpush.msra.mxu0 0.0
    %1339 = vmatpush.msra.mxu0 0.0
    %1340 = vmatpush.msra.mxu0 0.0
    %1341 = vmatpush.msra.mxu0 0.0
    %1342 = vmatpush.msra.mxu0 0.0
    %1343 = vmatpush.msra.mxu0 0.0
    %1344 = vmatpush.msra.mxu0 0.0
    %1345 = vmatpush.msra.mxu0 0.0
    %1346 = vmatpush.msra.mxu0 0.0
    %1347 = vmatpush.msra.mxu0 0.0
    %1348 = vmatpush.msra.mxu0 0.0
    %v1349 = vand.u32 %v65, 4294901760
    %v1350 = vsub.f32 %v65, %v1349
    %v1351 = vand.u32 %v1350, 4294901760
    %v1352 = vsub.f32 %v1350, %v1351
    %v1353 = vand.u32 %v1352, 4294901760
    %1354 = vmatpush.msra.mxu0 %v1353
    %v1355 = vand.u32 %v64, 4294901760
    %v1356 = vsub.f32 %v64, %v1355
    %v1357 = vand.u32 %v1356, 4294901760
    %v1358 = vsub.f32 %v1356, %v1357
    %v1359 = vand.u32 %v1358, 4294901760
    %1360 = vmatpush.msra.mxu0 %v1359
    %v1361 = vand.u32 %v63, 4294901760
    %v1362 = vsub.f32 %v63, %v1361
    %v1363 = vand.u32 %v1362, 4294901760
    %v1364 = vsub.f32 %v1362, %v1363
    %v1365 = vand.u32 %v1364, 4294901760
    %1366 = vmatpush.msra.mxu0 %v1365
    %v1367 = vand.u32 %v62, 4294901760
    %v1368 = vsub.f32 %v62, %v1367
    %v1369 = vand.u32 %v1368, 4294901760
    %v1370 = vsub.f32 %v1368, %v1369
    %v1371 = vand.u32 %v1370, 4294901760
    %1372 = vmatpush.msra.mxu0 %v1371
    %v1373 = vand.u32 %v193, 4294901760
    %1374 = vmatmul.f32.gmra.mxu0 %v1373
    %v1375 = vpop.f32.mrf.mxu0
    %v1376 = vadd.f32 %v1335, %v1375
    %1377 = vdwg.mxu0
    %1378 = vmatpush.msra.mxu0 0.0
    %1379 = vmatpush.msra.mxu0 0.0
    %1380 = vmatpush.msra.mxu0 0.0
    %1381 = vmatpush.msra.mxu0 0.0
    %1382 = vmatpush.msra.mxu0 0.0
    %1383 = vmatpush.msra.mxu0 0.0
    %1384 = vmatpush.msra.mxu0 0.0
    %1385 = vmatpush.msra.mxu0 0.0
    %1386 = vmatpush.msra.mxu0 0.0
    %1387 = vmatpush.msra.mxu0 0.0
    %1388 = vmatpush.msra.mxu0 0.0
    %1389 = vmatpush.msra.mxu0 0.0
    %v1390 = vand.u32 %v65, 4294901760
    %v1391 = vsub.f32 %v65, %v1390
    %1392 = vmatpush.msra.mxu0 %v1391
    %v1393 = vand.u32 %v64, 4294901760
    %v1394 = vsub.f32 %v64, %v1393
    %1395 = vmatpush.msra.mxu0 %v1394
    %v1396 = vand.u32 %v63, 4294901760
    %v1397 = vsub.f32 %v63, %v1396
    %1398 = vmatpush.msra.mxu0 %v1397
    %v1399 = vand.u32 %v62, 4294901760
    %v1400 = vsub.f32 %v62, %v1399
    %1401 = vmatpush.msra.mxu0 %v1400
    %v1402 = vand.u32 %v193, 4294901760
    %v1403 = vsub.f32 %v193, %v1402
    %1404 = vmatmul.f32.gmra.mxu0 %v1403
    %v1405 = vpop.f32.mrf.mxu0
    %v1406 = vadd.f32 %v1376, %v1405
    %1407 = vdwg.mxu0
    %1408 = vmatpush.msra.mxu0 0.0
    %1409 = vmatpush.msra.mxu0 0.0
    %1410 = vmatpush.msra.mxu0 0.0
    %1411 = vmatpush.msra.mxu0 0.0
    %1412 = vmatpush.msra.mxu0 0.0
    %1413 = vmatpush.msra.mxu0 0.0
    %1414 = vmatpush.msra.mxu0 0.0
    %1415 = vmatpush.msra.mxu0 0.0
    %1416 = vmatpush.msra.mxu0 0.0
    %1417 = vmatpush.msra.mxu0 0.0
    %1418 = vmatpush.msra.mxu0 0.0
    %1419 = vmatpush.msra.mxu0 0.0
    %v1420 = vand.u32 %v65, 4294901760
    %1421 = vmatpush.msra.mxu0 %v1420
    %v1422 = vand.u32 %v64, 4294901760
    %1423 = vmatpush.msra.mxu0 %v1422
    %v1424 = vand.u32 %v63, 4294901760
    %1425 = vmatpush.msra.mxu0 %v1424
    %v1426 = vand.u32 %v62, 4294901760
    %1427 = vmatpush.msra.mxu0 %v1426
    %v1428 = vand.u32 %v193, 4294901760
    %v1429 = vsub.f32 %v193, %v1428
    %v1430 = vand.u32 %v1429, 4294901760
    %1431 = vmatmul.f32.gmra.mxu0 %v1430
    %v1432 = vpop.f32.mrf.mxu0
    %v1433 = vadd.f32 %v1406, %v1432
    %1434 = vdwg.mxu0
    %1435 = vmatpush.msra.mxu0 0.0
    %1436 = vmatpush.msra.mxu0 0.0
    %1437 = vmatpush.msra.mxu0 0.0
    %1438 = vmatpush.msra.mxu0 0.0
    %1439 = vmatpush.msra.mxu0 0.0
    %1440 = vmatpush.msra.mxu0 0.0
    %1441 = vmatpush.msra.mxu0 0.0
    %1442 = vmatpush.msra.mxu0 0.0
    %1443 = vmatpush.msra.mxu0 0.0
    %1444 = vmatpush.msra.mxu0 0.0
    %1445 = vmatpush.msra.mxu0 0.0
    %1446 = vmatpush.msra.mxu0 0.0
    %v1447 = vand.u32 %v65, 4294901760
    %v1448 = vsub.f32 %v65, %v1447
    %v1449 = vand.u32 %v1448, 4294901760
    %1450 = vmatpush.msra.mxu0 %v1449
    %v1451 = vand.u32 %v64, 4294901760
    %v1452 = vsub.f32 %v64, %v1451
    %v1453 = vand.u32 %v1452, 4294901760
    %1454 = vmatpush.msra.mxu0 %v1453
    %v1455 = vand.u32 %v63, 4294901760
    %v1456 = vsub.f32 %v63, %v1455
    %v1457 = vand.u32 %v1456, 4294901760
    %1458 = vmatpush.msra.mxu0 %v1457
    %v1459 = vand.u32 %v62, 4294901760
    %v1460 = vsub.f32 %v62, %v1459
    %v1461 = vand.u32 %v1460, 4294901760
    %1462 = vmatpush.msra.mxu0 %v1461
    %v1463 = vand.u32 %v193, 4294901760
    %1464 = vmatmul.f32.gmra.mxu0 %v1463
    %v1465 = vpop.f32.mrf.mxu0
    %v1466 = vadd.f32 %v1433, %v1465
    %1467 = vdwg.mxu0
    %1468 = vmatpush.msra.mxu0 0.0
    %1469 = vmatpush.msra.mxu0 0.0
    %1470 = vmatpush.msra.mxu0 0.0
    %1471 = vmatpush.msra.mxu0 0.0
    %1472 = vmatpush.msra.mxu0 0.0
    %1473 = vmatpush.msra.mxu0 0.0
    %1474 = vmatpush.msra.mxu0 0.0
    %1475 = vmatpush.msra.mxu0 0.0
    %1476 = vmatpush.msra.mxu0 0.0
    %1477 = vmatpush.msra.mxu0 0.0
    %1478 = vmatpush.msra.mxu0 0.0
    %1479 = vmatpush.msra.mxu0 0.0
    %v1480 = vand.u32 %v65, 4294901760
    %1481 = vmatpush.msra.mxu0 %v1480
    %v1482 = vand.u32 %v64, 4294901760
    %1483 = vmatpush.msra.mxu0 %v1482
    %v1484 = vand.u32 %v63, 4294901760
    %1485 = vmatpush.msra.mxu0 %v1484
    %v1486 = vand.u32 %v62, 4294901760
    %1487 = vmatpush.msra.mxu0 %v1486
    %v1488 = vand.u32 %v193, 4294901760
    %1489 = vmatmul.f32.gmra.mxu0 %v1488
    %v1490 = vpop.f32.mrf.mxu0
    %v1491 = vadd.f32 %v1466, %v1490
    %1492 = vdwg.mxu0
    %1493 = vmatpush.msra.mxu0 0.0
    %1494 = vmatpush.msra.mxu0 0.0
    %1495 = vmatpush.msra.mxu0 0.0
    %1496 = vmatpush.msra.mxu0 0.0
    %1497 = vmatpush.msra.mxu0 0.0
    %1498 = vmatpush.msra.mxu0 0.0
    %1499 = vmatpush.msra.mxu0 0.0
    %1500 = vmatpush.msra.mxu0 0.0
    %1501 = vmatpush.msra.mxu0 0.0
    %1502 = vmatpush.msra.mxu0 0.0
    %1503 = vmatpush.msra.mxu0 0.0
    %1504 = vmatpush.msra.mxu0 0.0
    %v1505 = vand.u32 %v69, 4294901760
    %1506 = vmatpush.msra.mxu0 %v1505
    %v1507 = vand.u32 %v68, 4294901760
    %1508 = vmatpush.msra.mxu0 %v1507
    %v1509 = vand.u32 %v67, 4294901760
    %1510 = vmatpush.msra.mxu0 %v1509
    %v1511 = vand.u32 %v66, 4294901760
    %1512 = vmatpush.msra.mxu0 %v1511
    %v1513 = vand.u32 %v381, 4294901760
    %v1514 = vsub.f32 %v381, %v1513
    %v1515 = vand.u32 %v1514, 4294901760
    %v1516 = vsub.f32 %v1514, %v1515
    %v1517 = vand.u32 %v1516, 4294901760
    %1518 = vmatmul.f32.gmra.mxu0 %v1517
    %v1519 = vpop.f32.mrf.mxu0
    %v1520 = vadd.f32 %v182, %v1519
    %1521 = vdwg.mxu0
    %1522 = vmatpush.msra.mxu0 0.0
    %1523 = vmatpush.msra.mxu0 0.0
    %1524 = vmatpush.msra.mxu0 0.0
    %1525 = vmatpush.msra.mxu0 0.0
    %1526 = vmatpush.msra.mxu0 0.0
    %1527 = vmatpush.msra.mxu0 0.0
    %1528 = vmatpush.msra.mxu0 0.0
    %1529 = vmatpush.msra.mxu0 0.0
    %1530 = vmatpush.msra.mxu0 0.0
    %1531 = vmatpush.msra.mxu0 0.0
    %1532 = vmatpush.msra.mxu0 0.0
    %1533 = vmatpush.msra.mxu0 0.0
    %v1534 = vand.u32 %v69, 4294901760
    %v1535 = vsub.f32 %v69, %v1534
    %v1536 = vand.u32 %v1535, 4294901760
    %v1537 = vsub.f32 %v1535, %v1536
    %v1538 = vand.u32 %v1537, 4294901760
    %1539 = vmatpush.msra.mxu0 %v1538
    %v1540 = vand.u32 %v68, 4294901760
    %v1541 = vsub.f32 %v68, %v1540
    %v1542 = vand.u32 %v1541, 4294901760
    %v1543 = vsub.f32 %v1541, %v1542
    %v1544 = vand.u32 %v1543, 4294901760
    %1545 = vmatpush.msra.mxu0 %v1544
    %v1546 = vand.u32 %v67, 4294901760
    %v1547 = vsub.f32 %v67, %v1546
    %v1548 = vand.u32 %v1547, 4294901760
    %v1549 = vsub.f32 %v1547, %v1548
    %v1550 = vand.u32 %v1549, 4294901760
    %1551 = vmatpush.msra.mxu0 %v1550
    %v1552 = vand.u32 %v66, 4294901760
    %v1553 = vsub.f32 %v66, %v1552
    %v1554 = vand.u32 %v1553, 4294901760
    %v1555 = vsub.f32 %v1553, %v1554
    %v1556 = vand.u32 %v1555, 4294901760
    %1557 = vmatpush.msra.mxu0 %v1556
    %v1558 = vand.u32 %v381, 4294901760
    %1559 = vmatmul.f32.gmra.mxu0 %v1558
    %v1560 = vpop.f32.mrf.mxu0
    %v1561 = vadd.f32 %v1520, %v1560
    %1562 = vdwg.mxu0
    %1563 = vmatpush.msra.mxu0 0.0
    %1564 = vmatpush.msra.mxu0 0.0
    %1565 = vmatpush.msra.mxu0 0.0
    %1566 = vmatpush.msra.mxu0 0.0
    %1567 = vmatpush.msra.mxu0 0.0
    %1568 = vmatpush.msra.mxu0 0.0
    %1569 = vmatpush.msra.mxu0 0.0
    %1570 = vmatpush.msra.mxu0 0.0
    %1571 = vmatpush.msra.mxu0 0.0
    %1572 = vmatpush.msra.mxu0 0.0
    %1573 = vmatpush.msra.mxu0 0.0
    %1574 = vmatpush.msra.mxu0 0.0
    %v1575 = vand.u32 %v69, 4294901760
    %v1576 = vsub.f32 %v69, %v1575
    %1577 = vmatpush.msra.mxu0 %v1576
    %v1578 = vand.u32 %v68, 4294901760
    %v1579 = vsub.f32 %v68, %v1578
    %1580 = vmatpush.msra.mxu0 %v1579
    %v1581 = vand.u32 %v67, 4294901760
    %v1582 = vsub.f32 %v67, %v1581
    %1583 = vmatpush.msra.mxu0 %v1582
    %v1584 = vand.u32 %v66, 4294901760
    %v1585 = vsub.f32 %v66, %v1584
    %1586 = vmatpush.msra.mxu0 %v1585
    %v1587 = vand.u32 %v381, 4294901760
    %v1588 = vsub.f32 %v381, %v1587
    %1589 = vmatmul.f32.gmra.mxu0 %v1588
    %v1590 = vpop.f32.mrf.mxu0
    %v1591 = vadd.f32 %v1561, %v1590
    %1592 = vdwg.mxu0
    %1593 = vmatpush.msra.mxu0 0.0
    %1594 = vmatpush.msra.mxu0 0.0
    %1595 = vmatpush.msra.mxu0 0.0
    %1596 = vmatpush.msra.mxu0 0.0
    %1597 = vmatpush.msra.mxu0 0.0
    %1598 = vmatpush.msra.mxu0 0.0
    %1599 = vmatpush.msra.mxu0 0.0
    %1600 = vmatpush.msra.mxu0 0.0
    %1601 = vmatpush.msra.mxu0 0.0
    %1602 = vmatpush.msra.mxu0 0.0
    %1603 = vmatpush.msra.mxu0 0.0
    %1604 = vmatpush.msra.mxu0 0.0
    %v1605 = vand.u32 %v69, 4294901760
    %1606 = vmatpush.msra.mxu0 %v1605
    %v1607 = vand.u32 %v68, 4294901760
    %1608 = vmatpush.msra.mxu0 %v1607
    %v1609 = vand.u32 %v67, 4294901760
    %1610 = vmatpush.msra.mxu0 %v1609
    %v1611 = vand.u32 %v66, 4294901760
    %1612 = vmatpush.msra.mxu0 %v1611
    %v1613 = vand.u32 %v381, 4294901760
    %v1614 = vsub.f32 %v381, %v1613
    %v1615 = vand.u32 %v1614, 4294901760
    %1616 = vmatmul.f32.gmra.mxu0 %v1615
    %v1617 = vpop.f32.mrf.mxu0
    %v1618 = vadd.f32 %v1591, %v1617
    %1619 = vdwg.mxu0
    %1620 = vmatpush.msra.mxu0 0.0
    %1621 = vmatpush.msra.mxu0 0.0
    %1622 = vmatpush.msra.mxu0 0.0
    %1623 = vmatpush.msra.mxu0 0.0
    %1624 = vmatpush.msra.mxu0 0.0
    %1625 = vmatpush.msra.mxu0 0.0
    %1626 = vmatpush.msra.mxu0 0.0
    %1627 = vmatpush.msra.mxu0 0.0
    %1628 = vmatpush.msra.mxu0 0.0
    %1629 = vmatpush.msra.mxu0 0.0
    %1630 = vmatpush.msra.mxu0 0.0
    %1631 = vmatpush.msra.mxu0 0.0
    %v1632 = vand.u32 %v69, 4294901760
    %v1633 = vsub.f32 %v69, %v1632
    %v1634 = vand.u32 %v1633, 4294901760
    %1635 = vmatpush.msra.mxu0 %v1634
    %v1636 = vand.u32 %v68, 4294901760
    %v1637 = vsub.f32 %v68, %v1636
    %v1638 = vand.u32 %v1637, 4294901760
    %1639 = vmatpush.msra.mxu0 %v1638
    %v1640 = vand.u32 %v67, 4294901760
    %v1641 = vsub.f32 %v67, %v1640
    %v1642 = vand.u32 %v1641, 4294901760
    %1643 = vmatpush.msra.mxu0 %v1642
    %v1644 = vand.u32 %v66, 4294901760
    %v1645 = vsub.f32 %v66, %v1644
    %v1646 = vand.u32 %v1645, 4294901760
    %1647 = vmatpush.msra.mxu0 %v1646
    %v1648 = vand.u32 %v381, 4294901760
    %1649 = vmatmul.f32.gmra.mxu0 %v1648
    %v1650 = vpop.f32.mrf.mxu0
    %v1651 = vadd.f32 %v1618, %v1650
    %1652 = vdwg.mxu0
    %1653 = vmatpush.msra.mxu0 0.0
    %1654 = vmatpush.msra.mxu0 0.0
    %1655 = vmatpush.msra.mxu0 0.0
    %1656 = vmatpush.msra.mxu0 0.0
    %1657 = vmatpush.msra.mxu0 0.0
    %1658 = vmatpush.msra.mxu0 0.0
    %1659 = vmatpush.msra.mxu0 0.0
    %1660 = vmatpush.msra.mxu0 0.0
    %1661 = vmatpush.msra.mxu0 0.0
    %1662 = vmatpush.msra.mxu0 0.0
    %1663 = vmatpush.msra.mxu0 0.0
    %1664 = vmatpush.msra.mxu0 0.0
    %v1665 = vand.u32 %v69, 4294901760
    %1666 = vmatpush.msra.mxu0 %v1665
    %v1667 = vand.u32 %v68, 4294901760
    %1668 = vmatpush.msra.mxu0 %v1667
    %v1669 = vand.u32 %v67, 4294901760
    %1670 = vmatpush.msra.mxu0 %v1669
    %v1671 = vand.u32 %v66, 4294901760
    %1672 = vmatpush.msra.mxu0 %v1671
    %v1673 = vand.u32 %v381, 4294901760
    %1674 = vmatmul.f32.gmra.mxu0 %v1673
    %v1675 = vpop.f32.mrf.mxu0
    %v1676 = vadd.f32 %v1651, %v1675
    %1677 = vdwg.mxu0
    %v1686 = vperm.slane %v142, 0
    %v1687 = vperm.slane %v143, 0
    %v1688 = vperm.slane %v144, 0
    %v1689 = vperm.slane %v145, 0
    %v1690 = vperm.slane %v146, 0
    %v1691 = vperm.slane %v147, 0
    %v1692 = vperm.slane %v148, 0
    %v1693 = vperm.slane %v149, 0
    %1702 = vmatpush.msra.mxu0 0.0
    %1703 = vmatpush.msra.mxu0 0.0
    %1704 = vmatpush.msra.mxu0 0.0
    %1705 = vmatpush.msra.mxu0 0.0
    %1706 = vmatpush.msra.mxu0 0.0
    %1707 = vmatpush.msra.mxu0 0.0
    %1708 = vmatpush.msra.mxu0 0.0
    %1709 = vmatpush.msra.mxu0 0.0
    %1710 = vmatpush.msra.mxu0 0.0
    %1711 = vmatpush.msra.mxu0 0.0
    %1712 = vmatpush.msra.mxu0 0.0
    %1713 = vmatpush.msra.mxu0 0.0
    %v1714 = vand.u32 %v73, 4294901760
    %1715 = vmatpush.msra.mxu0 %v1714
    %v1716 = vand.u32 %v72, 4294901760
    %1717 = vmatpush.msra.mxu0 %v1716
    %v1718 = vand.u32 %v71, 4294901760
    %1719 = vmatpush.msra.mxu0 %v1718
    %v1720 = vand.u32 %v70, 4294901760
    %1721 = vmatpush.msra.mxu0 %v1720
    %v1722 = vand.u32 %v193, 4294901760
    %v1723 = vsub.f32 %v193, %v1722
    %v1724 = vand.u32 %v1723, 4294901760
    %v1725 = vsub.f32 %v1723, %v1724
    %v1726 = vand.u32 %v1725, 4294901760
    %1727 = vmatmul.f32.gmra.mxu0 %v1726
    %v1728 = vpop.f32.mrf.mxu0
    %v1729 = vadd.f32 %v1686, %v1728
    %1730 = vdwg.mxu0
    %1731 = vmatpush.msra.mxu0 0.0
    %1732 = vmatpush.msra.mxu0 0.0
    %1733 = vmatpush.msra.mxu0 0.0
    %1734 = vmatpush.msra.mxu0 0.0
    %1735 = vmatpush.msra.mxu0 0.0
    %1736 = vmatpush.msra.mxu0 0.0
    %1737 = vmatpush.msra.mxu0 0.0
    %1738 = vmatpush.msra.mxu0 0.0
    %1739 = vmatpush.msra.mxu0 0.0
    %1740 = vmatpush.msra.mxu0 0.0
    %1741 = vmatpush.msra.mxu0 0.0
    %1742 = vmatpush.msra.mxu0 0.0
    %v1743 = vand.u32 %v73, 4294901760
    %v1744 = vsub.f32 %v73, %v1743
    %v1745 = vand.u32 %v1744, 4294901760
    %v1746 = vsub.f32 %v1744, %v1745
    %v1747 = vand.u32 %v1746, 4294901760
    %1748 = vmatpush.msra.mxu0 %v1747
    %v1749 = vand.u32 %v72, 4294901760
    %v1750 = vsub.f32 %v72, %v1749
    %v1751 = vand.u32 %v1750, 4294901760
    %v1752 = vsub.f32 %v1750, %v1751
    %v1753 = vand.u32 %v1752, 4294901760
    %1754 = vmatpush.msra.mxu0 %v1753
    %v1755 = vand.u32 %v71, 4294901760
    %v1756 = vsub.f32 %v71, %v1755
    %v1757 = vand.u32 %v1756, 4294901760
    %v1758 = vsub.f32 %v1756, %v1757
    %v1759 = vand.u32 %v1758, 4294901760
    %1760 = vmatpush.msra.mxu0 %v1759
    %v1761 = vand.u32 %v70, 4294901760
    %v1762 = vsub.f32 %v70, %v1761
    %v1763 = vand.u32 %v1762, 4294901760
    %v1764 = vsub.f32 %v1762, %v1763
    %v1765 = vand.u32 %v1764, 4294901760
    %1766 = vmatpush.msra.mxu0 %v1765
    %v1767 = vand.u32 %v193, 4294901760
    %1768 = vmatmul.f32.gmra.mxu0 %v1767
    %v1769 = vpop.f32.mrf.mxu0
    %v1770 = vadd.f32 %v1729, %v1769
    %1771 = vdwg.mxu0
    %1772 = vmatpush.msra.mxu0 0.0
    %1773 = vmatpush.msra.mxu0 0.0
    %1774 = vmatpush.msra.mxu0 0.0
    %1775 = vmatpush.msra.mxu0 0.0
    %1776 = vmatpush.msra.mxu0 0.0
    %1777 = vmatpush.msra.mxu0 0.0
    %1778 = vmatpush.msra.mxu0 0.0
    %1779 = vmatpush.msra.mxu0 0.0
    %1780 = vmatpush.msra.mxu0 0.0
    %1781 = vmatpush.msra.mxu0 0.0
    %1782 = vmatpush.msra.mxu0 0.0
    %1783 = vmatpush.msra.mxu0 0.0
    %v1784 = vand.u32 %v73, 4294901760
    %v1785 = vsub.f32 %v73, %v1784
    %1786 = vmatpush.msra.mxu0 %v1785
    %v1787 = vand.u32 %v72, 4294901760
    %v1788 = vsub.f32 %v72, %v1787
    %1789 = vmatpush.msra.mxu0 %v1788
    %v1790 = vand.u32 %v71, 4294901760
    %v1791 = vsub.f32 %v71, %v1790
    %1792 = vmatpush.msra.mxu0 %v1791
    %v1793 = vand.u32 %v70, 4294901760
    %v1794 = vsub.f32 %v70, %v1793
    %1795 = vmatpush.msra.mxu0 %v1794
    %v1796 = vand.u32 %v193, 4294901760
    %v1797 = vsub.f32 %v193, %v1796
    %1798 = vmatmul.f32.gmra.mxu0 %v1797
    %v1799 = vpop.f32.mrf.mxu0
    %v1800 = vadd.f32 %v1770, %v1799
    %1801 = vdwg.mxu0
    %1802 = vmatpush.msra.mxu0 0.0
    %1803 = vmatpush.msra.mxu0 0.0
    %1804 = vmatpush.msra.mxu0 0.0
    %1805 = vmatpush.msra.mxu0 0.0
    %1806 = vmatpush.msra.mxu0 0.0
    %1807 = vmatpush.msra.mxu0 0.0
    %1808 = vmatpush.msra.mxu0 0.0
    %1809 = vmatpush.msra.mxu0 0.0
    %1810 = vmatpush.msra.mxu0 0.0
    %1811 = vmatpush.msra.mxu0 0.0
    %1812 = vmatpush.msra.mxu0 0.0
    %1813 = vmatpush.msra.mxu0 0.0
    %v1814 = vand.u32 %v73, 4294901760
    %1815 = vmatpush.msra.mxu0 %v1814
    %v1816 = vand.u32 %v72, 4294901760
    %1817 = vmatpush.msra.mxu0 %v1816
    %v1818 = vand.u32 %v71, 4294901760
    %1819 = vmatpush.msra.mxu0 %v1818
    %v1820 = vand.u32 %v70, 4294901760
    %1821 = vmatpush.msra.mxu0 %v1820
    %v1822 = vand.u32 %v193, 4294901760
    %v1823 = vsub.f32 %v193, %v1822
    %v1824 = vand.u32 %v1823, 4294901760
    %1825 = vmatmul.f32.gmra.mxu0 %v1824
    %v1826 = vpop.f32.mrf.mxu0
    %v1827 = vadd.f32 %v1800, %v1826
    %1828 = vdwg.mxu0
    %1829 = vmatpush.msra.mxu0 0.0
    %1830 = vmatpush.msra.mxu0 0.0
    %1831 = vmatpush.msra.mxu0 0.0
    %1832 = vmatpush.msra.mxu0 0.0
    %1833 = vmatpush.msra.mxu0 0.0
    %1834 = vmatpush.msra.mxu0 0.0
    %1835 = vmatpush.msra.mxu0 0.0
    %1836 = vmatpush.msra.mxu0 0.0
    %1837 = vmatpush.msra.mxu0 0.0
    %1838 = vmatpush.msra.mxu0 0.0
    %1839 = vmatpush.msra.mxu0 0.0
    %1840 = vmatpush.msra.mxu0 0.0
    %v1841 = vand.u32 %v73, 4294901760
    %v1842 = vsub.f32 %v73, %v1841
    %v1843 = vand.u32 %v1842, 4294901760
    %1844 = vmatpush.msra.mxu0 %v1843
    %v1845 = vand.u32 %v72, 4294901760
    %v1846 = vsub.f32 %v72, %v1845
    %v1847 = vand.u32 %v1846, 4294901760
    %1848 = vmatpush.msra.mxu0 %v1847
    %v1849 = vand.u32 %v71, 4294901760
    %v1850 = vsub.f32 %v71, %v1849
    %v1851 = vand.u32 %v1850, 4294901760
    %1852 = vmatpush.msra.mxu0 %v1851
    %v1853 = vand.u32 %v70, 4294901760
    %v1854 = vsub.f32 %v70, %v1853
    %v1855 = vand.u32 %v1854, 4294901760
    %1856 = vmatpush.msra.mxu0 %v1855
    %v1857 = vand.u32 %v193, 4294901760
    %1858 = vmatmul.f32.gmra.mxu0 %v1857
    %v1859 = vpop.f32.mrf.mxu0
    %v1860 = vadd.f32 %v1827, %v1859
    %1861 = vdwg.mxu0
    %1862 = vmatpush.msra.mxu0 0.0
    %1863 = vmatpush.msra.mxu0 0.0
    %1864 = vmatpush.msra.mxu0 0.0
    %1865 = vmatpush.msra.mxu0 0.0
    %1866 = vmatpush.msra.mxu0 0.0
    %1867 = vmatpush.msra.mxu0 0.0
    %1868 = vmatpush.msra.mxu0 0.0
    %1869 = vmatpush.msra.mxu0 0.0
    %1870 = vmatpush.msra.mxu0 0.0
    %1871 = vmatpush.msra.mxu0 0.0
    %1872 = vmatpush.msra.mxu0 0.0
    %1873 = vmatpush.msra.mxu0 0.0
    %v1874 = vand.u32 %v73, 4294901760
    %1875 = vmatpush.msra.mxu0 %v1874
    %v1876 = vand.u32 %v72, 4294901760
    %1877 = vmatpush.msra.mxu0 %v1876
    %v1878 = vand.u32 %v71, 4294901760
    %1879 = vmatpush.msra.mxu0 %v1878
    %v1880 = vand.u32 %v70, 4294901760
    %1881 = vmatpush.msra.mxu0 %v1880
    %v1882 = vand.u32 %v193, 4294901760
    %1883 = vmatmul.f32.gmra.mxu0 %v1882
    %v1884 = vpop.f32.mrf.mxu0
    %v1885 = vadd.f32 %v1860, %v1884
    %1886 = vdwg.mxu0
    %1887 = vmatpush.msra.mxu0 0.0
    %1888 = vmatpush.msra.mxu0 0.0
    %1889 = vmatpush.msra.mxu0 0.0
    %1890 = vmatpush.msra.mxu0 0.0
    %1891 = vmatpush.msra.mxu0 0.0
    %1892 = vmatpush.msra.mxu0 0.0
    %1893 = vmatpush.msra.mxu0 0.0
    %1894 = vmatpush.msra.mxu0 0.0
    %1895 = vmatpush.msra.mxu0 0.0
    %1896 = vmatpush.msra.mxu0 0.0
    %1897 = vmatpush.msra.mxu0 0.0
    %1898 = vmatpush.msra.mxu0 0.0
    %v1899 = vand.u32 %v77, 4294901760
    %1900 = vmatpush.msra.mxu0 %v1899
    %v1901 = vand.u32 %v76, 4294901760
    %1902 = vmatpush.msra.mxu0 %v1901
    %v1903 = vand.u32 %v75, 4294901760
    %1904 = vmatpush.msra.mxu0 %v1903
    %v1905 = vand.u32 %v74, 4294901760
    %1906 = vmatpush.msra.mxu0 %v1905
    %v1907 = vand.u32 %v381, 4294901760
    %v1908 = vsub.f32 %v381, %v1907
    %v1909 = vand.u32 %v1908, 4294901760
    %v1910 = vsub.f32 %v1908, %v1909
    %v1911 = vand.u32 %v1910, 4294901760
    %1912 = vmatmul.f32.gmra.mxu0 %v1911
    %v1913 = vpop.f32.mrf.mxu0
    %v1914 = vadd.f32 %v1687, %v1913
    %1915 = vdwg.mxu0
    %1916 = vmatpush.msra.mxu0 0.0
    %1917 = vmatpush.msra.mxu0 0.0
    %1918 = vmatpush.msra.mxu0 0.0
    %1919 = vmatpush.msra.mxu0 0.0
    %1920 = vmatpush.msra.mxu0 0.0
    %1921 = vmatpush.msra.mxu0 0.0
    %1922 = vmatpush.msra.mxu0 0.0
    %1923 = vmatpush.msra.mxu0 0.0
    %1924 = vmatpush.msra.mxu0 0.0
    %1925 = vmatpush.msra.mxu0 0.0
    %1926 = vmatpush.msra.mxu0 0.0
    %1927 = vmatpush.msra.mxu0 0.0
    %v1928 = vand.u32 %v77, 4294901760
    %v1929 = vsub.f32 %v77, %v1928
    %v1930 = vand.u32 %v1929, 4294901760
    %v1931 = vsub.f32 %v1929, %v1930
    %v1932 = vand.u32 %v1931, 4294901760
    %1933 = vmatpush.msra.mxu0 %v1932
    %v1934 = vand.u32 %v76, 4294901760
    %v1935 = vsub.f32 %v76, %v1934
    %v1936 = vand.u32 %v1935, 4294901760
    %v1937 = vsub.f32 %v1935, %v1936
    %v1938 = vand.u32 %v1937, 4294901760
    %1939 = vmatpush.msra.mxu0 %v1938
    %v1940 = vand.u32 %v75, 4294901760
    %v1941 = vsub.f32 %v75, %v1940
    %v1942 = vand.u32 %v1941, 4294901760
    %v1943 = vsub.f32 %v1941, %v1942
    %v1944 = vand.u32 %v1943, 4294901760
    %1945 = vmatpush.msra.mxu0 %v1944
    %v1946 = vand.u32 %v74, 4294901760
    %v1947 = vsub.f32 %v74, %v1946
    %v1948 = vand.u32 %v1947, 4294901760
    %v1949 = vsub.f32 %v1947, %v1948
    %v1950 = vand.u32 %v1949, 4294901760
    %1951 = vmatpush.msra.mxu0 %v1950
    %v1952 = vand.u32 %v381, 4294901760
    %1953 = vmatmul.f32.gmra.mxu0 %v1952
    %v1954 = vpop.f32.mrf.mxu0
    %v1955 = vadd.f32 %v1914, %v1954
    %1956 = vdwg.mxu0
    %1957 = vmatpush.msra.mxu0 0.0
    %1958 = vmatpush.msra.mxu0 0.0
    %1959 = vmatpush.msra.mxu0 0.0
    %1960 = vmatpush.msra.mxu0 0.0
    %1961 = vmatpush.msra.mxu0 0.0
    %1962 = vmatpush.msra.mxu0 0.0
    %1963 = vmatpush.msra.mxu0 0.0
    %1964 = vmatpush.msra.mxu0 0.0
    %1965 = vmatpush.msra.mxu0 0.0
    %1966 = vmatpush.msra.mxu0 0.0
    %1967 = vmatpush.msra.mxu0 0.0
    %1968 = vmatpush.msra.mxu0 0.0
    %v1969 = vand.u32 %v77, 4294901760
    %v1970 = vsub.f32 %v77, %v1969
    %1971 = vmatpush.msra.mxu0 %v1970
    %v1972 = vand.u32 %v76, 4294901760
    %v1973 = vsub.f32 %v76, %v1972
    %1974 = vmatpush.msra.mxu0 %v1973
    %v1975 = vand.u32 %v75, 4294901760
    %v1976 = vsub.f32 %v75, %v1975
    %1977 = vmatpush.msra.mxu0 %v1976
    %v1978 = vand.u32 %v74, 4294901760
    %v1979 = vsub.f32 %v74, %v1978
    %1980 = vmatpush.msra.mxu0 %v1979
    %v1981 = vand.u32 %v381, 4294901760
    %v1982 = vsub.f32 %v381, %v1981
    %1983 = vmatmul.f32.gmra.mxu0 %v1982
    %v1984 = vpop.f32.mrf.mxu0
    %v1985 = vadd.f32 %v1955, %v1984
    %1986 = vdwg.mxu0
    %1987 = vmatpush.msra.mxu0 0.0
    %1988 = vmatpush.msra.mxu0 0.0
    %1989 = vmatpush.msra.mxu0 0.0
    %1990 = vmatpush.msra.mxu0 0.0
    %1991 = vmatpush.msra.mxu0 0.0
    %1992 = vmatpush.msra.mxu0 0.0
    %1993 = vmatpush.msra.mxu0 0.0
    %1994 = vmatpush.msra.mxu0 0.0
    %1995 = vmatpush.msra.mxu0 0.0
    %1996 = vmatpush.msra.mxu0 0.0
    %1997 = vmatpush.msra.mxu0 0.0
    %1998 = vmatpush.msra.mxu0 0.0
    %v1999 = vand.u32 %v77, 4294901760
    %2000 = vmatpush.msra.mxu0 %v1999
    %v2001 = vand.u32 %v76, 4294901760
    %2002 = vmatpush.msra.mxu0 %v2001
    %v2003 = vand.u32 %v75, 4294901760
    %2004 = vmatpush.msra.mxu0 %v2003
    %v2005 = vand.u32 %v74, 4294901760
    %2006 = vmatpush.msra.mxu0 %v2005
    %v2007 = vand.u32 %v381, 4294901760
    %v2008 = vsub.f32 %v381, %v2007
    %v2009 = vand.u32 %v2008, 4294901760
    %2010 = vmatmul.f32.gmra.mxu0 %v2009
    %v2011 = vpop.f32.mrf.mxu0
    %v2012 = vadd.f32 %v1985, %v2011
    %2013 = vdwg.mxu0
    %2014 = vmatpush.msra.mxu0 0.0
    %2015 = vmatpush.msra.mxu0 0.0
    %2016 = vmatpush.msra.mxu0 0.0
    %2017 = vmatpush.msra.mxu0 0.0
    %2018 = vmatpush.msra.mxu0 0.0
    %2019 = vmatpush.msra.mxu0 0.0
    %2020 = vmatpush.msra.mxu0 0.0
    %2021 = vmatpush.msra.mxu0 0.0
    %2022 = vmatpush.msra.mxu0 0.0
    %2023 = vmatpush.msra.mxu0 0.0
    %2024 = vmatpush.msra.mxu0 0.0
    %2025 = vmatpush.msra.mxu0 0.0
    %v2026 = vand.u32 %v77, 4294901760
    %v2027 = vsub.f32 %v77, %v2026
    %v2028 = vand.u32 %v2027, 4294901760
    %2029 = vmatpush.msra.mxu0 %v2028
    %v2030 = vand.u32 %v76, 4294901760
    %v2031 = vsub.f32 %v76, %v2030
    %v2032 = vand.u32 %v2031, 4294901760
    %2033 = vmatpush.msra.mxu0 %v2032
    %v2034 = vand.u32 %v75, 4294901760
    %v2035 = vsub.f32 %v75, %v2034
    %v2036 = vand.u32 %v2035, 4294901760
    %2037 = vmatpush.msra.mxu0 %v2036
    %v2038 = vand.u32 %v74, 4294901760
    %v2039 = vsub.f32 %v74, %v2038
    %v2040 = vand.u32 %v2039, 4294901760
    %2041 = vmatpush.msra.mxu0 %v2040
    %v2042 = vand.u32 %v381, 4294901760
    %2043 = vmatmul.f32.gmra.mxu0 %v2042
    %v2044 = vpop.f32.mrf.mxu0
    %v2045 = vadd.f32 %v2012, %v2044
    %2046 = vdwg.mxu0
    %2047 = vmatpush.msra.mxu0 0.0
    %2048 = vmatpush.msra.mxu0 0.0
    %2049 = vmatpush.msra.mxu0 0.0
    %2050 = vmatpush.msra.mxu0 0.0
    %2051 = vmatpush.msra.mxu0 0.0
    %2052 = vmatpush.msra.mxu0 0.0
    %2053 = vmatpush.msra.mxu0 0.0
    %2054 = vmatpush.msra.mxu0 0.0
    %2055 = vmatpush.msra.mxu0 0.0
    %2056 = vmatpush.msra.mxu0 0.0
    %2057 = vmatpush.msra.mxu0 0.0
    %2058 = vmatpush.msra.mxu0 0.0
    %v2059 = vand.u32 %v77, 4294901760
    %2060 = vmatpush.msra.mxu0 %v2059
    %v2061 = vand.u32 %v76, 4294901760
    %2062 = vmatpush.msra.mxu0 %v2061
    %v2063 = vand.u32 %v75, 4294901760
    %2064 = vmatpush.msra.mxu0 %v2063
    %v2065 = vand.u32 %v74, 4294901760
    %2066 = vmatpush.msra.mxu0 %v2065
    %v2067 = vand.u32 %v381, 4294901760
    %2068 = vmatmul.f32.gmra.mxu0 %v2067
    %v2069 = vpop.f32.mrf.mxu0
    %v2070 = vadd.f32 %v2045, %v2069
    %2071 = vdwg.mxu0
    %2072 = vmatpush.msra.mxu0 0.0
    %2073 = vmatpush.msra.mxu0 0.0
    %2074 = vmatpush.msra.mxu0 0.0
    %2075 = vmatpush.msra.mxu0 0.0
    %2076 = vmatpush.msra.mxu0 0.0
    %2077 = vmatpush.msra.mxu0 0.0
    %2078 = vmatpush.msra.mxu0 0.0
    %2079 = vmatpush.msra.mxu0 0.0
    %2080 = vmatpush.msra.mxu0 0.0
    %2081 = vmatpush.msra.mxu0 0.0
    %2082 = vmatpush.msra.mxu0 0.0
    %2083 = vmatpush.msra.mxu0 0.0
    %v2084 = vand.u32 %v81, 4294901760
    %2085 = vmatpush.msra.mxu0 %v2084
    %v2086 = vand.u32 %v80, 4294901760
    %2087 = vmatpush.msra.mxu0 %v2086
    %v2088 = vand.u32 %v79, 4294901760
    %2089 = vmatpush.msra.mxu0 %v2088
    %v2090 = vand.u32 %v78, 4294901760
    %2091 = vmatpush.msra.mxu0 %v2090
    %v2092 = vand.u32 %v193, 4294901760
    %v2093 = vsub.f32 %v193, %v2092
    %v2094 = vand.u32 %v2093, 4294901760
    %v2095 = vsub.f32 %v2093, %v2094
    %v2096 = vand.u32 %v2095, 4294901760
    %2097 = vmatmul.f32.gmra.mxu0 %v2096
    %v2098 = vpop.f32.mrf.mxu0
    %v2099 = vadd.f32 %v1688, %v2098
    %2100 = vdwg.mxu0
    %2101 = vmatpush.msra.mxu0 0.0
    %2102 = vmatpush.msra.mxu0 0.0
    %2103 = vmatpush.msra.mxu0 0.0
    %2104 = vmatpush.msra.mxu0 0.0
    %2105 = vmatpush.msra.mxu0 0.0
    %2106 = vmatpush.msra.mxu0 0.0
    %2107 = vmatpush.msra.mxu0 0.0
    %2108 = vmatpush.msra.mxu0 0.0
    %2109 = vmatpush.msra.mxu0 0.0
    %2110 = vmatpush.msra.mxu0 0.0
    %2111 = vmatpush.msra.mxu0 0.0
    %2112 = vmatpush.msra.mxu0 0.0
    %v2113 = vand.u32 %v81, 4294901760
    %v2114 = vsub.f32 %v81, %v2113
    %v2115 = vand.u32 %v2114, 4294901760
    %v2116 = vsub.f32 %v2114, %v2115
    %v2117 = vand.u32 %v2116, 4294901760
    %2118 = vmatpush.msra.mxu0 %v2117
    %v2119 = vand.u32 %v80, 4294901760
    %v2120 = vsub.f32 %v80, %v2119
    %v2121 = vand.u32 %v2120, 4294901760
    %v2122 = vsub.f32 %v2120, %v2121
    %v2123 = vand.u32 %v2122, 4294901760
    %2124 = vmatpush.msra.mxu0 %v2123
    %v2125 = vand.u32 %v79, 4294901760
    %v2126 = vsub.f32 %v79, %v2125
    %v2127 = vand.u32 %v2126, 4294901760
    %v2128 = vsub.f32 %v2126, %v2127
    %v2129 = vand.u32 %v2128, 4294901760
    %2130 = vmatpush.msra.mxu0 %v2129
    %v2131 = vand.u32 %v78, 4294901760
    %v2132 = vsub.f32 %v78, %v2131
    %v2133 = vand.u32 %v2132, 4294901760
    %v2134 = vsub.f32 %v2132, %v2133
    %v2135 = vand.u32 %v2134, 4294901760
    %2136 = vmatpush.msra.mxu0 %v2135
    %v2137 = vand.u32 %v193, 4294901760
    %2138 = vmatmul.f32.gmra.mxu0 %v2137
    %v2139 = vpop.f32.mrf.mxu0
    %v2140 = vadd.f32 %v2099, %v2139
    %2141 = vdwg.mxu0
    %2142 = vmatpush.msra.mxu0 0.0
    %2143 = vmatpush.msra.mxu0 0.0
    %2144 = vmatpush.msra.mxu0 0.0
    %2145 = vmatpush.msra.mxu0 0.0
    %2146 = vmatpush.msra.mxu0 0.0
    %2147 = vmatpush.msra.mxu0 0.0
    %2148 = vmatpush.msra.mxu0 0.0
    %2149 = vmatpush.msra.mxu0 0.0
    %2150 = vmatpush.msra.mxu0 0.0
    %2151 = vmatpush.msra.mxu0 0.0
    %2152 = vmatpush.msra.mxu0 0.0
    %2153 = vmatpush.msra.mxu0 0.0
    %v2154 = vand.u32 %v81, 4294901760
    %v2155 = vsub.f32 %v81, %v2154
    %2156 = vmatpush.msra.mxu0 %v2155
    %v2157 = vand.u32 %v80, 4294901760
    %v2158 = vsub.f32 %v80, %v2157
    %2159 = vmatpush.msra.mxu0 %v2158
    %v2160 = vand.u32 %v79, 4294901760
    %v2161 = vsub.f32 %v79, %v2160
    %2162 = vmatpush.msra.mxu0 %v2161
    %v2163 = vand.u32 %v78, 4294901760
    %v2164 = vsub.f32 %v78, %v2163
    %2165 = vmatpush.msra.mxu0 %v2164
    %v2166 = vand.u32 %v193, 4294901760
    %v2167 = vsub.f32 %v193, %v2166
    %2168 = vmatmul.f32.gmra.mxu0 %v2167
    %v2169 = vpop.f32.mrf.mxu0
    %v2170 = vadd.f32 %v2140, %v2169
    %2171 = vdwg.mxu0
    %2172 = vmatpush.msra.mxu0 0.0
    %2173 = vmatpush.msra.mxu0 0.0
    %2174 = vmatpush.msra.mxu0 0.0
    %2175 = vmatpush.msra.mxu0 0.0
    %2176 = vmatpush.msra.mxu0 0.0
    %2177 = vmatpush.msra.mxu0 0.0
    %2178 = vmatpush.msra.mxu0 0.0
    %2179 = vmatpush.msra.mxu0 0.0
    %2180 = vmatpush.msra.mxu0 0.0
    %2181 = vmatpush.msra.mxu0 0.0
    %2182 = vmatpush.msra.mxu0 0.0
    %2183 = vmatpush.msra.mxu0 0.0
    %v2184 = vand.u32 %v81, 4294901760
    %2185 = vmatpush.msra.mxu0 %v2184
    %v2186 = vand.u32 %v80, 4294901760
    %2187 = vmatpush.msra.mxu0 %v2186
    %v2188 = vand.u32 %v79, 4294901760
    %2189 = vmatpush.msra.mxu0 %v2188
    %v2190 = vand.u32 %v78, 4294901760
    %2191 = vmatpush.msra.mxu0 %v2190
    %v2192 = vand.u32 %v193, 4294901760
    %v2193 = vsub.f32 %v193, %v2192
    %v2194 = vand.u32 %v2193, 4294901760
    %2195 = vmatmul.f32.gmra.mxu0 %v2194
    %v2196 = vpop.f32.mrf.mxu0
    %v2197 = vadd.f32 %v2170, %v2196
    %2198 = vdwg.mxu0
    %2199 = vmatpush.msra.mxu0 0.0
    %2200 = vmatpush.msra.mxu0 0.0
    %2201 = vmatpush.msra.mxu0 0.0
    %2202 = vmatpush.msra.mxu0 0.0
    %2203 = vmatpush.msra.mxu0 0.0
    %2204 = vmatpush.msra.mxu0 0.0
    %2205 = vmatpush.msra.mxu0 0.0
    %2206 = vmatpush.msra.mxu0 0.0
    %2207 = vmatpush.msra.mxu0 0.0
    %2208 = vmatpush.msra.mxu0 0.0
    %2209 = vmatpush.msra.mxu0 0.0
    %2210 = vmatpush.msra.mxu0 0.0
    %v2211 = vand.u32 %v81, 4294901760
    %v2212 = vsub.f32 %v81, %v2211
    %v2213 = vand.u32 %v2212, 4294901760
    %2214 = vmatpush.msra.mxu0 %v2213
    %v2215 = vand.u32 %v80, 4294901760
    %v2216 = vsub.f32 %v80, %v2215
    %v2217 = vand.u32 %v2216, 4294901760
    %2218 = vmatpush.msra.mxu0 %v2217
    %v2219 = vand.u32 %v79, 4294901760
    %v2220 = vsub.f32 %v79, %v2219
    %v2221 = vand.u32 %v2220, 4294901760
    %2222 = vmatpush.msra.mxu0 %v2221
    %v2223 = vand.u32 %v78, 4294901760
    %v2224 = vsub.f32 %v78, %v2223
    %v2225 = vand.u32 %v2224, 4294901760
    %2226 = vmatpush.msra.mxu0 %v2225
    %v2227 = vand.u32 %v193, 4294901760
    %2228 = vmatmul.f32.gmra.mxu0 %v2227
    %v2229 = vpop.f32.mrf.mxu0
    %v2230 = vadd.f32 %v2197, %v2229
    %2231 = vdwg.mxu0
    %2232 = vmatpush.msra.mxu0 0.0
    %2233 = vmatpush.msra.mxu0 0.0
    %2234 = vmatpush.msra.mxu0 0.0
    %2235 = vmatpush.msra.mxu0 0.0
    %2236 = vmatpush.msra.mxu0 0.0
    %2237 = vmatpush.msra.mxu0 0.0
    %2238 = vmatpush.msra.mxu0 0.0
    %2239 = vmatpush.msra.mxu0 0.0
    %2240 = vmatpush.msra.mxu0 0.0
    %2241 = vmatpush.msra.mxu0 0.0
    %2242 = vmatpush.msra.mxu0 0.0
    %2243 = vmatpush.msra.mxu0 0.0
    %v2244 = vand.u32 %v81, 4294901760
    %2245 = vmatpush.msra.mxu0 %v2244
    %v2246 = vand.u32 %v80, 4294901760
    %2247 = vmatpush.msra.mxu0 %v2246
    %v2248 = vand.u32 %v79, 4294901760
    %2249 = vmatpush.msra.mxu0 %v2248
    %v2250 = vand.u32 %v78, 4294901760
    %2251 = vmatpush.msra.mxu0 %v2250
    %v2252 = vand.u32 %v193, 4294901760
    %2253 = vmatmul.f32.gmra.mxu0 %v2252
    %v2254 = vpop.f32.mrf.mxu0
    %v2255 = vadd.f32 %v2230, %v2254
    %2256 = vdwg.mxu0
    %2257 = vmatpush.msra.mxu0 0.0
    %2258 = vmatpush.msra.mxu0 0.0
    %2259 = vmatpush.msra.mxu0 0.0
    %2260 = vmatpush.msra.mxu0 0.0
    %2261 = vmatpush.msra.mxu0 0.0
    %2262 = vmatpush.msra.mxu0 0.0
    %2263 = vmatpush.msra.mxu0 0.0
    %2264 = vmatpush.msra.mxu0 0.0
    %2265 = vmatpush.msra.mxu0 0.0
    %2266 = vmatpush.msra.mxu0 0.0
    %2267 = vmatpush.msra.mxu0 0.0
    %2268 = vmatpush.msra.mxu0 0.0
    %v2269 = vand.u32 %v85, 4294901760
    %2270 = vmatpush.msra.mxu0 %v2269
    %v2271 = vand.u32 %v84, 4294901760
    %2272 = vmatpush.msra.mxu0 %v2271
    %v2273 = vand.u32 %v83, 4294901760
    %2274 = vmatpush.msra.mxu0 %v2273
    %v2275 = vand.u32 %v82, 4294901760
    %2276 = vmatpush.msra.mxu0 %v2275
    %v2277 = vand.u32 %v381, 4294901760
    %v2278 = vsub.f32 %v381, %v2277
    %v2279 = vand.u32 %v2278, 4294901760
    %v2280 = vsub.f32 %v2278, %v2279
    %v2281 = vand.u32 %v2280, 4294901760
    %2282 = vmatmul.f32.gmra.mxu0 %v2281
    %v2283 = vpop.f32.mrf.mxu0
    %v2284 = vadd.f32 %v1689, %v2283
    %2285 = vdwg.mxu0
    %2286 = vmatpush.msra.mxu0 0.0
    %2287 = vmatpush.msra.mxu0 0.0
    %2288 = vmatpush.msra.mxu0 0.0
    %2289 = vmatpush.msra.mxu0 0.0
    %2290 = vmatpush.msra.mxu0 0.0
    %2291 = vmatpush.msra.mxu0 0.0
    %2292 = vmatpush.msra.mxu0 0.0
    %2293 = vmatpush.msra.mxu0 0.0
    %2294 = vmatpush.msra.mxu0 0.0
    %2295 = vmatpush.msra.mxu0 0.0
    %2296 = vmatpush.msra.mxu0 0.0
    %2297 = vmatpush.msra.mxu0 0.0
    %v2298 = vand.u32 %v85, 4294901760
    %v2299 = vsub.f32 %v85, %v2298
    %v2300 = vand.u32 %v2299, 4294901760
    %v2301 = vsub.f32 %v2299, %v2300
    %v2302 = vand.u32 %v2301, 4294901760
    %2303 = vmatpush.msra.mxu0 %v2302
    %v2304 = vand.u32 %v84, 4294901760
    %v2305 = vsub.f32 %v84, %v2304
    %v2306 = vand.u32 %v2305, 4294901760
    %v2307 = vsub.f32 %v2305, %v2306
    %v2308 = vand.u32 %v2307, 4294901760
    %2309 = vmatpush.msra.mxu0 %v2308
    %v2310 = vand.u32 %v83, 4294901760
    %v2311 = vsub.f32 %v83, %v2310
    %v2312 = vand.u32 %v2311, 4294901760
    %v2313 = vsub.f32 %v2311, %v2312
    %v2314 = vand.u32 %v2313, 4294901760
    %2315 = vmatpush.msra.mxu0 %v2314
    %v2316 = vand.u32 %v82, 4294901760
    %v2317 = vsub.f32 %v82, %v2316
    %v2318 = vand.u32 %v2317, 4294901760
    %v2319 = vsub.f32 %v2317, %v2318
    %v2320 = vand.u32 %v2319, 4294901760
    %2321 = vmatpush.msra.mxu0 %v2320
    %v2322 = vand.u32 %v381, 4294901760
    %2323 = vmatmul.f32.gmra.mxu0 %v2322
    %v2324 = vpop.f32.mrf.mxu0
    %v2325 = vadd.f32 %v2284, %v2324
    %2326 = vdwg.mxu0
    %2327 = vmatpush.msra.mxu0 0.0
    %2328 = vmatpush.msra.mxu0 0.0
    %2329 = vmatpush.msra.mxu0 0.0
    %2330 = vmatpush.msra.mxu0 0.0
    %2331 = vmatpush.msra.mxu0 0.0
    %2332 = vmatpush.msra.mxu0 0.0
    %2333 = vmatpush.msra.mxu0 0.0
    %2334 = vmatpush.msra.mxu0 0.0
    %2335 = vmatpush.msra.mxu0 0.0
    %2336 = vmatpush.msra.mxu0 0.0
    %2337 = vmatpush.msra.mxu0 0.0
    %2338 = vmatpush.msra.mxu0 0.0
    %v2339 = vand.u32 %v85, 4294901760
    %v2340 = vsub.f32 %v85, %v2339
    %2341 = vmatpush.msra.mxu0 %v2340
    %v2342 = vand.u32 %v84, 4294901760
    %v2343 = vsub.f32 %v84, %v2342
    %2344 = vmatpush.msra.mxu0 %v2343
    %v2345 = vand.u32 %v83, 4294901760
    %v2346 = vsub.f32 %v83, %v2345
    %2347 = vmatpush.msra.mxu0 %v2346
    %v2348 = vand.u32 %v82, 4294901760
    %v2349 = vsub.f32 %v82, %v2348
    %2350 = vmatpush.msra.mxu0 %v2349
    %v2351 = vand.u32 %v381, 4294901760
    %v2352 = vsub.f32 %v381, %v2351
    %2353 = vmatmul.f32.gmra.mxu0 %v2352
    %v2354 = vpop.f32.mrf.mxu0
    %v2355 = vadd.f32 %v2325, %v2354
    %2356 = vdwg.mxu0
    %2357 = vmatpush.msra.mxu0 0.0
    %2358 = vmatpush.msra.mxu0 0.0
    %2359 = vmatpush.msra.mxu0 0.0
    %2360 = vmatpush.msra.mxu0 0.0
    %2361 = vmatpush.msra.mxu0 0.0
    %2362 = vmatpush.msra.mxu0 0.0
    %2363 = vmatpush.msra.mxu0 0.0
    %2364 = vmatpush.msra.mxu0 0.0
    %2365 = vmatpush.msra.mxu0 0.0
    %2366 = vmatpush.msra.mxu0 0.0
    %2367 = vmatpush.msra.mxu0 0.0
    %2368 = vmatpush.msra.mxu0 0.0
    %v2369 = vand.u32 %v85, 4294901760
    %2370 = vmatpush.msra.mxu0 %v2369
    %v2371 = vand.u32 %v84, 4294901760
    %2372 = vmatpush.msra.mxu0 %v2371
    %v2373 = vand.u32 %v83, 4294901760
    %2374 = vmatpush.msra.mxu0 %v2373
    %v2375 = vand.u32 %v82, 4294901760
    %2376 = vmatpush.msra.mxu0 %v2375
    %v2377 = vand.u32 %v381, 4294901760
    %v2378 = vsub.f32 %v381, %v2377
    %v2379 = vand.u32 %v2378, 4294901760
    %2380 = vmatmul.f32.gmra.mxu0 %v2379
    %v2381 = vpop.f32.mrf.mxu0
    %v2382 = vadd.f32 %v2355, %v2381
    %2383 = vdwg.mxu0
    %2384 = vmatpush.msra.mxu0 0.0
    %2385 = vmatpush.msra.mxu0 0.0
    %2386 = vmatpush.msra.mxu0 0.0
    %2387 = vmatpush.msra.mxu0 0.0
    %2388 = vmatpush.msra.mxu0 0.0
    %2389 = vmatpush.msra.mxu0 0.0
    %2390 = vmatpush.msra.mxu0 0.0
    %2391 = vmatpush.msra.mxu0 0.0
    %2392 = vmatpush.msra.mxu0 0.0
    %2393 = vmatpush.msra.mxu0 0.0
    %2394 = vmatpush.msra.mxu0 0.0
    %2395 = vmatpush.msra.mxu0 0.0
    %v2396 = vand.u32 %v85, 4294901760
    %v2397 = vsub.f32 %v85, %v2396
    %v2398 = vand.u32 %v2397, 4294901760
    %2399 = vmatpush.msra.mxu0 %v2398
    %v2400 = vand.u32 %v84, 4294901760
    %v2401 = vsub.f32 %v84, %v2400
    %v2402 = vand.u32 %v2401, 4294901760
    %2403 = vmatpush.msra.mxu0 %v2402
    %v2404 = vand.u32 %v83, 4294901760
    %v2405 = vsub.f32 %v83, %v2404
    %v2406 = vand.u32 %v2405, 4294901760
    %2407 = vmatpush.msra.mxu0 %v2406
    %v2408 = vand.u32 %v82, 4294901760
    %v2409 = vsub.f32 %v82, %v2408
    %v2410 = vand.u32 %v2409, 4294901760
    %2411 = vmatpush.msra.mxu0 %v2410
    %v2412 = vand.u32 %v381, 4294901760
    %2413 = vmatmul.f32.gmra.mxu0 %v2412
    %v2414 = vpop.f32.mrf.mxu0
    %v2415 = vadd.f32 %v2382, %v2414
    %2416 = vdwg.mxu0
    %2417 = vmatpush.msra.mxu0 0.0
    %2418 = vmatpush.msra.mxu0 0.0
    %2419 = vmatpush.msra.mxu0 0.0
    %2420 = vmatpush.msra.mxu0 0.0
    %2421 = vmatpush.msra.mxu0 0.0
    %2422 = vmatpush.msra.mxu0 0.0
    %2423 = vmatpush.msra.mxu0 0.0
    %2424 = vmatpush.msra.mxu0 0.0
    %2425 = vmatpush.msra.mxu0 0.0
    %2426 = vmatpush.msra.mxu0 0.0
    %2427 = vmatpush.msra.mxu0 0.0
    %2428 = vmatpush.msra.mxu0 0.0
    %v2429 = vand.u32 %v85, 4294901760
    %2430 = vmatpush.msra.mxu0 %v2429
    %v2431 = vand.u32 %v84, 4294901760
    %2432 = vmatpush.msra.mxu0 %v2431
    %v2433 = vand.u32 %v83, 4294901760
    %2434 = vmatpush.msra.mxu0 %v2433
    %v2435 = vand.u32 %v82, 4294901760
    %2436 = vmatpush.msra.mxu0 %v2435
    %v2437 = vand.u32 %v381, 4294901760
    %2438 = vmatmul.f32.gmra.mxu0 %v2437
    %v2439 = vpop.f32.mrf.mxu0
    %v2440 = vadd.f32 %v2415, %v2439
    %2441 = vdwg.mxu0
    %2442 = vmatpush.msra.mxu0 0.0
    %2443 = vmatpush.msra.mxu0 0.0
    %2444 = vmatpush.msra.mxu0 0.0
    %2445 = vmatpush.msra.mxu0 0.0
    %2446 = vmatpush.msra.mxu0 0.0
    %2447 = vmatpush.msra.mxu0 0.0
    %2448 = vmatpush.msra.mxu0 0.0
    %2449 = vmatpush.msra.mxu0 0.0
    %2450 = vmatpush.msra.mxu0 0.0
    %2451 = vmatpush.msra.mxu0 0.0
    %2452 = vmatpush.msra.mxu0 0.0
    %2453 = vmatpush.msra.mxu0 0.0
    %v2454 = vand.u32 %v89, 4294901760
    %2455 = vmatpush.msra.mxu0 %v2454
    %v2456 = vand.u32 %v88, 4294901760
    %2457 = vmatpush.msra.mxu0 %v2456
    %v2458 = vand.u32 %v87, 4294901760
    %2459 = vmatpush.msra.mxu0 %v2458
    %v2460 = vand.u32 %v86, 4294901760
    %2461 = vmatpush.msra.mxu0 %v2460
    %v2462 = vand.u32 %v193, 4294901760
    %v2463 = vsub.f32 %v193, %v2462
    %v2464 = vand.u32 %v2463, 4294901760
    %v2465 = vsub.f32 %v2463, %v2464
    %v2466 = vand.u32 %v2465, 4294901760
    %2467 = vmatmul.f32.gmra.mxu0 %v2466
    %v2468 = vpop.f32.mrf.mxu0
    %v2469 = vadd.f32 %v1690, %v2468
    %2470 = vdwg.mxu0
    %2471 = vmatpush.msra.mxu0 0.0
    %2472 = vmatpush.msra.mxu0 0.0
    %2473 = vmatpush.msra.mxu0 0.0
    %2474 = vmatpush.msra.mxu0 0.0
    %2475 = vmatpush.msra.mxu0 0.0
    %2476 = vmatpush.msra.mxu0 0.0
    %2477 = vmatpush.msra.mxu0 0.0
    %2478 = vmatpush.msra.mxu0 0.0
    %2479 = vmatpush.msra.mxu0 0.0
    %2480 = vmatpush.msra.mxu0 0.0
    %2481 = vmatpush.msra.mxu0 0.0
    %2482 = vmatpush.msra.mxu0 0.0
    %v2483 = vand.u32 %v89, 4294901760
    %v2484 = vsub.f32 %v89, %v2483
    %v2485 = vand.u32 %v2484, 4294901760
    %v2486 = vsub.f32 %v2484, %v2485
    %v2487 = vand.u32 %v2486, 4294901760
    %2488 = vmatpush.msra.mxu0 %v2487
    %v2489 = vand.u32 %v88, 4294901760
    %v2490 = vsub.f32 %v88, %v2489
    %v2491 = vand.u32 %v2490, 4294901760
    %v2492 = vsub.f32 %v2490, %v2491
    %v2493 = vand.u32 %v2492, 4294901760
    %2494 = vmatpush.msra.mxu0 %v2493
    %v2495 = vand.u32 %v87, 4294901760
    %v2496 = vsub.f32 %v87, %v2495
    %v2497 = vand.u32 %v2496, 4294901760
    %v2498 = vsub.f32 %v2496, %v2497
    %v2499 = vand.u32 %v2498, 4294901760
    %2500 = vmatpush.msra.mxu0 %v2499
    %v2501 = vand.u32 %v86, 4294901760
    %v2502 = vsub.f32 %v86, %v2501
    %v2503 = vand.u32 %v2502, 4294901760
    %v2504 = vsub.f32 %v2502, %v2503
    %v2505 = vand.u32 %v2504, 4294901760
    %2506 = vmatpush.msra.mxu0 %v2505
    %v2507 = vand.u32 %v193, 4294901760
    %2508 = vmatmul.f32.gmra.mxu0 %v2507
    %v2509 = vpop.f32.mrf.mxu0
    %v2510 = vadd.f32 %v2469, %v2509
    %2511 = vdwg.mxu0
    %2512 = vmatpush.msra.mxu0 0.0
    %2513 = vmatpush.msra.mxu0 0.0
    %2514 = vmatpush.msra.mxu0 0.0
    %2515 = vmatpush.msra.mxu0 0.0
    %2516 = vmatpush.msra.mxu0 0.0
    %2517 = vmatpush.msra.mxu0 0.0
    %2518 = vmatpush.msra.mxu0 0.0
    %2519 = vmatpush.msra.mxu0 0.0
    %2520 = vmatpush.msra.mxu0 0.0
    %2521 = vmatpush.msra.mxu0 0.0
    %2522 = vmatpush.msra.mxu0 0.0
    %2523 = vmatpush.msra.mxu0 0.0
    %v2524 = vand.u32 %v89, 4294901760
    %v2525 = vsub.f32 %v89, %v2524
    %2526 = vmatpush.msra.mxu0 %v2525
    %v2527 = vand.u32 %v88, 4294901760
    %v2528 = vsub.f32 %v88, %v2527
    %2529 = vmatpush.msra.mxu0 %v2528
    %v2530 = vand.u32 %v87, 4294901760
    %v2531 = vsub.f32 %v87, %v2530
    %2532 = vmatpush.msra.mxu0 %v2531
    %v2533 = vand.u32 %v86, 4294901760
    %v2534 = vsub.f32 %v86, %v2533
    %2535 = vmatpush.msra.mxu0 %v2534
    %v2536 = vand.u32 %v193, 4294901760
    %v2537 = vsub.f32 %v193, %v2536
    %2538 = vmatmul.f32.gmra.mxu0 %v2537
    %v2539 = vpop.f32.mrf.mxu0
    %v2540 = vadd.f32 %v2510, %v2539
    %2541 = vdwg.mxu0
    %2542 = vmatpush.msra.mxu0 0.0
    %2543 = vmatpush.msra.mxu0 0.0
    %2544 = vmatpush.msra.mxu0 0.0
    %2545 = vmatpush.msra.mxu0 0.0
    %2546 = vmatpush.msra.mxu0 0.0
    %2547 = vmatpush.msra.mxu0 0.0
    %2548 = vmatpush.msra.mxu0 0.0
    %2549 = vmatpush.msra.mxu0 0.0
    %2550 = vmatpush.msra.mxu0 0.0
    %2551 = vmatpush.msra.mxu0 0.0
    %2552 = vmatpush.msra.mxu0 0.0
    %2553 = vmatpush.msra.mxu0 0.0
    %v2554 = vand.u32 %v89, 4294901760
    %2555 = vmatpush.msra.mxu0 %v2554
    %v2556 = vand.u32 %v88, 4294901760
    %2557 = vmatpush.msra.mxu0 %v2556
    %v2558 = vand.u32 %v87, 4294901760
    %2559 = vmatpush.msra.mxu0 %v2558
    %v2560 = vand.u32 %v86, 4294901760
    %2561 = vmatpush.msra.mxu0 %v2560
    %v2562 = vand.u32 %v193, 4294901760
    %v2563 = vsub.f32 %v193, %v2562
    %v2564 = vand.u32 %v2563, 4294901760
    %2565 = vmatmul.f32.gmra.mxu0 %v2564
    %v2566 = vpop.f32.mrf.mxu0
    %v2567 = vadd.f32 %v2540, %v2566
    %2568 = vdwg.mxu0
    %2569 = vmatpush.msra.mxu0 0.0
    %2570 = vmatpush.msra.mxu0 0.0
    %2571 = vmatpush.msra.mxu0 0.0
    %2572 = vmatpush.msra.mxu0 0.0
    %2573 = vmatpush.msra.mxu0 0.0
    %2574 = vmatpush.msra.mxu0 0.0
    %2575 = vmatpush.msra.mxu0 0.0
    %2576 = vmatpush.msra.mxu0 0.0
    %2577 = vmatpush.msra.mxu0 0.0
    %2578 = vmatpush.msra.mxu0 0.0
    %2579 = vmatpush.msra.mxu0 0.0
    %2580 = vmatpush.msra.mxu0 0.0
    %v2581 = vand.u32 %v89, 4294901760
    %v2582 = vsub.f32 %v89, %v2581
    %v2583 = vand.u32 %v2582, 4294901760
    %2584 = vmatpush.msra.mxu0 %v2583
    %v2585 = vand.u32 %v88, 4294901760
    %v2586 = vsub.f32 %v88, %v2585
    %v2587 = vand.u32 %v2586, 4294901760
    %2588 = vmatpush.msra.mxu0 %v2587
    %v2589 = vand.u32 %v87, 4294901760
    %v2590 = vsub.f32 %v87, %v2589
    %v2591 = vand.u32 %v2590, 4294901760
    %2592 = vmatpush.msra.mxu0 %v2591
    %v2593 = vand.u32 %v86, 4294901760
    %v2594 = vsub.f32 %v86, %v2593
    %v2595 = vand.u32 %v2594, 4294901760
    %2596 = vmatpush.msra.mxu0 %v2595
    %v2597 = vand.u32 %v193, 4294901760
    %2598 = vmatmul.f32.gmra.mxu0 %v2597
    %v2599 = vpop.f32.mrf.mxu0
    %v2600 = vadd.f32 %v2567, %v2599
    %2601 = vdwg.mxu0
    %2602 = vmatpush.msra.mxu0 0.0
    %2603 = vmatpush.msra.mxu0 0.0
    %2604 = vmatpush.msra.mxu0 0.0
    %2605 = vmatpush.msra.mxu0 0.0
    %2606 = vmatpush.msra.mxu0 0.0
    %2607 = vmatpush.msra.mxu0 0.0
    %2608 = vmatpush.msra.mxu0 0.0
    %2609 = vmatpush.msra.mxu0 0.0
    %2610 = vmatpush.msra.mxu0 0.0
    %2611 = vmatpush.msra.mxu0 0.0
    %2612 = vmatpush.msra.mxu0 0.0
    %2613 = vmatpush.msra.mxu0 0.0
    %v2614 = vand.u32 %v89, 4294901760
    %2615 = vmatpush.msra.mxu0 %v2614
    %v2616 = vand.u32 %v88, 4294901760
    %2617 = vmatpush.msra.mxu0 %v2616
    %v2618 = vand.u32 %v87, 4294901760
    %2619 = vmatpush.msra.mxu0 %v2618
    %v2620 = vand.u32 %v86, 4294901760
    %2621 = vmatpush.msra.mxu0 %v2620
    %v2622 = vand.u32 %v193, 4294901760
    %2623 = vmatmul.f32.gmra.mxu0 %v2622
    %v2624 = vpop.f32.mrf.mxu0
    %v2625 = vadd.f32 %v2600, %v2624
    %2626 = vdwg.mxu0
    %2627 = vmatpush.msra.mxu0 0.0
    %2628 = vmatpush.msra.mxu0 0.0
    %2629 = vmatpush.msra.mxu0 0.0
    %2630 = vmatpush.msra.mxu0 0.0
    %2631 = vmatpush.msra.mxu0 0.0
    %2632 = vmatpush.msra.mxu0 0.0
    %2633 = vmatpush.msra.mxu0 0.0
    %2634 = vmatpush.msra.mxu0 0.0
    %2635 = vmatpush.msra.mxu0 0.0
    %2636 = vmatpush.msra.mxu0 0.0
    %2637 = vmatpush.msra.mxu0 0.0
    %2638 = vmatpush.msra.mxu0 0.0
    %v2639 = vand.u32 %v93, 4294901760
    %2640 = vmatpush.msra.mxu0 %v2639
    %v2641 = vand.u32 %v92, 4294901760
    %2642 = vmatpush.msra.mxu0 %v2641
    %v2643 = vand.u32 %v91, 4294901760
    %2644 = vmatpush.msra.mxu0 %v2643
    %v2645 = vand.u32 %v90, 4294901760
    %2646 = vmatpush.msra.mxu0 %v2645
    %v2647 = vand.u32 %v381, 4294901760
    %v2648 = vsub.f32 %v381, %v2647
    %v2649 = vand.u32 %v2648, 4294901760
    %v2650 = vsub.f32 %v2648, %v2649
    %v2651 = vand.u32 %v2650, 4294901760
    %2652 = vmatmul.f32.gmra.mxu0 %v2651
    %v2653 = vpop.f32.mrf.mxu0
    %v2654 = vadd.f32 %v1691, %v2653
    %2655 = vdwg.mxu0
    %2656 = vmatpush.msra.mxu0 0.0
    %2657 = vmatpush.msra.mxu0 0.0
    %2658 = vmatpush.msra.mxu0 0.0
    %2659 = vmatpush.msra.mxu0 0.0
    %2660 = vmatpush.msra.mxu0 0.0
    %2661 = vmatpush.msra.mxu0 0.0
    %2662 = vmatpush.msra.mxu0 0.0
    %2663 = vmatpush.msra.mxu0 0.0
    %2664 = vmatpush.msra.mxu0 0.0
    %2665 = vmatpush.msra.mxu0 0.0
    %2666 = vmatpush.msra.mxu0 0.0
    %2667 = vmatpush.msra.mxu0 0.0
    %v2668 = vand.u32 %v93, 4294901760
    %v2669 = vsub.f32 %v93, %v2668
    %v2670 = vand.u32 %v2669, 4294901760
    %v2671 = vsub.f32 %v2669, %v2670
    %v2672 = vand.u32 %v2671, 4294901760
    %2673 = vmatpush.msra.mxu0 %v2672
    %v2674 = vand.u32 %v92, 4294901760
    %v2675 = vsub.f32 %v92, %v2674
    %v2676 = vand.u32 %v2675, 4294901760
    %v2677 = vsub.f32 %v2675, %v2676
    %v2678 = vand.u32 %v2677, 4294901760
    %2679 = vmatpush.msra.mxu0 %v2678
    %v2680 = vand.u32 %v91, 4294901760
    %v2681 = vsub.f32 %v91, %v2680
    %v2682 = vand.u32 %v2681, 4294901760
    %v2683 = vsub.f32 %v2681, %v2682
    %v2684 = vand.u32 %v2683, 4294901760
    %2685 = vmatpush.msra.mxu0 %v2684
    %v2686 = vand.u32 %v90, 4294901760
    %v2687 = vsub.f32 %v90, %v2686
    %v2688 = vand.u32 %v2687, 4294901760
    %v2689 = vsub.f32 %v2687, %v2688
    %v2690 = vand.u32 %v2689, 4294901760
    %2691 = vmatpush.msra.mxu0 %v2690
    %v2692 = vand.u32 %v381, 4294901760
    %2693 = vmatmul.f32.gmra.mxu0 %v2692
    %v2694 = vpop.f32.mrf.mxu0
    %v2695 = vadd.f32 %v2654, %v2694
    %2696 = vdwg.mxu0
    %2697 = vmatpush.msra.mxu0 0.0
    %2698 = vmatpush.msra.mxu0 0.0
    %2699 = vmatpush.msra.mxu0 0.0
    %2700 = vmatpush.msra.mxu0 0.0
    %2701 = vmatpush.msra.mxu0 0.0
    %2702 = vmatpush.msra.mxu0 0.0
    %2703 = vmatpush.msra.mxu0 0.0
    %2704 = vmatpush.msra.mxu0 0.0
    %2705 = vmatpush.msra.mxu0 0.0
    %2706 = vmatpush.msra.mxu0 0.0
    %2707 = vmatpush.msra.mxu0 0.0
    %2708 = vmatpush.msra.mxu0 0.0
    %v2709 = vand.u32 %v93, 4294901760
    %v2710 = vsub.f32 %v93, %v2709
    %2711 = vmatpush.msra.mxu0 %v2710
    %v2712 = vand.u32 %v92, 4294901760
    %v2713 = vsub.f32 %v92, %v2712
    %2714 = vmatpush.msra.mxu0 %v2713
    %v2715 = vand.u32 %v91, 4294901760
    %v2716 = vsub.f32 %v91, %v2715
    %2717 = vmatpush.msra.mxu0 %v2716
    %v2718 = vand.u32 %v90, 4294901760
    %v2719 = vsub.f32 %v90, %v2718
    %2720 = vmatpush.msra.mxu0 %v2719
    %v2721 = vand.u32 %v381, 4294901760
    %v2722 = vsub.f32 %v381, %v2721
    %2723 = vmatmul.f32.gmra.mxu0 %v2722
    %v2724 = vpop.f32.mrf.mxu0
    %v2725 = vadd.f32 %v2695, %v2724
    %2726 = vdwg.mxu0
    %2727 = vmatpush.msra.mxu0 0.0
    %2728 = vmatpush.msra.mxu0 0.0
    %2729 = vmatpush.msra.mxu0 0.0
    %2730 = vmatpush.msra.mxu0 0.0
    %2731 = vmatpush.msra.mxu0 0.0
    %2732 = vmatpush.msra.mxu0 0.0
    %2733 = vmatpush.msra.mxu0 0.0
    %2734 = vmatpush.msra.mxu0 0.0
    %2735 = vmatpush.msra.mxu0 0.0
    %2736 = vmatpush.msra.mxu0 0.0
    %2737 = vmatpush.msra.mxu0 0.0
    %2738 = vmatpush.msra.mxu0 0.0
    %v2739 = vand.u32 %v93, 4294901760
    %2740 = vmatpush.msra.mxu0 %v2739
    %v2741 = vand.u32 %v92, 4294901760
    %2742 = vmatpush.msra.mxu0 %v2741
    %v2743 = vand.u32 %v91, 4294901760
    %2744 = vmatpush.msra.mxu0 %v2743
    %v2745 = vand.u32 %v90, 4294901760
    %2746 = vmatpush.msra.mxu0 %v2745
    %v2747 = vand.u32 %v381, 4294901760
    %v2748 = vsub.f32 %v381, %v2747
    %v2749 = vand.u32 %v2748, 4294901760
    %2750 = vmatmul.f32.gmra.mxu0 %v2749
    %v2751 = vpop.f32.mrf.mxu0
    %v2752 = vadd.f32 %v2725, %v2751
    %2753 = vdwg.mxu0
    %2754 = vmatpush.msra.mxu0 0.0
    %2755 = vmatpush.msra.mxu0 0.0
    %2756 = vmatpush.msra.mxu0 0.0
    %2757 = vmatpush.msra.mxu0 0.0
    %2758 = vmatpush.msra.mxu0 0.0
    %2759 = vmatpush.msra.mxu0 0.0
    %2760 = vmatpush.msra.mxu0 0.0
    %2761 = vmatpush.msra.mxu0 0.0
    %2762 = vmatpush.msra.mxu0 0.0
    %2763 = vmatpush.msra.mxu0 0.0
    %2764 = vmatpush.msra.mxu0 0.0
    %2765 = vmatpush.msra.mxu0 0.0
    %v2766 = vand.u32 %v93, 4294901760
    %v2767 = vsub.f32 %v93, %v2766
    %v2768 = vand.u32 %v2767, 4294901760
    %2769 = vmatpush.msra.mxu0 %v2768
    %v2770 = vand.u32 %v92, 4294901760
    %v2771 = vsub.f32 %v92, %v2770
    %v2772 = vand.u32 %v2771, 4294901760
    %2773 = vmatpush.msra.mxu0 %v2772
    %v2774 = vand.u32 %v91, 4294901760
    %v2775 = vsub.f32 %v91, %v2774
    %v2776 = vand.u32 %v2775, 4294901760
    %2777 = vmatpush.msra.mxu0 %v2776
    %v2778 = vand.u32 %v90, 4294901760
    %v2779 = vsub.f32 %v90, %v2778
    %v2780 = vand.u32 %v2779, 4294901760
    %2781 = vmatpush.msra.mxu0 %v2780
    %v2782 = vand.u32 %v381, 4294901760
    %2783 = vmatmul.f32.gmra.mxu0 %v2782
    %v2784 = vpop.f32.mrf.mxu0
    %v2785 = vadd.f32 %v2752, %v2784
    %2786 = vdwg.mxu0
    %2787 = vmatpush.msra.mxu0 0.0
    %2788 = vmatpush.msra.mxu0 0.0
    %2789 = vmatpush.msra.mxu0 0.0
    %2790 = vmatpush.msra.mxu0 0.0
    %2791 = vmatpush.msra.mxu0 0.0
    %2792 = vmatpush.msra.mxu0 0.0
    %2793 = vmatpush.msra.mxu0 0.0
    %2794 = vmatpush.msra.mxu0 0.0
    %2795 = vmatpush.msra.mxu0 0.0
    %2796 = vmatpush.msra.mxu0 0.0
    %2797 = vmatpush.msra.mxu0 0.0
    %2798 = vmatpush.msra.mxu0 0.0
    %v2799 = vand.u32 %v93, 4294901760
    %2800 = vmatpush.msra.mxu0 %v2799
    %v2801 = vand.u32 %v92, 4294901760
    %2802 = vmatpush.msra.mxu0 %v2801
    %v2803 = vand.u32 %v91, 4294901760
    %2804 = vmatpush.msra.mxu0 %v2803
    %v2805 = vand.u32 %v90, 4294901760
    %2806 = vmatpush.msra.mxu0 %v2805
    %v2807 = vand.u32 %v381, 4294901760
    %2808 = vmatmul.f32.gmra.mxu0 %v2807
    %v2809 = vpop.f32.mrf.mxu0
    %v2810 = vadd.f32 %v2785, %v2809
    %2811 = vdwg.mxu0
    %2812 = vmatpush.msra.mxu0 0.0
    %2813 = vmatpush.msra.mxu0 0.0
    %2814 = vmatpush.msra.mxu0 0.0
    %2815 = vmatpush.msra.mxu0 0.0
    %2816 = vmatpush.msra.mxu0 0.0
    %2817 = vmatpush.msra.mxu0 0.0
    %2818 = vmatpush.msra.mxu0 0.0
    %2819 = vmatpush.msra.mxu0 0.0
    %2820 = vmatpush.msra.mxu0 0.0
    %2821 = vmatpush.msra.mxu0 0.0
    %2822 = vmatpush.msra.mxu0 0.0
    %2823 = vmatpush.msra.mxu0 0.0
    %v2824 = vand.u32 %v97, 4294901760
    %2825 = vmatpush.msra.mxu0 %v2824
    %v2826 = vand.u32 %v96, 4294901760
    %2827 = vmatpush.msra.mxu0 %v2826
    %v2828 = vand.u32 %v95, 4294901760
    %2829 = vmatpush.msra.mxu0 %v2828
    %v2830 = vand.u32 %v94, 4294901760
    %2831 = vmatpush.msra.mxu0 %v2830
    %v2832 = vand.u32 %v193, 4294901760
    %v2833 = vsub.f32 %v193, %v2832
    %v2834 = vand.u32 %v2833, 4294901760
    %v2835 = vsub.f32 %v2833, %v2834
    %v2836 = vand.u32 %v2835, 4294901760
    %2837 = vmatmul.f32.gmra.mxu0 %v2836
    %v2838 = vpop.f32.mrf.mxu0
    %v2839 = vadd.f32 %v1692, %v2838
    %2840 = vdwg.mxu0
    %2841 = vmatpush.msra.mxu0 0.0
    %2842 = vmatpush.msra.mxu0 0.0
    %2843 = vmatpush.msra.mxu0 0.0
    %2844 = vmatpush.msra.mxu0 0.0
    %2845 = vmatpush.msra.mxu0 0.0
    %2846 = vmatpush.msra.mxu0 0.0
    %2847 = vmatpush.msra.mxu0 0.0
    %2848 = vmatpush.msra.mxu0 0.0
    %2849 = vmatpush.msra.mxu0 0.0
    %2850 = vmatpush.msra.mxu0 0.0
    %2851 = vmatpush.msra.mxu0 0.0
    %2852 = vmatpush.msra.mxu0 0.0
    %v2853 = vand.u32 %v97, 4294901760
    %v2854 = vsub.f32 %v97, %v2853
    %v2855 = vand.u32 %v2854, 4294901760
    %v2856 = vsub.f32 %v2854, %v2855
    %v2857 = vand.u32 %v2856, 4294901760
    %2858 = vmatpush.msra.mxu0 %v2857
    %v2859 = vand.u32 %v96, 4294901760
    %v2860 = vsub.f32 %v96, %v2859
    %v2861 = vand.u32 %v2860, 4294901760
    %v2862 = vsub.f32 %v2860, %v2861
    %v2863 = vand.u32 %v2862, 4294901760
    %2864 = vmatpush.msra.mxu0 %v2863
    %v2865 = vand.u32 %v95, 4294901760
    %v2866 = vsub.f32 %v95, %v2865
    %v2867 = vand.u32 %v2866, 4294901760
    %v2868 = vsub.f32 %v2866, %v2867
    %v2869 = vand.u32 %v2868, 4294901760
    %2870 = vmatpush.msra.mxu0 %v2869
    %v2871 = vand.u32 %v94, 4294901760
    %v2872 = vsub.f32 %v94, %v2871
    %v2873 = vand.u32 %v2872, 4294901760
    %v2874 = vsub.f32 %v2872, %v2873
    %v2875 = vand.u32 %v2874, 4294901760
    %2876 = vmatpush.msra.mxu0 %v2875
    %v2877 = vand.u32 %v193, 4294901760
    %2878 = vmatmul.f32.gmra.mxu0 %v2877
    %v2879 = vpop.f32.mrf.mxu0
    %v2880 = vadd.f32 %v2839, %v2879
    %2881 = vdwg.mxu0
    %2882 = vmatpush.msra.mxu0 0.0
    %2883 = vmatpush.msra.mxu0 0.0
    %2884 = vmatpush.msra.mxu0 0.0
    %2885 = vmatpush.msra.mxu0 0.0
    %2886 = vmatpush.msra.mxu0 0.0
    %2887 = vmatpush.msra.mxu0 0.0
    %2888 = vmatpush.msra.mxu0 0.0
    %2889 = vmatpush.msra.mxu0 0.0
    %2890 = vmatpush.msra.mxu0 0.0
    %2891 = vmatpush.msra.mxu0 0.0
    %2892 = vmatpush.msra.mxu0 0.0
    %2893 = vmatpush.msra.mxu0 0.0
    %v2894 = vand.u32 %v97, 4294901760
    %v2895 = vsub.f32 %v97, %v2894
    %2896 = vmatpush.msra.mxu0 %v2895
    %v2897 = vand.u32 %v96, 4294901760
    %v2898 = vsub.f32 %v96, %v2897
    %2899 = vmatpush.msra.mxu0 %v2898
    %v2900 = vand.u32 %v95, 4294901760
    %v2901 = vsub.f32 %v95, %v2900
    %2902 = vmatpush.msra.mxu0 %v2901
    %v2903 = vand.u32 %v94, 4294901760
    %v2904 = vsub.f32 %v94, %v2903
    %2905 = vmatpush.msra.mxu0 %v2904
    %v2906 = vand.u32 %v193, 4294901760
    %v2907 = vsub.f32 %v193, %v2906
    %2908 = vmatmul.f32.gmra.mxu0 %v2907
    %v2909 = vpop.f32.mrf.mxu0
    %v2910 = vadd.f32 %v2880, %v2909
    %2911 = vdwg.mxu0
    %2912 = vmatpush.msra.mxu0 0.0
    %2913 = vmatpush.msra.mxu0 0.0
    %2914 = vmatpush.msra.mxu0 0.0
    %2915 = vmatpush.msra.mxu0 0.0
    %2916 = vmatpush.msra.mxu0 0.0
    %2917 = vmatpush.msra.mxu0 0.0
    %2918 = vmatpush.msra.mxu0 0.0
    %2919 = vmatpush.msra.mxu0 0.0
    %2920 = vmatpush.msra.mxu0 0.0
    %2921 = vmatpush.msra.mxu0 0.0
    %2922 = vmatpush.msra.mxu0 0.0
    %2923 = vmatpush.msra.mxu0 0.0
    %v2924 = vand.u32 %v97, 4294901760
    %2925 = vmatpush.msra.mxu0 %v2924
    %v2926 = vand.u32 %v96, 4294901760
    %2927 = vmatpush.msra.mxu0 %v2926
    %v2928 = vand.u32 %v95, 4294901760
    %2929 = vmatpush.msra.mxu0 %v2928
    %v2930 = vand.u32 %v94, 4294901760
    %2931 = vmatpush.msra.mxu0 %v2930
    %v2932 = vand.u32 %v193, 4294901760
    %v2933 = vsub.f32 %v193, %v2932
    %v2934 = vand.u32 %v2933, 4294901760
    %2935 = vmatmul.f32.gmra.mxu0 %v2934
    %v2936 = vpop.f32.mrf.mxu0
    %v2937 = vadd.f32 %v2910, %v2936
    %2938 = vdwg.mxu0
    %2939 = vmatpush.msra.mxu0 0.0
    %2940 = vmatpush.msra.mxu0 0.0
    %2941 = vmatpush.msra.mxu0 0.0
    %2942 = vmatpush.msra.mxu0 0.0
    %2943 = vmatpush.msra.mxu0 0.0
    %2944 = vmatpush.msra.mxu0 0.0
    %2945 = vmatpush.msra.mxu0 0.0
    %2946 = vmatpush.msra.mxu0 0.0
    %2947 = vmatpush.msra.mxu0 0.0
    %2948 = vmatpush.msra.mxu0 0.0
    %2949 = vmatpush.msra.mxu0 0.0
    %2950 = vmatpush.msra.mxu0 0.0
    %v2951 = vand.u32 %v97, 4294901760
    %v2952 = vsub.f32 %v97, %v2951
    %v2953 = vand.u32 %v2952, 4294901760
    %2954 = vmatpush.msra.mxu0 %v2953
    %v2955 = vand.u32 %v96, 4294901760
    %v2956 = vsub.f32 %v96, %v2955
    %v2957 = vand.u32 %v2956, 4294901760
    %2958 = vmatpush.msra.mxu0 %v2957
    %v2959 = vand.u32 %v95, 4294901760
    %v2960 = vsub.f32 %v95, %v2959
    %v2961 = vand.u32 %v2960, 4294901760
    %2962 = vmatpush.msra.mxu0 %v2961
    %v2963 = vand.u32 %v94, 4294901760
    %v2964 = vsub.f32 %v94, %v2963
    %v2965 = vand.u32 %v2964, 4294901760
    %2966 = vmatpush.msra.mxu0 %v2965
    %v2967 = vand.u32 %v193, 4294901760
    %2968 = vmatmul.f32.gmra.mxu0 %v2967
    %v2969 = vpop.f32.mrf.mxu0
    %v2970 = vadd.f32 %v2937, %v2969
    %2971 = vdwg.mxu0
    %2972 = vmatpush.msra.mxu0 0.0
    %2973 = vmatpush.msra.mxu0 0.0
    %2974 = vmatpush.msra.mxu0 0.0
    %2975 = vmatpush.msra.mxu0 0.0
    %2976 = vmatpush.msra.mxu0 0.0
    %2977 = vmatpush.msra.mxu0 0.0
    %2978 = vmatpush.msra.mxu0 0.0
    %2979 = vmatpush.msra.mxu0 0.0
    %2980 = vmatpush.msra.mxu0 0.0
    %2981 = vmatpush.msra.mxu0 0.0
    %2982 = vmatpush.msra.mxu0 0.0
    %2983 = vmatpush.msra.mxu0 0.0
    %v2984 = vand.u32 %v97, 4294901760
    %2985 = vmatpush.msra.mxu0 %v2984
    %v2986 = vand.u32 %v96, 4294901760
    %2987 = vmatpush.msra.mxu0 %v2986
    %v2988 = vand.u32 %v95, 4294901760
    %2989 = vmatpush.msra.mxu0 %v2988
    %v2990 = vand.u32 %v94, 4294901760
    %2991 = vmatpush.msra.mxu0 %v2990
    %v2992 = vand.u32 %v193, 4294901760
    %2993 = vmatmul.f32.gmra.mxu0 %v2992
    %v2994 = vpop.f32.mrf.mxu0
    %v2995 = vadd.f32 %v2970, %v2994
    %2996 = vdwg.mxu0
    %2997 = vmatpush.msra.mxu0 0.0
    %2998 = vmatpush.msra.mxu0 0.0
    %2999 = vmatpush.msra.mxu0 0.0
    %3000 = vmatpush.msra.mxu0 0.0
    %3001 = vmatpush.msra.mxu0 0.0
    %3002 = vmatpush.msra.mxu0 0.0
    %3003 = vmatpush.msra.mxu0 0.0
    %3004 = vmatpush.msra.mxu0 0.0
    %3005 = vmatpush.msra.mxu0 0.0
    %3006 = vmatpush.msra.mxu0 0.0
    %3007 = vmatpush.msra.mxu0 0.0
    %3008 = vmatpush.msra.mxu0 0.0
    %v3009 = vand.u32 %v101, 4294901760
    %3010 = vmatpush.msra.mxu0 %v3009
    %v3011 = vand.u32 %v100, 4294901760
    %3012 = vmatpush.msra.mxu0 %v3011
    %v3013 = vand.u32 %v99, 4294901760
    %3014 = vmatpush.msra.mxu0 %v3013
    %v3015 = vand.u32 %v98, 4294901760
    %3016 = vmatpush.msra.mxu0 %v3015
    %v3017 = vand.u32 %v381, 4294901760
    %v3018 = vsub.f32 %v381, %v3017
    %v3019 = vand.u32 %v3018, 4294901760
    %v3020 = vsub.f32 %v3018, %v3019
    %v3021 = vand.u32 %v3020, 4294901760
    %3022 = vmatmul.f32.gmra.mxu0 %v3021
    %v3023 = vpop.f32.mrf.mxu0
    %v3024 = vadd.f32 %v1693, %v3023
    %3025 = vdwg.mxu0
    %3026 = vmatpush.msra.mxu0 0.0
    %3027 = vmatpush.msra.mxu0 0.0
    %3028 = vmatpush.msra.mxu0 0.0
    %3029 = vmatpush.msra.mxu0 0.0
    %3030 = vmatpush.msra.mxu0 0.0
    %3031 = vmatpush.msra.mxu0 0.0
    %3032 = vmatpush.msra.mxu0 0.0
    %3033 = vmatpush.msra.mxu0 0.0
    %3034 = vmatpush.msra.mxu0 0.0
    %3035 = vmatpush.msra.mxu0 0.0
    %3036 = vmatpush.msra.mxu0 0.0
    %3037 = vmatpush.msra.mxu0 0.0
    %v3038 = vand.u32 %v101, 4294901760
    %v3039 = vsub.f32 %v101, %v3038
    %v3040 = vand.u32 %v3039, 4294901760
    %v3041 = vsub.f32 %v3039, %v3040
    %v3042 = vand.u32 %v3041, 4294901760
    %3043 = vmatpush.msra.mxu0 %v3042
    %v3044 = vand.u32 %v100, 4294901760
    %v3045 = vsub.f32 %v100, %v3044
    %v3046 = vand.u32 %v3045, 4294901760
    %v3047 = vsub.f32 %v3045, %v3046
    %v3048 = vand.u32 %v3047, 4294901760
    %3049 = vmatpush.msra.mxu0 %v3048
    %v3050 = vand.u32 %v99, 4294901760
    %v3051 = vsub.f32 %v99, %v3050
    %v3052 = vand.u32 %v3051, 4294901760
    %v3053 = vsub.f32 %v3051, %v3052
    %v3054 = vand.u32 %v3053, 4294901760
    %3055 = vmatpush.msra.mxu0 %v3054
    %v3056 = vand.u32 %v98, 4294901760
    %v3057 = vsub.f32 %v98, %v3056
    %v3058 = vand.u32 %v3057, 4294901760
    %v3059 = vsub.f32 %v3057, %v3058
    %v3060 = vand.u32 %v3059, 4294901760
    %3061 = vmatpush.msra.mxu0 %v3060
    %v3062 = vand.u32 %v381, 4294901760
    %3063 = vmatmul.f32.gmra.mxu0 %v3062
    %v3064 = vpop.f32.mrf.mxu0
    %v3065 = vadd.f32 %v3024, %v3064
    %3066 = vdwg.mxu0
    %3067 = vmatpush.msra.mxu0 0.0
    %3068 = vmatpush.msra.mxu0 0.0
    %3069 = vmatpush.msra.mxu0 0.0
    %3070 = vmatpush.msra.mxu0 0.0
    %3071 = vmatpush.msra.mxu0 0.0
    %3072 = vmatpush.msra.mxu0 0.0
    %3073 = vmatpush.msra.mxu0 0.0
    %3074 = vmatpush.msra.mxu0 0.0
    %3075 = vmatpush.msra.mxu0 0.0
    %3076 = vmatpush.msra.mxu0 0.0
    %3077 = vmatpush.msra.mxu0 0.0
    %3078 = vmatpush.msra.mxu0 0.0
    %v3079 = vand.u32 %v101, 4294901760
    %v3080 = vsub.f32 %v101, %v3079
    %3081 = vmatpush.msra.mxu0 %v3080
    %v3082 = vand.u32 %v100, 4294901760
    %v3083 = vsub.f32 %v100, %v3082
    %3084 = vmatpush.msra.mxu0 %v3083
    %v3085 = vand.u32 %v99, 4294901760
    %v3086 = vsub.f32 %v99, %v3085
    %3087 = vmatpush.msra.mxu0 %v3086
    %v3088 = vand.u32 %v98, 4294901760
    %v3089 = vsub.f32 %v98, %v3088
    %3090 = vmatpush.msra.mxu0 %v3089
    %v3091 = vand.u32 %v381, 4294901760
    %v3092 = vsub.f32 %v381, %v3091
    %3093 = vmatmul.f32.gmra.mxu0 %v3092
    %v3094 = vpop.f32.mrf.mxu0
    %v3095 = vadd.f32 %v3065, %v3094
    %3096 = vdwg.mxu0
    %3097 = vmatpush.msra.mxu0 0.0
    %3098 = vmatpush.msra.mxu0 0.0
    %3099 = vmatpush.msra.mxu0 0.0
    %3100 = vmatpush.msra.mxu0 0.0
    %3101 = vmatpush.msra.mxu0 0.0
    %3102 = vmatpush.msra.mxu0 0.0
    %3103 = vmatpush.msra.mxu0 0.0
    %3104 = vmatpush.msra.mxu0 0.0
    %3105 = vmatpush.msra.mxu0 0.0
    %3106 = vmatpush.msra.mxu0 0.0
    %3107 = vmatpush.msra.mxu0 0.0
    %3108 = vmatpush.msra.mxu0 0.0
    %v3109 = vand.u32 %v101, 4294901760
    %3110 = vmatpush.msra.mxu0 %v3109
    %v3111 = vand.u32 %v100, 4294901760
    %3112 = vmatpush.msra.mxu0 %v3111
    %v3113 = vand.u32 %v99, 4294901760
    %3114 = vmatpush.msra.mxu0 %v3113
    %v3115 = vand.u32 %v98, 4294901760
    %3116 = vmatpush.msra.mxu0 %v3115
    %v3117 = vand.u32 %v381, 4294901760
    %v3118 = vsub.f32 %v381, %v3117
    %v3119 = vand.u32 %v3118, 4294901760
    %3120 = vmatmul.f32.gmra.mxu0 %v3119
    %v3121 = vpop.f32.mrf.mxu0
    %v3122 = vadd.f32 %v3095, %v3121
    %3123 = vdwg.mxu0
    %3124 = vmatpush.msra.mxu0 0.0
    %3125 = vmatpush.msra.mxu0 0.0
    %3126 = vmatpush.msra.mxu0 0.0
    %3127 = vmatpush.msra.mxu0 0.0
    %3128 = vmatpush.msra.mxu0 0.0
    %3129 = vmatpush.msra.mxu0 0.0
    %3130 = vmatpush.msra.mxu0 0.0
    %3131 = vmatpush.msra.mxu0 0.0
    %3132 = vmatpush.msra.mxu0 0.0
    %3133 = vmatpush.msra.mxu0 0.0
    %3134 = vmatpush.msra.mxu0 0.0
    %3135 = vmatpush.msra.mxu0 0.0
    %v3136 = vand.u32 %v101, 4294901760
    %v3137 = vsub.f32 %v101, %v3136
    %v3138 = vand.u32 %v3137, 4294901760
    %3139 = vmatpush.msra.mxu0 %v3138
    %v3140 = vand.u32 %v100, 4294901760
    %v3141 = vsub.f32 %v100, %v3140
    %v3142 = vand.u32 %v3141, 4294901760
    %3143 = vmatpush.msra.mxu0 %v3142
    %v3144 = vand.u32 %v99, 4294901760
    %v3145 = vsub.f32 %v99, %v3144
    %v3146 = vand.u32 %v3145, 4294901760
    %3147 = vmatpush.msra.mxu0 %v3146
    %v3148 = vand.u32 %v98, 4294901760
    %v3149 = vsub.f32 %v98, %v3148
    %v3150 = vand.u32 %v3149, 4294901760
    %3151 = vmatpush.msra.mxu0 %v3150
    %v3152 = vand.u32 %v381, 4294901760
    %3153 = vmatmul.f32.gmra.mxu0 %v3152
    %v3154 = vpop.f32.mrf.mxu0
    %v3155 = vadd.f32 %v3122, %v3154
    %3156 = vdwg.mxu0
    %3157 = vmatpush.msra.mxu0 0.0
    %3158 = vmatpush.msra.mxu0 0.0
    %3159 = vmatpush.msra.mxu0 0.0
    %3160 = vmatpush.msra.mxu0 0.0
    %3161 = vmatpush.msra.mxu0 0.0
    %3162 = vmatpush.msra.mxu0 0.0
    %3163 = vmatpush.msra.mxu0 0.0
    %3164 = vmatpush.msra.mxu0 0.0
    %3165 = vmatpush.msra.mxu0 0.0
    %3166 = vmatpush.msra.mxu0 0.0
    %3167 = vmatpush.msra.mxu0 0.0
    %3168 = vmatpush.msra.mxu0 0.0
    %v3169 = vand.u32 %v101, 4294901760
    %3170 = vmatpush.msra.mxu0 %v3169
    %v3171 = vand.u32 %v100, 4294901760
    %3172 = vmatpush.msra.mxu0 %v3171
    %v3173 = vand.u32 %v99, 4294901760
    %3174 = vmatpush.msra.mxu0 %v3173
    %v3175 = vand.u32 %v98, 4294901760
    %3176 = vmatpush.msra.mxu0 %v3175
    %v3177 = vand.u32 %v381, 4294901760
    %3178 = vmatmul.f32.gmra.mxu0 %v3177
    %v3179 = vpop.f32.mrf.mxu0
    %v3180 = vadd.f32 %v3155, %v3179
    %3181 = vdwg.mxu0
    %v3190 = vperm.slane %v150, 0
    %v3191 = vperm.slane %v151, 0
    %v3192 = vperm.slane %v152, 0
    %v3193 = vperm.slane %v153, 0
    %v3194 = vperm.slane %v154, 0
    %v3195 = vperm.slane %v155, 0
    %v3196 = vperm.slane %v156, 0
    %v3197 = vperm.slane %v157, 0
    %3206 = vmatpush.msra.mxu0 0.0
    %3207 = vmatpush.msra.mxu0 0.0
    %3208 = vmatpush.msra.mxu0 0.0
    %3209 = vmatpush.msra.mxu0 0.0
    %3210 = vmatpush.msra.mxu0 0.0
    %3211 = vmatpush.msra.mxu0 0.0
    %3212 = vmatpush.msra.mxu0 0.0
    %3213 = vmatpush.msra.mxu0 0.0
    %3214 = vmatpush.msra.mxu0 0.0
    %3215 = vmatpush.msra.mxu0 0.0
    %3216 = vmatpush.msra.mxu0 0.0
    %3217 = vmatpush.msra.mxu0 0.0
    %v3218 = vand.u32 %v105, 4294901760
    %3219 = vmatpush.msra.mxu0 %v3218
    %v3220 = vand.u32 %v104, 4294901760
    %3221 = vmatpush.msra.mxu0 %v3220
    %v3222 = vand.u32 %v103, 4294901760
    %3223 = vmatpush.msra.mxu0 %v3222
    %v3224 = vand.u32 %v102, 4294901760
    %3225 = vmatpush.msra.mxu0 %v3224
    %v3226 = vand.u32 %v193, 4294901760
    %v3227 = vsub.f32 %v193, %v3226
    %v3228 = vand.u32 %v3227, 4294901760
    %v3229 = vsub.f32 %v3227, %v3228
    %v3230 = vand.u32 %v3229, 4294901760
    %3231 = vmatmul.f32.gmra.mxu0 %v3230
    %v3232 = vpop.f32.mrf.mxu0
    %v3233 = vadd.f32 %v3190, %v3232
    %3234 = vdwg.mxu0
    %3235 = vmatpush.msra.mxu0 0.0
    %3236 = vmatpush.msra.mxu0 0.0
    %3237 = vmatpush.msra.mxu0 0.0
    %3238 = vmatpush.msra.mxu0 0.0
    %3239 = vmatpush.msra.mxu0 0.0
    %3240 = vmatpush.msra.mxu0 0.0
    %3241 = vmatpush.msra.mxu0 0.0
    %3242 = vmatpush.msra.mxu0 0.0
    %3243 = vmatpush.msra.mxu0 0.0
    %3244 = vmatpush.msra.mxu0 0.0
    %3245 = vmatpush.msra.mxu0 0.0
    %3246 = vmatpush.msra.mxu0 0.0
    %v3247 = vand.u32 %v105, 4294901760
    %v3248 = vsub.f32 %v105, %v3247
    %v3249 = vand.u32 %v3248, 4294901760
    %v3250 = vsub.f32 %v3248, %v3249
    %v3251 = vand.u32 %v3250, 4294901760
    %3252 = vmatpush.msra.mxu0 %v3251
    %v3253 = vand.u32 %v104, 4294901760
    %v3254 = vsub.f32 %v104, %v3253
    %v3255 = vand.u32 %v3254, 4294901760
    %v3256 = vsub.f32 %v3254, %v3255
    %v3257 = vand.u32 %v3256, 4294901760
    %3258 = vmatpush.msra.mxu0 %v3257
    %v3259 = vand.u32 %v103, 4294901760
    %v3260 = vsub.f32 %v103, %v3259
    %v3261 = vand.u32 %v3260, 4294901760
    %v3262 = vsub.f32 %v3260, %v3261
    %v3263 = vand.u32 %v3262, 4294901760
    %3264 = vmatpush.msra.mxu0 %v3263
    %v3265 = vand.u32 %v102, 4294901760
    %v3266 = vsub.f32 %v102, %v3265
    %v3267 = vand.u32 %v3266, 4294901760
    %v3268 = vsub.f32 %v3266, %v3267
    %v3269 = vand.u32 %v3268, 4294901760
    %3270 = vmatpush.msra.mxu0 %v3269
    %v3271 = vand.u32 %v193, 4294901760
    %3272 = vmatmul.f32.gmra.mxu0 %v3271
    %v3273 = vpop.f32.mrf.mxu0
    %v3274 = vadd.f32 %v3233, %v3273
    %3275 = vdwg.mxu0
    %3276 = vmatpush.msra.mxu0 0.0
    %3277 = vmatpush.msra.mxu0 0.0
    %3278 = vmatpush.msra.mxu0 0.0
    %3279 = vmatpush.msra.mxu0 0.0
    %3280 = vmatpush.msra.mxu0 0.0
    %3281 = vmatpush.msra.mxu0 0.0
    %3282 = vmatpush.msra.mxu0 0.0
    %3283 = vmatpush.msra.mxu0 0.0
    %3284 = vmatpush.msra.mxu0 0.0
    %3285 = vmatpush.msra.mxu0 0.0
    %3286 = vmatpush.msra.mxu0 0.0
    %3287 = vmatpush.msra.mxu0 0.0
    %v3288 = vand.u32 %v105, 4294901760
    %v3289 = vsub.f32 %v105, %v3288
    %3290 = vmatpush.msra.mxu0 %v3289
    %v3291 = vand.u32 %v104, 4294901760
    %v3292 = vsub.f32 %v104, %v3291
    %3293 = vmatpush.msra.mxu0 %v3292
    %v3294 = vand.u32 %v103, 4294901760
    %v3295 = vsub.f32 %v103, %v3294
    %3296 = vmatpush.msra.mxu0 %v3295
    %v3297 = vand.u32 %v102, 4294901760
    %v3298 = vsub.f32 %v102, %v3297
    %3299 = vmatpush.msra.mxu0 %v3298
    %v3300 = vand.u32 %v193, 4294901760
    %v3301 = vsub.f32 %v193, %v3300
    %3302 = vmatmul.f32.gmra.mxu0 %v3301
    %v3303 = vpop.f32.mrf.mxu0
    %v3304 = vadd.f32 %v3274, %v3303
    %3305 = vdwg.mxu0
    %3306 = vmatpush.msra.mxu0 0.0
    %3307 = vmatpush.msra.mxu0 0.0
    %3308 = vmatpush.msra.mxu0 0.0
    %3309 = vmatpush.msra.mxu0 0.0
    %3310 = vmatpush.msra.mxu0 0.0
    %3311 = vmatpush.msra.mxu0 0.0
    %3312 = vmatpush.msra.mxu0 0.0
    %3313 = vmatpush.msra.mxu0 0.0
    %3314 = vmatpush.msra.mxu0 0.0
    %3315 = vmatpush.msra.mxu0 0.0
    %3316 = vmatpush.msra.mxu0 0.0
    %3317 = vmatpush.msra.mxu0 0.0
    %v3318 = vand.u32 %v105, 4294901760
    %3319 = vmatpush.msra.mxu0 %v3318
    %v3320 = vand.u32 %v104, 4294901760
    %3321 = vmatpush.msra.mxu0 %v3320
    %v3322 = vand.u32 %v103, 4294901760
    %3323 = vmatpush.msra.mxu0 %v3322
    %v3324 = vand.u32 %v102, 4294901760
    %3325 = vmatpush.msra.mxu0 %v3324
    %v3326 = vand.u32 %v193, 4294901760
    %v3327 = vsub.f32 %v193, %v3326
    %v3328 = vand.u32 %v3327, 4294901760
    %3329 = vmatmul.f32.gmra.mxu0 %v3328
    %v3330 = vpop.f32.mrf.mxu0
    %v3331 = vadd.f32 %v3304, %v3330
    %3332 = vdwg.mxu0
    %3333 = vmatpush.msra.mxu0 0.0
    %3334 = vmatpush.msra.mxu0 0.0
    %3335 = vmatpush.msra.mxu0 0.0
    %3336 = vmatpush.msra.mxu0 0.0
    %3337 = vmatpush.msra.mxu0 0.0
    %3338 = vmatpush.msra.mxu0 0.0
    %3339 = vmatpush.msra.mxu0 0.0
    %3340 = vmatpush.msra.mxu0 0.0
    %3341 = vmatpush.msra.mxu0 0.0
    %3342 = vmatpush.msra.mxu0 0.0
    %3343 = vmatpush.msra.mxu0 0.0
    %3344 = vmatpush.msra.mxu0 0.0
    %v3345 = vand.u32 %v105, 4294901760
    %v3346 = vsub.f32 %v105, %v3345
    %v3347 = vand.u32 %v3346, 4294901760
    %3348 = vmatpush.msra.mxu0 %v3347
    %v3349 = vand.u32 %v104, 4294901760
    %v3350 = vsub.f32 %v104, %v3349
    %v3351 = vand.u32 %v3350, 4294901760
    %3352 = vmatpush.msra.mxu0 %v3351
    %v3353 = vand.u32 %v103, 4294901760
    %v3354 = vsub.f32 %v103, %v3353
    %v3355 = vand.u32 %v3354, 4294901760
    %3356 = vmatpush.msra.mxu0 %v3355
    %v3357 = vand.u32 %v102, 4294901760
    %v3358 = vsub.f32 %v102, %v3357
    %v3359 = vand.u32 %v3358, 4294901760
    %3360 = vmatpush.msra.mxu0 %v3359
    %v3361 = vand.u32 %v193, 4294901760
    %3362 = vmatmul.f32.gmra.mxu0 %v3361
    %v3363 = vpop.f32.mrf.mxu0
    %v3364 = vadd.f32 %v3331, %v3363
    %3365 = vdwg.mxu0
    %3366 = vmatpush.msra.mxu0 0.0
    %3367 = vmatpush.msra.mxu0 0.0
    %3368 = vmatpush.msra.mxu0 0.0
    %3369 = vmatpush.msra.mxu0 0.0
    %3370 = vmatpush.msra.mxu0 0.0
    %3371 = vmatpush.msra.mxu0 0.0
    %3372 = vmatpush.msra.mxu0 0.0
    %3373 = vmatpush.msra.mxu0 0.0
    %3374 = vmatpush.msra.mxu0 0.0
    %3375 = vmatpush.msra.mxu0 0.0
    %3376 = vmatpush.msra.mxu0 0.0
    %3377 = vmatpush.msra.mxu0 0.0
    %v3378 = vand.u32 %v105, 4294901760
    %3379 = vmatpush.msra.mxu0 %v3378
    %v3380 = vand.u32 %v104, 4294901760
    %3381 = vmatpush.msra.mxu0 %v3380
    %v3382 = vand.u32 %v103, 4294901760
    %3383 = vmatpush.msra.mxu0 %v3382
    %v3384 = vand.u32 %v102, 4294901760
    %3385 = vmatpush.msra.mxu0 %v3384
    %v3386 = vand.u32 %v193, 4294901760
    %3387 = vmatmul.f32.gmra.mxu0 %v3386
    %v3388 = vpop.f32.mrf.mxu0
    %v3389 = vadd.f32 %v3364, %v3388
    %3390 = vdwg.mxu0
    %3391 = vmatpush.msra.mxu0 0.0
    %3392 = vmatpush.msra.mxu0 0.0
    %3393 = vmatpush.msra.mxu0 0.0
    %3394 = vmatpush.msra.mxu0 0.0
    %3395 = vmatpush.msra.mxu0 0.0
    %3396 = vmatpush.msra.mxu0 0.0
    %3397 = vmatpush.msra.mxu0 0.0
    %3398 = vmatpush.msra.mxu0 0.0
    %3399 = vmatpush.msra.mxu0 0.0
    %3400 = vmatpush.msra.mxu0 0.0
    %3401 = vmatpush.msra.mxu0 0.0
    %3402 = vmatpush.msra.mxu0 0.0
    %v3403 = vand.u32 %v109, 4294901760
    %3404 = vmatpush.msra.mxu0 %v3403
    %v3405 = vand.u32 %v108, 4294901760
    %3406 = vmatpush.msra.mxu0 %v3405
    %v3407 = vand.u32 %v107, 4294901760
    %3408 = vmatpush.msra.mxu0 %v3407
    %v3409 = vand.u32 %v106, 4294901760
    %3410 = vmatpush.msra.mxu0 %v3409
    %v3411 = vand.u32 %v381, 4294901760
    %v3412 = vsub.f32 %v381, %v3411
    %v3413 = vand.u32 %v3412, 4294901760
    %v3414 = vsub.f32 %v3412, %v3413
    %v3415 = vand.u32 %v3414, 4294901760
    %3416 = vmatmul.f32.gmra.mxu0 %v3415
    %v3417 = vpop.f32.mrf.mxu0
    %v3418 = vadd.f32 %v3191, %v3417
    %3419 = vdwg.mxu0
    %3420 = vmatpush.msra.mxu0 0.0
    %3421 = vmatpush.msra.mxu0 0.0
    %3422 = vmatpush.msra.mxu0 0.0
    %3423 = vmatpush.msra.mxu0 0.0
    %3424 = vmatpush.msra.mxu0 0.0
    %3425 = vmatpush.msra.mxu0 0.0
    %3426 = vmatpush.msra.mxu0 0.0
    %3427 = vmatpush.msra.mxu0 0.0
    %3428 = vmatpush.msra.mxu0 0.0
    %3429 = vmatpush.msra.mxu0 0.0
    %3430 = vmatpush.msra.mxu0 0.0
    %3431 = vmatpush.msra.mxu0 0.0
    %v3432 = vand.u32 %v109, 4294901760
    %v3433 = vsub.f32 %v109, %v3432
    %v3434 = vand.u32 %v3433, 4294901760
    %v3435 = vsub.f32 %v3433, %v3434
    %v3436 = vand.u32 %v3435, 4294901760
    %3437 = vmatpush.msra.mxu0 %v3436
    %v3438 = vand.u32 %v108, 4294901760
    %v3439 = vsub.f32 %v108, %v3438
    %v3440 = vand.u32 %v3439, 4294901760
    %v3441 = vsub.f32 %v3439, %v3440
    %v3442 = vand.u32 %v3441, 4294901760
    %3443 = vmatpush.msra.mxu0 %v3442
    %v3444 = vand.u32 %v107, 4294901760
    %v3445 = vsub.f32 %v107, %v3444
    %v3446 = vand.u32 %v3445, 4294901760
    %v3447 = vsub.f32 %v3445, %v3446
    %v3448 = vand.u32 %v3447, 4294901760
    %3449 = vmatpush.msra.mxu0 %v3448
    %v3450 = vand.u32 %v106, 4294901760
    %v3451 = vsub.f32 %v106, %v3450
    %v3452 = vand.u32 %v3451, 4294901760
    %v3453 = vsub.f32 %v3451, %v3452
    %v3454 = vand.u32 %v3453, 4294901760
    %3455 = vmatpush.msra.mxu0 %v3454
    %v3456 = vand.u32 %v381, 4294901760
    %3457 = vmatmul.f32.gmra.mxu0 %v3456
    %v3458 = vpop.f32.mrf.mxu0
    %v3459 = vadd.f32 %v3418, %v3458
    %3460 = vdwg.mxu0
    %3461 = vmatpush.msra.mxu0 0.0
    %3462 = vmatpush.msra.mxu0 0.0
    %3463 = vmatpush.msra.mxu0 0.0
    %3464 = vmatpush.msra.mxu0 0.0
    %3465 = vmatpush.msra.mxu0 0.0
    %3466 = vmatpush.msra.mxu0 0.0
    %3467 = vmatpush.msra.mxu0 0.0
    %3468 = vmatpush.msra.mxu0 0.0
    %3469 = vmatpush.msra.mxu0 0.0
    %3470 = vmatpush.msra.mxu0 0.0
    %3471 = vmatpush.msra.mxu0 0.0
    %3472 = vmatpush.msra.mxu0 0.0
    %v3473 = vand.u32 %v109, 4294901760
    %v3474 = vsub.f32 %v109, %v3473
    %3475 = vmatpush.msra.mxu0 %v3474
    %v3476 = vand.u32 %v108, 4294901760
    %v3477 = vsub.f32 %v108, %v3476
    %3478 = vmatpush.msra.mxu0 %v3477
    %v3479 = vand.u32 %v107, 4294901760
    %v3480 = vsub.f32 %v107, %v3479
    %3481 = vmatpush.msra.mxu0 %v3480
    %v3482 = vand.u32 %v106, 4294901760
    %v3483 = vsub.f32 %v106, %v3482
    %3484 = vmatpush.msra.mxu0 %v3483
    %v3485 = vand.u32 %v381, 4294901760
    %v3486 = vsub.f32 %v381, %v3485
    %3487 = vmatmul.f32.gmra.mxu0 %v3486
    %v3488 = vpop.f32.mrf.mxu0
    %v3489 = vadd.f32 %v3459, %v3488
    %3490 = vdwg.mxu0
    %3491 = vmatpush.msra.mxu0 0.0
    %3492 = vmatpush.msra.mxu0 0.0
    %3493 = vmatpush.msra.mxu0 0.0
    %3494 = vmatpush.msra.mxu0 0.0
    %3495 = vmatpush.msra.mxu0 0.0
    %3496 = vmatpush.msra.mxu0 0.0
    %3497 = vmatpush.msra.mxu0 0.0
    %3498 = vmatpush.msra.mxu0 0.0
    %3499 = vmatpush.msra.mxu0 0.0
    %3500 = vmatpush.msra.mxu0 0.0
    %3501 = vmatpush.msra.mxu0 0.0
    %3502 = vmatpush.msra.mxu0 0.0
    %v3503 = vand.u32 %v109, 4294901760
    %3504 = vmatpush.msra.mxu0 %v3503
    %v3505 = vand.u32 %v108, 4294901760
    %3506 = vmatpush.msra.mxu0 %v3505
    %v3507 = vand.u32 %v107, 4294901760
    %3508 = vmatpush.msra.mxu0 %v3507
    %v3509 = vand.u32 %v106, 4294901760
    %3510 = vmatpush.msra.mxu0 %v3509
    %v3511 = vand.u32 %v381, 4294901760
    %v3512 = vsub.f32 %v381, %v3511
    %v3513 = vand.u32 %v3512, 4294901760
    %3514 = vmatmul.f32.gmra.mxu0 %v3513
    %v3515 = vpop.f32.mrf.mxu0
    %v3516 = vadd.f32 %v3489, %v3515
    %3517 = vdwg.mxu0
    %3518 = vmatpush.msra.mxu0 0.0
    %3519 = vmatpush.msra.mxu0 0.0
    %3520 = vmatpush.msra.mxu0 0.0
    %3521 = vmatpush.msra.mxu0 0.0
    %3522 = vmatpush.msra.mxu0 0.0
    %3523 = vmatpush.msra.mxu0 0.0
    %3524 = vmatpush.msra.mxu0 0.0
    %3525 = vmatpush.msra.mxu0 0.0
    %3526 = vmatpush.msra.mxu0 0.0
    %3527 = vmatpush.msra.mxu0 0.0
    %3528 = vmatpush.msra.mxu0 0.0
    %3529 = vmatpush.msra.mxu0 0.0
    %v3530 = vand.u32 %v109, 4294901760
    %v3531 = vsub.f32 %v109, %v3530
    %v3532 = vand.u32 %v3531, 4294901760
    %3533 = vmatpush.msra.mxu0 %v3532
    %v3534 = vand.u32 %v108, 4294901760
    %v3535 = vsub.f32 %v108, %v3534
    %v3536 = vand.u32 %v3535, 4294901760
    %3537 = vmatpush.msra.mxu0 %v3536
    %v3538 = vand.u32 %v107, 4294901760
    %v3539 = vsub.f32 %v107, %v3538
    %v3540 = vand.u32 %v3539, 4294901760
    %3541 = vmatpush.msra.mxu0 %v3540
    %v3542 = vand.u32 %v106, 4294901760
    %v3543 = vsub.f32 %v106, %v3542
    %v3544 = vand.u32 %v3543, 4294901760
    %3545 = vmatpush.msra.mxu0 %v3544
    %v3546 = vand.u32 %v381, 4294901760
    %3547 = vmatmul.f32.gmra.mxu0 %v3546
    %v3548 = vpop.f32.mrf.mxu0
    %v3549 = vadd.f32 %v3516, %v3548
    %3550 = vdwg.mxu0
    %3551 = vmatpush.msra.mxu0 0.0
    %3552 = vmatpush.msra.mxu0 0.0
    %3553 = vmatpush.msra.mxu0 0.0
    %3554 = vmatpush.msra.mxu0 0.0
    %3555 = vmatpush.msra.mxu0 0.0
    %3556 = vmatpush.msra.mxu0 0.0
    %3557 = vmatpush.msra.mxu0 0.0
    %3558 = vmatpush.msra.mxu0 0.0
    %3559 = vmatpush.msra.mxu0 0.0
    %3560 = vmatpush.msra.mxu0 0.0
    %3561 = vmatpush.msra.mxu0 0.0
    %3562 = vmatpush.msra.mxu0 0.0
    %v3563 = vand.u32 %v109, 4294901760
    %3564 = vmatpush.msra.mxu0 %v3563
    %v3565 = vand.u32 %v108, 4294901760
    %3566 = vmatpush.msra.mxu0 %v3565
    %v3567 = vand.u32 %v107, 4294901760
    %3568 = vmatpush.msra.mxu0 %v3567
    %v3569 = vand.u32 %v106, 4294901760
    %3570 = vmatpush.msra.mxu0 %v3569
    %v3571 = vand.u32 %v381, 4294901760
    %3572 = vmatmul.f32.gmra.mxu0 %v3571
    %v3573 = vpop.f32.mrf.mxu0
    %v3574 = vadd.f32 %v3549, %v3573
    %3575 = vdwg.mxu0
    %3576 = vmatpush.msra.mxu0 0.0
    %3577 = vmatpush.msra.mxu0 0.0
    %3578 = vmatpush.msra.mxu0 0.0
    %3579 = vmatpush.msra.mxu0 0.0
    %3580 = vmatpush.msra.mxu0 0.0
    %3581 = vmatpush.msra.mxu0 0.0
    %3582 = vmatpush.msra.mxu0 0.0
    %3583 = vmatpush.msra.mxu0 0.0
    %3584 = vmatpush.msra.mxu0 0.0
    %3585 = vmatpush.msra.mxu0 0.0
    %3586 = vmatpush.msra.mxu0 0.0
    %3587 = vmatpush.msra.mxu0 0.0
    %v3588 = vand.u32 %v113, 4294901760
    %3589 = vmatpush.msra.mxu0 %v3588
    %v3590 = vand.u32 %v112, 4294901760
    %3591 = vmatpush.msra.mxu0 %v3590
    %v3592 = vand.u32 %v111, 4294901760
    %3593 = vmatpush.msra.mxu0 %v3592
    %v3594 = vand.u32 %v110, 4294901760
    %3595 = vmatpush.msra.mxu0 %v3594
    %v3596 = vand.u32 %v193, 4294901760
    %v3597 = vsub.f32 %v193, %v3596
    %v3598 = vand.u32 %v3597, 4294901760
    %v3599 = vsub.f32 %v3597, %v3598
    %v3600 = vand.u32 %v3599, 4294901760
    %3601 = vmatmul.f32.gmra.mxu0 %v3600
    %v3602 = vpop.f32.mrf.mxu0
    %v3603 = vadd.f32 %v3192, %v3602
    %3604 = vdwg.mxu0
    %3605 = vmatpush.msra.mxu0 0.0
    %3606 = vmatpush.msra.mxu0 0.0
    %3607 = vmatpush.msra.mxu0 0.0
    %3608 = vmatpush.msra.mxu0 0.0
    %3609 = vmatpush.msra.mxu0 0.0
    %3610 = vmatpush.msra.mxu0 0.0
    %3611 = vmatpush.msra.mxu0 0.0
    %3612 = vmatpush.msra.mxu0 0.0
    %3613 = vmatpush.msra.mxu0 0.0
    %3614 = vmatpush.msra.mxu0 0.0
    %3615 = vmatpush.msra.mxu0 0.0
    %3616 = vmatpush.msra.mxu0 0.0
    %v3617 = vand.u32 %v113, 4294901760
    %v3618 = vsub.f32 %v113, %v3617
    %v3619 = vand.u32 %v3618, 4294901760
    %v3620 = vsub.f32 %v3618, %v3619
    %v3621 = vand.u32 %v3620, 4294901760
    %3622 = vmatpush.msra.mxu0 %v3621
    %v3623 = vand.u32 %v112, 4294901760
    %v3624 = vsub.f32 %v112, %v3623
    %v3625 = vand.u32 %v3624, 4294901760
    %v3626 = vsub.f32 %v3624, %v3625
    %v3627 = vand.u32 %v3626, 4294901760
    %3628 = vmatpush.msra.mxu0 %v3627
    %v3629 = vand.u32 %v111, 4294901760
    %v3630 = vsub.f32 %v111, %v3629
    %v3631 = vand.u32 %v3630, 4294901760
    %v3632 = vsub.f32 %v3630, %v3631
    %v3633 = vand.u32 %v3632, 4294901760
    %3634 = vmatpush.msra.mxu0 %v3633
    %v3635 = vand.u32 %v110, 4294901760
    %v3636 = vsub.f32 %v110, %v3635
    %v3637 = vand.u32 %v3636, 4294901760
    %v3638 = vsub.f32 %v3636, %v3637
    %v3639 = vand.u32 %v3638, 4294901760
    %3640 = vmatpush.msra.mxu0 %v3639
    %v3641 = vand.u32 %v193, 4294901760
    %3642 = vmatmul.f32.gmra.mxu0 %v3641
    %v3643 = vpop.f32.mrf.mxu0
    %v3644 = vadd.f32 %v3603, %v3643
    %3645 = vdwg.mxu0
    %3646 = vmatpush.msra.mxu0 0.0
    %3647 = vmatpush.msra.mxu0 0.0
    %3648 = vmatpush.msra.mxu0 0.0
    %3649 = vmatpush.msra.mxu0 0.0
    %3650 = vmatpush.msra.mxu0 0.0
    %3651 = vmatpush.msra.mxu0 0.0
    %3652 = vmatpush.msra.mxu0 0.0
    %3653 = vmatpush.msra.mxu0 0.0
    %3654 = vmatpush.msra.mxu0 0.0
    %3655 = vmatpush.msra.mxu0 0.0
    %3656 = vmatpush.msra.mxu0 0.0
    %3657 = vmatpush.msra.mxu0 0.0
    %v3658 = vand.u32 %v113, 4294901760
    %v3659 = vsub.f32 %v113, %v3658
    %3660 = vmatpush.msra.mxu0 %v3659
    %v3661 = vand.u32 %v112, 4294901760
    %v3662 = vsub.f32 %v112, %v3661
    %3663 = vmatpush.msra.mxu0 %v3662
    %v3664 = vand.u32 %v111, 4294901760
    %v3665 = vsub.f32 %v111, %v3664
    %3666 = vmatpush.msra.mxu0 %v3665
    %v3667 = vand.u32 %v110, 4294901760
    %v3668 = vsub.f32 %v110, %v3667
    %3669 = vmatpush.msra.mxu0 %v3668
    %v3670 = vand.u32 %v193, 4294901760
    %v3671 = vsub.f32 %v193, %v3670
    %3672 = vmatmul.f32.gmra.mxu0 %v3671
    %v3673 = vpop.f32.mrf.mxu0
    %v3674 = vadd.f32 %v3644, %v3673
    %3675 = vdwg.mxu0
    %3676 = vmatpush.msra.mxu0 0.0
    %3677 = vmatpush.msra.mxu0 0.0
    %3678 = vmatpush.msra.mxu0 0.0
    %3679 = vmatpush.msra.mxu0 0.0
    %3680 = vmatpush.msra.mxu0 0.0
    %3681 = vmatpush.msra.mxu0 0.0
    %3682 = vmatpush.msra.mxu0 0.0
    %3683 = vmatpush.msra.mxu0 0.0
    %3684 = vmatpush.msra.mxu0 0.0
    %3685 = vmatpush.msra.mxu0 0.0
    %3686 = vmatpush.msra.mxu0 0.0
    %3687 = vmatpush.msra.mxu0 0.0
    %v3688 = vand.u32 %v113, 4294901760
    %3689 = vmatpush.msra.mxu0 %v3688
    %v3690 = vand.u32 %v112, 4294901760
    %3691 = vmatpush.msra.mxu0 %v3690
    %v3692 = vand.u32 %v111, 4294901760
    %3693 = vmatpush.msra.mxu0 %v3692
    %v3694 = vand.u32 %v110, 4294901760
    %3695 = vmatpush.msra.mxu0 %v3694
    %v3696 = vand.u32 %v193, 4294901760
    %v3697 = vsub.f32 %v193, %v3696
    %v3698 = vand.u32 %v3697, 4294901760
    %3699 = vmatmul.f32.gmra.mxu0 %v3698
    %v3700 = vpop.f32.mrf.mxu0
    %v3701 = vadd.f32 %v3674, %v3700
    %3702 = vdwg.mxu0
    %3703 = vmatpush.msra.mxu0 0.0
    %3704 = vmatpush.msra.mxu0 0.0
    %3705 = vmatpush.msra.mxu0 0.0
    %3706 = vmatpush.msra.mxu0 0.0
    %3707 = vmatpush.msra.mxu0 0.0
    %3708 = vmatpush.msra.mxu0 0.0
    %3709 = vmatpush.msra.mxu0 0.0
    %3710 = vmatpush.msra.mxu0 0.0
    %3711 = vmatpush.msra.mxu0 0.0
    %3712 = vmatpush.msra.mxu0 0.0
    %3713 = vmatpush.msra.mxu0 0.0
    %3714 = vmatpush.msra.mxu0 0.0
    %v3715 = vand.u32 %v113, 4294901760
    %v3716 = vsub.f32 %v113, %v3715
    %v3717 = vand.u32 %v3716, 4294901760
    %3718 = vmatpush.msra.mxu0 %v3717
    %v3719 = vand.u32 %v112, 4294901760
    %v3720 = vsub.f32 %v112, %v3719
    %v3721 = vand.u32 %v3720, 4294901760
    %3722 = vmatpush.msra.mxu0 %v3721
    %v3723 = vand.u32 %v111, 4294901760
    %v3724 = vsub.f32 %v111, %v3723
    %v3725 = vand.u32 %v3724, 4294901760
    %3726 = vmatpush.msra.mxu0 %v3725
    %v3727 = vand.u32 %v110, 4294901760
    %v3728 = vsub.f32 %v110, %v3727
    %v3729 = vand.u32 %v3728, 4294901760
    %3730 = vmatpush.msra.mxu0 %v3729
    %v3731 = vand.u32 %v193, 4294901760
    %3732 = vmatmul.f32.gmra.mxu0 %v3731
    %v3733 = vpop.f32.mrf.mxu0
    %v3734 = vadd.f32 %v3701, %v3733
    %3735 = vdwg.mxu0
    %3736 = vmatpush.msra.mxu0 0.0
    %3737 = vmatpush.msra.mxu0 0.0
    %3738 = vmatpush.msra.mxu0 0.0
    %3739 = vmatpush.msra.mxu0 0.0
    %3740 = vmatpush.msra.mxu0 0.0
    %3741 = vmatpush.msra.mxu0 0.0
    %3742 = vmatpush.msra.mxu0 0.0
    %3743 = vmatpush.msra.mxu0 0.0
    %3744 = vmatpush.msra.mxu0 0.0
    %3745 = vmatpush.msra.mxu0 0.0
    %3746 = vmatpush.msra.mxu0 0.0
    %3747 = vmatpush.msra.mxu0 0.0
    %v3748 = vand.u32 %v113, 4294901760
    %3749 = vmatpush.msra.mxu0 %v3748
    %v3750 = vand.u32 %v112, 4294901760
    %3751 = vmatpush.msra.mxu0 %v3750
    %v3752 = vand.u32 %v111, 4294901760
    %3753 = vmatpush.msra.mxu0 %v3752
    %v3754 = vand.u32 %v110, 4294901760
    %3755 = vmatpush.msra.mxu0 %v3754
    %v3756 = vand.u32 %v193, 4294901760
    %3757 = vmatmul.f32.gmra.mxu0 %v3756
    %v3758 = vpop.f32.mrf.mxu0
    %v3759 = vadd.f32 %v3734, %v3758
    %3760 = vdwg.mxu0
    %3761 = vmatpush.msra.mxu0 0.0
    %3762 = vmatpush.msra.mxu0 0.0
    %3763 = vmatpush.msra.mxu0 0.0
    %3764 = vmatpush.msra.mxu0 0.0
    %3765 = vmatpush.msra.mxu0 0.0
    %3766 = vmatpush.msra.mxu0 0.0
    %3767 = vmatpush.msra.mxu0 0.0
    %3768 = vmatpush.msra.mxu0 0.0
    %3769 = vmatpush.msra.mxu0 0.0
    %3770 = vmatpush.msra.mxu0 0.0
    %3771 = vmatpush.msra.mxu0 0.0
    %3772 = vmatpush.msra.mxu0 0.0
    %v3773 = vand.u32 %v117, 4294901760
    %3774 = vmatpush.msra.mxu0 %v3773
    %v3775 = vand.u32 %v116, 4294901760
    %3776 = vmatpush.msra.mxu0 %v3775
    %v3777 = vand.u32 %v115, 4294901760
    %3778 = vmatpush.msra.mxu0 %v3777
    %v3779 = vand.u32 %v114, 4294901760
    %3780 = vmatpush.msra.mxu0 %v3779
    %v3781 = vand.u32 %v381, 4294901760
    %v3782 = vsub.f32 %v381, %v3781
    %v3783 = vand.u32 %v3782, 4294901760
    %v3784 = vsub.f32 %v3782, %v3783
    %v3785 = vand.u32 %v3784, 4294901760
    %3786 = vmatmul.f32.gmra.mxu0 %v3785
    %v3787 = vpop.f32.mrf.mxu0
    %v3788 = vadd.f32 %v3193, %v3787
    %3789 = vdwg.mxu0
    %3790 = vmatpush.msra.mxu0 0.0
    %3791 = vmatpush.msra.mxu0 0.0
    %3792 = vmatpush.msra.mxu0 0.0
    %3793 = vmatpush.msra.mxu0 0.0
    %3794 = vmatpush.msra.mxu0 0.0
    %3795 = vmatpush.msra.mxu0 0.0
    %3796 = vmatpush.msra.mxu0 0.0
    %3797 = vmatpush.msra.mxu0 0.0
    %3798 = vmatpush.msra.mxu0 0.0
    %3799 = vmatpush.msra.mxu0 0.0
    %3800 = vmatpush.msra.mxu0 0.0
    %3801 = vmatpush.msra.mxu0 0.0
    %v3802 = vand.u32 %v117, 4294901760
    %v3803 = vsub.f32 %v117, %v3802
    %v3804 = vand.u32 %v3803, 4294901760
    %v3805 = vsub.f32 %v3803, %v3804
    %v3806 = vand.u32 %v3805, 4294901760
    %3807 = vmatpush.msra.mxu0 %v3806
    %v3808 = vand.u32 %v116, 4294901760
    %v3809 = vsub.f32 %v116, %v3808
    %v3810 = vand.u32 %v3809, 4294901760
    %v3811 = vsub.f32 %v3809, %v3810
    %v3812 = vand.u32 %v3811, 4294901760
    %3813 = vmatpush.msra.mxu0 %v3812
    %v3814 = vand.u32 %v115, 4294901760
    %v3815 = vsub.f32 %v115, %v3814
    %v3816 = vand.u32 %v3815, 4294901760
    %v3817 = vsub.f32 %v3815, %v3816
    %v3818 = vand.u32 %v3817, 4294901760
    %3819 = vmatpush.msra.mxu0 %v3818
    %v3820 = vand.u32 %v114, 4294901760
    %v3821 = vsub.f32 %v114, %v3820
    %v3822 = vand.u32 %v3821, 4294901760
    %v3823 = vsub.f32 %v3821, %v3822
    %v3824 = vand.u32 %v3823, 4294901760
    %3825 = vmatpush.msra.mxu0 %v3824
    %v3826 = vand.u32 %v381, 4294901760
    %3827 = vmatmul.f32.gmra.mxu0 %v3826
    %v3828 = vpop.f32.mrf.mxu0
    %v3829 = vadd.f32 %v3788, %v3828
    %3830 = vdwg.mxu0
    %3831 = vmatpush.msra.mxu0 0.0
    %3832 = vmatpush.msra.mxu0 0.0
    %3833 = vmatpush.msra.mxu0 0.0
    %3834 = vmatpush.msra.mxu0 0.0
    %3835 = vmatpush.msra.mxu0 0.0
    %3836 = vmatpush.msra.mxu0 0.0
    %3837 = vmatpush.msra.mxu0 0.0
    %3838 = vmatpush.msra.mxu0 0.0
    %3839 = vmatpush.msra.mxu0 0.0
    %3840 = vmatpush.msra.mxu0 0.0
    %3841 = vmatpush.msra.mxu0 0.0
    %3842 = vmatpush.msra.mxu0 0.0
    %v3843 = vand.u32 %v117, 4294901760
    %v3844 = vsub.f32 %v117, %v3843
    %3845 = vmatpush.msra.mxu0 %v3844
    %v3846 = vand.u32 %v116, 4294901760
    %v3847 = vsub.f32 %v116, %v3846
    %3848 = vmatpush.msra.mxu0 %v3847
    %v3849 = vand.u32 %v115, 4294901760
    %v3850 = vsub.f32 %v115, %v3849
    %3851 = vmatpush.msra.mxu0 %v3850
    %v3852 = vand.u32 %v114, 4294901760
    %v3853 = vsub.f32 %v114, %v3852
    %3854 = vmatpush.msra.mxu0 %v3853
    %v3855 = vand.u32 %v381, 4294901760
    %v3856 = vsub.f32 %v381, %v3855
    %3857 = vmatmul.f32.gmra.mxu0 %v3856
    %v3858 = vpop.f32.mrf.mxu0
    %v3859 = vadd.f32 %v3829, %v3858
    %3860 = vdwg.mxu0
    %3861 = vmatpush.msra.mxu0 0.0
    %3862 = vmatpush.msra.mxu0 0.0
    %3863 = vmatpush.msra.mxu0 0.0
    %3864 = vmatpush.msra.mxu0 0.0
    %3865 = vmatpush.msra.mxu0 0.0
    %3866 = vmatpush.msra.mxu0 0.0
    %3867 = vmatpush.msra.mxu0 0.0
    %3868 = vmatpush.msra.mxu0 0.0
    %3869 = vmatpush.msra.mxu0 0.0
    %3870 = vmatpush.msra.mxu0 0.0
    %3871 = vmatpush.msra.mxu0 0.0
    %3872 = vmatpush.msra.mxu0 0.0
    %v3873 = vand.u32 %v117, 4294901760
    %3874 = vmatpush.msra.mxu0 %v3873
    %v3875 = vand.u32 %v116, 4294901760
    %3876 = vmatpush.msra.mxu0 %v3875
    %v3877 = vand.u32 %v115, 4294901760
    %3878 = vmatpush.msra.mxu0 %v3877
    %v3879 = vand.u32 %v114, 4294901760
    %3880 = vmatpush.msra.mxu0 %v3879
    %v3881 = vand.u32 %v381, 4294901760
    %v3882 = vsub.f32 %v381, %v3881
    %v3883 = vand.u32 %v3882, 4294901760
    %3884 = vmatmul.f32.gmra.mxu0 %v3883
    %v3885 = vpop.f32.mrf.mxu0
    %v3886 = vadd.f32 %v3859, %v3885
    %3887 = vdwg.mxu0
    %3888 = vmatpush.msra.mxu0 0.0
    %3889 = vmatpush.msra.mxu0 0.0
    %3890 = vmatpush.msra.mxu0 0.0
    %3891 = vmatpush.msra.mxu0 0.0
    %3892 = vmatpush.msra.mxu0 0.0
    %3893 = vmatpush.msra.mxu0 0.0
    %3894 = vmatpush.msra.mxu0 0.0
    %3895 = vmatpush.msra.mxu0 0.0
    %3896 = vmatpush.msra.mxu0 0.0
    %3897 = vmatpush.msra.mxu0 0.0
    %3898 = vmatpush.msra.mxu0 0.0
    %3899 = vmatpush.msra.mxu0 0.0
    %v3900 = vand.u32 %v117, 4294901760
    %v3901 = vsub.f32 %v117, %v3900
    %v3902 = vand.u32 %v3901, 4294901760
    %3903 = vmatpush.msra.mxu0 %v3902
    %v3904 = vand.u32 %v116, 4294901760
    %v3905 = vsub.f32 %v116, %v3904
    %v3906 = vand.u32 %v3905, 4294901760
    %3907 = vmatpush.msra.mxu0 %v3906
    %v3908 = vand.u32 %v115, 4294901760
    %v3909 = vsub.f32 %v115, %v3908
    %v3910 = vand.u32 %v3909, 4294901760
    %3911 = vmatpush.msra.mxu0 %v3910
    %v3912 = vand.u32 %v114, 4294901760
    %v3913 = vsub.f32 %v114, %v3912
    %v3914 = vand.u32 %v3913, 4294901760
    %3915 = vmatpush.msra.mxu0 %v3914
    %v3916 = vand.u32 %v381, 4294901760
    %3917 = vmatmul.f32.gmra.mxu0 %v3916
    %v3918 = vpop.f32.mrf.mxu0
    %v3919 = vadd.f32 %v3886, %v3918
    %3920 = vdwg.mxu0
    %3921 = vmatpush.msra.mxu0 0.0
    %3922 = vmatpush.msra.mxu0 0.0
    %3923 = vmatpush.msra.mxu0 0.0
    %3924 = vmatpush.msra.mxu0 0.0
    %3925 = vmatpush.msra.mxu0 0.0
    %3926 = vmatpush.msra.mxu0 0.0
    %3927 = vmatpush.msra.mxu0 0.0
    %3928 = vmatpush.msra.mxu0 0.0
    %3929 = vmatpush.msra.mxu0 0.0
    %3930 = vmatpush.msra.mxu0 0.0
    %3931 = vmatpush.msra.mxu0 0.0
    %3932 = vmatpush.msra.mxu0 0.0
    %v3933 = vand.u32 %v117, 4294901760
    %3934 = vmatpush.msra.mxu0 %v3933
    %v3935 = vand.u32 %v116, 4294901760
    %3936 = vmatpush.msra.mxu0 %v3935
    %v3937 = vand.u32 %v115, 4294901760
    %3938 = vmatpush.msra.mxu0 %v3937
    %v3939 = vand.u32 %v114, 4294901760
    %3940 = vmatpush.msra.mxu0 %v3939
    %v3941 = vand.u32 %v381, 4294901760
    %3942 = vmatmul.f32.gmra.mxu0 %v3941
    %v3943 = vpop.f32.mrf.mxu0
    %v3944 = vadd.f32 %v3919, %v3943
    %3945 = vdwg.mxu0
    %3946 = vmatpush.msra.mxu0 0.0
    %3947 = vmatpush.msra.mxu0 0.0
    %3948 = vmatpush.msra.mxu0 0.0
    %3949 = vmatpush.msra.mxu0 0.0
    %3950 = vmatpush.msra.mxu0 0.0
    %3951 = vmatpush.msra.mxu0 0.0
    %3952 = vmatpush.msra.mxu0 0.0
    %3953 = vmatpush.msra.mxu0 0.0
    %3954 = vmatpush.msra.mxu0 0.0
    %3955 = vmatpush.msra.mxu0 0.0
    %3956 = vmatpush.msra.mxu0 0.0
    %3957 = vmatpush.msra.mxu0 0.0
    %v3958 = vand.u32 %v121, 4294901760
    %3959 = vmatpush.msra.mxu0 %v3958
    %v3960 = vand.u32 %v120, 4294901760
    %3961 = vmatpush.msra.mxu0 %v3960
    %v3962 = vand.u32 %v119, 4294901760
    %3963 = vmatpush.msra.mxu0 %v3962
    %v3964 = vand.u32 %v118, 4294901760
    %3965 = vmatpush.msra.mxu0 %v3964
    %v3966 = vand.u32 %v193, 4294901760
    %v3967 = vsub.f32 %v193, %v3966
    %v3968 = vand.u32 %v3967, 4294901760
    %v3969 = vsub.f32 %v3967, %v3968
    %v3970 = vand.u32 %v3969, 4294901760
    %3971 = vmatmul.f32.gmra.mxu0 %v3970
    %v3972 = vpop.f32.mrf.mxu0
    %v3973 = vadd.f32 %v3194, %v3972
    %3974 = vdwg.mxu0
    %3975 = vmatpush.msra.mxu0 0.0
    %3976 = vmatpush.msra.mxu0 0.0
    %3977 = vmatpush.msra.mxu0 0.0
    %3978 = vmatpush.msra.mxu0 0.0
    %3979 = vmatpush.msra.mxu0 0.0
    %3980 = vmatpush.msra.mxu0 0.0
    %3981 = vmatpush.msra.mxu0 0.0
    %3982 = vmatpush.msra.mxu0 0.0
    %3983 = vmatpush.msra.mxu0 0.0
    %3984 = vmatpush.msra.mxu0 0.0
    %3985 = vmatpush.msra.mxu0 0.0
    %3986 = vmatpush.msra.mxu0 0.0
    %v3987 = vand.u32 %v121, 4294901760
    %v3988 = vsub.f32 %v121, %v3987
    %v3989 = vand.u32 %v3988, 4294901760
    %v3990 = vsub.f32 %v3988, %v3989
    %v3991 = vand.u32 %v3990, 4294901760
    %3992 = vmatpush.msra.mxu0 %v3991
    %v3993 = vand.u32 %v120, 4294901760
    %v3994 = vsub.f32 %v120, %v3993
    %v3995 = vand.u32 %v3994, 4294901760
    %v3996 = vsub.f32 %v3994, %v3995
    %v3997 = vand.u32 %v3996, 4294901760
    %3998 = vmatpush.msra.mxu0 %v3997
    %v3999 = vand.u32 %v119, 4294901760
    %v4000 = vsub.f32 %v119, %v3999
    %v4001 = vand.u32 %v4000, 4294901760
    %v4002 = vsub.f32 %v4000, %v4001
    %v4003 = vand.u32 %v4002, 4294901760
    %4004 = vmatpush.msra.mxu0 %v4003
    %v4005 = vand.u32 %v118, 4294901760
    %v4006 = vsub.f32 %v118, %v4005
    %v4007 = vand.u32 %v4006, 4294901760
    %v4008 = vsub.f32 %v4006, %v4007
    %v4009 = vand.u32 %v4008, 4294901760
    %4010 = vmatpush.msra.mxu0 %v4009
    %v4011 = vand.u32 %v193, 4294901760
    %4012 = vmatmul.f32.gmra.mxu0 %v4011
    %v4013 = vpop.f32.mrf.mxu0
    %v4014 = vadd.f32 %v3973, %v4013
    %4015 = vdwg.mxu0
    %4016 = vmatpush.msra.mxu0 0.0
    %4017 = vmatpush.msra.mxu0 0.0
    %4018 = vmatpush.msra.mxu0 0.0
    %4019 = vmatpush.msra.mxu0 0.0
    %4020 = vmatpush.msra.mxu0 0.0
    %4021 = vmatpush.msra.mxu0 0.0
    %4022 = vmatpush.msra.mxu0 0.0
    %4023 = vmatpush.msra.mxu0 0.0
    %4024 = vmatpush.msra.mxu0 0.0
    %4025 = vmatpush.msra.mxu0 0.0
    %4026 = vmatpush.msra.mxu0 0.0
    %4027 = vmatpush.msra.mxu0 0.0
    %v4028 = vand.u32 %v121, 4294901760
    %v4029 = vsub.f32 %v121, %v4028
    %4030 = vmatpush.msra.mxu0 %v4029
    %v4031 = vand.u32 %v120, 4294901760
    %v4032 = vsub.f32 %v120, %v4031
    %4033 = vmatpush.msra.mxu0 %v4032
    %v4034 = vand.u32 %v119, 4294901760
    %v4035 = vsub.f32 %v119, %v4034
    %4036 = vmatpush.msra.mxu0 %v4035
    %v4037 = vand.u32 %v118, 4294901760
    %v4038 = vsub.f32 %v118, %v4037
    %4039 = vmatpush.msra.mxu0 %v4038
    %v4040 = vand.u32 %v193, 4294901760
    %v4041 = vsub.f32 %v193, %v4040
    %4042 = vmatmul.f32.gmra.mxu0 %v4041
    %v4043 = vpop.f32.mrf.mxu0
    %v4044 = vadd.f32 %v4014, %v4043
    %4045 = vdwg.mxu0
    %4046 = vmatpush.msra.mxu0 0.0
    %4047 = vmatpush.msra.mxu0 0.0
    %4048 = vmatpush.msra.mxu0 0.0
    %4049 = vmatpush.msra.mxu0 0.0
    %4050 = vmatpush.msra.mxu0 0.0
    %4051 = vmatpush.msra.mxu0 0.0
    %4052 = vmatpush.msra.mxu0 0.0
    %4053 = vmatpush.msra.mxu0 0.0
    %4054 = vmatpush.msra.mxu0 0.0
    %4055 = vmatpush.msra.mxu0 0.0
    %4056 = vmatpush.msra.mxu0 0.0
    %4057 = vmatpush.msra.mxu0 0.0
    %v4058 = vand.u32 %v121, 4294901760
    %4059 = vmatpush.msra.mxu0 %v4058
    %v4060 = vand.u32 %v120, 4294901760
    %4061 = vmatpush.msra.mxu0 %v4060
    %v4062 = vand.u32 %v119, 4294901760
    %4063 = vmatpush.msra.mxu0 %v4062
    %v4064 = vand.u32 %v118, 4294901760
    %4065 = vmatpush.msra.mxu0 %v4064
    %v4066 = vand.u32 %v193, 4294901760
    %v4067 = vsub.f32 %v193, %v4066
    %v4068 = vand.u32 %v4067, 4294901760
    %4069 = vmatmul.f32.gmra.mxu0 %v4068
    %v4070 = vpop.f32.mrf.mxu0
    %v4071 = vadd.f32 %v4044, %v4070
    %4072 = vdwg.mxu0
    %4073 = vmatpush.msra.mxu0 0.0
    %4074 = vmatpush.msra.mxu0 0.0
    %4075 = vmatpush.msra.mxu0 0.0
    %4076 = vmatpush.msra.mxu0 0.0
    %4077 = vmatpush.msra.mxu0 0.0
    %4078 = vmatpush.msra.mxu0 0.0
    %4079 = vmatpush.msra.mxu0 0.0
    %4080 = vmatpush.msra.mxu0 0.0
    %4081 = vmatpush.msra.mxu0 0.0
    %4082 = vmatpush.msra.mxu0 0.0
    %4083 = vmatpush.msra.mxu0 0.0
    %4084 = vmatpush.msra.mxu0 0.0
    %v4085 = vand.u32 %v121, 4294901760
    %v4086 = vsub.f32 %v121, %v4085
    %v4087 = vand.u32 %v4086, 4294901760
    %4088 = vmatpush.msra.mxu0 %v4087
    %v4089 = vand.u32 %v120, 4294901760
    %v4090 = vsub.f32 %v120, %v4089
    %v4091 = vand.u32 %v4090, 4294901760
    %4092 = vmatpush.msra.mxu0 %v4091
    %v4093 = vand.u32 %v119, 4294901760
    %v4094 = vsub.f32 %v119, %v4093
    %v4095 = vand.u32 %v4094, 4294901760
    %4096 = vmatpush.msra.mxu0 %v4095
    %v4097 = vand.u32 %v118, 4294901760
    %v4098 = vsub.f32 %v118, %v4097
    %v4099 = vand.u32 %v4098, 4294901760
    %4100 = vmatpush.msra.mxu0 %v4099
    %v4101 = vand.u32 %v193, 4294901760
    %4102 = vmatmul.f32.gmra.mxu0 %v4101
    %v4103 = vpop.f32.mrf.mxu0
    %v4104 = vadd.f32 %v4071, %v4103
    %4105 = vdwg.mxu0
    %4106 = vmatpush.msra.mxu0 0.0
    %4107 = vmatpush.msra.mxu0 0.0
    %4108 = vmatpush.msra.mxu0 0.0
    %4109 = vmatpush.msra.mxu0 0.0
    %4110 = vmatpush.msra.mxu0 0.0
    %4111 = vmatpush.msra.mxu0 0.0
    %4112 = vmatpush.msra.mxu0 0.0
    %4113 = vmatpush.msra.mxu0 0.0
    %4114 = vmatpush.msra.mxu0 0.0
    %4115 = vmatpush.msra.mxu0 0.0
    %4116 = vmatpush.msra.mxu0 0.0
    %4117 = vmatpush.msra.mxu0 0.0
    %v4118 = vand.u32 %v121, 4294901760
    %4119 = vmatpush.msra.mxu0 %v4118
    %v4120 = vand.u32 %v120, 4294901760
    %4121 = vmatpush.msra.mxu0 %v4120
    %v4122 = vand.u32 %v119, 4294901760
    %4123 = vmatpush.msra.mxu0 %v4122
    %v4124 = vand.u32 %v118, 4294901760
    %4125 = vmatpush.msra.mxu0 %v4124
    %v4126 = vand.u32 %v193, 4294901760
    %4127 = vmatmul.f32.gmra.mxu0 %v4126
    %v4128 = vpop.f32.mrf.mxu0
    %v4129 = vadd.f32 %v4104, %v4128
    %4130 = vdwg.mxu0
    %4131 = vmatpush.msra.mxu0 0.0
    %4132 = vmatpush.msra.mxu0 0.0
    %4133 = vmatpush.msra.mxu0 0.0
    %4134 = vmatpush.msra.mxu0 0.0
    %4135 = vmatpush.msra.mxu0 0.0
    %4136 = vmatpush.msra.mxu0 0.0
    %4137 = vmatpush.msra.mxu0 0.0
    %4138 = vmatpush.msra.mxu0 0.0
    %4139 = vmatpush.msra.mxu0 0.0
    %4140 = vmatpush.msra.mxu0 0.0
    %4141 = vmatpush.msra.mxu0 0.0
    %4142 = vmatpush.msra.mxu0 0.0
    %v4143 = vand.u32 %v125, 4294901760
    %4144 = vmatpush.msra.mxu0 %v4143
    %v4145 = vand.u32 %v124, 4294901760
    %4146 = vmatpush.msra.mxu0 %v4145
    %v4147 = vand.u32 %v123, 4294901760
    %4148 = vmatpush.msra.mxu0 %v4147
    %v4149 = vand.u32 %v122, 4294901760
    %4150 = vmatpush.msra.mxu0 %v4149
    %v4151 = vand.u32 %v381, 4294901760
    %v4152 = vsub.f32 %v381, %v4151
    %v4153 = vand.u32 %v4152, 4294901760
    %v4154 = vsub.f32 %v4152, %v4153
    %v4155 = vand.u32 %v4154, 4294901760
    %4156 = vmatmul.f32.gmra.mxu0 %v4155
    %v4157 = vpop.f32.mrf.mxu0
    %v4158 = vadd.f32 %v3195, %v4157
    %4159 = vdwg.mxu0
    %4160 = vmatpush.msra.mxu0 0.0
    %4161 = vmatpush.msra.mxu0 0.0
    %4162 = vmatpush.msra.mxu0 0.0
    %4163 = vmatpush.msra.mxu0 0.0
    %4164 = vmatpush.msra.mxu0 0.0
    %4165 = vmatpush.msra.mxu0 0.0
    %4166 = vmatpush.msra.mxu0 0.0
    %4167 = vmatpush.msra.mxu0 0.0
    %4168 = vmatpush.msra.mxu0 0.0
    %4169 = vmatpush.msra.mxu0 0.0
    %4170 = vmatpush.msra.mxu0 0.0
    %4171 = vmatpush.msra.mxu0 0.0
    %v4172 = vand.u32 %v125, 4294901760
    %v4173 = vsub.f32 %v125, %v4172
    %v4174 = vand.u32 %v4173, 4294901760
    %v4175 = vsub.f32 %v4173, %v4174
    %v4176 = vand.u32 %v4175, 4294901760
    %4177 = vmatpush.msra.mxu0 %v4176
    %v4178 = vand.u32 %v124, 4294901760
    %v4179 = vsub.f32 %v124, %v4178
    %v4180 = vand.u32 %v4179, 4294901760
    %v4181 = vsub.f32 %v4179, %v4180
    %v4182 = vand.u32 %v4181, 4294901760
    %4183 = vmatpush.msra.mxu0 %v4182
    %v4184 = vand.u32 %v123, 4294901760
    %v4185 = vsub.f32 %v123, %v4184
    %v4186 = vand.u32 %v4185, 4294901760
    %v4187 = vsub.f32 %v4185, %v4186
    %v4188 = vand.u32 %v4187, 4294901760
    %4189 = vmatpush.msra.mxu0 %v4188
    %v4190 = vand.u32 %v122, 4294901760
    %v4191 = vsub.f32 %v122, %v4190
    %v4192 = vand.u32 %v4191, 4294901760
    %v4193 = vsub.f32 %v4191, %v4192
    %v4194 = vand.u32 %v4193, 4294901760
    %4195 = vmatpush.msra.mxu0 %v4194
    %v4196 = vand.u32 %v381, 4294901760
    %4197 = vmatmul.f32.gmra.mxu0 %v4196
    %v4198 = vpop.f32.mrf.mxu0
    %v4199 = vadd.f32 %v4158, %v4198
    %4200 = vdwg.mxu0
    %4201 = vmatpush.msra.mxu0 0.0
    %4202 = vmatpush.msra.mxu0 0.0
    %4203 = vmatpush.msra.mxu0 0.0
    %4204 = vmatpush.msra.mxu0 0.0
    %4205 = vmatpush.msra.mxu0 0.0
    %4206 = vmatpush.msra.mxu0 0.0
    %4207 = vmatpush.msra.mxu0 0.0
    %4208 = vmatpush.msra.mxu0 0.0
    %4209 = vmatpush.msra.mxu0 0.0
    %4210 = vmatpush.msra.mxu0 0.0
    %4211 = vmatpush.msra.mxu0 0.0
    %4212 = vmatpush.msra.mxu0 0.0
    %v4213 = vand.u32 %v125, 4294901760
    %v4214 = vsub.f32 %v125, %v4213
    %4215 = vmatpush.msra.mxu0 %v4214
    %v4216 = vand.u32 %v124, 4294901760
    %v4217 = vsub.f32 %v124, %v4216
    %4218 = vmatpush.msra.mxu0 %v4217
    %v4219 = vand.u32 %v123, 4294901760
    %v4220 = vsub.f32 %v123, %v4219
    %4221 = vmatpush.msra.mxu0 %v4220
    %v4222 = vand.u32 %v122, 4294901760
    %v4223 = vsub.f32 %v122, %v4222
    %4224 = vmatpush.msra.mxu0 %v4223
    %v4225 = vand.u32 %v381, 4294901760
    %v4226 = vsub.f32 %v381, %v4225
    %4227 = vmatmul.f32.gmra.mxu0 %v4226
    %v4228 = vpop.f32.mrf.mxu0
    %v4229 = vadd.f32 %v4199, %v4228
    %4230 = vdwg.mxu0
    %4231 = vmatpush.msra.mxu0 0.0
    %4232 = vmatpush.msra.mxu0 0.0
    %4233 = vmatpush.msra.mxu0 0.0
    %4234 = vmatpush.msra.mxu0 0.0
    %4235 = vmatpush.msra.mxu0 0.0
    %4236 = vmatpush.msra.mxu0 0.0
    %4237 = vmatpush.msra.mxu0 0.0
    %4238 = vmatpush.msra.mxu0 0.0
    %4239 = vmatpush.msra.mxu0 0.0
    %4240 = vmatpush.msra.mxu0 0.0
    %4241 = vmatpush.msra.mxu0 0.0
    %4242 = vmatpush.msra.mxu0 0.0
    %v4243 = vand.u32 %v125, 4294901760
    %4244 = vmatpush.msra.mxu0 %v4243
    %v4245 = vand.u32 %v124, 4294901760
    %4246 = vmatpush.msra.mxu0 %v4245
    %v4247 = vand.u32 %v123, 4294901760
    %4248 = vmatpush.msra.mxu0 %v4247
    %v4249 = vand.u32 %v122, 4294901760
    %4250 = vmatpush.msra.mxu0 %v4249
    %v4251 = vand.u32 %v381, 4294901760
    %v4252 = vsub.f32 %v381, %v4251
    %v4253 = vand.u32 %v4252, 4294901760
    %4254 = vmatmul.f32.gmra.mxu0 %v4253
    %v4255 = vpop.f32.mrf.mxu0
    %v4256 = vadd.f32 %v4229, %v4255
    %4257 = vdwg.mxu0
    %4258 = vmatpush.msra.mxu0 0.0
    %4259 = vmatpush.msra.mxu0 0.0
    %4260 = vmatpush.msra.mxu0 0.0
    %4261 = vmatpush.msra.mxu0 0.0
    %4262 = vmatpush.msra.mxu0 0.0
    %4263 = vmatpush.msra.mxu0 0.0
    %4264 = vmatpush.msra.mxu0 0.0
    %4265 = vmatpush.msra.mxu0 0.0
    %4266 = vmatpush.msra.mxu0 0.0
    %4267 = vmatpush.msra.mxu0 0.0
    %4268 = vmatpush.msra.mxu0 0.0
    %4269 = vmatpush.msra.mxu0 0.0
    %v4270 = vand.u32 %v125, 4294901760
    %v4271 = vsub.f32 %v125, %v4270
    %v4272 = vand.u32 %v4271, 4294901760
    %4273 = vmatpush.msra.mxu0 %v4272
    %v4274 = vand.u32 %v124, 4294901760
    %v4275 = vsub.f32 %v124, %v4274
    %v4276 = vand.u32 %v4275, 4294901760
    %4277 = vmatpush.msra.mxu0 %v4276
    %v4278 = vand.u32 %v123, 4294901760
    %v4279 = vsub.f32 %v123, %v4278
    %v4280 = vand.u32 %v4279, 4294901760
    %4281 = vmatpush.msra.mxu0 %v4280
    %v4282 = vand.u32 %v122, 4294901760
    %v4283 = vsub.f32 %v122, %v4282
    %v4284 = vand.u32 %v4283, 4294901760
    %4285 = vmatpush.msra.mxu0 %v4284
    %v4286 = vand.u32 %v381, 4294901760
    %4287 = vmatmul.f32.gmra.mxu0 %v4286
    %v4288 = vpop.f32.mrf.mxu0
    %v4289 = vadd.f32 %v4256, %v4288
    %4290 = vdwg.mxu0
    %4291 = vmatpush.msra.mxu0 0.0
    %4292 = vmatpush.msra.mxu0 0.0
    %4293 = vmatpush.msra.mxu0 0.0
    %4294 = vmatpush.msra.mxu0 0.0
    %4295 = vmatpush.msra.mxu0 0.0
    %4296 = vmatpush.msra.mxu0 0.0
    %4297 = vmatpush.msra.mxu0 0.0
    %4298 = vmatpush.msra.mxu0 0.0
    %4299 = vmatpush.msra.mxu0 0.0
    %4300 = vmatpush.msra.mxu0 0.0
    %4301 = vmatpush.msra.mxu0 0.0
    %4302 = vmatpush.msra.mxu0 0.0
    %v4303 = vand.u32 %v125, 4294901760
    %4304 = vmatpush.msra.mxu0 %v4303
    %v4305 = vand.u32 %v124, 4294901760
    %4306 = vmatpush.msra.mxu0 %v4305
    %v4307 = vand.u32 %v123, 4294901760
    %4308 = vmatpush.msra.mxu0 %v4307
    %v4309 = vand.u32 %v122, 4294901760
    %4310 = vmatpush.msra.mxu0 %v4309
    %v4311 = vand.u32 %v381, 4294901760
    %4312 = vmatmul.f32.gmra.mxu0 %v4311
    %v4313 = vpop.f32.mrf.mxu0
    %v4314 = vadd.f32 %v4289, %v4313
    %4315 = vdwg.mxu0
    %4316 = vmatpush.msra.mxu0 0.0
    %4317 = vmatpush.msra.mxu0 0.0
    %4318 = vmatpush.msra.mxu0 0.0
    %4319 = vmatpush.msra.mxu0 0.0
    %4320 = vmatpush.msra.mxu0 0.0
    %4321 = vmatpush.msra.mxu0 0.0
    %4322 = vmatpush.msra.mxu0 0.0
    %4323 = vmatpush.msra.mxu0 0.0
    %4324 = vmatpush.msra.mxu0 0.0
    %4325 = vmatpush.msra.mxu0 0.0
    %4326 = vmatpush.msra.mxu0 0.0
    %4327 = vmatpush.msra.mxu0 0.0
    %v4328 = vand.u32 %v129, 4294901760
    %4329 = vmatpush.msra.mxu0 %v4328
    %v4330 = vand.u32 %v128, 4294901760
    %4331 = vmatpush.msra.mxu0 %v4330
    %v4332 = vand.u32 %v127, 4294901760
    %4333 = vmatpush.msra.mxu0 %v4332
    %v4334 = vand.u32 %v126, 4294901760
    %4335 = vmatpush.msra.mxu0 %v4334
    %v4336 = vand.u32 %v193, 4294901760
    %v4337 = vsub.f32 %v193, %v4336
    %v4338 = vand.u32 %v4337, 4294901760
    %v4339 = vsub.f32 %v4337, %v4338
    %v4340 = vand.u32 %v4339, 4294901760
    %4341 = vmatmul.f32.gmra.mxu0 %v4340
    %v4342 = vpop.f32.mrf.mxu0
    %v4343 = vadd.f32 %v3196, %v4342
    %4344 = vdwg.mxu0
    %4345 = vmatpush.msra.mxu0 0.0
    %4346 = vmatpush.msra.mxu0 0.0
    %4347 = vmatpush.msra.mxu0 0.0
    %4348 = vmatpush.msra.mxu0 0.0
    %4349 = vmatpush.msra.mxu0 0.0
    %4350 = vmatpush.msra.mxu0 0.0
    %4351 = vmatpush.msra.mxu0 0.0
    %4352 = vmatpush.msra.mxu0 0.0
    %4353 = vmatpush.msra.mxu0 0.0
    %4354 = vmatpush.msra.mxu0 0.0
    %4355 = vmatpush.msra.mxu0 0.0
    %4356 = vmatpush.msra.mxu0 0.0
    %v4357 = vand.u32 %v129, 4294901760
    %v4358 = vsub.f32 %v129, %v4357
    %v4359 = vand.u32 %v4358, 4294901760
    %v4360 = vsub.f32 %v4358, %v4359
    %v4361 = vand.u32 %v4360, 4294901760
    %4362 = vmatpush.msra.mxu0 %v4361
    %v4363 = vand.u32 %v128, 4294901760
    %v4364 = vsub.f32 %v128, %v4363
    %v4365 = vand.u32 %v4364, 4294901760
    %v4366 = vsub.f32 %v4364, %v4365
    %v4367 = vand.u32 %v4366, 4294901760
    %4368 = vmatpush.msra.mxu0 %v4367
    %v4369 = vand.u32 %v127, 4294901760
    %v4370 = vsub.f32 %v127, %v4369
    %v4371 = vand.u32 %v4370, 4294901760
    %v4372 = vsub.f32 %v4370, %v4371
    %v4373 = vand.u32 %v4372, 4294901760
    %4374 = vmatpush.msra.mxu0 %v4373
    %v4375 = vand.u32 %v126, 4294901760
    %v4376 = vsub.f32 %v126, %v4375
    %v4377 = vand.u32 %v4376, 4294901760
    %v4378 = vsub.f32 %v4376, %v4377
    %v4379 = vand.u32 %v4378, 4294901760
    %4380 = vmatpush.msra.mxu0 %v4379
    %v4381 = vand.u32 %v193, 4294901760
    %4382 = vmatmul.f32.gmra.mxu0 %v4381
    %v4383 = vpop.f32.mrf.mxu0
    %v4384 = vadd.f32 %v4343, %v4383
    %4385 = vdwg.mxu0
    %4386 = vmatpush.msra.mxu0 0.0
    %4387 = vmatpush.msra.mxu0 0.0
    %4388 = vmatpush.msra.mxu0 0.0
    %4389 = vmatpush.msra.mxu0 0.0
    %4390 = vmatpush.msra.mxu0 0.0
    %4391 = vmatpush.msra.mxu0 0.0
    %4392 = vmatpush.msra.mxu0 0.0
    %4393 = vmatpush.msra.mxu0 0.0
    %4394 = vmatpush.msra.mxu0 0.0
    %4395 = vmatpush.msra.mxu0 0.0
    %4396 = vmatpush.msra.mxu0 0.0
    %4397 = vmatpush.msra.mxu0 0.0
    %v4398 = vand.u32 %v129, 4294901760
    %v4399 = vsub.f32 %v129, %v4398
    %4400 = vmatpush.msra.mxu0 %v4399
    %v4401 = vand.u32 %v128, 4294901760
    %v4402 = vsub.f32 %v128, %v4401
    %4403 = vmatpush.msra.mxu0 %v4402
    %v4404 = vand.u32 %v127, 4294901760
    %v4405 = vsub.f32 %v127, %v4404
    %4406 = vmatpush.msra.mxu0 %v4405
    %v4407 = vand.u32 %v126, 4294901760
    %v4408 = vsub.f32 %v126, %v4407
    %4409 = vmatpush.msra.mxu0 %v4408
    %v4410 = vand.u32 %v193, 4294901760
    %v4411 = vsub.f32 %v193, %v4410
    %4412 = vmatmul.f32.gmra.mxu0 %v4411
    %v4413 = vpop.f32.mrf.mxu0
    %v4414 = vadd.f32 %v4384, %v4413
    %4415 = vdwg.mxu0
    %4416 = vmatpush.msra.mxu0 0.0
    %4417 = vmatpush.msra.mxu0 0.0
    %4418 = vmatpush.msra.mxu0 0.0
    %4419 = vmatpush.msra.mxu0 0.0
    %4420 = vmatpush.msra.mxu0 0.0
    %4421 = vmatpush.msra.mxu0 0.0
    %4422 = vmatpush.msra.mxu0 0.0
    %4423 = vmatpush.msra.mxu0 0.0
    %4424 = vmatpush.msra.mxu0 0.0
    %4425 = vmatpush.msra.mxu0 0.0
    %4426 = vmatpush.msra.mxu0 0.0
    %4427 = vmatpush.msra.mxu0 0.0
    %v4428 = vand.u32 %v129, 4294901760
    %4429 = vmatpush.msra.mxu0 %v4428
    %v4430 = vand.u32 %v128, 4294901760
    %4431 = vmatpush.msra.mxu0 %v4430
    %v4432 = vand.u32 %v127, 4294901760
    %4433 = vmatpush.msra.mxu0 %v4432
    %v4434 = vand.u32 %v126, 4294901760
    %4435 = vmatpush.msra.mxu0 %v4434
    %v4436 = vand.u32 %v193, 4294901760
    %v4437 = vsub.f32 %v193, %v4436
    %v4438 = vand.u32 %v4437, 4294901760
    %4439 = vmatmul.f32.gmra.mxu0 %v4438
    %v4440 = vpop.f32.mrf.mxu0
    %v4441 = vadd.f32 %v4414, %v4440
    %4442 = vdwg.mxu0
    %4443 = vmatpush.msra.mxu0 0.0
    %4444 = vmatpush.msra.mxu0 0.0
    %4445 = vmatpush.msra.mxu0 0.0
    %4446 = vmatpush.msra.mxu0 0.0
    %4447 = vmatpush.msra.mxu0 0.0
    %4448 = vmatpush.msra.mxu0 0.0
    %4449 = vmatpush.msra.mxu0 0.0
    %4450 = vmatpush.msra.mxu0 0.0
    %4451 = vmatpush.msra.mxu0 0.0
    %4452 = vmatpush.msra.mxu0 0.0
    %4453 = vmatpush.msra.mxu0 0.0
    %4454 = vmatpush.msra.mxu0 0.0
    %v4455 = vand.u32 %v129, 4294901760
    %v4456 = vsub.f32 %v129, %v4455
    %v4457 = vand.u32 %v4456, 4294901760
    %4458 = vmatpush.msra.mxu0 %v4457
    %v4459 = vand.u32 %v128, 4294901760
    %v4460 = vsub.f32 %v128, %v4459
    %v4461 = vand.u32 %v4460, 4294901760
    %4462 = vmatpush.msra.mxu0 %v4461
    %v4463 = vand.u32 %v127, 4294901760
    %v4464 = vsub.f32 %v127, %v4463
    %v4465 = vand.u32 %v4464, 4294901760
    %4466 = vmatpush.msra.mxu0 %v4465
    %v4467 = vand.u32 %v126, 4294901760
    %v4468 = vsub.f32 %v126, %v4467
    %v4469 = vand.u32 %v4468, 4294901760
    %4470 = vmatpush.msra.mxu0 %v4469
    %v4471 = vand.u32 %v193, 4294901760
    %4472 = vmatmul.f32.gmra.mxu0 %v4471
    %v4473 = vpop.f32.mrf.mxu0
    %v4474 = vadd.f32 %v4441, %v4473
    %4475 = vdwg.mxu0
    %4476 = vmatpush.msra.mxu0 0.0
    %4477 = vmatpush.msra.mxu0 0.0
    %4478 = vmatpush.msra.mxu0 0.0
    %4479 = vmatpush.msra.mxu0 0.0
    %4480 = vmatpush.msra.mxu0 0.0
    %4481 = vmatpush.msra.mxu0 0.0
    %4482 = vmatpush.msra.mxu0 0.0
    %4483 = vmatpush.msra.mxu0 0.0
    %4484 = vmatpush.msra.mxu0 0.0
    %4485 = vmatpush.msra.mxu0 0.0
    %4486 = vmatpush.msra.mxu0 0.0
    %4487 = vmatpush.msra.mxu0 0.0
    %v4488 = vand.u32 %v129, 4294901760
    %4489 = vmatpush.msra.mxu0 %v4488
    %v4490 = vand.u32 %v128, 4294901760
    %4491 = vmatpush.msra.mxu0 %v4490
    %v4492 = vand.u32 %v127, 4294901760
    %4493 = vmatpush.msra.mxu0 %v4492
    %v4494 = vand.u32 %v126, 4294901760
    %4495 = vmatpush.msra.mxu0 %v4494
    %v4496 = vand.u32 %v193, 4294901760
    %4497 = vmatmul.f32.gmra.mxu0 %v4496
    %v4498 = vpop.f32.mrf.mxu0
    %v4499 = vadd.f32 %v4474, %v4498
    %4500 = vdwg.mxu0
    %4501 = vmatpush.msra.mxu0 0.0
    %4502 = vmatpush.msra.mxu0 0.0
    %4503 = vmatpush.msra.mxu0 0.0
    %4504 = vmatpush.msra.mxu0 0.0
    %4505 = vmatpush.msra.mxu0 0.0
    %4506 = vmatpush.msra.mxu0 0.0
    %4507 = vmatpush.msra.mxu0 0.0
    %4508 = vmatpush.msra.mxu0 0.0
    %4509 = vmatpush.msra.mxu0 0.0
    %4510 = vmatpush.msra.mxu0 0.0
    %4511 = vmatpush.msra.mxu0 0.0
    %4512 = vmatpush.msra.mxu0 0.0
    %v4513 = vand.u32 %v133, 4294901760
    %4514 = vmatpush.msra.mxu0 %v4513
    %v4515 = vand.u32 %v132, 4294901760
    %4516 = vmatpush.msra.mxu0 %v4515
    %v4517 = vand.u32 %v131, 4294901760
    %4518 = vmatpush.msra.mxu0 %v4517
    %v4519 = vand.u32 %v130, 4294901760
    %4520 = vmatpush.msra.mxu0 %v4519
    %v4521 = vand.u32 %v381, 4294901760
    %v4522 = vsub.f32 %v381, %v4521
    %v4523 = vand.u32 %v4522, 4294901760
    %v4524 = vsub.f32 %v4522, %v4523
    %v4525 = vand.u32 %v4524, 4294901760
    %4526 = vmatmul.f32.gmra.mxu0 %v4525
    %v4527 = vpop.f32.mrf.mxu0
    %v4528 = vadd.f32 %v3197, %v4527
    %4529 = vdwg.mxu0
    %4530 = vmatpush.msra.mxu0 0.0
    %4531 = vmatpush.msra.mxu0 0.0
    %4532 = vmatpush.msra.mxu0 0.0
    %4533 = vmatpush.msra.mxu0 0.0
    %4534 = vmatpush.msra.mxu0 0.0
    %4535 = vmatpush.msra.mxu0 0.0
    %4536 = vmatpush.msra.mxu0 0.0
    %4537 = vmatpush.msra.mxu0 0.0
    %4538 = vmatpush.msra.mxu0 0.0
    %4539 = vmatpush.msra.mxu0 0.0
    %4540 = vmatpush.msra.mxu0 0.0
    %4541 = vmatpush.msra.mxu0 0.0
    %v4542 = vand.u32 %v133, 4294901760
    %v4543 = vsub.f32 %v133, %v4542
    %v4544 = vand.u32 %v4543, 4294901760
    %v4545 = vsub.f32 %v4543, %v4544
    %v4546 = vand.u32 %v4545, 4294901760
    %4547 = vmatpush.msra.mxu0 %v4546
    %v4548 = vand.u32 %v132, 4294901760
    %v4549 = vsub.f32 %v132, %v4548
    %v4550 = vand.u32 %v4549, 4294901760
    %v4551 = vsub.f32 %v4549, %v4550
    %v4552 = vand.u32 %v4551, 4294901760
    %4553 = vmatpush.msra.mxu0 %v4552
    %v4554 = vand.u32 %v131, 4294901760
    %v4555 = vsub.f32 %v131, %v4554
    %v4556 = vand.u32 %v4555, 4294901760
    %v4557 = vsub.f32 %v4555, %v4556
    %v4558 = vand.u32 %v4557, 4294901760
    %4559 = vmatpush.msra.mxu0 %v4558
    %v4560 = vand.u32 %v130, 4294901760
    %v4561 = vsub.f32 %v130, %v4560
    %v4562 = vand.u32 %v4561, 4294901760
    %v4563 = vsub.f32 %v4561, %v4562
    %v4564 = vand.u32 %v4563, 4294901760
    %4565 = vmatpush.msra.mxu0 %v4564
    %v4566 = vand.u32 %v381, 4294901760
    %4567 = vmatmul.f32.gmra.mxu0 %v4566
    %v4568 = vpop.f32.mrf.mxu0
    %v4569 = vadd.f32 %v4528, %v4568
    %4570 = vdwg.mxu0
    %4571 = vmatpush.msra.mxu0 0.0
    %4572 = vmatpush.msra.mxu0 0.0
    %4573 = vmatpush.msra.mxu0 0.0
    %4574 = vmatpush.msra.mxu0 0.0
    %4575 = vmatpush.msra.mxu0 0.0
    %4576 = vmatpush.msra.mxu0 0.0
    %4577 = vmatpush.msra.mxu0 0.0
    %4578 = vmatpush.msra.mxu0 0.0
    %4579 = vmatpush.msra.mxu0 0.0
    %4580 = vmatpush.msra.mxu0 0.0
    %4581 = vmatpush.msra.mxu0 0.0
    %4582 = vmatpush.msra.mxu0 0.0
    %v4583 = vand.u32 %v133, 4294901760
    %v4584 = vsub.f32 %v133, %v4583
    %4585 = vmatpush.msra.mxu0 %v4584
    %v4586 = vand.u32 %v132, 4294901760
    %v4587 = vsub.f32 %v132, %v4586
    %4588 = vmatpush.msra.mxu0 %v4587
    %v4589 = vand.u32 %v131, 4294901760
    %v4590 = vsub.f32 %v131, %v4589
    %4591 = vmatpush.msra.mxu0 %v4590
    %v4592 = vand.u32 %v130, 4294901760
    %v4593 = vsub.f32 %v130, %v4592
    %4594 = vmatpush.msra.mxu0 %v4593
    %v4595 = vand.u32 %v381, 4294901760
    %v4596 = vsub.f32 %v381, %v4595
    %4597 = vmatmul.f32.gmra.mxu0 %v4596
    %v4598 = vpop.f32.mrf.mxu0
    %v4599 = vadd.f32 %v4569, %v4598
    %4600 = vdwg.mxu0
    %4601 = vmatpush.msra.mxu0 0.0
    %4602 = vmatpush.msra.mxu0 0.0
    %4603 = vmatpush.msra.mxu0 0.0
    %4604 = vmatpush.msra.mxu0 0.0
    %4605 = vmatpush.msra.mxu0 0.0
    %4606 = vmatpush.msra.mxu0 0.0
    %4607 = vmatpush.msra.mxu0 0.0
    %4608 = vmatpush.msra.mxu0 0.0
    %4609 = vmatpush.msra.mxu0 0.0
    %4610 = vmatpush.msra.mxu0 0.0
    %4611 = vmatpush.msra.mxu0 0.0
    %4612 = vmatpush.msra.mxu0 0.0
    %v4613 = vand.u32 %v133, 4294901760
    %4614 = vmatpush.msra.mxu0 %v4613
    %v4615 = vand.u32 %v132, 4294901760
    %4616 = vmatpush.msra.mxu0 %v4615
    %v4617 = vand.u32 %v131, 4294901760
    %4618 = vmatpush.msra.mxu0 %v4617
    %v4619 = vand.u32 %v130, 4294901760
    %4620 = vmatpush.msra.mxu0 %v4619
    %v4621 = vand.u32 %v381, 4294901760
    %v4622 = vsub.f32 %v381, %v4621
    %v4623 = vand.u32 %v4622, 4294901760
    %4624 = vmatmul.f32.gmra.mxu0 %v4623
    %v4625 = vpop.f32.mrf.mxu0
    %v4626 = vadd.f32 %v4599, %v4625
    %4627 = vdwg.mxu0
    %4628 = vmatpush.msra.mxu0 0.0
    %4629 = vmatpush.msra.mxu0 0.0
    %4630 = vmatpush.msra.mxu0 0.0
    %4631 = vmatpush.msra.mxu0 0.0
    %4632 = vmatpush.msra.mxu0 0.0
    %4633 = vmatpush.msra.mxu0 0.0
    %4634 = vmatpush.msra.mxu0 0.0
    %4635 = vmatpush.msra.mxu0 0.0
    %4636 = vmatpush.msra.mxu0 0.0
    %4637 = vmatpush.msra.mxu0 0.0
    %4638 = vmatpush.msra.mxu0 0.0
    %4639 = vmatpush.msra.mxu0 0.0
    %v4640 = vand.u32 %v133, 4294901760
    %v4641 = vsub.f32 %v133, %v4640
    %v4642 = vand.u32 %v4641, 4294901760
    %4643 = vmatpush.msra.mxu0 %v4642
    %v4644 = vand.u32 %v132, 4294901760
    %v4645 = vsub.f32 %v132, %v4644
    %v4646 = vand.u32 %v4645, 4294901760
    %4647 = vmatpush.msra.mxu0 %v4646
    %v4648 = vand.u32 %v131, 4294901760
    %v4649 = vsub.f32 %v131, %v4648
    %v4650 = vand.u32 %v4649, 4294901760
    %4651 = vmatpush.msra.mxu0 %v4650
    %v4652 = vand.u32 %v130, 4294901760
    %v4653 = vsub.f32 %v130, %v4652
    %v4654 = vand.u32 %v4653, 4294901760
    %4655 = vmatpush.msra.mxu0 %v4654
    %v4656 = vand.u32 %v381, 4294901760
    %4657 = vmatmul.f32.gmra.mxu0 %v4656
    %v4658 = vpop.f32.mrf.mxu0
    %v4659 = vadd.f32 %v4626, %v4658
    %4660 = vdwg.mxu0
    %4661 = vmatpush.msra.mxu0 0.0
    %4662 = vmatpush.msra.mxu0 0.0
    %4663 = vmatpush.msra.mxu0 0.0
    %4664 = vmatpush.msra.mxu0 0.0
    %4665 = vmatpush.msra.mxu0 0.0
    %4666 = vmatpush.msra.mxu0 0.0
    %4667 = vmatpush.msra.mxu0 0.0
    %4668 = vmatpush.msra.mxu0 0.0
    %4669 = vmatpush.msra.mxu0 0.0
    %4670 = vmatpush.msra.mxu0 0.0
    %4671 = vmatpush.msra.mxu0 0.0
    %4672 = vmatpush.msra.mxu0 0.0
    %v4673 = vand.u32 %v133, 4294901760
    %4674 = vmatpush.msra.mxu0 %v4673
    %v4675 = vand.u32 %v132, 4294901760
    %4676 = vmatpush.msra.mxu0 %v4675
    %v4677 = vand.u32 %v131, 4294901760
    %4678 = vmatpush.msra.mxu0 %v4677
    %v4679 = vand.u32 %v130, 4294901760
    %4680 = vmatpush.msra.mxu0 %v4679
    %v4681 = vand.u32 %v381, 4294901760
    %4682 = vmatmul.f32.gmra.mxu0 %v4681
    %v4683 = vpop.f32.mrf.mxu0
    %v4684 = vadd.f32 %v4659, %v4683
    %4685 = vdwg.mxu0
    %vm4686 = vcmask 64512
    %v4688 = vsel %vm4686, %v378, 0
    %v4691 = vsel %vm4686, %v1885, 0
    %4693 = vmatpush.xpose.msra.mxu0 0.0
    %4694 = vmatpush.xpose.msra.mxu0 0.0
    %4695 = vmatpush.xpose.msra.mxu0 0.0
    %4696 = vmatpush.xpose.msra.mxu0 0.0
    %4697 = vmatpush.xpose.msra.mxu0 0.0
    %4698 = vmatpush.xpose.msra.mxu0 0.0
    %4699 = vmatpush.xpose.msra.mxu0 0.0
    %4700 = vmatpush.xpose.msra.mxu0 0.0
    %4701 = vmatpush.xpose.msra.mxu0 0.0
    %4702 = vmatpush.xpose.msra.mxu0 0.0
    %4703 = vmatpush.xpose.msra.mxu0 0.0
    %4704 = vmatpush.xpose.msra.mxu0 0.0
    %4705 = vmatpush.xpose.msra.mxu0 0.0
    %4706 = vmatpush.xpose.msra.mxu0 0.0
    %4707 = vmatpush.xpose.msra.mxu0 0.0
    %v4708 = vand.u32 %v4691, 4294901760
    %4709 = vmatpush.xpose.msra.mxu0 %v4708
    %v4710 = vand.u32 %v4688, 4294901760
    %v4711 = vsub.f32 %v4688, %v4710
    %v4712 = vand.u32 %v4711, 4294901760
    %v4713 = vsub.f32 %v4711, %v4712
    %v4714 = vand.u32 %v4713, 4294901760
    %4715 = vmatmul.f32.gmra.mxu0 %v4714
    %v4716 = vpop.f32.mrf.mxu0
    %v4717 = vadd.f32 0.0, %v4716
    %4718 = vdwg.mxu0
    %4719 = vmatpush.xpose.msra.mxu0 0.0
    %4720 = vmatpush.xpose.msra.mxu0 0.0
    %4721 = vmatpush.xpose.msra.mxu0 0.0
    %4722 = vmatpush.xpose.msra.mxu0 0.0
    %4723 = vmatpush.xpose.msra.mxu0 0.0
    %4724 = vmatpush.xpose.msra.mxu0 0.0
    %4725 = vmatpush.xpose.msra.mxu0 0.0
    %4726 = vmatpush.xpose.msra.mxu0 0.0
    %4727 = vmatpush.xpose.msra.mxu0 0.0
    %4728 = vmatpush.xpose.msra.mxu0 0.0
    %4729 = vmatpush.xpose.msra.mxu0 0.0
    %4730 = vmatpush.xpose.msra.mxu0 0.0
    %4731 = vmatpush.xpose.msra.mxu0 0.0
    %4732 = vmatpush.xpose.msra.mxu0 0.0
    %4733 = vmatpush.xpose.msra.mxu0 0.0
    %v4734 = vand.u32 %v4691, 4294901760
    %v4735 = vsub.f32 %v4691, %v4734
    %v4736 = vand.u32 %v4735, 4294901760
    %v4737 = vsub.f32 %v4735, %v4736
    %v4738 = vand.u32 %v4737, 4294901760
    %4739 = vmatpush.xpose.msra.mxu0 %v4738
    %v4740 = vand.u32 %v4688, 4294901760
    %4741 = vmatmul.f32.gmra.mxu0 %v4740
    %v4742 = vpop.f32.mrf.mxu0
    %v4743 = vadd.f32 %v4717, %v4742
    %4744 = vdwg.mxu0
    %4745 = vmatpush.xpose.msra.mxu0 0.0
    %4746 = vmatpush.xpose.msra.mxu0 0.0
    %4747 = vmatpush.xpose.msra.mxu0 0.0
    %4748 = vmatpush.xpose.msra.mxu0 0.0
    %4749 = vmatpush.xpose.msra.mxu0 0.0
    %4750 = vmatpush.xpose.msra.mxu0 0.0
    %4751 = vmatpush.xpose.msra.mxu0 0.0
    %4752 = vmatpush.xpose.msra.mxu0 0.0
    %4753 = vmatpush.xpose.msra.mxu0 0.0
    %4754 = vmatpush.xpose.msra.mxu0 0.0
    %4755 = vmatpush.xpose.msra.mxu0 0.0
    %4756 = vmatpush.xpose.msra.mxu0 0.0
    %4757 = vmatpush.xpose.msra.mxu0 0.0
    %4758 = vmatpush.xpose.msra.mxu0 0.0
    %4759 = vmatpush.xpose.msra.mxu0 0.0
    %v4760 = vand.u32 %v4691, 4294901760
    %v4761 = vsub.f32 %v4691, %v4760
    %4762 = vmatpush.xpose.msra.mxu0 %v4761
    %v4763 = vand.u32 %v4688, 4294901760
    %v4764 = vsub.f32 %v4688, %v4763
    %4765 = vmatmul.f32.gmra.mxu0 %v4764
    %v4766 = vpop.f32.mrf.mxu0
    %v4767 = vadd.f32 %v4743, %v4766
    %4768 = vdwg.mxu0
    %4769 = vmatpush.xpose.msra.mxu0 0.0
    %4770 = vmatpush.xpose.msra.mxu0 0.0
    %4771 = vmatpush.xpose.msra.mxu0 0.0
    %4772 = vmatpush.xpose.msra.mxu0 0.0
    %4773 = vmatpush.xpose.msra.mxu0 0.0
    %4774 = vmatpush.xpose.msra.mxu0 0.0
    %4775 = vmatpush.xpose.msra.mxu0 0.0
    %4776 = vmatpush.xpose.msra.mxu0 0.0
    %4777 = vmatpush.xpose.msra.mxu0 0.0
    %4778 = vmatpush.xpose.msra.mxu0 0.0
    %4779 = vmatpush.xpose.msra.mxu0 0.0
    %4780 = vmatpush.xpose.msra.mxu0 0.0
    %4781 = vmatpush.xpose.msra.mxu0 0.0
    %4782 = vmatpush.xpose.msra.mxu0 0.0
    %4783 = vmatpush.xpose.msra.mxu0 0.0
    %v4784 = vand.u32 %v4691, 4294901760
    %4785 = vmatpush.xpose.msra.mxu0 %v4784
    %v4786 = vand.u32 %v4688, 4294901760
    %v4787 = vsub.f32 %v4688, %v4786
    %v4788 = vand.u32 %v4787, 4294901760
    %4789 = vmatmul.f32.gmra.mxu0 %v4788
    %v4790 = vpop.f32.mrf.mxu0
    %v4791 = vadd.f32 %v4767, %v4790
    %4792 = vdwg.mxu0
    %4793 = vmatpush.xpose.msra.mxu0 0.0
    %4794 = vmatpush.xpose.msra.mxu0 0.0
    %4795 = vmatpush.xpose.msra.mxu0 0.0
    %4796 = vmatpush.xpose.msra.mxu0 0.0
    %4797 = vmatpush.xpose.msra.mxu0 0.0
    %4798 = vmatpush.xpose.msra.mxu0 0.0
    %4799 = vmatpush.xpose.msra.mxu0 0.0
    %4800 = vmatpush.xpose.msra.mxu0 0.0
    %4801 = vmatpush.xpose.msra.mxu0 0.0
    %4802 = vmatpush.xpose.msra.mxu0 0.0
    %4803 = vmatpush.xpose.msra.mxu0 0.0
    %4804 = vmatpush.xpose.msra.mxu0 0.0
    %4805 = vmatpush.xpose.msra.mxu0 0.0
    %4806 = vmatpush.xpose.msra.mxu0 0.0
    %4807 = vmatpush.xpose.msra.mxu0 0.0
    %v4808 = vand.u32 %v4691, 4294901760
    %v4809 = vsub.f32 %v4691, %v4808
    %v4810 = vand.u32 %v4809, 4294901760
    %4811 = vmatpush.xpose.msra.mxu0 %v4810
    %v4812 = vand.u32 %v4688, 4294901760
    %4813 = vmatmul.f32.gmra.mxu0 %v4812
    %v4814 = vpop.f32.mrf.mxu0
    %v4815 = vadd.f32 %v4791, %v4814
    %4816 = vdwg.mxu0
    %4817 = vmatpush.xpose.msra.mxu0 0.0
    %4818 = vmatpush.xpose.msra.mxu0 0.0
    %4819 = vmatpush.xpose.msra.mxu0 0.0
    %4820 = vmatpush.xpose.msra.mxu0 0.0
    %4821 = vmatpush.xpose.msra.mxu0 0.0
    %4822 = vmatpush.xpose.msra.mxu0 0.0
    %4823 = vmatpush.xpose.msra.mxu0 0.0
    %4824 = vmatpush.xpose.msra.mxu0 0.0
    %4825 = vmatpush.xpose.msra.mxu0 0.0
    %4826 = vmatpush.xpose.msra.mxu0 0.0
    %4827 = vmatpush.xpose.msra.mxu0 0.0
    %4828 = vmatpush.xpose.msra.mxu0 0.0
    %4829 = vmatpush.xpose.msra.mxu0 0.0
    %4830 = vmatpush.xpose.msra.mxu0 0.0
    %4831 = vmatpush.xpose.msra.mxu0 0.0
    %v4832 = vand.u32 %v4691, 4294901760
    %4833 = vmatpush.xpose.msra.mxu0 %v4832
    %v4834 = vand.u32 %v4688, 4294901760
    %4835 = vmatmul.f32.gmra.mxu0 %v4834
    %v4836 = vpop.f32.mrf.mxu0
    %v4837 = vadd.f32 %v4815, %v4836
    %4838 = vdwg.mxu0
    %v4840 = vsel %vm4686, %v566, 0
    %v4843 = vsel %vm4686, %v2070, 0
    %4845 = vmatpush.xpose.msra.mxu0 0.0
    %4846 = vmatpush.xpose.msra.mxu0 0.0
    %4847 = vmatpush.xpose.msra.mxu0 0.0
    %4848 = vmatpush.xpose.msra.mxu0 0.0
    %4849 = vmatpush.xpose.msra.mxu0 0.0
    %4850 = vmatpush.xpose.msra.mxu0 0.0
    %4851 = vmatpush.xpose.msra.mxu0 0.0
    %4852 = vmatpush.xpose.msra.mxu0 0.0
    %4853 = vmatpush.xpose.msra.mxu0 0.0
    %4854 = vmatpush.xpose.msra.mxu0 0.0
    %4855 = vmatpush.xpose.msra.mxu0 0.0
    %4856 = vmatpush.xpose.msra.mxu0 0.0
    %4857 = vmatpush.xpose.msra.mxu0 0.0
    %4858 = vmatpush.xpose.msra.mxu0 0.0
    %4859 = vmatpush.xpose.msra.mxu0 0.0
    %v4860 = vand.u32 %v4843, 4294901760
    %4861 = vmatpush.xpose.msra.mxu0 %v4860
    %v4862 = vand.u32 %v4840, 4294901760
    %v4863 = vsub.f32 %v4840, %v4862
    %v4864 = vand.u32 %v4863, 4294901760
    %v4865 = vsub.f32 %v4863, %v4864
    %v4866 = vand.u32 %v4865, 4294901760
    %4867 = vmatmul.f32.gmra.mxu0 %v4866
    %v4868 = vpop.f32.mrf.mxu0
    %v4869 = vadd.f32 0.0, %v4868
    %4870 = vdwg.mxu0
    %4871 = vmatpush.xpose.msra.mxu0 0.0
    %4872 = vmatpush.xpose.msra.mxu0 0.0
    %4873 = vmatpush.xpose.msra.mxu0 0.0
    %4874 = vmatpush.xpose.msra.mxu0 0.0
    %4875 = vmatpush.xpose.msra.mxu0 0.0
    %4876 = vmatpush.xpose.msra.mxu0 0.0
    %4877 = vmatpush.xpose.msra.mxu0 0.0
    %4878 = vmatpush.xpose.msra.mxu0 0.0
    %4879 = vmatpush.xpose.msra.mxu0 0.0
    %4880 = vmatpush.xpose.msra.mxu0 0.0
    %4881 = vmatpush.xpose.msra.mxu0 0.0
    %4882 = vmatpush.xpose.msra.mxu0 0.0
    %4883 = vmatpush.xpose.msra.mxu0 0.0
    %4884 = vmatpush.xpose.msra.mxu0 0.0
    %4885 = vmatpush.xpose.msra.mxu0 0.0
    %v4886 = vand.u32 %v4843, 4294901760
    %v4887 = vsub.f32 %v4843, %v4886
    %v4888 = vand.u32 %v4887, 4294901760
    %v4889 = vsub.f32 %v4887, %v4888
    %v4890 = vand.u32 %v4889, 4294901760
    %4891 = vmatpush.xpose.msra.mxu0 %v4890
    %v4892 = vand.u32 %v4840, 4294901760
    %4893 = vmatmul.f32.gmra.mxu0 %v4892
    %v4894 = vpop.f32.mrf.mxu0
    %v4895 = vadd.f32 %v4869, %v4894
    %4896 = vdwg.mxu0
    %4897 = vmatpush.xpose.msra.mxu0 0.0
    %4898 = vmatpush.xpose.msra.mxu0 0.0
    %4899 = vmatpush.xpose.msra.mxu0 0.0
    %4900 = vmatpush.xpose.msra.mxu0 0.0
    %4901 = vmatpush.xpose.msra.mxu0 0.0
    %4902 = vmatpush.xpose.msra.mxu0 0.0
    %4903 = vmatpush.xpose.msra.mxu0 0.0
    %4904 = vmatpush.xpose.msra.mxu0 0.0
    %4905 = vmatpush.xpose.msra.mxu0 0.0
    %4906 = vmatpush.xpose.msra.mxu0 0.0
    %4907 = vmatpush.xpose.msra.mxu0 0.0
    %4908 = vmatpush.xpose.msra.mxu0 0.0
    %4909 = vmatpush.xpose.msra.mxu0 0.0
    %4910 = vmatpush.xpose.msra.mxu0 0.0
    %4911 = vmatpush.xpose.msra.mxu0 0.0
    %v4912 = vand.u32 %v4843, 4294901760
    %v4913 = vsub.f32 %v4843, %v4912
    %4914 = vmatpush.xpose.msra.mxu0 %v4913
    %v4915 = vand.u32 %v4840, 4294901760
    %v4916 = vsub.f32 %v4840, %v4915
    %4917 = vmatmul.f32.gmra.mxu0 %v4916
    %v4918 = vpop.f32.mrf.mxu0
    %v4919 = vadd.f32 %v4895, %v4918
    %4920 = vdwg.mxu0
    %4921 = vmatpush.xpose.msra.mxu0 0.0
    %4922 = vmatpush.xpose.msra.mxu0 0.0
    %4923 = vmatpush.xpose.msra.mxu0 0.0
    %4924 = vmatpush.xpose.msra.mxu0 0.0
    %4925 = vmatpush.xpose.msra.mxu0 0.0
    %4926 = vmatpush.xpose.msra.mxu0 0.0
    %4927 = vmatpush.xpose.msra.mxu0 0.0
    %4928 = vmatpush.xpose.msra.mxu0 0.0
    %4929 = vmatpush.xpose.msra.mxu0 0.0
    %4930 = vmatpush.xpose.msra.mxu0 0.0
    %4931 = vmatpush.xpose.msra.mxu0 0.0
    %4932 = vmatpush.xpose.msra.mxu0 0.0
    %4933 = vmatpush.xpose.msra.mxu0 0.0
    %4934 = vmatpush.xpose.msra.mxu0 0.0
    %4935 = vmatpush.xpose.msra.mxu0 0.0
    %v4936 = vand.u32 %v4843, 4294901760
    %4937 = vmatpush.xpose.msra.mxu0 %v4936
    %v4938 = vand.u32 %v4840, 4294901760
    %v4939 = vsub.f32 %v4840, %v4938
    %v4940 = vand.u32 %v4939, 4294901760
    %4941 = vmatmul.f32.gmra.mxu0 %v4940
    %v4942 = vpop.f32.mrf.mxu0
    %v4943 = vadd.f32 %v4919, %v4942
    %4944 = vdwg.mxu0
    %4945 = vmatpush.xpose.msra.mxu0 0.0
    %4946 = vmatpush.xpose.msra.mxu0 0.0
    %4947 = vmatpush.xpose.msra.mxu0 0.0
    %4948 = vmatpush.xpose.msra.mxu0 0.0
    %4949 = vmatpush.xpose.msra.mxu0 0.0
    %4950 = vmatpush.xpose.msra.mxu0 0.0
    %4951 = vmatpush.xpose.msra.mxu0 0.0
    %4952 = vmatpush.xpose.msra.mxu0 0.0
    %4953 = vmatpush.xpose.msra.mxu0 0.0
    %4954 = vmatpush.xpose.msra.mxu0 0.0
    %4955 = vmatpush.xpose.msra.mxu0 0.0
    %4956 = vmatpush.xpose.msra.mxu0 0.0
    %4957 = vmatpush.xpose.msra.mxu0 0.0
    %4958 = vmatpush.xpose.msra.mxu0 0.0
    %4959 = vmatpush.xpose.msra.mxu0 0.0
    %v4960 = vand.u32 %v4843, 4294901760
    %v4961 = vsub.f32 %v4843, %v4960
    %v4962 = vand.u32 %v4961, 4294901760
    %4963 = vmatpush.xpose.msra.mxu0 %v4962
    %v4964 = vand.u32 %v4840, 4294901760
    %4965 = vmatmul.f32.gmra.mxu0 %v4964
    %v4966 = vpop.f32.mrf.mxu0
    %v4967 = vadd.f32 %v4943, %v4966
    %4968 = vdwg.mxu0
    %4969 = vmatpush.xpose.msra.mxu0 0.0
    %4970 = vmatpush.xpose.msra.mxu0 0.0
    %4971 = vmatpush.xpose.msra.mxu0 0.0
    %4972 = vmatpush.xpose.msra.mxu0 0.0
    %4973 = vmatpush.xpose.msra.mxu0 0.0
    %4974 = vmatpush.xpose.msra.mxu0 0.0
    %4975 = vmatpush.xpose.msra.mxu0 0.0
    %4976 = vmatpush.xpose.msra.mxu0 0.0
    %4977 = vmatpush.xpose.msra.mxu0 0.0
    %4978 = vmatpush.xpose.msra.mxu0 0.0
    %4979 = vmatpush.xpose.msra.mxu0 0.0
    %4980 = vmatpush.xpose.msra.mxu0 0.0
    %4981 = vmatpush.xpose.msra.mxu0 0.0
    %4982 = vmatpush.xpose.msra.mxu0 0.0
    %4983 = vmatpush.xpose.msra.mxu0 0.0
    %v4984 = vand.u32 %v4843, 4294901760
    %4985 = vmatpush.xpose.msra.mxu0 %v4984
    %v4986 = vand.u32 %v4840, 4294901760
    %4987 = vmatmul.f32.gmra.mxu0 %v4986
    %v4988 = vpop.f32.mrf.mxu0
    %v4989 = vadd.f32 %v4967, %v4988
    %4990 = vdwg.mxu0
    %v4992 = vsel %vm4686, %v751, 0
    %v4995 = vsel %vm4686, %v2255, 0
    %4997 = vmatpush.xpose.msra.mxu0 0.0
    %4998 = vmatpush.xpose.msra.mxu0 0.0
    %4999 = vmatpush.xpose.msra.mxu0 0.0
    %5000 = vmatpush.xpose.msra.mxu0 0.0
    %5001 = vmatpush.xpose.msra.mxu0 0.0
    %5002 = vmatpush.xpose.msra.mxu0 0.0
    %5003 = vmatpush.xpose.msra.mxu0 0.0
    %5004 = vmatpush.xpose.msra.mxu0 0.0
    %5005 = vmatpush.xpose.msra.mxu0 0.0
    %5006 = vmatpush.xpose.msra.mxu0 0.0
    %5007 = vmatpush.xpose.msra.mxu0 0.0
    %5008 = vmatpush.xpose.msra.mxu0 0.0
    %5009 = vmatpush.xpose.msra.mxu0 0.0
    %5010 = vmatpush.xpose.msra.mxu0 0.0
    %5011 = vmatpush.xpose.msra.mxu0 0.0
    %v5012 = vand.u32 %v4995, 4294901760
    %5013 = vmatpush.xpose.msra.mxu0 %v5012
    %v5014 = vand.u32 %v4992, 4294901760
    %v5015 = vsub.f32 %v4992, %v5014
    %v5016 = vand.u32 %v5015, 4294901760
    %v5017 = vsub.f32 %v5015, %v5016
    %v5018 = vand.u32 %v5017, 4294901760
    %5019 = vmatmul.f32.gmra.mxu0 %v5018
    %v5020 = vpop.f32.mrf.mxu0
    %v5021 = vadd.f32 0.0, %v5020
    %5022 = vdwg.mxu0
    %5023 = vmatpush.xpose.msra.mxu0 0.0
    %5024 = vmatpush.xpose.msra.mxu0 0.0
    %5025 = vmatpush.xpose.msra.mxu0 0.0
    %5026 = vmatpush.xpose.msra.mxu0 0.0
    %5027 = vmatpush.xpose.msra.mxu0 0.0
    %5028 = vmatpush.xpose.msra.mxu0 0.0
    %5029 = vmatpush.xpose.msra.mxu0 0.0
    %5030 = vmatpush.xpose.msra.mxu0 0.0
    %5031 = vmatpush.xpose.msra.mxu0 0.0
    %5032 = vmatpush.xpose.msra.mxu0 0.0
    %5033 = vmatpush.xpose.msra.mxu0 0.0
    %5034 = vmatpush.xpose.msra.mxu0 0.0
    %5035 = vmatpush.xpose.msra.mxu0 0.0
    %5036 = vmatpush.xpose.msra.mxu0 0.0
    %5037 = vmatpush.xpose.msra.mxu0 0.0
    %v5038 = vand.u32 %v4995, 4294901760
    %v5039 = vsub.f32 %v4995, %v5038
    %v5040 = vand.u32 %v5039, 4294901760
    %v5041 = vsub.f32 %v5039, %v5040
    %v5042 = vand.u32 %v5041, 4294901760
    %5043 = vmatpush.xpose.msra.mxu0 %v5042
    %v5044 = vand.u32 %v4992, 4294901760
    %5045 = vmatmul.f32.gmra.mxu0 %v5044
    %v5046 = vpop.f32.mrf.mxu0
    %v5047 = vadd.f32 %v5021, %v5046
    %5048 = vdwg.mxu0
    %5049 = vmatpush.xpose.msra.mxu0 0.0
    %5050 = vmatpush.xpose.msra.mxu0 0.0
    %5051 = vmatpush.xpose.msra.mxu0 0.0
    %5052 = vmatpush.xpose.msra.mxu0 0.0
    %5053 = vmatpush.xpose.msra.mxu0 0.0
    %5054 = vmatpush.xpose.msra.mxu0 0.0
    %5055 = vmatpush.xpose.msra.mxu0 0.0
    %5056 = vmatpush.xpose.msra.mxu0 0.0
    %5057 = vmatpush.xpose.msra.mxu0 0.0
    %5058 = vmatpush.xpose.msra.mxu0 0.0
    %5059 = vmatpush.xpose.msra.mxu0 0.0
    %5060 = vmatpush.xpose.msra.mxu0 0.0
    %5061 = vmatpush.xpose.msra.mxu0 0.0
    %5062 = vmatpush.xpose.msra.mxu0 0.0
    %5063 = vmatpush.xpose.msra.mxu0 0.0
    %v5064 = vand.u32 %v4995, 4294901760
    %v5065 = vsub.f32 %v4995, %v5064
    %5066 = vmatpush.xpose.msra.mxu0 %v5065
    %v5067 = vand.u32 %v4992, 4294901760
    %v5068 = vsub.f32 %v4992, %v5067
    %5069 = vmatmul.f32.gmra.mxu0 %v5068
    %v5070 = vpop.f32.mrf.mxu0
    %v5071 = vadd.f32 %v5047, %v5070
    %5072 = vdwg.mxu0
    %5073 = vmatpush.xpose.msra.mxu0 0.0
    %5074 = vmatpush.xpose.msra.mxu0 0.0
    %5075 = vmatpush.xpose.msra.mxu0 0.0
    %5076 = vmatpush.xpose.msra.mxu0 0.0
    %5077 = vmatpush.xpose.msra.mxu0 0.0
    %5078 = vmatpush.xpose.msra.mxu0 0.0
    %5079 = vmatpush.xpose.msra.mxu0 0.0
    %5080 = vmatpush.xpose.msra.mxu0 0.0
    %5081 = vmatpush.xpose.msra.mxu0 0.0
    %5082 = vmatpush.xpose.msra.mxu0 0.0
    %5083 = vmatpush.xpose.msra.mxu0 0.0
    %5084 = vmatpush.xpose.msra.mxu0 0.0
    %5085 = vmatpush.xpose.msra.mxu0 0.0
    %5086 = vmatpush.xpose.msra.mxu0 0.0
    %5087 = vmatpush.xpose.msra.mxu0 0.0
    %v5088 = vand.u32 %v4995, 4294901760
    %5089 = vmatpush.xpose.msra.mxu0 %v5088
    %v5090 = vand.u32 %v4992, 4294901760
    %v5091 = vsub.f32 %v4992, %v5090
    %v5092 = vand.u32 %v5091, 4294901760
    %5093 = vmatmul.f32.gmra.mxu0 %v5092
    %v5094 = vpop.f32.mrf.mxu0
    %v5095 = vadd.f32 %v5071, %v5094
    %5096 = vdwg.mxu0
    %5097 = vmatpush.xpose.msra.mxu0 0.0
    %5098 = vmatpush.xpose.msra.mxu0 0.0
    %5099 = vmatpush.xpose.msra.mxu0 0.0
    %5100 = vmatpush.xpose.msra.mxu0 0.0
    %5101 = vmatpush.xpose.msra.mxu0 0.0
    %5102 = vmatpush.xpose.msra.mxu0 0.0
    %5103 = vmatpush.xpose.msra.mxu0 0.0
    %5104 = vmatpush.xpose.msra.mxu0 0.0
    %5105 = vmatpush.xpose.msra.mxu0 0.0
    %5106 = vmatpush.xpose.msra.mxu0 0.0
    %5107 = vmatpush.xpose.msra.mxu0 0.0
    %5108 = vmatpush.xpose.msra.mxu0 0.0
    %5109 = vmatpush.xpose.msra.mxu0 0.0
    %5110 = vmatpush.xpose.msra.mxu0 0.0
    %5111 = vmatpush.xpose.msra.mxu0 0.0
    %v5112 = vand.u32 %v4995, 4294901760
    %v5113 = vsub.f32 %v4995, %v5112
    %v5114 = vand.u32 %v5113, 4294901760
    %5115 = vmatpush.xpose.msra.mxu0 %v5114
    %v5116 = vand.u32 %v4992, 4294901760
    %5117 = vmatmul.f32.gmra.mxu0 %v5116
    %v5118 = vpop.f32.mrf.mxu0
    %v5119 = vadd.f32 %v5095, %v5118
    %5120 = vdwg.mxu0
    %5121 = vmatpush.xpose.msra.mxu0 0.0
    %5122 = vmatpush.xpose.msra.mxu0 0.0
    %5123 = vmatpush.xpose.msra.mxu0 0.0
    %5124 = vmatpush.xpose.msra.mxu0 0.0
    %5125 = vmatpush.xpose.msra.mxu0 0.0
    %5126 = vmatpush.xpose.msra.mxu0 0.0
    %5127 = vmatpush.xpose.msra.mxu0 0.0
    %5128 = vmatpush.xpose.msra.mxu0 0.0
    %5129 = vmatpush.xpose.msra.mxu0 0.0
    %5130 = vmatpush.xpose.msra.mxu0 0.0
    %5131 = vmatpush.xpose.msra.mxu0 0.0
    %5132 = vmatpush.xpose.msra.mxu0 0.0
    %5133 = vmatpush.xpose.msra.mxu0 0.0
    %5134 = vmatpush.xpose.msra.mxu0 0.0
    %5135 = vmatpush.xpose.msra.mxu0 0.0
    %v5136 = vand.u32 %v4995, 4294901760
    %5137 = vmatpush.xpose.msra.mxu0 %v5136
    %v5138 = vand.u32 %v4992, 4294901760
    %5139 = vmatmul.f32.gmra.mxu0 %v5138
    %v5140 = vpop.f32.mrf.mxu0
    %v5141 = vadd.f32 %v5119, %v5140
    %5142 = vdwg.mxu0
    %v5144 = vsel %vm4686, %v936, 0
    %v5147 = vsel %vm4686, %v2440, 0
    %5149 = vmatpush.xpose.msra.mxu0 0.0
    %5150 = vmatpush.xpose.msra.mxu0 0.0
    %5151 = vmatpush.xpose.msra.mxu0 0.0
    %5152 = vmatpush.xpose.msra.mxu0 0.0
    %5153 = vmatpush.xpose.msra.mxu0 0.0
    %5154 = vmatpush.xpose.msra.mxu0 0.0
    %5155 = vmatpush.xpose.msra.mxu0 0.0
    %5156 = vmatpush.xpose.msra.mxu0 0.0
    %5157 = vmatpush.xpose.msra.mxu0 0.0
    %5158 = vmatpush.xpose.msra.mxu0 0.0
    %5159 = vmatpush.xpose.msra.mxu0 0.0
    %5160 = vmatpush.xpose.msra.mxu0 0.0
    %5161 = vmatpush.xpose.msra.mxu0 0.0
    %5162 = vmatpush.xpose.msra.mxu0 0.0
    %5163 = vmatpush.xpose.msra.mxu0 0.0
    %v5164 = vand.u32 %v5147, 4294901760
    %5165 = vmatpush.xpose.msra.mxu0 %v5164
    %v5166 = vand.u32 %v5144, 4294901760
    %v5167 = vsub.f32 %v5144, %v5166
    %v5168 = vand.u32 %v5167, 4294901760
    %v5169 = vsub.f32 %v5167, %v5168
    %v5170 = vand.u32 %v5169, 4294901760
    %5171 = vmatmul.f32.gmra.mxu0 %v5170
    %v5172 = vpop.f32.mrf.mxu0
    %v5173 = vadd.f32 0.0, %v5172
    %5174 = vdwg.mxu0
    %5175 = vmatpush.xpose.msra.mxu0 0.0
    %5176 = vmatpush.xpose.msra.mxu0 0.0
    %5177 = vmatpush.xpose.msra.mxu0 0.0
    %5178 = vmatpush.xpose.msra.mxu0 0.0
    %5179 = vmatpush.xpose.msra.mxu0 0.0
    %5180 = vmatpush.xpose.msra.mxu0 0.0
    %5181 = vmatpush.xpose.msra.mxu0 0.0
    %5182 = vmatpush.xpose.msra.mxu0 0.0
    %5183 = vmatpush.xpose.msra.mxu0 0.0
    %5184 = vmatpush.xpose.msra.mxu0 0.0
    %5185 = vmatpush.xpose.msra.mxu0 0.0
    %5186 = vmatpush.xpose.msra.mxu0 0.0
    %5187 = vmatpush.xpose.msra.mxu0 0.0
    %5188 = vmatpush.xpose.msra.mxu0 0.0
    %5189 = vmatpush.xpose.msra.mxu0 0.0
    %v5190 = vand.u32 %v5147, 4294901760
    %v5191 = vsub.f32 %v5147, %v5190
    %v5192 = vand.u32 %v5191, 4294901760
    %v5193 = vsub.f32 %v5191, %v5192
    %v5194 = vand.u32 %v5193, 4294901760
    %5195 = vmatpush.xpose.msra.mxu0 %v5194
    %v5196 = vand.u32 %v5144, 4294901760
    %5197 = vmatmul.f32.gmra.mxu0 %v5196
    %v5198 = vpop.f32.mrf.mxu0
    %v5199 = vadd.f32 %v5173, %v5198
    %5200 = vdwg.mxu0
    %5201 = vmatpush.xpose.msra.mxu0 0.0
    %5202 = vmatpush.xpose.msra.mxu0 0.0
    %5203 = vmatpush.xpose.msra.mxu0 0.0
    %5204 = vmatpush.xpose.msra.mxu0 0.0
    %5205 = vmatpush.xpose.msra.mxu0 0.0
    %5206 = vmatpush.xpose.msra.mxu0 0.0
    %5207 = vmatpush.xpose.msra.mxu0 0.0
    %5208 = vmatpush.xpose.msra.mxu0 0.0
    %5209 = vmatpush.xpose.msra.mxu0 0.0
    %5210 = vmatpush.xpose.msra.mxu0 0.0
    %5211 = vmatpush.xpose.msra.mxu0 0.0
    %5212 = vmatpush.xpose.msra.mxu0 0.0
    %5213 = vmatpush.xpose.msra.mxu0 0.0
    %5214 = vmatpush.xpose.msra.mxu0 0.0
    %5215 = vmatpush.xpose.msra.mxu0 0.0
    %v5216 = vand.u32 %v5147, 4294901760
    %v5217 = vsub.f32 %v5147, %v5216
    %5218 = vmatpush.xpose.msra.mxu0 %v5217
    %v5219 = vand.u32 %v5144, 4294901760
    %v5220 = vsub.f32 %v5144, %v5219
    %5221 = vmatmul.f32.gmra.mxu0 %v5220
    %v5222 = vpop.f32.mrf.mxu0
    %v5223 = vadd.f32 %v5199, %v5222
    %5224 = vdwg.mxu0
    %5225 = vmatpush.xpose.msra.mxu0 0.0
    %5226 = vmatpush.xpose.msra.mxu0 0.0
    %5227 = vmatpush.xpose.msra.mxu0 0.0
    %5228 = vmatpush.xpose.msra.mxu0 0.0
    %5229 = vmatpush.xpose.msra.mxu0 0.0
    %5230 = vmatpush.xpose.msra.mxu0 0.0
    %5231 = vmatpush.xpose.msra.mxu0 0.0
    %5232 = vmatpush.xpose.msra.mxu0 0.0
    %5233 = vmatpush.xpose.msra.mxu0 0.0
    %5234 = vmatpush.xpose.msra.mxu0 0.0
    %5235 = vmatpush.xpose.msra.mxu0 0.0
    %5236 = vmatpush.xpose.msra.mxu0 0.0
    %5237 = vmatpush.xpose.msra.mxu0 0.0
    %5238 = vmatpush.xpose.msra.mxu0 0.0
    %5239 = vmatpush.xpose.msra.mxu0 0.0
    %v5240 = vand.u32 %v5147, 4294901760
    %5241 = vmatpush.xpose.msra.mxu0 %v5240
    %v5242 = vand.u32 %v5144, 4294901760
    %v5243 = vsub.f32 %v5144, %v5242
    %v5244 = vand.u32 %v5243, 4294901760
    %5245 = vmatmul.f32.gmra.mxu0 %v5244
    %v5246 = vpop.f32.mrf.mxu0
    %v5247 = vadd.f32 %v5223, %v5246
    %5248 = vdwg.mxu0
    %5249 = vmatpush.xpose.msra.mxu0 0.0
    %5250 = vmatpush.xpose.msra.mxu0 0.0
    %5251 = vmatpush.xpose.msra.mxu0 0.0
    %5252 = vmatpush.xpose.msra.mxu0 0.0
    %5253 = vmatpush.xpose.msra.mxu0 0.0
    %5254 = vmatpush.xpose.msra.mxu0 0.0
    %5255 = vmatpush.xpose.msra.mxu0 0.0
    %5256 = vmatpush.xpose.msra.mxu0 0.0
    %5257 = vmatpush.xpose.msra.mxu0 0.0
    %5258 = vmatpush.xpose.msra.mxu0 0.0
    %5259 = vmatpush.xpose.msra.mxu0 0.0
    %5260 = vmatpush.xpose.msra.mxu0 0.0
    %5261 = vmatpush.xpose.msra.mxu0 0.0
    %5262 = vmatpush.xpose.msra.mxu0 0.0
    %5263 = vmatpush.xpose.msra.mxu0 0.0
    %v5264 = vand.u32 %v5147, 4294901760
    %v5265 = vsub.f32 %v5147, %v5264
    %v5266 = vand.u32 %v5265, 4294901760
    %5267 = vmatpush.xpose.msra.mxu0 %v5266
    %v5268 = vand.u32 %v5144, 4294901760
    %5269 = vmatmul.f32.gmra.mxu0 %v5268
    %v5270 = vpop.f32.mrf.mxu0
    %v5271 = vadd.f32 %v5247, %v5270
    %5272 = vdwg.mxu0
    %5273 = vmatpush.xpose.msra.mxu0 0.0
    %5274 = vmatpush.xpose.msra.mxu0 0.0
    %5275 = vmatpush.xpose.msra.mxu0 0.0
    %5276 = vmatpush.xpose.msra.mxu0 0.0
    %5277 = vmatpush.xpose.msra.mxu0 0.0
    %5278 = vmatpush.xpose.msra.mxu0 0.0
    %5279 = vmatpush.xpose.msra.mxu0 0.0
    %5280 = vmatpush.xpose.msra.mxu0 0.0
    %5281 = vmatpush.xpose.msra.mxu0 0.0
    %5282 = vmatpush.xpose.msra.mxu0 0.0
    %5283 = vmatpush.xpose.msra.mxu0 0.0
    %5284 = vmatpush.xpose.msra.mxu0 0.0
    %5285 = vmatpush.xpose.msra.mxu0 0.0
    %5286 = vmatpush.xpose.msra.mxu0 0.0
    %5287 = vmatpush.xpose.msra.mxu0 0.0
    %v5288 = vand.u32 %v5147, 4294901760
    %5289 = vmatpush.xpose.msra.mxu0 %v5288
    %v5290 = vand.u32 %v5144, 4294901760
    %5291 = vmatmul.f32.gmra.mxu0 %v5290
    %v5292 = vpop.f32.mrf.mxu0
    %v5293 = vadd.f32 %v5271, %v5292
    %5294 = vdwg.mxu0
    %v5296 = vsel %vm4686, %v1121, 0
    %v5299 = vsel %vm4686, %v2625, 0
    %5301 = vmatpush.xpose.msra.mxu0 0.0
    %5302 = vmatpush.xpose.msra.mxu0 0.0
    %5303 = vmatpush.xpose.msra.mxu0 0.0
    %5304 = vmatpush.xpose.msra.mxu0 0.0
    %5305 = vmatpush.xpose.msra.mxu0 0.0
    %5306 = vmatpush.xpose.msra.mxu0 0.0
    %5307 = vmatpush.xpose.msra.mxu0 0.0
    %5308 = vmatpush.xpose.msra.mxu0 0.0
    %5309 = vmatpush.xpose.msra.mxu0 0.0
    %5310 = vmatpush.xpose.msra.mxu0 0.0
    %5311 = vmatpush.xpose.msra.mxu0 0.0
    %5312 = vmatpush.xpose.msra.mxu0 0.0
    %5313 = vmatpush.xpose.msra.mxu0 0.0
    %5314 = vmatpush.xpose.msra.mxu0 0.0
    %5315 = vmatpush.xpose.msra.mxu0 0.0
    %v5316 = vand.u32 %v5299, 4294901760
    %5317 = vmatpush.xpose.msra.mxu0 %v5316
    %v5318 = vand.u32 %v5296, 4294901760
    %v5319 = vsub.f32 %v5296, %v5318
    %v5320 = vand.u32 %v5319, 4294901760
    %v5321 = vsub.f32 %v5319, %v5320
    %v5322 = vand.u32 %v5321, 4294901760
    %5323 = vmatmul.f32.gmra.mxu0 %v5322
    %v5324 = vpop.f32.mrf.mxu0
    %v5325 = vadd.f32 0.0, %v5324
    %5326 = vdwg.mxu0
    %5327 = vmatpush.xpose.msra.mxu0 0.0
    %5328 = vmatpush.xpose.msra.mxu0 0.0
    %5329 = vmatpush.xpose.msra.mxu0 0.0
    %5330 = vmatpush.xpose.msra.mxu0 0.0
    %5331 = vmatpush.xpose.msra.mxu0 0.0
    %5332 = vmatpush.xpose.msra.mxu0 0.0
    %5333 = vmatpush.xpose.msra.mxu0 0.0
    %5334 = vmatpush.xpose.msra.mxu0 0.0
    %5335 = vmatpush.xpose.msra.mxu0 0.0
    %5336 = vmatpush.xpose.msra.mxu0 0.0
    %5337 = vmatpush.xpose.msra.mxu0 0.0
    %5338 = vmatpush.xpose.msra.mxu0 0.0
    %5339 = vmatpush.xpose.msra.mxu0 0.0
    %5340 = vmatpush.xpose.msra.mxu0 0.0
    %5341 = vmatpush.xpose.msra.mxu0 0.0
    %v5342 = vand.u32 %v5299, 4294901760
    %v5343 = vsub.f32 %v5299, %v5342
    %v5344 = vand.u32 %v5343, 4294901760
    %v5345 = vsub.f32 %v5343, %v5344
    %v5346 = vand.u32 %v5345, 4294901760
    %5347 = vmatpush.xpose.msra.mxu0 %v5346
    %v5348 = vand.u32 %v5296, 4294901760
    %5349 = vmatmul.f32.gmra.mxu0 %v5348
    %v5350 = vpop.f32.mrf.mxu0
    %v5351 = vadd.f32 %v5325, %v5350
    %5352 = vdwg.mxu0
    %5353 = vmatpush.xpose.msra.mxu0 0.0
    %5354 = vmatpush.xpose.msra.mxu0 0.0
    %5355 = vmatpush.xpose.msra.mxu0 0.0
    %5356 = vmatpush.xpose.msra.mxu0 0.0
    %5357 = vmatpush.xpose.msra.mxu0 0.0
    %5358 = vmatpush.xpose.msra.mxu0 0.0
    %5359 = vmatpush.xpose.msra.mxu0 0.0
    %5360 = vmatpush.xpose.msra.mxu0 0.0
    %5361 = vmatpush.xpose.msra.mxu0 0.0
    %5362 = vmatpush.xpose.msra.mxu0 0.0
    %5363 = vmatpush.xpose.msra.mxu0 0.0
    %5364 = vmatpush.xpose.msra.mxu0 0.0
    %5365 = vmatpush.xpose.msra.mxu0 0.0
    %5366 = vmatpush.xpose.msra.mxu0 0.0
    %5367 = vmatpush.xpose.msra.mxu0 0.0
    %v5368 = vand.u32 %v5299, 4294901760
    %v5369 = vsub.f32 %v5299, %v5368
    %5370 = vmatpush.xpose.msra.mxu0 %v5369
    %v5371 = vand.u32 %v5296, 4294901760
    %v5372 = vsub.f32 %v5296, %v5371
    %5373 = vmatmul.f32.gmra.mxu0 %v5372
    %v5374 = vpop.f32.mrf.mxu0
    %v5375 = vadd.f32 %v5351, %v5374
    %5376 = vdwg.mxu0
    %5377 = vmatpush.xpose.msra.mxu0 0.0
    %5378 = vmatpush.xpose.msra.mxu0 0.0
    %5379 = vmatpush.xpose.msra.mxu0 0.0
    %5380 = vmatpush.xpose.msra.mxu0 0.0
    %5381 = vmatpush.xpose.msra.mxu0 0.0
    %5382 = vmatpush.xpose.msra.mxu0 0.0
    %5383 = vmatpush.xpose.msra.mxu0 0.0
    %5384 = vmatpush.xpose.msra.mxu0 0.0
    %5385 = vmatpush.xpose.msra.mxu0 0.0
    %5386 = vmatpush.xpose.msra.mxu0 0.0
    %5387 = vmatpush.xpose.msra.mxu0 0.0
    %5388 = vmatpush.xpose.msra.mxu0 0.0
    %5389 = vmatpush.xpose.msra.mxu0 0.0
    %5390 = vmatpush.xpose.msra.mxu0 0.0
    %5391 = vmatpush.xpose.msra.mxu0 0.0
    %v5392 = vand.u32 %v5299, 4294901760
    %5393 = vmatpush.xpose.msra.mxu0 %v5392
    %v5394 = vand.u32 %v5296, 4294901760
    %v5395 = vsub.f32 %v5296, %v5394
    %v5396 = vand.u32 %v5395, 4294901760
    %5397 = vmatmul.f32.gmra.mxu0 %v5396
    %v5398 = vpop.f32.mrf.mxu0
    %v5399 = vadd.f32 %v5375, %v5398
    %5400 = vdwg.mxu0
    %5401 = vmatpush.xpose.msra.mxu0 0.0
    %5402 = vmatpush.xpose.msra.mxu0 0.0
    %5403 = vmatpush.xpose.msra.mxu0 0.0
    %5404 = vmatpush.xpose.msra.mxu0 0.0
    %5405 = vmatpush.xpose.msra.mxu0 0.0
    %5406 = vmatpush.xpose.msra.mxu0 0.0
    %5407 = vmatpush.xpose.msra.mxu0 0.0
    %5408 = vmatpush.xpose.msra.mxu0 0.0
    %5409 = vmatpush.xpose.msra.mxu0 0.0
    %5410 = vmatpush.xpose.msra.mxu0 0.0
    %5411 = vmatpush.xpose.msra.mxu0 0.0
    %5412 = vmatpush.xpose.msra.mxu0 0.0
    %5413 = vmatpush.xpose.msra.mxu0 0.0
    %5414 = vmatpush.xpose.msra.mxu0 0.0
    %5415 = vmatpush.xpose.msra.mxu0 0.0
    %v5416 = vand.u32 %v5299, 4294901760
    %v5417 = vsub.f32 %v5299, %v5416
    %v5418 = vand.u32 %v5417, 4294901760
    %5419 = vmatpush.xpose.msra.mxu0 %v5418
    %v5420 = vand.u32 %v5296, 4294901760
    %5421 = vmatmul.f32.gmra.mxu0 %v5420
    %v5422 = vpop.f32.mrf.mxu0
    %v5423 = vadd.f32 %v5399, %v5422
    %5424 = vdwg.mxu0
    %5425 = vmatpush.xpose.msra.mxu0 0.0
    %5426 = vmatpush.xpose.msra.mxu0 0.0
    %5427 = vmatpush.xpose.msra.mxu0 0.0
    %5428 = vmatpush.xpose.msra.mxu0 0.0
    %5429 = vmatpush.xpose.msra.mxu0 0.0
    %5430 = vmatpush.xpose.msra.mxu0 0.0
    %5431 = vmatpush.xpose.msra.mxu0 0.0
    %5432 = vmatpush.xpose.msra.mxu0 0.0
    %5433 = vmatpush.xpose.msra.mxu0 0.0
    %5434 = vmatpush.xpose.msra.mxu0 0.0
    %5435 = vmatpush.xpose.msra.mxu0 0.0
    %5436 = vmatpush.xpose.msra.mxu0 0.0
    %5437 = vmatpush.xpose.msra.mxu0 0.0
    %5438 = vmatpush.xpose.msra.mxu0 0.0
    %5439 = vmatpush.xpose.msra.mxu0 0.0
    %v5440 = vand.u32 %v5299, 4294901760
    %5441 = vmatpush.xpose.msra.mxu0 %v5440
    %v5442 = vand.u32 %v5296, 4294901760
    %5443 = vmatmul.f32.gmra.mxu0 %v5442
    %v5444 = vpop.f32.mrf.mxu0
    %v5445 = vadd.f32 %v5423, %v5444
    %5446 = vdwg.mxu0
    %v5448 = vsel %vm4686, %v1306, 0
    %v5451 = vsel %vm4686, %v2810, 0
    %5453 = vmatpush.xpose.msra.mxu0 0.0
    %5454 = vmatpush.xpose.msra.mxu0 0.0
    %5455 = vmatpush.xpose.msra.mxu0 0.0
    %5456 = vmatpush.xpose.msra.mxu0 0.0
    %5457 = vmatpush.xpose.msra.mxu0 0.0
    %5458 = vmatpush.xpose.msra.mxu0 0.0
    %5459 = vmatpush.xpose.msra.mxu0 0.0
    %5460 = vmatpush.xpose.msra.mxu0 0.0
    %5461 = vmatpush.xpose.msra.mxu0 0.0
    %5462 = vmatpush.xpose.msra.mxu0 0.0
    %5463 = vmatpush.xpose.msra.mxu0 0.0
    %5464 = vmatpush.xpose.msra.mxu0 0.0
    %5465 = vmatpush.xpose.msra.mxu0 0.0
    %5466 = vmatpush.xpose.msra.mxu0 0.0
    %5467 = vmatpush.xpose.msra.mxu0 0.0
    %v5468 = vand.u32 %v5451, 4294901760
    %5469 = vmatpush.xpose.msra.mxu0 %v5468
    %v5470 = vand.u32 %v5448, 4294901760
    %v5471 = vsub.f32 %v5448, %v5470
    %v5472 = vand.u32 %v5471, 4294901760
    %v5473 = vsub.f32 %v5471, %v5472
    %v5474 = vand.u32 %v5473, 4294901760
    %5475 = vmatmul.f32.gmra.mxu0 %v5474
    %v5476 = vpop.f32.mrf.mxu0
    %v5477 = vadd.f32 0.0, %v5476
    %5478 = vdwg.mxu0
    %5479 = vmatpush.xpose.msra.mxu0 0.0
    %5480 = vmatpush.xpose.msra.mxu0 0.0
    %5481 = vmatpush.xpose.msra.mxu0 0.0
    %5482 = vmatpush.xpose.msra.mxu0 0.0
    %5483 = vmatpush.xpose.msra.mxu0 0.0
    %5484 = vmatpush.xpose.msra.mxu0 0.0
    %5485 = vmatpush.xpose.msra.mxu0 0.0
    %5486 = vmatpush.xpose.msra.mxu0 0.0
    %5487 = vmatpush.xpose.msra.mxu0 0.0
    %5488 = vmatpush.xpose.msra.mxu0 0.0
    %5489 = vmatpush.xpose.msra.mxu0 0.0
    %5490 = vmatpush.xpose.msra.mxu0 0.0
    %5491 = vmatpush.xpose.msra.mxu0 0.0
    %5492 = vmatpush.xpose.msra.mxu0 0.0
    %5493 = vmatpush.xpose.msra.mxu0 0.0
    %v5494 = vand.u32 %v5451, 4294901760
    %v5495 = vsub.f32 %v5451, %v5494
    %v5496 = vand.u32 %v5495, 4294901760
    %v5497 = vsub.f32 %v5495, %v5496
    %v5498 = vand.u32 %v5497, 4294901760
    %5499 = vmatpush.xpose.msra.mxu0 %v5498
    %v5500 = vand.u32 %v5448, 4294901760
    %5501 = vmatmul.f32.gmra.mxu0 %v5500
    %v5502 = vpop.f32.mrf.mxu0
    %v5503 = vadd.f32 %v5477, %v5502
    %5504 = vdwg.mxu0
    %5505 = vmatpush.xpose.msra.mxu0 0.0
    %5506 = vmatpush.xpose.msra.mxu0 0.0
    %5507 = vmatpush.xpose.msra.mxu0 0.0
    %5508 = vmatpush.xpose.msra.mxu0 0.0
    %5509 = vmatpush.xpose.msra.mxu0 0.0
    %5510 = vmatpush.xpose.msra.mxu0 0.0
    %5511 = vmatpush.xpose.msra.mxu0 0.0
    %5512 = vmatpush.xpose.msra.mxu0 0.0
    %5513 = vmatpush.xpose.msra.mxu0 0.0
    %5514 = vmatpush.xpose.msra.mxu0 0.0
    %5515 = vmatpush.xpose.msra.mxu0 0.0
    %5516 = vmatpush.xpose.msra.mxu0 0.0
    %5517 = vmatpush.xpose.msra.mxu0 0.0
    %5518 = vmatpush.xpose.msra.mxu0 0.0
    %5519 = vmatpush.xpose.msra.mxu0 0.0
    %v5520 = vand.u32 %v5451, 4294901760
    %v5521 = vsub.f32 %v5451, %v5520
    %5522 = vmatpush.xpose.msra.mxu0 %v5521
    %v5523 = vand.u32 %v5448, 4294901760
    %v5524 = vsub.f32 %v5448, %v5523
    %5525 = vmatmul.f32.gmra.mxu0 %v5524
    %v5526 = vpop.f32.mrf.mxu0
    %v5527 = vadd.f32 %v5503, %v5526
    %5528 = vdwg.mxu0
    %5529 = vmatpush.xpose.msra.mxu0 0.0
    %5530 = vmatpush.xpose.msra.mxu0 0.0
    %5531 = vmatpush.xpose.msra.mxu0 0.0
    %5532 = vmatpush.xpose.msra.mxu0 0.0
    %5533 = vmatpush.xpose.msra.mxu0 0.0
    %5534 = vmatpush.xpose.msra.mxu0 0.0
    %5535 = vmatpush.xpose.msra.mxu0 0.0
    %5536 = vmatpush.xpose.msra.mxu0 0.0
    %5537 = vmatpush.xpose.msra.mxu0 0.0
    %5538 = vmatpush.xpose.msra.mxu0 0.0
    %5539 = vmatpush.xpose.msra.mxu0 0.0
    %5540 = vmatpush.xpose.msra.mxu0 0.0
    %5541 = vmatpush.xpose.msra.mxu0 0.0
    %5542 = vmatpush.xpose.msra.mxu0 0.0
    %5543 = vmatpush.xpose.msra.mxu0 0.0
    %v5544 = vand.u32 %v5451, 4294901760
    %5545 = vmatpush.xpose.msra.mxu0 %v5544
    %v5546 = vand.u32 %v5448, 4294901760
    %v5547 = vsub.f32 %v5448, %v5546
    %v5548 = vand.u32 %v5547, 4294901760
    %5549 = vmatmul.f32.gmra.mxu0 %v5548
    %v5550 = vpop.f32.mrf.mxu0
    %v5551 = vadd.f32 %v5527, %v5550
    %5552 = vdwg.mxu0
    %5553 = vmatpush.xpose.msra.mxu0 0.0
    %5554 = vmatpush.xpose.msra.mxu0 0.0
    %5555 = vmatpush.xpose.msra.mxu0 0.0
    %5556 = vmatpush.xpose.msra.mxu0 0.0
    %5557 = vmatpush.xpose.msra.mxu0 0.0
    %5558 = vmatpush.xpose.msra.mxu0 0.0
    %5559 = vmatpush.xpose.msra.mxu0 0.0
    %5560 = vmatpush.xpose.msra.mxu0 0.0
    %5561 = vmatpush.xpose.msra.mxu0 0.0
    %5562 = vmatpush.xpose.msra.mxu0 0.0
    %5563 = vmatpush.xpose.msra.mxu0 0.0
    %5564 = vmatpush.xpose.msra.mxu0 0.0
    %5565 = vmatpush.xpose.msra.mxu0 0.0
    %5566 = vmatpush.xpose.msra.mxu0 0.0
    %5567 = vmatpush.xpose.msra.mxu0 0.0
    %v5568 = vand.u32 %v5451, 4294901760
    %v5569 = vsub.f32 %v5451, %v5568
    %v5570 = vand.u32 %v5569, 4294901760
    %5571 = vmatpush.xpose.msra.mxu0 %v5570
    %v5572 = vand.u32 %v5448, 4294901760
    %5573 = vmatmul.f32.gmra.mxu0 %v5572
    %v5574 = vpop.f32.mrf.mxu0
    %v5575 = vadd.f32 %v5551, %v5574
    %5576 = vdwg.mxu0
    %5577 = vmatpush.xpose.msra.mxu0 0.0
    %5578 = vmatpush.xpose.msra.mxu0 0.0
    %5579 = vmatpush.xpose.msra.mxu0 0.0
    %5580 = vmatpush.xpose.msra.mxu0 0.0
    %5581 = vmatpush.xpose.msra.mxu0 0.0
    %5582 = vmatpush.xpose.msra.mxu0 0.0
    %5583 = vmatpush.xpose.msra.mxu0 0.0
    %5584 = vmatpush.xpose.msra.mxu0 0.0
    %5585 = vmatpush.xpose.msra.mxu0 0.0
    %5586 = vmatpush.xpose.msra.mxu0 0.0
    %5587 = vmatpush.xpose.msra.mxu0 0.0
    %5588 = vmatpush.xpose.msra.mxu0 0.0
    %5589 = vmatpush.xpose.msra.mxu0 0.0
    %5590 = vmatpush.xpose.msra.mxu0 0.0
    %5591 = vmatpush.xpose.msra.mxu0 0.0
    %v5592 = vand.u32 %v5451, 4294901760
    %5593 = vmatpush.xpose.msra.mxu0 %v5592
    %v5594 = vand.u32 %v5448, 4294901760
    %5595 = vmatmul.f32.gmra.mxu0 %v5594
    %v5596 = vpop.f32.mrf.mxu0
    %v5597 = vadd.f32 %v5575, %v5596
    %5598 = vdwg.mxu0
    %v5600 = vsel %vm4686, %v1491, 0
    %v5603 = vsel %vm4686, %v2995, 0
    %5605 = vmatpush.xpose.msra.mxu0 0.0
    %5606 = vmatpush.xpose.msra.mxu0 0.0
    %5607 = vmatpush.xpose.msra.mxu0 0.0
    %5608 = vmatpush.xpose.msra.mxu0 0.0
    %5609 = vmatpush.xpose.msra.mxu0 0.0
    %5610 = vmatpush.xpose.msra.mxu0 0.0
    %5611 = vmatpush.xpose.msra.mxu0 0.0
    %5612 = vmatpush.xpose.msra.mxu0 0.0
    %5613 = vmatpush.xpose.msra.mxu0 0.0
    %5614 = vmatpush.xpose.msra.mxu0 0.0
    %5615 = vmatpush.xpose.msra.mxu0 0.0
    %5616 = vmatpush.xpose.msra.mxu0 0.0
    %5617 = vmatpush.xpose.msra.mxu0 0.0
    %5618 = vmatpush.xpose.msra.mxu0 0.0
    %5619 = vmatpush.xpose.msra.mxu0 0.0
    %v5620 = vand.u32 %v5603, 4294901760
    %5621 = vmatpush.xpose.msra.mxu0 %v5620
    %v5622 = vand.u32 %v5600, 4294901760
    %v5623 = vsub.f32 %v5600, %v5622
    %v5624 = vand.u32 %v5623, 4294901760
    %v5625 = vsub.f32 %v5623, %v5624
    %v5626 = vand.u32 %v5625, 4294901760
    %5627 = vmatmul.f32.gmra.mxu0 %v5626
    %v5628 = vpop.f32.mrf.mxu0
    %v5629 = vadd.f32 0.0, %v5628
    %5630 = vdwg.mxu0
    %5631 = vmatpush.xpose.msra.mxu0 0.0
    %5632 = vmatpush.xpose.msra.mxu0 0.0
    %5633 = vmatpush.xpose.msra.mxu0 0.0
    %5634 = vmatpush.xpose.msra.mxu0 0.0
    %5635 = vmatpush.xpose.msra.mxu0 0.0
    %5636 = vmatpush.xpose.msra.mxu0 0.0
    %5637 = vmatpush.xpose.msra.mxu0 0.0
    %5638 = vmatpush.xpose.msra.mxu0 0.0
    %5639 = vmatpush.xpose.msra.mxu0 0.0
    %5640 = vmatpush.xpose.msra.mxu0 0.0
    %5641 = vmatpush.xpose.msra.mxu0 0.0
    %5642 = vmatpush.xpose.msra.mxu0 0.0
    %5643 = vmatpush.xpose.msra.mxu0 0.0
    %5644 = vmatpush.xpose.msra.mxu0 0.0
    %5645 = vmatpush.xpose.msra.mxu0 0.0
    %v5646 = vand.u32 %v5603, 4294901760
    %v5647 = vsub.f32 %v5603, %v5646
    %v5648 = vand.u32 %v5647, 4294901760
    %v5649 = vsub.f32 %v5647, %v5648
    %v5650 = vand.u32 %v5649, 4294901760
    %5651 = vmatpush.xpose.msra.mxu0 %v5650
    %v5652 = vand.u32 %v5600, 4294901760
    %5653 = vmatmul.f32.gmra.mxu0 %v5652
    %v5654 = vpop.f32.mrf.mxu0
    %v5655 = vadd.f32 %v5629, %v5654
    %5656 = vdwg.mxu0
    %5657 = vmatpush.xpose.msra.mxu0 0.0
    %5658 = vmatpush.xpose.msra.mxu0 0.0
    %5659 = vmatpush.xpose.msra.mxu0 0.0
    %5660 = vmatpush.xpose.msra.mxu0 0.0
    %5661 = vmatpush.xpose.msra.mxu0 0.0
    %5662 = vmatpush.xpose.msra.mxu0 0.0
    %5663 = vmatpush.xpose.msra.mxu0 0.0
    %5664 = vmatpush.xpose.msra.mxu0 0.0
    %5665 = vmatpush.xpose.msra.mxu0 0.0
    %5666 = vmatpush.xpose.msra.mxu0 0.0
    %5667 = vmatpush.xpose.msra.mxu0 0.0
    %5668 = vmatpush.xpose.msra.mxu0 0.0
    %5669 = vmatpush.xpose.msra.mxu0 0.0
    %5670 = vmatpush.xpose.msra.mxu0 0.0
    %5671 = vmatpush.xpose.msra.mxu0 0.0
    %v5672 = vand.u32 %v5603, 4294901760
    %v5673 = vsub.f32 %v5603, %v5672
    %5674 = vmatpush.xpose.msra.mxu0 %v5673
    %v5675 = vand.u32 %v5600, 4294901760
    %v5676 = vsub.f32 %v5600, %v5675
    %5677 = vmatmul.f32.gmra.mxu0 %v5676
    %v5678 = vpop.f32.mrf.mxu0
    %v5679 = vadd.f32 %v5655, %v5678
    %5680 = vdwg.mxu0
    %5681 = vmatpush.xpose.msra.mxu0 0.0
    %5682 = vmatpush.xpose.msra.mxu0 0.0
    %5683 = vmatpush.xpose.msra.mxu0 0.0
    %5684 = vmatpush.xpose.msra.mxu0 0.0
    %5685 = vmatpush.xpose.msra.mxu0 0.0
    %5686 = vmatpush.xpose.msra.mxu0 0.0
    %5687 = vmatpush.xpose.msra.mxu0 0.0
    %5688 = vmatpush.xpose.msra.mxu0 0.0
    %5689 = vmatpush.xpose.msra.mxu0 0.0
    %5690 = vmatpush.xpose.msra.mxu0 0.0
    %5691 = vmatpush.xpose.msra.mxu0 0.0
    %5692 = vmatpush.xpose.msra.mxu0 0.0
    %5693 = vmatpush.xpose.msra.mxu0 0.0
    %5694 = vmatpush.xpose.msra.mxu0 0.0
    %5695 = vmatpush.xpose.msra.mxu0 0.0
    %v5696 = vand.u32 %v5603, 4294901760
    %5697 = vmatpush.xpose.msra.mxu0 %v5696
    %v5698 = vand.u32 %v5600, 4294901760
    %v5699 = vsub.f32 %v5600, %v5698
    %v5700 = vand.u32 %v5699, 4294901760
    %5701 = vmatmul.f32.gmra.mxu0 %v5700
    %v5702 = vpop.f32.mrf.mxu0
    %v5703 = vadd.f32 %v5679, %v5702
    %5704 = vdwg.mxu0
    %5705 = vmatpush.xpose.msra.mxu0 0.0
    %5706 = vmatpush.xpose.msra.mxu0 0.0
    %5707 = vmatpush.xpose.msra.mxu0 0.0
    %5708 = vmatpush.xpose.msra.mxu0 0.0
    %5709 = vmatpush.xpose.msra.mxu0 0.0
    %5710 = vmatpush.xpose.msra.mxu0 0.0
    %5711 = vmatpush.xpose.msra.mxu0 0.0
    %5712 = vmatpush.xpose.msra.mxu0 0.0
    %5713 = vmatpush.xpose.msra.mxu0 0.0
    %5714 = vmatpush.xpose.msra.mxu0 0.0
    %5715 = vmatpush.xpose.msra.mxu0 0.0
    %5716 = vmatpush.xpose.msra.mxu0 0.0
    %5717 = vmatpush.xpose.msra.mxu0 0.0
    %5718 = vmatpush.xpose.msra.mxu0 0.0
    %5719 = vmatpush.xpose.msra.mxu0 0.0
    %v5720 = vand.u32 %v5603, 4294901760
    %v5721 = vsub.f32 %v5603, %v5720
    %v5722 = vand.u32 %v5721, 4294901760
    %5723 = vmatpush.xpose.msra.mxu0 %v5722
    %v5724 = vand.u32 %v5600, 4294901760
    %5725 = vmatmul.f32.gmra.mxu0 %v5724
    %v5726 = vpop.f32.mrf.mxu0
    %v5727 = vadd.f32 %v5703, %v5726
    %5728 = vdwg.mxu0
    %5729 = vmatpush.xpose.msra.mxu0 0.0
    %5730 = vmatpush.xpose.msra.mxu0 0.0
    %5731 = vmatpush.xpose.msra.mxu0 0.0
    %5732 = vmatpush.xpose.msra.mxu0 0.0
    %5733 = vmatpush.xpose.msra.mxu0 0.0
    %5734 = vmatpush.xpose.msra.mxu0 0.0
    %5735 = vmatpush.xpose.msra.mxu0 0.0
    %5736 = vmatpush.xpose.msra.mxu0 0.0
    %5737 = vmatpush.xpose.msra.mxu0 0.0
    %5738 = vmatpush.xpose.msra.mxu0 0.0
    %5739 = vmatpush.xpose.msra.mxu0 0.0
    %5740 = vmatpush.xpose.msra.mxu0 0.0
    %5741 = vmatpush.xpose.msra.mxu0 0.0
    %5742 = vmatpush.xpose.msra.mxu0 0.0
    %5743 = vmatpush.xpose.msra.mxu0 0.0
    %v5744 = vand.u32 %v5603, 4294901760
    %5745 = vmatpush.xpose.msra.mxu0 %v5744
    %v5746 = vand.u32 %v5600, 4294901760
    %5747 = vmatmul.f32.gmra.mxu0 %v5746
    %v5748 = vpop.f32.mrf.mxu0
    %v5749 = vadd.f32 %v5727, %v5748
    %5750 = vdwg.mxu0
    %v5752 = vsel %vm4686, %v1676, 0
    %v5755 = vsel %vm4686, %v3180, 0
    %5757 = vmatpush.xpose.msra.mxu0 0.0
    %5758 = vmatpush.xpose.msra.mxu0 0.0
    %5759 = vmatpush.xpose.msra.mxu0 0.0
    %5760 = vmatpush.xpose.msra.mxu0 0.0
    %5761 = vmatpush.xpose.msra.mxu0 0.0
    %5762 = vmatpush.xpose.msra.mxu0 0.0
    %5763 = vmatpush.xpose.msra.mxu0 0.0
    %5764 = vmatpush.xpose.msra.mxu0 0.0
    %5765 = vmatpush.xpose.msra.mxu0 0.0
    %5766 = vmatpush.xpose.msra.mxu0 0.0
    %5767 = vmatpush.xpose.msra.mxu0 0.0
    %5768 = vmatpush.xpose.msra.mxu0 0.0
    %5769 = vmatpush.xpose.msra.mxu0 0.0
    %5770 = vmatpush.xpose.msra.mxu0 0.0
    %5771 = vmatpush.xpose.msra.mxu0 0.0
    %v5772 = vand.u32 %v5755, 4294901760
    %5773 = vmatpush.xpose.msra.mxu0 %v5772
    %v5774 = vand.u32 %v5752, 4294901760
    %v5775 = vsub.f32 %v5752, %v5774
    %v5776 = vand.u32 %v5775, 4294901760
    %v5777 = vsub.f32 %v5775, %v5776
    %v5778 = vand.u32 %v5777, 4294901760
    %5779 = vmatmul.f32.gmra.mxu0 %v5778
    %v5780 = vpop.f32.mrf.mxu0
    %v5781 = vadd.f32 0.0, %v5780
    %5782 = vdwg.mxu0
    %5783 = vmatpush.xpose.msra.mxu0 0.0
    %5784 = vmatpush.xpose.msra.mxu0 0.0
    %5785 = vmatpush.xpose.msra.mxu0 0.0
    %5786 = vmatpush.xpose.msra.mxu0 0.0
    %5787 = vmatpush.xpose.msra.mxu0 0.0
    %5788 = vmatpush.xpose.msra.mxu0 0.0
    %5789 = vmatpush.xpose.msra.mxu0 0.0
    %5790 = vmatpush.xpose.msra.mxu0 0.0
    %5791 = vmatpush.xpose.msra.mxu0 0.0
    %5792 = vmatpush.xpose.msra.mxu0 0.0
    %5793 = vmatpush.xpose.msra.mxu0 0.0
    %5794 = vmatpush.xpose.msra.mxu0 0.0
    %5795 = vmatpush.xpose.msra.mxu0 0.0
    %5796 = vmatpush.xpose.msra.mxu0 0.0
    %5797 = vmatpush.xpose.msra.mxu0 0.0
    %v5798 = vand.u32 %v5755, 4294901760
    %v5799 = vsub.f32 %v5755, %v5798
    %v5800 = vand.u32 %v5799, 4294901760
    %v5801 = vsub.f32 %v5799, %v5800
    %v5802 = vand.u32 %v5801, 4294901760
    %5803 = vmatpush.xpose.msra.mxu0 %v5802
    %v5804 = vand.u32 %v5752, 4294901760
    %5805 = vmatmul.f32.gmra.mxu0 %v5804
    %v5806 = vpop.f32.mrf.mxu0
    %v5807 = vadd.f32 %v5781, %v5806
    %5808 = vdwg.mxu0
    %5809 = vmatpush.xpose.msra.mxu0 0.0
    %5810 = vmatpush.xpose.msra.mxu0 0.0
    %5811 = vmatpush.xpose.msra.mxu0 0.0
    %5812 = vmatpush.xpose.msra.mxu0 0.0
    %5813 = vmatpush.xpose.msra.mxu0 0.0
    %5814 = vmatpush.xpose.msra.mxu0 0.0
    %5815 = vmatpush.xpose.msra.mxu0 0.0
    %5816 = vmatpush.xpose.msra.mxu0 0.0
    %5817 = vmatpush.xpose.msra.mxu0 0.0
    %5818 = vmatpush.xpose.msra.mxu0 0.0
    %5819 = vmatpush.xpose.msra.mxu0 0.0
    %5820 = vmatpush.xpose.msra.mxu0 0.0
    %5821 = vmatpush.xpose.msra.mxu0 0.0
    %5822 = vmatpush.xpose.msra.mxu0 0.0
    %5823 = vmatpush.xpose.msra.mxu0 0.0
    %v5824 = vand.u32 %v5755, 4294901760
    %v5825 = vsub.f32 %v5755, %v5824
    %5826 = vmatpush.xpose.msra.mxu0 %v5825
    %v5827 = vand.u32 %v5752, 4294901760
    %v5828 = vsub.f32 %v5752, %v5827
    %5829 = vmatmul.f32.gmra.mxu0 %v5828
    %v5830 = vpop.f32.mrf.mxu0
    %v5831 = vadd.f32 %v5807, %v5830
    %5832 = vdwg.mxu0
    %5833 = vmatpush.xpose.msra.mxu0 0.0
    %5834 = vmatpush.xpose.msra.mxu0 0.0
    %5835 = vmatpush.xpose.msra.mxu0 0.0
    %5836 = vmatpush.xpose.msra.mxu0 0.0
    %5837 = vmatpush.xpose.msra.mxu0 0.0
    %5838 = vmatpush.xpose.msra.mxu0 0.0
    %5839 = vmatpush.xpose.msra.mxu0 0.0
    %5840 = vmatpush.xpose.msra.mxu0 0.0
    %5841 = vmatpush.xpose.msra.mxu0 0.0
    %5842 = vmatpush.xpose.msra.mxu0 0.0
    %5843 = vmatpush.xpose.msra.mxu0 0.0
    %5844 = vmatpush.xpose.msra.mxu0 0.0
    %5845 = vmatpush.xpose.msra.mxu0 0.0
    %5846 = vmatpush.xpose.msra.mxu0 0.0
    %5847 = vmatpush.xpose.msra.mxu0 0.0
    %v5848 = vand.u32 %v5755, 4294901760
    %5849 = vmatpush.xpose.msra.mxu0 %v5848
    %v5850 = vand.u32 %v5752, 4294901760
    %v5851 = vsub.f32 %v5752, %v5850
    %v5852 = vand.u32 %v5851, 4294901760
    %5853 = vmatmul.f32.gmra.mxu0 %v5852
    %v5854 = vpop.f32.mrf.mxu0
    %v5855 = vadd.f32 %v5831, %v5854
    %5856 = vdwg.mxu0
    %5857 = vmatpush.xpose.msra.mxu0 0.0
    %5858 = vmatpush.xpose.msra.mxu0 0.0
    %5859 = vmatpush.xpose.msra.mxu0 0.0
    %5860 = vmatpush.xpose.msra.mxu0 0.0
    %5861 = vmatpush.xpose.msra.mxu0 0.0
    %5862 = vmatpush.xpose.msra.mxu0 0.0
    %5863 = vmatpush.xpose.msra.mxu0 0.0
    %5864 = vmatpush.xpose.msra.mxu0 0.0
    %5865 = vmatpush.xpose.msra.mxu0 0.0
    %5866 = vmatpush.xpose.msra.mxu0 0.0
    %5867 = vmatpush.xpose.msra.mxu0 0.0
    %5868 = vmatpush.xpose.msra.mxu0 0.0
    %5869 = vmatpush.xpose.msra.mxu0 0.0
    %5870 = vmatpush.xpose.msra.mxu0 0.0
    %5871 = vmatpush.xpose.msra.mxu0 0.0
    %v5872 = vand.u32 %v5755, 4294901760
    %v5873 = vsub.f32 %v5755, %v5872
    %v5874 = vand.u32 %v5873, 4294901760
    %5875 = vmatpush.xpose.msra.mxu0 %v5874
    %v5876 = vand.u32 %v5752, 4294901760
    %5877 = vmatmul.f32.gmra.mxu0 %v5876
    %v5878 = vpop.f32.mrf.mxu0
    %v5879 = vadd.f32 %v5855, %v5878
    %5880 = vdwg.mxu0
    %5881 = vmatpush.xpose.msra.mxu0 0.0
    %5882 = vmatpush.xpose.msra.mxu0 0.0
    %5883 = vmatpush.xpose.msra.mxu0 0.0
    %5884 = vmatpush.xpose.msra.mxu0 0.0
    %5885 = vmatpush.xpose.msra.mxu0 0.0
    %5886 = vmatpush.xpose.msra.mxu0 0.0
    %5887 = vmatpush.xpose.msra.mxu0 0.0
    %5888 = vmatpush.xpose.msra.mxu0 0.0
    %5889 = vmatpush.xpose.msra.mxu0 0.0
    %5890 = vmatpush.xpose.msra.mxu0 0.0
    %5891 = vmatpush.xpose.msra.mxu0 0.0
    %5892 = vmatpush.xpose.msra.mxu0 0.0
    %5893 = vmatpush.xpose.msra.mxu0 0.0
    %5894 = vmatpush.xpose.msra.mxu0 0.0
    %5895 = vmatpush.xpose.msra.mxu0 0.0
    %v5896 = vand.u32 %v5755, 4294901760
    %5897 = vmatpush.xpose.msra.mxu0 %v5896
    %v5898 = vand.u32 %v5752, 4294901760
    %5899 = vmatmul.f32.gmra.mxu0 %v5898
    %v5900 = vpop.f32.mrf.mxu0
    %v5901 = vadd.f32 %v5879, %v5900
    %5902 = vdwg.mxu0
    %v5903 = vsel %vm4686, %v4837, -inf
    %5904 = vmax.xlane.f32.xlu0 %v5903
    %v5905 = vpop.xlane.xlu0 %5904
    %v5906 = vsel %vm4686, %v4989, -inf
    %5907 = vmax.xlane.f32.xlu0 %v5906
    %v5908 = vpop.xlane.xlu0 %5907
    %v5909 = vsel %vm4686, %v5141, -inf
    %5910 = vmax.xlane.f32.xlu0 %v5909
    %v5911 = vpop.xlane.xlu0 %5910
    %v5912 = vsel %vm4686, %v5293, -inf
    %5913 = vmax.xlane.f32.xlu0 %v5912
    %v5914 = vpop.xlane.xlu0 %5913
    %v5915 = vsel %vm4686, %v5445, -inf
    %5916 = vmax.xlane.f32.xlu0 %v5915
    %v5917 = vpop.xlane.xlu0 %5916
    %v5918 = vsel %vm4686, %v5597, -inf
    %5919 = vmax.xlane.f32.xlu0 %v5918
    %v5920 = vpop.xlane.xlu0 %5919
    %v5921 = vsel %vm4686, %v5749, -inf
    %5922 = vmax.xlane.f32.xlu0 %v5921
    %v5923 = vpop.xlane.xlu0 %5922
    %v5924 = vsel %vm4686, %v5901, -inf
    %5925 = vmax.xlane.f32.xlu0 %v5924
    %v5926 = vpop.xlane.xlu0 %5925
    %v5927 = vsub.f32 %v4837, %v5905
    %v5928 = vsub.f32 %v4989, %v5908
    %v5929 = vsub.f32 %v5141, %v5911
    %v5930 = vsub.f32 %v5293, %v5914
    %v5931 = vsub.f32 %v5445, %v5917
    %v5932 = vsub.f32 %v5597, %v5920
    %v5933 = vsub.f32 %v5749, %v5923
    %v5934 = vsub.f32 %v5901, %v5926
    %v5935 = vmul.f32 %v5927, 1.442695
    %v5936 = vpow.pop %v5935
    %v5937 = vmul.f32 %v5928, 1.442695
    %v5938 = vpow.pop %v5937
    %v5939 = vmul.f32 %v5929, 1.442695
    %v5940 = vpow.pop %v5939
    %v5941 = vmul.f32 %v5930, 1.442695
    %v5942 = vpow.pop %v5941
    %v5943 = vmul.f32 %v5931, 1.442695
    %v5944 = vpow.pop %v5943
    %v5945 = vmul.f32 %v5932, 1.442695
    %v5946 = vpow.pop %v5945
    %v5947 = vmul.f32 %v5933, 1.442695
    %v5948 = vpow.pop %v5947
    %v5949 = vmul.f32 %v5934, 1.442695
    %v5950 = vpow.pop %v5949
    %v5951 = vsel %vm4686, %v5936, 0.0
    %5952 = vadd.xlane.f32.xlu0 %v5951
    %v5953 = vpop.xlane.xlu0 %5952
    %v5954 = vsel %vm4686, %v5938, 0.0
    %5955 = vadd.xlane.f32.xlu0 %v5954
    %v5956 = vpop.xlane.xlu0 %5955
    %v5957 = vsel %vm4686, %v5940, 0.0
    %5958 = vadd.xlane.f32.xlu0 %v5957
    %v5959 = vpop.xlane.xlu0 %5958
    %v5960 = vsel %vm4686, %v5942, 0.0
    %5961 = vadd.xlane.f32.xlu0 %v5960
    %v5962 = vpop.xlane.xlu0 %5961
    %v5963 = vsel %vm4686, %v5944, 0.0
    %5964 = vadd.xlane.f32.xlu0 %v5963
    %v5965 = vpop.xlane.xlu0 %5964
    %v5966 = vsel %vm4686, %v5946, 0.0
    %5967 = vadd.xlane.f32.xlu0 %v5966
    %v5968 = vpop.xlane.xlu0 %5967
    %v5969 = vsel %vm4686, %v5948, 0.0
    %5970 = vadd.xlane.f32.xlu0 %v5969
    %v5971 = vpop.xlane.xlu0 %5970
    %v5972 = vsel %vm4686, %v5950, 0.0
    %5973 = vadd.xlane.f32.xlu0 %v5972
    %v5974 = vpop.xlane.xlu0 %5973
    %v5975 = vrcp.pop %v5953
    %v5976 = vmul.f32 %v5953, %v5975
    %v5977 = vsub.f32 1.0, %v5976
    %v5978 = vmul.f32 %v5975, %v5977
    %v5979 = vadd.f32 %v5975, %v5978
    %vm5980 = vweird.f32 %v5953
    %vm5981 = vweird.f32 %v5975
    %vm5982 = vmor %vm5980, %vm5981
    %v5983 = vsel %vm5982, %v5975, %v5979
    %v5984 = vand.u32 2147483647, %v5953
    %vm5985 = vcmp.eq.f32.partialorder %v5984, 8.507059e+37
    %v5986 = vand.u32 %v5953, 2147483648
    %v5987 = vor.u32 1.1754944e-38, %v5986
    %v5988 = vsel %vm5985, %v5987, %v5983
    %v5989 = vmul.f32 %v5936, %v5988
    %v5990 = vrcp.pop %v5956
    %v5991 = vmul.f32 %v5956, %v5990
    %v5992 = vsub.f32 1.0, %v5991
    %v5993 = vmul.f32 %v5990, %v5992
    %v5994 = vadd.f32 %v5990, %v5993
    %vm5995 = vweird.f32 %v5956
    %vm5996 = vweird.f32 %v5990
    %vm5997 = vmor %vm5995, %vm5996
    %v5998 = vsel %vm5997, %v5990, %v5994
    %v5999 = vand.u32 2147483647, %v5956
    %vm6000 = vcmp.eq.f32.partialorder %v5999, 8.507059e+37
    %v6001 = vand.u32 %v5956, 2147483648
    %v6002 = vor.u32 1.1754944e-38, %v6001
    %v6003 = vsel %vm6000, %v6002, %v5998
    %v6004 = vmul.f32 %v5938, %v6003
    %v6005 = vrcp.pop %v5959
    %v6006 = vmul.f32 %v5959, %v6005
    %v6007 = vsub.f32 1.0, %v6006
    %v6008 = vmul.f32 %v6005, %v6007
    %v6009 = vadd.f32 %v6005, %v6008
    %vm6010 = vweird.f32 %v5959
    %vm6011 = vweird.f32 %v6005
    %vm6012 = vmor %vm6010, %vm6011
    %v6013 = vsel %vm6012, %v6005, %v6009
    %v6014 = vand.u32 2147483647, %v5959
    %vm6015 = vcmp.eq.f32.partialorder %v6014, 8.507059e+37
    %v6016 = vand.u32 %v5959, 2147483648
    %v6017 = vor.u32 1.1754944e-38, %v6016
    %v6018 = vsel %vm6015, %v6017, %v6013
    %v6019 = vmul.f32 %v5940, %v6018
    %v6020 = vrcp.pop %v5962
    %v6021 = vmul.f32 %v5962, %v6020
    %v6022 = vsub.f32 1.0, %v6021
    %v6023 = vmul.f32 %v6020, %v6022
    %v6024 = vadd.f32 %v6020, %v6023
    %vm6025 = vweird.f32 %v5962
    %vm6026 = vweird.f32 %v6020
    %vm6027 = vmor %vm6025, %vm6026
    %v6028 = vsel %vm6027, %v6020, %v6024
    %v6029 = vand.u32 2147483647, %v5962
    %vm6030 = vcmp.eq.f32.partialorder %v6029, 8.507059e+37
    %v6031 = vand.u32 %v5962, 2147483648
    %v6032 = vor.u32 1.1754944e-38, %v6031
    %v6033 = vsel %vm6030, %v6032, %v6028
    %v6034 = vmul.f32 %v5942, %v6033
    %v6035 = vrcp.pop %v5965
    %v6036 = vmul.f32 %v5965, %v6035
    %v6037 = vsub.f32 1.0, %v6036
    %v6038 = vmul.f32 %v6035, %v6037
    %v6039 = vadd.f32 %v6035, %v6038
    %vm6040 = vweird.f32 %v5965
    %vm6041 = vweird.f32 %v6035
    %vm6042 = vmor %vm6040, %vm6041
    %v6043 = vsel %vm6042, %v6035, %v6039
    %v6044 = vand.u32 2147483647, %v5965
    %vm6045 = vcmp.eq.f32.partialorder %v6044, 8.507059e+37
    %v6046 = vand.u32 %v5965, 2147483648
    %v6047 = vor.u32 1.1754944e-38, %v6046
    %v6048 = vsel %vm6045, %v6047, %v6043
    %v6049 = vmul.f32 %v5944, %v6048
    %v6050 = vrcp.pop %v5968
    %v6051 = vmul.f32 %v5968, %v6050
    %v6052 = vsub.f32 1.0, %v6051
    %v6053 = vmul.f32 %v6050, %v6052
    %v6054 = vadd.f32 %v6050, %v6053
    %vm6055 = vweird.f32 %v5968
    %vm6056 = vweird.f32 %v6050
    %vm6057 = vmor %vm6055, %vm6056
    %v6058 = vsel %vm6057, %v6050, %v6054
    %v6059 = vand.u32 2147483647, %v5968
    %vm6060 = vcmp.eq.f32.partialorder %v6059, 8.507059e+37
    %v6061 = vand.u32 %v5968, 2147483648
    %v6062 = vor.u32 1.1754944e-38, %v6061
    %v6063 = vsel %vm6060, %v6062, %v6058
    %v6064 = vmul.f32 %v5946, %v6063
    %v6065 = vrcp.pop %v5971
    %v6066 = vmul.f32 %v5971, %v6065
    %v6067 = vsub.f32 1.0, %v6066
    %v6068 = vmul.f32 %v6065, %v6067
    %v6069 = vadd.f32 %v6065, %v6068
    %vm6070 = vweird.f32 %v5971
    %vm6071 = vweird.f32 %v6065
    %vm6072 = vmor %vm6070, %vm6071
    %v6073 = vsel %vm6072, %v6065, %v6069
    %v6074 = vand.u32 2147483647, %v5971
    %vm6075 = vcmp.eq.f32.partialorder %v6074, 8.507059e+37
    %v6076 = vand.u32 %v5971, 2147483648
    %v6077 = vor.u32 1.1754944e-38, %v6076
    %v6078 = vsel %vm6075, %v6077, %v6073
    %v6079 = vmul.f32 %v5948, %v6078
    %v6080 = vrcp.pop %v5974
    %v6081 = vmul.f32 %v5974, %v6080
    %v6082 = vsub.f32 1.0, %v6081
    %v6083 = vmul.f32 %v6080, %v6082
    %v6084 = vadd.f32 %v6080, %v6083
    %vm6085 = vweird.f32 %v5974
    %vm6086 = vweird.f32 %v6080
    %vm6087 = vmor %vm6085, %vm6086
    %v6088 = vsel %vm6087, %v6080, %v6084
    %v6089 = vand.u32 2147483647, %v5974
    %vm6090 = vcmp.eq.f32.partialorder %v6089, 8.507059e+37
    %v6091 = vand.u32 %v5974, 2147483648
    %v6092 = vor.u32 1.1754944e-38, %v6091
    %v6093 = vsel %vm6090, %v6092, %v6088
    %v6094 = vmul.f32 %v5950, %v6093
    %v6096 = vsel %vm4686, %v5989, 0
    %6098 = vmatpush.msra.mxu0 0.0
    %6099 = vmatpush.msra.mxu0 0.0
    %6100 = vmatpush.msra.mxu0 0.0
    %6101 = vmatpush.msra.mxu0 0.0
    %6102 = vmatpush.msra.mxu0 0.0
    %6103 = vmatpush.msra.mxu0 0.0
    %6104 = vmatpush.msra.mxu0 0.0
    %6105 = vmatpush.msra.mxu0 0.0
    %6106 = vmatpush.msra.mxu0 0.0
    %6107 = vmatpush.msra.mxu0 0.0
    %6108 = vmatpush.msra.mxu0 0.0
    %6109 = vmatpush.msra.mxu0 0.0
    %6110 = vmatpush.msra.mxu0 0.0
    %6111 = vmatpush.msra.mxu0 0.0
    %6112 = vmatpush.msra.mxu0 0.0
    %v6113 = vand.u32 %v3389, 4294901760
    %6114 = vmatpush.msra.mxu0 %v6113
    %v6115 = vand.u32 %v6096, 4294901760
    %v6116 = vsub.f32 %v6096, %v6115
    %v6117 = vand.u32 %v6116, 4294901760
    %v6118 = vsub.f32 %v6116, %v6117
    %v6119 = vand.u32 %v6118, 4294901760
    %6120 = vmatmul.f32.gmra.mxu0 %v6119
    %v6121 = vpop.f32.mrf.mxu0
    %v6122 = vadd.f32 0.0, %v6121
    %6123 = vdwg.mxu0
    %6124 = vmatpush.msra.mxu0 0.0
    %6125 = vmatpush.msra.mxu0 0.0
    %6126 = vmatpush.msra.mxu0 0.0
    %6127 = vmatpush.msra.mxu0 0.0
    %6128 = vmatpush.msra.mxu0 0.0
    %6129 = vmatpush.msra.mxu0 0.0
    %6130 = vmatpush.msra.mxu0 0.0
    %6131 = vmatpush.msra.mxu0 0.0
    %6132 = vmatpush.msra.mxu0 0.0
    %6133 = vmatpush.msra.mxu0 0.0
    %6134 = vmatpush.msra.mxu0 0.0
    %6135 = vmatpush.msra.mxu0 0.0
    %6136 = vmatpush.msra.mxu0 0.0
    %6137 = vmatpush.msra.mxu0 0.0
    %6138 = vmatpush.msra.mxu0 0.0
    %v6139 = vand.u32 %v3389, 4294901760
    %v6140 = vsub.f32 %v3389, %v6139
    %v6141 = vand.u32 %v6140, 4294901760
    %v6142 = vsub.f32 %v6140, %v6141
    %v6143 = vand.u32 %v6142, 4294901760
    %6144 = vmatpush.msra.mxu0 %v6143
    %v6145 = vand.u32 %v6096, 4294901760
    %6146 = vmatmul.f32.gmra.mxu0 %v6145
    %v6147 = vpop.f32.mrf.mxu0
    %v6148 = vadd.f32 %v6122, %v6147
    %6149 = vdwg.mxu0
    %6150 = vmatpush.msra.mxu0 0.0
    %6151 = vmatpush.msra.mxu0 0.0
    %6152 = vmatpush.msra.mxu0 0.0
    %6153 = vmatpush.msra.mxu0 0.0
    %6154 = vmatpush.msra.mxu0 0.0
    %6155 = vmatpush.msra.mxu0 0.0
    %6156 = vmatpush.msra.mxu0 0.0
    %6157 = vmatpush.msra.mxu0 0.0
    %6158 = vmatpush.msra.mxu0 0.0
    %6159 = vmatpush.msra.mxu0 0.0
    %6160 = vmatpush.msra.mxu0 0.0
    %6161 = vmatpush.msra.mxu0 0.0
    %6162 = vmatpush.msra.mxu0 0.0
    %6163 = vmatpush.msra.mxu0 0.0
    %6164 = vmatpush.msra.mxu0 0.0
    %v6165 = vand.u32 %v3389, 4294901760
    %v6166 = vsub.f32 %v3389, %v6165
    %6167 = vmatpush.msra.mxu0 %v6166
    %v6168 = vand.u32 %v6096, 4294901760
    %v6169 = vsub.f32 %v6096, %v6168
    %6170 = vmatmul.f32.gmra.mxu0 %v6169
    %v6171 = vpop.f32.mrf.mxu0
    %v6172 = vadd.f32 %v6148, %v6171
    %6173 = vdwg.mxu0
    %6174 = vmatpush.msra.mxu0 0.0
    %6175 = vmatpush.msra.mxu0 0.0
    %6176 = vmatpush.msra.mxu0 0.0
    %6177 = vmatpush.msra.mxu0 0.0
    %6178 = vmatpush.msra.mxu0 0.0
    %6179 = vmatpush.msra.mxu0 0.0
    %6180 = vmatpush.msra.mxu0 0.0
    %6181 = vmatpush.msra.mxu0 0.0
    %6182 = vmatpush.msra.mxu0 0.0
    %6183 = vmatpush.msra.mxu0 0.0
    %6184 = vmatpush.msra.mxu0 0.0
    %6185 = vmatpush.msra.mxu0 0.0
    %6186 = vmatpush.msra.mxu0 0.0
    %6187 = vmatpush.msra.mxu0 0.0
    %6188 = vmatpush.msra.mxu0 0.0
    %v6189 = vand.u32 %v3389, 4294901760
    %6190 = vmatpush.msra.mxu0 %v6189
    %v6191 = vand.u32 %v6096, 4294901760
    %v6192 = vsub.f32 %v6096, %v6191
    %v6193 = vand.u32 %v6192, 4294901760
    %6194 = vmatmul.f32.gmra.mxu0 %v6193
    %v6195 = vpop.f32.mrf.mxu0
    %v6196 = vadd.f32 %v6172, %v6195
    %6197 = vdwg.mxu0
    %6198 = vmatpush.msra.mxu0 0.0
    %6199 = vmatpush.msra.mxu0 0.0
    %6200 = vmatpush.msra.mxu0 0.0
    %6201 = vmatpush.msra.mxu0 0.0
    %6202 = vmatpush.msra.mxu0 0.0
    %6203 = vmatpush.msra.mxu0 0.0
    %6204 = vmatpush.msra.mxu0 0.0
    %6205 = vmatpush.msra.mxu0 0.0
    %6206 = vmatpush.msra.mxu0 0.0
    %6207 = vmatpush.msra.mxu0 0.0
    %6208 = vmatpush.msra.mxu0 0.0
    %6209 = vmatpush.msra.mxu0 0.0
    %6210 = vmatpush.msra.mxu0 0.0
    %6211 = vmatpush.msra.mxu0 0.0
    %6212 = vmatpush.msra.mxu0 0.0
    %v6213 = vand.u32 %v3389, 4294901760
    %v6214 = vsub.f32 %v3389, %v6213
    %v6215 = vand.u32 %v6214, 4294901760
    %6216 = vmatpush.msra.mxu0 %v6215
    %v6217 = vand.u32 %v6096, 4294901760
    %6218 = vmatmul.f32.gmra.mxu0 %v6217
    %v6219 = vpop.f32.mrf.mxu0
    %v6220 = vadd.f32 %v6196, %v6219
    %6221 = vdwg.mxu0
    %6222 = vmatpush.msra.mxu0 0.0
    %6223 = vmatpush.msra.mxu0 0.0
    %6224 = vmatpush.msra.mxu0 0.0
    %6225 = vmatpush.msra.mxu0 0.0
    %6226 = vmatpush.msra.mxu0 0.0
    %6227 = vmatpush.msra.mxu0 0.0
    %6228 = vmatpush.msra.mxu0 0.0
    %6229 = vmatpush.msra.mxu0 0.0
    %6230 = vmatpush.msra.mxu0 0.0
    %6231 = vmatpush.msra.mxu0 0.0
    %6232 = vmatpush.msra.mxu0 0.0
    %6233 = vmatpush.msra.mxu0 0.0
    %6234 = vmatpush.msra.mxu0 0.0
    %6235 = vmatpush.msra.mxu0 0.0
    %6236 = vmatpush.msra.mxu0 0.0
    %v6237 = vand.u32 %v3389, 4294901760
    %6238 = vmatpush.msra.mxu0 %v6237
    %v6239 = vand.u32 %v6096, 4294901760
    %6240 = vmatmul.f32.gmra.mxu0 %v6239
    %v6241 = vpop.f32.mrf.mxu0
    %v6242 = vadd.f32 %v6220, %v6241
    %6243 = vdwg.mxu0
    %v6245 = vsel %vm4686, %v6004, 0
    %6247 = vmatpush.msra.mxu0 0.0
    %6248 = vmatpush.msra.mxu0 0.0
    %6249 = vmatpush.msra.mxu0 0.0
    %6250 = vmatpush.msra.mxu0 0.0
    %6251 = vmatpush.msra.mxu0 0.0
    %6252 = vmatpush.msra.mxu0 0.0
    %6253 = vmatpush.msra.mxu0 0.0
    %6254 = vmatpush.msra.mxu0 0.0
    %6255 = vmatpush.msra.mxu0 0.0
    %6256 = vmatpush.msra.mxu0 0.0
    %6257 = vmatpush.msra.mxu0 0.0
    %6258 = vmatpush.msra.mxu0 0.0
    %6259 = vmatpush.msra.mxu0 0.0
    %6260 = vmatpush.msra.mxu0 0.0
    %6261 = vmatpush.msra.mxu0 0.0
    %v6262 = vand.u32 %v3574, 4294901760
    %6263 = vmatpush.msra.mxu0 %v6262
    %v6264 = vand.u32 %v6245, 4294901760
    %v6265 = vsub.f32 %v6245, %v6264
    %v6266 = vand.u32 %v6265, 4294901760
    %v6267 = vsub.f32 %v6265, %v6266
    %v6268 = vand.u32 %v6267, 4294901760
    %6269 = vmatmul.f32.gmra.mxu0 %v6268
    %v6270 = vpop.f32.mrf.mxu0
    %v6271 = vadd.f32 0.0, %v6270
    %6272 = vdwg.mxu0
    %6273 = vmatpush.msra.mxu0 0.0
    %6274 = vmatpush.msra.mxu0 0.0
    %6275 = vmatpush.msra.mxu0 0.0
    %6276 = vmatpush.msra.mxu0 0.0
    %6277 = vmatpush.msra.mxu0 0.0
    %6278 = vmatpush.msra.mxu0 0.0
    %6279 = vmatpush.msra.mxu0 0.0
    %6280 = vmatpush.msra.mxu0 0.0
    %6281 = vmatpush.msra.mxu0 0.0
    %6282 = vmatpush.msra.mxu0 0.0
    %6283 = vmatpush.msra.mxu0 0.0
    %6284 = vmatpush.msra.mxu0 0.0
    %6285 = vmatpush.msra.mxu0 0.0
    %6286 = vmatpush.msra.mxu0 0.0
    %6287 = vmatpush.msra.mxu0 0.0
    %v6288 = vand.u32 %v3574, 4294901760
    %v6289 = vsub.f32 %v3574, %v6288
    %v6290 = vand.u32 %v6289, 4294901760
    %v6291 = vsub.f32 %v6289, %v6290
    %v6292 = vand.u32 %v6291, 4294901760
    %6293 = vmatpush.msra.mxu0 %v6292
    %v6294 = vand.u32 %v6245, 4294901760
    %6295 = vmatmul.f32.gmra.mxu0 %v6294
    %v6296 = vpop.f32.mrf.mxu0
    %v6297 = vadd.f32 %v6271, %v6296
    %6298 = vdwg.mxu0
    %6299 = vmatpush.msra.mxu0 0.0
    %6300 = vmatpush.msra.mxu0 0.0
    %6301 = vmatpush.msra.mxu0 0.0
    %6302 = vmatpush.msra.mxu0 0.0
    %6303 = vmatpush.msra.mxu0 0.0
    %6304 = vmatpush.msra.mxu0 0.0
    %6305 = vmatpush.msra.mxu0 0.0
    %6306 = vmatpush.msra.mxu0 0.0
    %6307 = vmatpush.msra.mxu0 0.0
    %6308 = vmatpush.msra.mxu0 0.0
    %6309 = vmatpush.msra.mxu0 0.0
    %6310 = vmatpush.msra.mxu0 0.0
    %6311 = vmatpush.msra.mxu0 0.0
    %6312 = vmatpush.msra.mxu0 0.0
    %6313 = vmatpush.msra.mxu0 0.0
    %v6314 = vand.u32 %v3574, 4294901760
    %v6315 = vsub.f32 %v3574, %v6314
    %6316 = vmatpush.msra.mxu0 %v6315
    %v6317 = vand.u32 %v6245, 4294901760
    %v6318 = vsub.f32 %v6245, %v6317
    %6319 = vmatmul.f32.gmra.mxu0 %v6318
    %v6320 = vpop.f32.mrf.mxu0
    %v6321 = vadd.f32 %v6297, %v6320
    %6322 = vdwg.mxu0
    %6323 = vmatpush.msra.mxu0 0.0
    %6324 = vmatpush.msra.mxu0 0.0
    %6325 = vmatpush.msra.mxu0 0.0
    %6326 = vmatpush.msra.mxu0 0.0
    %6327 = vmatpush.msra.mxu0 0.0
    %6328 = vmatpush.msra.mxu0 0.0
    %6329 = vmatpush.msra.mxu0 0.0
    %6330 = vmatpush.msra.mxu0 0.0
    %6331 = vmatpush.msra.mxu0 0.0
    %6332 = vmatpush.msra.mxu0 0.0
    %6333 = vmatpush.msra.mxu0 0.0
    %6334 = vmatpush.msra.mxu0 0.0
    %6335 = vmatpush.msra.mxu0 0.0
    %6336 = vmatpush.msra.mxu0 0.0
    %6337 = vmatpush.msra.mxu0 0.0
    %v6338 = vand.u32 %v3574, 4294901760
    %6339 = vmatpush.msra.mxu0 %v6338
    %v6340 = vand.u32 %v6245, 4294901760
    %v6341 = vsub.f32 %v6245, %v6340
    %v6342 = vand.u32 %v6341, 4294901760
    %6343 = vmatmul.f32.gmra.mxu0 %v6342
    %v6344 = vpop.f32.mrf.mxu0
    %v6345 = vadd.f32 %v6321, %v6344
    %6346 = vdwg.mxu0
    %6347 = vmatpush.msra.mxu0 0.0
    %6348 = vmatpush.msra.mxu0 0.0
    %6349 = vmatpush.msra.mxu0 0.0
    %6350 = vmatpush.msra.mxu0 0.0
    %6351 = vmatpush.msra.mxu0 0.0
    %6352 = vmatpush.msra.mxu0 0.0
    %6353 = vmatpush.msra.mxu0 0.0
    %6354 = vmatpush.msra.mxu0 0.0
    %6355 = vmatpush.msra.mxu0 0.0
    %6356 = vmatpush.msra.mxu0 0.0
    %6357 = vmatpush.msra.mxu0 0.0
    %6358 = vmatpush.msra.mxu0 0.0
    %6359 = vmatpush.msra.mxu0 0.0
    %6360 = vmatpush.msra.mxu0 0.0
    %6361 = vmatpush.msra.mxu0 0.0
    %v6362 = vand.u32 %v3574, 4294901760
    %v6363 = vsub.f32 %v3574, %v6362
    %v6364 = vand.u32 %v6363, 4294901760
    %6365 = vmatpush.msra.mxu0 %v6364
    %v6366 = vand.u32 %v6245, 4294901760
    %6367 = vmatmul.f32.gmra.mxu0 %v6366
    %v6368 = vpop.f32.mrf.mxu0
    %v6369 = vadd.f32 %v6345, %v6368
    %6370 = vdwg.mxu0
    %6371 = vmatpush.msra.mxu0 0.0
    %6372 = vmatpush.msra.mxu0 0.0
    %6373 = vmatpush.msra.mxu0 0.0
    %6374 = vmatpush.msra.mxu0 0.0
    %6375 = vmatpush.msra.mxu0 0.0
    %6376 = vmatpush.msra.mxu0 0.0
    %6377 = vmatpush.msra.mxu0 0.0
    %6378 = vmatpush.msra.mxu0 0.0
    %6379 = vmatpush.msra.mxu0 0.0
    %6380 = vmatpush.msra.mxu0 0.0
    %6381 = vmatpush.msra.mxu0 0.0
    %6382 = vmatpush.msra.mxu0 0.0
    %6383 = vmatpush.msra.mxu0 0.0
    %6384 = vmatpush.msra.mxu0 0.0
    %6385 = vmatpush.msra.mxu0 0.0
    %v6386 = vand.u32 %v3574, 4294901760
    %6387 = vmatpush.msra.mxu0 %v6386
    %v6388 = vand.u32 %v6245, 4294901760
    %6389 = vmatmul.f32.gmra.mxu0 %v6388
    %v6390 = vpop.f32.mrf.mxu0
    %v6391 = vadd.f32 %v6369, %v6390
    %6392 = vdwg.mxu0
    %v6394 = vsel %vm4686, %v6019, 0
    %6396 = vmatpush.msra.mxu0 0.0
    %6397 = vmatpush.msra.mxu0 0.0
    %6398 = vmatpush.msra.mxu0 0.0
    %6399 = vmatpush.msra.mxu0 0.0
    %6400 = vmatpush.msra.mxu0 0.0
    %6401 = vmatpush.msra.mxu0 0.0
    %6402 = vmatpush.msra.mxu0 0.0
    %6403 = vmatpush.msra.mxu0 0.0
    %6404 = vmatpush.msra.mxu0 0.0
    %6405 = vmatpush.msra.mxu0 0.0
    %6406 = vmatpush.msra.mxu0 0.0
    %6407 = vmatpush.msra.mxu0 0.0
    %6408 = vmatpush.msra.mxu0 0.0
    %6409 = vmatpush.msra.mxu0 0.0
    %6410 = vmatpush.msra.mxu0 0.0
    %v6411 = vand.u32 %v3759, 4294901760
    %6412 = vmatpush.msra.mxu0 %v6411
    %v6413 = vand.u32 %v6394, 4294901760
    %v6414 = vsub.f32 %v6394, %v6413
    %v6415 = vand.u32 %v6414, 4294901760
    %v6416 = vsub.f32 %v6414, %v6415
    %v6417 = vand.u32 %v6416, 4294901760
    %6418 = vmatmul.f32.gmra.mxu0 %v6417
    %v6419 = vpop.f32.mrf.mxu0
    %v6420 = vadd.f32 0.0, %v6419
    %6421 = vdwg.mxu0
    %6422 = vmatpush.msra.mxu0 0.0
    %6423 = vmatpush.msra.mxu0 0.0
    %6424 = vmatpush.msra.mxu0 0.0
    %6425 = vmatpush.msra.mxu0 0.0
    %6426 = vmatpush.msra.mxu0 0.0
    %6427 = vmatpush.msra.mxu0 0.0
    %6428 = vmatpush.msra.mxu0 0.0
    %6429 = vmatpush.msra.mxu0 0.0
    %6430 = vmatpush.msra.mxu0 0.0
    %6431 = vmatpush.msra.mxu0 0.0
    %6432 = vmatpush.msra.mxu0 0.0
    %6433 = vmatpush.msra.mxu0 0.0
    %6434 = vmatpush.msra.mxu0 0.0
    %6435 = vmatpush.msra.mxu0 0.0
    %6436 = vmatpush.msra.mxu0 0.0
    %v6437 = vand.u32 %v3759, 4294901760
    %v6438 = vsub.f32 %v3759, %v6437
    %v6439 = vand.u32 %v6438, 4294901760
    %v6440 = vsub.f32 %v6438, %v6439
    %v6441 = vand.u32 %v6440, 4294901760
    %6442 = vmatpush.msra.mxu0 %v6441
    %v6443 = vand.u32 %v6394, 4294901760
    %6444 = vmatmul.f32.gmra.mxu0 %v6443
    %v6445 = vpop.f32.mrf.mxu0
    %v6446 = vadd.f32 %v6420, %v6445
    %6447 = vdwg.mxu0
    %6448 = vmatpush.msra.mxu0 0.0
    %6449 = vmatpush.msra.mxu0 0.0
    %6450 = vmatpush.msra.mxu0 0.0
    %6451 = vmatpush.msra.mxu0 0.0
    %6452 = vmatpush.msra.mxu0 0.0
    %6453 = vmatpush.msra.mxu0 0.0
    %6454 = vmatpush.msra.mxu0 0.0
    %6455 = vmatpush.msra.mxu0 0.0
    %6456 = vmatpush.msra.mxu0 0.0
    %6457 = vmatpush.msra.mxu0 0.0
    %6458 = vmatpush.msra.mxu0 0.0
    %6459 = vmatpush.msra.mxu0 0.0
    %6460 = vmatpush.msra.mxu0 0.0
    %6461 = vmatpush.msra.mxu0 0.0
    %6462 = vmatpush.msra.mxu0 0.0
    %v6463 = vand.u32 %v3759, 4294901760
    %v6464 = vsub.f32 %v3759, %v6463
    %6465 = vmatpush.msra.mxu0 %v6464
    %v6466 = vand.u32 %v6394, 4294901760
    %v6467 = vsub.f32 %v6394, %v6466
    %6468 = vmatmul.f32.gmra.mxu0 %v6467
    %v6469 = vpop.f32.mrf.mxu0
    %v6470 = vadd.f32 %v6446, %v6469
    %6471 = vdwg.mxu0
    %6472 = vmatpush.msra.mxu0 0.0
    %6473 = vmatpush.msra.mxu0 0.0
    %6474 = vmatpush.msra.mxu0 0.0
    %6475 = vmatpush.msra.mxu0 0.0
    %6476 = vmatpush.msra.mxu0 0.0
    %6477 = vmatpush.msra.mxu0 0.0
    %6478 = vmatpush.msra.mxu0 0.0
    %6479 = vmatpush.msra.mxu0 0.0
    %6480 = vmatpush.msra.mxu0 0.0
    %6481 = vmatpush.msra.mxu0 0.0
    %6482 = vmatpush.msra.mxu0 0.0
    %6483 = vmatpush.msra.mxu0 0.0
    %6484 = vmatpush.msra.mxu0 0.0
    %6485 = vmatpush.msra.mxu0 0.0
    %6486 = vmatpush.msra.mxu0 0.0
    %v6487 = vand.u32 %v3759, 4294901760
    %6488 = vmatpush.msra.mxu0 %v6487
    %v6489 = vand.u32 %v6394, 4294901760
    %v6490 = vsub.f32 %v6394, %v6489
    %v6491 = vand.u32 %v6490, 4294901760
    %6492 = vmatmul.f32.gmra.mxu0 %v6491
    %v6493 = vpop.f32.mrf.mxu0
    %v6494 = vadd.f32 %v6470, %v6493
    %6495 = vdwg.mxu0
    %6496 = vmatpush.msra.mxu0 0.0
    %6497 = vmatpush.msra.mxu0 0.0
    %6498 = vmatpush.msra.mxu0 0.0
    %6499 = vmatpush.msra.mxu0 0.0
    %6500 = vmatpush.msra.mxu0 0.0
    %6501 = vmatpush.msra.mxu0 0.0
    %6502 = vmatpush.msra.mxu0 0.0
    %6503 = vmatpush.msra.mxu0 0.0
    %6504 = vmatpush.msra.mxu0 0.0
    %6505 = vmatpush.msra.mxu0 0.0
    %6506 = vmatpush.msra.mxu0 0.0
    %6507 = vmatpush.msra.mxu0 0.0
    %6508 = vmatpush.msra.mxu0 0.0
    %6509 = vmatpush.msra.mxu0 0.0
    %6510 = vmatpush.msra.mxu0 0.0
    %v6511 = vand.u32 %v3759, 4294901760
    %v6512 = vsub.f32 %v3759, %v6511
    %v6513 = vand.u32 %v6512, 4294901760
    %6514 = vmatpush.msra.mxu0 %v6513
    %v6515 = vand.u32 %v6394, 4294901760
    %6516 = vmatmul.f32.gmra.mxu0 %v6515
    %v6517 = vpop.f32.mrf.mxu0
    %v6518 = vadd.f32 %v6494, %v6517
    %6519 = vdwg.mxu0
    %6520 = vmatpush.msra.mxu0 0.0
    %6521 = vmatpush.msra.mxu0 0.0
    %6522 = vmatpush.msra.mxu0 0.0
    %6523 = vmatpush.msra.mxu0 0.0
    %6524 = vmatpush.msra.mxu0 0.0
    %6525 = vmatpush.msra.mxu0 0.0
    %6526 = vmatpush.msra.mxu0 0.0
    %6527 = vmatpush.msra.mxu0 0.0
    %6528 = vmatpush.msra.mxu0 0.0
    %6529 = vmatpush.msra.mxu0 0.0
    %6530 = vmatpush.msra.mxu0 0.0
    %6531 = vmatpush.msra.mxu0 0.0
    %6532 = vmatpush.msra.mxu0 0.0
    %6533 = vmatpush.msra.mxu0 0.0
    %6534 = vmatpush.msra.mxu0 0.0
    %v6535 = vand.u32 %v3759, 4294901760
    %6536 = vmatpush.msra.mxu0 %v6535
    %v6537 = vand.u32 %v6394, 4294901760
    %6538 = vmatmul.f32.gmra.mxu0 %v6537
    %v6539 = vpop.f32.mrf.mxu0
    %v6540 = vadd.f32 %v6518, %v6539
    %6541 = vdwg.mxu0
    %v6543 = vsel %vm4686, %v6034, 0
    %6545 = vmatpush.msra.mxu0 0.0
    %6546 = vmatpush.msra.mxu0 0.0
    %6547 = vmatpush.msra.mxu0 0.0
    %6548 = vmatpush.msra.mxu0 0.0
    %6549 = vmatpush.msra.mxu0 0.0
    %6550 = vmatpush.msra.mxu0 0.0
    %6551 = vmatpush.msra.mxu0 0.0
    %6552 = vmatpush.msra.mxu0 0.0
    %6553 = vmatpush.msra.mxu0 0.0
    %6554 = vmatpush.msra.mxu0 0.0
    %6555 = vmatpush.msra.mxu0 0.0
    %6556 = vmatpush.msra.mxu0 0.0
    %6557 = vmatpush.msra.mxu0 0.0
    %6558 = vmatpush.msra.mxu0 0.0
    %6559 = vmatpush.msra.mxu0 0.0
    %v6560 = vand.u32 %v3944, 4294901760
    %6561 = vmatpush.msra.mxu0 %v6560
    %v6562 = vand.u32 %v6543, 4294901760
    %v6563 = vsub.f32 %v6543, %v6562
    %v6564 = vand.u32 %v6563, 4294901760
    %v6565 = vsub.f32 %v6563, %v6564
    %v6566 = vand.u32 %v6565, 4294901760
    %6567 = vmatmul.f32.gmra.mxu0 %v6566
    %v6568 = vpop.f32.mrf.mxu0
    %v6569 = vadd.f32 0.0, %v6568
    %6570 = vdwg.mxu0
    %6571 = vmatpush.msra.mxu0 0.0
    %6572 = vmatpush.msra.mxu0 0.0
    %6573 = vmatpush.msra.mxu0 0.0
    %6574 = vmatpush.msra.mxu0 0.0
    %6575 = vmatpush.msra.mxu0 0.0
    %6576 = vmatpush.msra.mxu0 0.0
    %6577 = vmatpush.msra.mxu0 0.0
    %6578 = vmatpush.msra.mxu0 0.0
    %6579 = vmatpush.msra.mxu0 0.0
    %6580 = vmatpush.msra.mxu0 0.0
    %6581 = vmatpush.msra.mxu0 0.0
    %6582 = vmatpush.msra.mxu0 0.0
    %6583 = vmatpush.msra.mxu0 0.0
    %6584 = vmatpush.msra.mxu0 0.0
    %6585 = vmatpush.msra.mxu0 0.0
    %v6586 = vand.u32 %v3944, 4294901760
    %v6587 = vsub.f32 %v3944, %v6586
    %v6588 = vand.u32 %v6587, 4294901760
    %v6589 = vsub.f32 %v6587, %v6588
    %v6590 = vand.u32 %v6589, 4294901760
    %6591 = vmatpush.msra.mxu0 %v6590
    %v6592 = vand.u32 %v6543, 4294901760
    %6593 = vmatmul.f32.gmra.mxu0 %v6592
    %v6594 = vpop.f32.mrf.mxu0
    %v6595 = vadd.f32 %v6569, %v6594
    %6596 = vdwg.mxu0
    %6597 = vmatpush.msra.mxu0 0.0
    %6598 = vmatpush.msra.mxu0 0.0
    %6599 = vmatpush.msra.mxu0 0.0
    %6600 = vmatpush.msra.mxu0 0.0
    %6601 = vmatpush.msra.mxu0 0.0
    %6602 = vmatpush.msra.mxu0 0.0
    %6603 = vmatpush.msra.mxu0 0.0
    %6604 = vmatpush.msra.mxu0 0.0
    %6605 = vmatpush.msra.mxu0 0.0
    %6606 = vmatpush.msra.mxu0 0.0
    %6607 = vmatpush.msra.mxu0 0.0
    %6608 = vmatpush.msra.mxu0 0.0
    %6609 = vmatpush.msra.mxu0 0.0
    %6610 = vmatpush.msra.mxu0 0.0
    %6611 = vmatpush.msra.mxu0 0.0
    %v6612 = vand.u32 %v3944, 4294901760
    %v6613 = vsub.f32 %v3944, %v6612
    %6614 = vmatpush.msra.mxu0 %v6613
    %v6615 = vand.u32 %v6543, 4294901760
    %v6616 = vsub.f32 %v6543, %v6615
    %6617 = vmatmul.f32.gmra.mxu0 %v6616
    %v6618 = vpop.f32.mrf.mxu0
    %v6619 = vadd.f32 %v6595, %v6618
    %6620 = vdwg.mxu0
    %6621 = vmatpush.msra.mxu0 0.0
    %6622 = vmatpush.msra.mxu0 0.0
    %6623 = vmatpush.msra.mxu0 0.0
    %6624 = vmatpush.msra.mxu0 0.0
    %6625 = vmatpush.msra.mxu0 0.0
    %6626 = vmatpush.msra.mxu0 0.0
    %6627 = vmatpush.msra.mxu0 0.0
    %6628 = vmatpush.msra.mxu0 0.0
    %6629 = vmatpush.msra.mxu0 0.0
    %6630 = vmatpush.msra.mxu0 0.0
    %6631 = vmatpush.msra.mxu0 0.0
    %6632 = vmatpush.msra.mxu0 0.0
    %6633 = vmatpush.msra.mxu0 0.0
    %6634 = vmatpush.msra.mxu0 0.0
    %6635 = vmatpush.msra.mxu0 0.0
    %v6636 = vand.u32 %v3944, 4294901760
    %6637 = vmatpush.msra.mxu0 %v6636
    %v6638 = vand.u32 %v6543, 4294901760
    %v6639 = vsub.f32 %v6543, %v6638
    %v6640 = vand.u32 %v6639, 4294901760
    %6641 = vmatmul.f32.gmra.mxu0 %v6640
    %v6642 = vpop.f32.mrf.mxu0
    %v6643 = vadd.f32 %v6619, %v6642
    %6644 = vdwg.mxu0
    %6645 = vmatpush.msra.mxu0 0.0
    %6646 = vmatpush.msra.mxu0 0.0
    %6647 = vmatpush.msra.mxu0 0.0
    %6648 = vmatpush.msra.mxu0 0.0
    %6649 = vmatpush.msra.mxu0 0.0
    %6650 = vmatpush.msra.mxu0 0.0
    %6651 = vmatpush.msra.mxu0 0.0
    %6652 = vmatpush.msra.mxu0 0.0
    %6653 = vmatpush.msra.mxu0 0.0
    %6654 = vmatpush.msra.mxu0 0.0
    %6655 = vmatpush.msra.mxu0 0.0
    %6656 = vmatpush.msra.mxu0 0.0
    %6657 = vmatpush.msra.mxu0 0.0
    %6658 = vmatpush.msra.mxu0 0.0
    %6659 = vmatpush.msra.mxu0 0.0
    %v6660 = vand.u32 %v3944, 4294901760
    %v6661 = vsub.f32 %v3944, %v6660
    %v6662 = vand.u32 %v6661, 4294901760
    %6663 = vmatpush.msra.mxu0 %v6662
    %v6664 = vand.u32 %v6543, 4294901760
    %6665 = vmatmul.f32.gmra.mxu0 %v6664
    %v6666 = vpop.f32.mrf.mxu0
    %v6667 = vadd.f32 %v6643, %v6666
    %6668 = vdwg.mxu0
    %6669 = vmatpush.msra.mxu0 0.0
    %6670 = vmatpush.msra.mxu0 0.0
    %6671 = vmatpush.msra.mxu0 0.0
    %6672 = vmatpush.msra.mxu0 0.0
    %6673 = vmatpush.msra.mxu0 0.0
    %6674 = vmatpush.msra.mxu0 0.0
    %6675 = vmatpush.msra.mxu0 0.0
    %6676 = vmatpush.msra.mxu0 0.0
    %6677 = vmatpush.msra.mxu0 0.0
    %6678 = vmatpush.msra.mxu0 0.0
    %6679 = vmatpush.msra.mxu0 0.0
    %6680 = vmatpush.msra.mxu0 0.0
    %6681 = vmatpush.msra.mxu0 0.0
    %6682 = vmatpush.msra.mxu0 0.0
    %6683 = vmatpush.msra.mxu0 0.0
    %v6684 = vand.u32 %v3944, 4294901760
    %6685 = vmatpush.msra.mxu0 %v6684
    %v6686 = vand.u32 %v6543, 4294901760
    %6687 = vmatmul.f32.gmra.mxu0 %v6686
    %v6688 = vpop.f32.mrf.mxu0
    %v6689 = vadd.f32 %v6667, %v6688
    %6690 = vdwg.mxu0
    %v6692 = vsel %vm4686, %v6049, 0
    %6694 = vmatpush.msra.mxu0 0.0
    %6695 = vmatpush.msra.mxu0 0.0
    %6696 = vmatpush.msra.mxu0 0.0
    %6697 = vmatpush.msra.mxu0 0.0
    %6698 = vmatpush.msra.mxu0 0.0
    %6699 = vmatpush.msra.mxu0 0.0
    %6700 = vmatpush.msra.mxu0 0.0
    %6701 = vmatpush.msra.mxu0 0.0
    %6702 = vmatpush.msra.mxu0 0.0
    %6703 = vmatpush.msra.mxu0 0.0
    %6704 = vmatpush.msra.mxu0 0.0
    %6705 = vmatpush.msra.mxu0 0.0
    %6706 = vmatpush.msra.mxu0 0.0
    %6707 = vmatpush.msra.mxu0 0.0
    %6708 = vmatpush.msra.mxu0 0.0
    %v6709 = vand.u32 %v4129, 4294901760
    %6710 = vmatpush.msra.mxu0 %v6709
    %v6711 = vand.u32 %v6692, 4294901760
    %v6712 = vsub.f32 %v6692, %v6711
    %v6713 = vand.u32 %v6712, 4294901760
    %v6714 = vsub.f32 %v6712, %v6713
    %v6715 = vand.u32 %v6714, 4294901760
    %6716 = vmatmul.f32.gmra.mxu0 %v6715
    %v6717 = vpop.f32.mrf.mxu0
    %v6718 = vadd.f32 0.0, %v6717
    %6719 = vdwg.mxu0
    %6720 = vmatpush.msra.mxu0 0.0
    %6721 = vmatpush.msra.mxu0 0.0
    %6722 = vmatpush.msra.mxu0 0.0
    %6723 = vmatpush.msra.mxu0 0.0
    %6724 = vmatpush.msra.mxu0 0.0
    %6725 = vmatpush.msra.mxu0 0.0
    %6726 = vmatpush.msra.mxu0 0.0
    %6727 = vmatpush.msra.mxu0 0.0
    %6728 = vmatpush.msra.mxu0 0.0
    %6729 = vmatpush.msra.mxu0 0.0
    %6730 = vmatpush.msra.mxu0 0.0
    %6731 = vmatpush.msra.mxu0 0.0
    %6732 = vmatpush.msra.mxu0 0.0
    %6733 = vmatpush.msra.mxu0 0.0
    %6734 = vmatpush.msra.mxu0 0.0
    %v6735 = vand.u32 %v4129, 4294901760
    %v6736 = vsub.f32 %v4129, %v6735
    %v6737 = vand.u32 %v6736, 4294901760
    %v6738 = vsub.f32 %v6736, %v6737
    %v6739 = vand.u32 %v6738, 4294901760
    %6740 = vmatpush.msra.mxu0 %v6739
    %v6741 = vand.u32 %v6692, 4294901760
    %6742 = vmatmul.f32.gmra.mxu0 %v6741
    %v6743 = vpop.f32.mrf.mxu0
    %v6744 = vadd.f32 %v6718, %v6743
    %6745 = vdwg.mxu0
    %6746 = vmatpush.msra.mxu0 0.0
    %6747 = vmatpush.msra.mxu0 0.0
    %6748 = vmatpush.msra.mxu0 0.0
    %6749 = vmatpush.msra.mxu0 0.0
    %6750 = vmatpush.msra.mxu0 0.0
    %6751 = vmatpush.msra.mxu0 0.0
    %6752 = vmatpush.msra.mxu0 0.0
    %6753 = vmatpush.msra.mxu0 0.0
    %6754 = vmatpush.msra.mxu0 0.0
    %6755 = vmatpush.msra.mxu0 0.0
    %6756 = vmatpush.msra.mxu0 0.0
    %6757 = vmatpush.msra.mxu0 0.0
    %6758 = vmatpush.msra.mxu0 0.0
    %6759 = vmatpush.msra.mxu0 0.0
    %6760 = vmatpush.msra.mxu0 0.0
    %v6761 = vand.u32 %v4129, 4294901760
    %v6762 = vsub.f32 %v4129, %v6761
    %6763 = vmatpush.msra.mxu0 %v6762
    %v6764 = vand.u32 %v6692, 4294901760
    %v6765 = vsub.f32 %v6692, %v6764
    %6766 = vmatmul.f32.gmra.mxu0 %v6765
    %v6767 = vpop.f32.mrf.mxu0
    %v6768 = vadd.f32 %v6744, %v6767
    %6769 = vdwg.mxu0
    %6770 = vmatpush.msra.mxu0 0.0
    %6771 = vmatpush.msra.mxu0 0.0
    %6772 = vmatpush.msra.mxu0 0.0
    %6773 = vmatpush.msra.mxu0 0.0
    %6774 = vmatpush.msra.mxu0 0.0
    %6775 = vmatpush.msra.mxu0 0.0
    %6776 = vmatpush.msra.mxu0 0.0
    %6777 = vmatpush.msra.mxu0 0.0
    %6778 = vmatpush.msra.mxu0 0.0
    %6779 = vmatpush.msra.mxu0 0.0
    %6780 = vmatpush.msra.mxu0 0.0
    %6781 = vmatpush.msra.mxu0 0.0
    %6782 = vmatpush.msra.mxu0 0.0
    %6783 = vmatpush.msra.mxu0 0.0
    %6784 = vmatpush.msra.mxu0 0.0
    %v6785 = vand.u32 %v4129, 4294901760
    %6786 = vmatpush.msra.mxu0 %v6785
    %v6787 = vand.u32 %v6692, 4294901760
    %v6788 = vsub.f32 %v6692, %v6787
    %v6789 = vand.u32 %v6788, 4294901760
    %6790 = vmatmul.f32.gmra.mxu0 %v6789
    %v6791 = vpop.f32.mrf.mxu0
    %v6792 = vadd.f32 %v6768, %v6791
    %6793 = vdwg.mxu0
    %6794 = vmatpush.msra.mxu0 0.0
    %6795 = vmatpush.msra.mxu0 0.0
    %6796 = vmatpush.msra.mxu0 0.0
    %6797 = vmatpush.msra.mxu0 0.0
    %6798 = vmatpush.msra.mxu0 0.0
    %6799 = vmatpush.msra.mxu0 0.0
    %6800 = vmatpush.msra.mxu0 0.0
    %6801 = vmatpush.msra.mxu0 0.0
    %6802 = vmatpush.msra.mxu0 0.0
    %6803 = vmatpush.msra.mxu0 0.0
    %6804 = vmatpush.msra.mxu0 0.0
    %6805 = vmatpush.msra.mxu0 0.0
    %6806 = vmatpush.msra.mxu0 0.0
    %6807 = vmatpush.msra.mxu0 0.0
    %6808 = vmatpush.msra.mxu0 0.0
    %v6809 = vand.u32 %v4129, 4294901760
    %v6810 = vsub.f32 %v4129, %v6809
    %v6811 = vand.u32 %v6810, 4294901760
    %6812 = vmatpush.msra.mxu0 %v6811
    %v6813 = vand.u32 %v6692, 4294901760
    %6814 = vmatmul.f32.gmra.mxu0 %v6813
    %v6815 = vpop.f32.mrf.mxu0
    %v6816 = vadd.f32 %v6792, %v6815
    %6817 = vdwg.mxu0
    %6818 = vmatpush.msra.mxu0 0.0
    %6819 = vmatpush.msra.mxu0 0.0
    %6820 = vmatpush.msra.mxu0 0.0
    %6821 = vmatpush.msra.mxu0 0.0
    %6822 = vmatpush.msra.mxu0 0.0
    %6823 = vmatpush.msra.mxu0 0.0
    %6824 = vmatpush.msra.mxu0 0.0
    %6825 = vmatpush.msra.mxu0 0.0
    %6826 = vmatpush.msra.mxu0 0.0
    %6827 = vmatpush.msra.mxu0 0.0
    %6828 = vmatpush.msra.mxu0 0.0
    %6829 = vmatpush.msra.mxu0 0.0
    %6830 = vmatpush.msra.mxu0 0.0
    %6831 = vmatpush.msra.mxu0 0.0
    %6832 = vmatpush.msra.mxu0 0.0
    %v6833 = vand.u32 %v4129, 4294901760
    %6834 = vmatpush.msra.mxu0 %v6833
    %v6835 = vand.u32 %v6692, 4294901760
    %6836 = vmatmul.f32.gmra.mxu0 %v6835
    %v6837 = vpop.f32.mrf.mxu0
    %v6838 = vadd.f32 %v6816, %v6837
    %6839 = vdwg.mxu0
    %v6841 = vsel %vm4686, %v6064, 0
    %6843 = vmatpush.msra.mxu0 0.0
    %6844 = vmatpush.msra.mxu0 0.0
    %6845 = vmatpush.msra.mxu0 0.0
    %6846 = vmatpush.msra.mxu0 0.0
    %6847 = vmatpush.msra.mxu0 0.0
    %6848 = vmatpush.msra.mxu0 0.0
    %6849 = vmatpush.msra.mxu0 0.0
    %6850 = vmatpush.msra.mxu0 0.0
    %6851 = vmatpush.msra.mxu0 0.0
    %6852 = vmatpush.msra.mxu0 0.0
    %6853 = vmatpush.msra.mxu0 0.0
    %6854 = vmatpush.msra.mxu0 0.0
    %6855 = vmatpush.msra.mxu0 0.0
    %6856 = vmatpush.msra.mxu0 0.0
    %6857 = vmatpush.msra.mxu0 0.0
    %v6858 = vand.u32 %v4314, 4294901760
    %6859 = vmatpush.msra.mxu0 %v6858
    %v6860 = vand.u32 %v6841, 4294901760
    %v6861 = vsub.f32 %v6841, %v6860
    %v6862 = vand.u32 %v6861, 4294901760
    %v6863 = vsub.f32 %v6861, %v6862
    %v6864 = vand.u32 %v6863, 4294901760
    %6865 = vmatmul.f32.gmra.mxu0 %v6864
    %v6866 = vpop.f32.mrf.mxu0
    %v6867 = vadd.f32 0.0, %v6866
    %6868 = vdwg.mxu0
    %6869 = vmatpush.msra.mxu0 0.0
    %6870 = vmatpush.msra.mxu0 0.0
    %6871 = vmatpush.msra.mxu0 0.0
    %6872 = vmatpush.msra.mxu0 0.0
    %6873 = vmatpush.msra.mxu0 0.0
    %6874 = vmatpush.msra.mxu0 0.0
    %6875 = vmatpush.msra.mxu0 0.0
    %6876 = vmatpush.msra.mxu0 0.0
    %6877 = vmatpush.msra.mxu0 0.0
    %6878 = vmatpush.msra.mxu0 0.0
    %6879 = vmatpush.msra.mxu0 0.0
    %6880 = vmatpush.msra.mxu0 0.0
    %6881 = vmatpush.msra.mxu0 0.0
    %6882 = vmatpush.msra.mxu0 0.0
    %6883 = vmatpush.msra.mxu0 0.0
    %v6884 = vand.u32 %v4314, 4294901760
    %v6885 = vsub.f32 %v4314, %v6884
    %v6886 = vand.u32 %v6885, 4294901760
    %v6887 = vsub.f32 %v6885, %v6886
    %v6888 = vand.u32 %v6887, 4294901760
    %6889 = vmatpush.msra.mxu0 %v6888
    %v6890 = vand.u32 %v6841, 4294901760
    %6891 = vmatmul.f32.gmra.mxu0 %v6890
    %v6892 = vpop.f32.mrf.mxu0
    %v6893 = vadd.f32 %v6867, %v6892
    %6894 = vdwg.mxu0
    %6895 = vmatpush.msra.mxu0 0.0
    %6896 = vmatpush.msra.mxu0 0.0
    %6897 = vmatpush.msra.mxu0 0.0
    %6898 = vmatpush.msra.mxu0 0.0
    %6899 = vmatpush.msra.mxu0 0.0
    %6900 = vmatpush.msra.mxu0 0.0
    %6901 = vmatpush.msra.mxu0 0.0
    %6902 = vmatpush.msra.mxu0 0.0
    %6903 = vmatpush.msra.mxu0 0.0
    %6904 = vmatpush.msra.mxu0 0.0
    %6905 = vmatpush.msra.mxu0 0.0
    %6906 = vmatpush.msra.mxu0 0.0
    %6907 = vmatpush.msra.mxu0 0.0
    %6908 = vmatpush.msra.mxu0 0.0
    %6909 = vmatpush.msra.mxu0 0.0
    %v6910 = vand.u32 %v4314, 4294901760
    %v6911 = vsub.f32 %v4314, %v6910
    %6912 = vmatpush.msra.mxu0 %v6911
    %v6913 = vand.u32 %v6841, 4294901760
    %v6914 = vsub.f32 %v6841, %v6913
    %6915 = vmatmul.f32.gmra.mxu0 %v6914
    %v6916 = vpop.f32.mrf.mxu0
    %v6917 = vadd.f32 %v6893, %v6916
    %6918 = vdwg.mxu0
    %6919 = vmatpush.msra.mxu0 0.0
    %6920 = vmatpush.msra.mxu0 0.0
    %6921 = vmatpush.msra.mxu0 0.0
    %6922 = vmatpush.msra.mxu0 0.0
    %6923 = vmatpush.msra.mxu0 0.0
    %6924 = vmatpush.msra.mxu0 0.0
    %6925 = vmatpush.msra.mxu0 0.0
    %6926 = vmatpush.msra.mxu0 0.0
    %6927 = vmatpush.msra.mxu0 0.0
    %6928 = vmatpush.msra.mxu0 0.0
    %6929 = vmatpush.msra.mxu0 0.0
    %6930 = vmatpush.msra.mxu0 0.0
    %6931 = vmatpush.msra.mxu0 0.0
    %6932 = vmatpush.msra.mxu0 0.0
    %6933 = vmatpush.msra.mxu0 0.0
    %v6934 = vand.u32 %v4314, 4294901760
    %6935 = vmatpush.msra.mxu0 %v6934
    %v6936 = vand.u32 %v6841, 4294901760
    %v6937 = vsub.f32 %v6841, %v6936
    %v6938 = vand.u32 %v6937, 4294901760
    %6939 = vmatmul.f32.gmra.mxu0 %v6938
    %v6940 = vpop.f32.mrf.mxu0
    %v6941 = vadd.f32 %v6917, %v6940
    %6942 = vdwg.mxu0
    %6943 = vmatpush.msra.mxu0 0.0
    %6944 = vmatpush.msra.mxu0 0.0
    %6945 = vmatpush.msra.mxu0 0.0
    %6946 = vmatpush.msra.mxu0 0.0
    %6947 = vmatpush.msra.mxu0 0.0
    %6948 = vmatpush.msra.mxu0 0.0
    %6949 = vmatpush.msra.mxu0 0.0
    %6950 = vmatpush.msra.mxu0 0.0
    %6951 = vmatpush.msra.mxu0 0.0
    %6952 = vmatpush.msra.mxu0 0.0
    %6953 = vmatpush.msra.mxu0 0.0
    %6954 = vmatpush.msra.mxu0 0.0
    %6955 = vmatpush.msra.mxu0 0.0
    %6956 = vmatpush.msra.mxu0 0.0
    %6957 = vmatpush.msra.mxu0 0.0
    %v6958 = vand.u32 %v4314, 4294901760
    %v6959 = vsub.f32 %v4314, %v6958
    %v6960 = vand.u32 %v6959, 4294901760
    %6961 = vmatpush.msra.mxu0 %v6960
    %v6962 = vand.u32 %v6841, 4294901760
    %6963 = vmatmul.f32.gmra.mxu0 %v6962
    %v6964 = vpop.f32.mrf.mxu0
    %v6965 = vadd.f32 %v6941, %v6964
    %6966 = vdwg.mxu0
    %6967 = vmatpush.msra.mxu0 0.0
    %6968 = vmatpush.msra.mxu0 0.0
    %6969 = vmatpush.msra.mxu0 0.0
    %6970 = vmatpush.msra.mxu0 0.0
    %6971 = vmatpush.msra.mxu0 0.0
    %6972 = vmatpush.msra.mxu0 0.0
    %6973 = vmatpush.msra.mxu0 0.0
    %6974 = vmatpush.msra.mxu0 0.0
    %6975 = vmatpush.msra.mxu0 0.0
    %6976 = vmatpush.msra.mxu0 0.0
    %6977 = vmatpush.msra.mxu0 0.0
    %6978 = vmatpush.msra.mxu0 0.0
    %6979 = vmatpush.msra.mxu0 0.0
    %6980 = vmatpush.msra.mxu0 0.0
    %6981 = vmatpush.msra.mxu0 0.0
    %v6982 = vand.u32 %v4314, 4294901760
    %6983 = vmatpush.msra.mxu0 %v6982
    %v6984 = vand.u32 %v6841, 4294901760
    %6985 = vmatmul.f32.gmra.mxu0 %v6984
    %v6986 = vpop.f32.mrf.mxu0
    %v6987 = vadd.f32 %v6965, %v6986
    %6988 = vdwg.mxu0
    %v6990 = vsel %vm4686, %v6079, 0
    %6992 = vmatpush.msra.mxu0 0.0
    %6993 = vmatpush.msra.mxu0 0.0
    %6994 = vmatpush.msra.mxu0 0.0
    %6995 = vmatpush.msra.mxu0 0.0
    %6996 = vmatpush.msra.mxu0 0.0
    %6997 = vmatpush.msra.mxu0 0.0
    %6998 = vmatpush.msra.mxu0 0.0
    %6999 = vmatpush.msra.mxu0 0.0
    %7000 = vmatpush.msra.mxu0 0.0
    %7001 = vmatpush.msra.mxu0 0.0
    %7002 = vmatpush.msra.mxu0 0.0
    %7003 = vmatpush.msra.mxu0 0.0
    %7004 = vmatpush.msra.mxu0 0.0
    %7005 = vmatpush.msra.mxu0 0.0
    %7006 = vmatpush.msra.mxu0 0.0
    %v7007 = vand.u32 %v4499, 4294901760
    %7008 = vmatpush.msra.mxu0 %v7007
    %v7009 = vand.u32 %v6990, 4294901760
    %v7010 = vsub.f32 %v6990, %v7009
    %v7011 = vand.u32 %v7010, 4294901760
    %v7012 = vsub.f32 %v7010, %v7011
    %v7013 = vand.u32 %v7012, 4294901760
    %7014 = vmatmul.f32.gmra.mxu0 %v7013
    %v7015 = vpop.f32.mrf.mxu0
    %v7016 = vadd.f32 0.0, %v7015
    %7017 = vdwg.mxu0
    %7018 = vmatpush.msra.mxu0 0.0
    %7019 = vmatpush.msra.mxu0 0.0
    %7020 = vmatpush.msra.mxu0 0.0
    %7021 = vmatpush.msra.mxu0 0.0
    %7022 = vmatpush.msra.mxu0 0.0
    %7023 = vmatpush.msra.mxu0 0.0
    %7024 = vmatpush.msra.mxu0 0.0
    %7025 = vmatpush.msra.mxu0 0.0
    %7026 = vmatpush.msra.mxu0 0.0
    %7027 = vmatpush.msra.mxu0 0.0
    %7028 = vmatpush.msra.mxu0 0.0
    %7029 = vmatpush.msra.mxu0 0.0
    %7030 = vmatpush.msra.mxu0 0.0
    %7031 = vmatpush.msra.mxu0 0.0
    %7032 = vmatpush.msra.mxu0 0.0
    %v7033 = vand.u32 %v4499, 4294901760
    %v7034 = vsub.f32 %v4499, %v7033
    %v7035 = vand.u32 %v7034, 4294901760
    %v7036 = vsub.f32 %v7034, %v7035
    %v7037 = vand.u32 %v7036, 4294901760
    %7038 = vmatpush.msra.mxu0 %v7037
    %v7039 = vand.u32 %v6990, 4294901760
    %7040 = vmatmul.f32.gmra.mxu0 %v7039
    %v7041 = vpop.f32.mrf.mxu0
    %v7042 = vadd.f32 %v7016, %v7041
    %7043 = vdwg.mxu0
    %7044 = vmatpush.msra.mxu0 0.0
    %7045 = vmatpush.msra.mxu0 0.0
    %7046 = vmatpush.msra.mxu0 0.0
    %7047 = vmatpush.msra.mxu0 0.0
    %7048 = vmatpush.msra.mxu0 0.0
    %7049 = vmatpush.msra.mxu0 0.0
    %7050 = vmatpush.msra.mxu0 0.0
    %7051 = vmatpush.msra.mxu0 0.0
    %7052 = vmatpush.msra.mxu0 0.0
    %7053 = vmatpush.msra.mxu0 0.0
    %7054 = vmatpush.msra.mxu0 0.0
    %7055 = vmatpush.msra.mxu0 0.0
    %7056 = vmatpush.msra.mxu0 0.0
    %7057 = vmatpush.msra.mxu0 0.0
    %7058 = vmatpush.msra.mxu0 0.0
    %v7059 = vand.u32 %v4499, 4294901760
    %v7060 = vsub.f32 %v4499, %v7059
    %7061 = vmatpush.msra.mxu0 %v7060
    %v7062 = vand.u32 %v6990, 4294901760
    %v7063 = vsub.f32 %v6990, %v7062
    %7064 = vmatmul.f32.gmra.mxu0 %v7063
    %v7065 = vpop.f32.mrf.mxu0
    %v7066 = vadd.f32 %v7042, %v7065
    %7067 = vdwg.mxu0
    %7068 = vmatpush.msra.mxu0 0.0
    %7069 = vmatpush.msra.mxu0 0.0
    %7070 = vmatpush.msra.mxu0 0.0
    %7071 = vmatpush.msra.mxu0 0.0
    %7072 = vmatpush.msra.mxu0 0.0
    %7073 = vmatpush.msra.mxu0 0.0
    %7074 = vmatpush.msra.mxu0 0.0
    %7075 = vmatpush.msra.mxu0 0.0
    %7076 = vmatpush.msra.mxu0 0.0
    %7077 = vmatpush.msra.mxu0 0.0
    %7078 = vmatpush.msra.mxu0 0.0
    %7079 = vmatpush.msra.mxu0 0.0
    %7080 = vmatpush.msra.mxu0 0.0
    %7081 = vmatpush.msra.mxu0 0.0
    %7082 = vmatpush.msra.mxu0 0.0
    %v7083 = vand.u32 %v4499, 4294901760
    %7084 = vmatpush.msra.mxu0 %v7083
    %v7085 = vand.u32 %v6990, 4294901760
    %v7086 = vsub.f32 %v6990, %v7085
    %v7087 = vand.u32 %v7086, 4294901760
    %7088 = vmatmul.f32.gmra.mxu0 %v7087
    %v7089 = vpop.f32.mrf.mxu0
    %v7090 = vadd.f32 %v7066, %v7089
    %7091 = vdwg.mxu0
    %7092 = vmatpush.msra.mxu0 0.0
    %7093 = vmatpush.msra.mxu0 0.0
    %7094 = vmatpush.msra.mxu0 0.0
    %7095 = vmatpush.msra.mxu0 0.0
    %7096 = vmatpush.msra.mxu0 0.0
    %7097 = vmatpush.msra.mxu0 0.0
    %7098 = vmatpush.msra.mxu0 0.0
    %7099 = vmatpush.msra.mxu0 0.0
    %7100 = vmatpush.msra.mxu0 0.0
    %7101 = vmatpush.msra.mxu0 0.0
    %7102 = vmatpush.msra.mxu0 0.0
    %7103 = vmatpush.msra.mxu0 0.0
    %7104 = vmatpush.msra.mxu0 0.0
    %7105 = vmatpush.msra.mxu0 0.0
    %7106 = vmatpush.msra.mxu0 0.0
    %v7107 = vand.u32 %v4499, 4294901760
    %v7108 = vsub.f32 %v4499, %v7107
    %v7109 = vand.u32 %v7108, 4294901760
    %7110 = vmatpush.msra.mxu0 %v7109
    %v7111 = vand.u32 %v6990, 4294901760
    %7112 = vmatmul.f32.gmra.mxu0 %v7111
    %v7113 = vpop.f32.mrf.mxu0
    %v7114 = vadd.f32 %v7090, %v7113
    %7115 = vdwg.mxu0
    %7116 = vmatpush.msra.mxu0 0.0
    %7117 = vmatpush.msra.mxu0 0.0
    %7118 = vmatpush.msra.mxu0 0.0
    %7119 = vmatpush.msra.mxu0 0.0
    %7120 = vmatpush.msra.mxu0 0.0
    %7121 = vmatpush.msra.mxu0 0.0
    %7122 = vmatpush.msra.mxu0 0.0
    %7123 = vmatpush.msra.mxu0 0.0
    %7124 = vmatpush.msra.mxu0 0.0
    %7125 = vmatpush.msra.mxu0 0.0
    %7126 = vmatpush.msra.mxu0 0.0
    %7127 = vmatpush.msra.mxu0 0.0
    %7128 = vmatpush.msra.mxu0 0.0
    %7129 = vmatpush.msra.mxu0 0.0
    %7130 = vmatpush.msra.mxu0 0.0
    %v7131 = vand.u32 %v4499, 4294901760
    %7132 = vmatpush.msra.mxu0 %v7131
    %v7133 = vand.u32 %v6990, 4294901760
    %7134 = vmatmul.f32.gmra.mxu0 %v7133
    %v7135 = vpop.f32.mrf.mxu0
    %v7136 = vadd.f32 %v7114, %v7135
    %7137 = vdwg.mxu0
    %v7139 = vsel %vm4686, %v6094, 0
    %7141 = vmatpush.msra.mxu0 0.0
    %7142 = vmatpush.msra.mxu0 0.0
    %7143 = vmatpush.msra.mxu0 0.0
    %7144 = vmatpush.msra.mxu0 0.0
    %7145 = vmatpush.msra.mxu0 0.0
    %7146 = vmatpush.msra.mxu0 0.0
    %7147 = vmatpush.msra.mxu0 0.0
    %7148 = vmatpush.msra.mxu0 0.0
    %7149 = vmatpush.msra.mxu0 0.0
    %7150 = vmatpush.msra.mxu0 0.0
    %7151 = vmatpush.msra.mxu0 0.0
    %7152 = vmatpush.msra.mxu0 0.0
    %7153 = vmatpush.msra.mxu0 0.0
    %7154 = vmatpush.msra.mxu0 0.0
    %7155 = vmatpush.msra.mxu0 0.0
    %v7156 = vand.u32 %v4684, 4294901760
    %7157 = vmatpush.msra.mxu0 %v7156
    %v7158 = vand.u32 %v7139, 4294901760
    %v7159 = vsub.f32 %v7139, %v7158
    %v7160 = vand.u32 %v7159, 4294901760
    %v7161 = vsub.f32 %v7159, %v7160
    %v7162 = vand.u32 %v7161, 4294901760
    %7163 = vmatmul.f32.gmra.mxu0 %v7162
    %v7164 = vpop.f32.mrf.mxu0
    %v7165 = vadd.f32 0.0, %v7164
    %7166 = vdwg.mxu0
    %7167 = vmatpush.msra.mxu0 0.0
    %7168 = vmatpush.msra.mxu0 0.0
    %7169 = vmatpush.msra.mxu0 0.0
    %7170 = vmatpush.msra.mxu0 0.0
    %7171 = vmatpush.msra.mxu0 0.0
    %7172 = vmatpush.msra.mxu0 0.0
    %7173 = vmatpush.msra.mxu0 0.0
    %7174 = vmatpush.msra.mxu0 0.0
    %7175 = vmatpush.msra.mxu0 0.0
    %7176 = vmatpush.msra.mxu0 0.0
    %7177 = vmatpush.msra.mxu0 0.0
    %7178 = vmatpush.msra.mxu0 0.0
    %7179 = vmatpush.msra.mxu0 0.0
    %7180 = vmatpush.msra.mxu0 0.0
    %7181 = vmatpush.msra.mxu0 0.0
    %v7182 = vand.u32 %v4684, 4294901760
    %v7183 = vsub.f32 %v4684, %v7182
    %v7184 = vand.u32 %v7183, 4294901760
    %v7185 = vsub.f32 %v7183, %v7184
    %v7186 = vand.u32 %v7185, 4294901760
    %7187 = vmatpush.msra.mxu0 %v7186
    %v7188 = vand.u32 %v7139, 4294901760
    %7189 = vmatmul.f32.gmra.mxu0 %v7188
    %v7190 = vpop.f32.mrf.mxu0
    %v7191 = vadd.f32 %v7165, %v7190
    %7192 = vdwg.mxu0
    %7193 = vmatpush.msra.mxu0 0.0
    %7194 = vmatpush.msra.mxu0 0.0
    %7195 = vmatpush.msra.mxu0 0.0
    %7196 = vmatpush.msra.mxu0 0.0
    %7197 = vmatpush.msra.mxu0 0.0
    %7198 = vmatpush.msra.mxu0 0.0
    %7199 = vmatpush.msra.mxu0 0.0
    %7200 = vmatpush.msra.mxu0 0.0
    %7201 = vmatpush.msra.mxu0 0.0
    %7202 = vmatpush.msra.mxu0 0.0
    %7203 = vmatpush.msra.mxu0 0.0
    %7204 = vmatpush.msra.mxu0 0.0
    %7205 = vmatpush.msra.mxu0 0.0
    %7206 = vmatpush.msra.mxu0 0.0
    %7207 = vmatpush.msra.mxu0 0.0
    %v7208 = vand.u32 %v4684, 4294901760
    %v7209 = vsub.f32 %v4684, %v7208
    %7210 = vmatpush.msra.mxu0 %v7209
    %v7211 = vand.u32 %v7139, 4294901760
    %v7212 = vsub.f32 %v7139, %v7211
    %7213 = vmatmul.f32.gmra.mxu0 %v7212
    %v7214 = vpop.f32.mrf.mxu0
    %v7215 = vadd.f32 %v7191, %v7214
    %7216 = vdwg.mxu0
    %7217 = vmatpush.msra.mxu0 0.0
    %7218 = vmatpush.msra.mxu0 0.0
    %7219 = vmatpush.msra.mxu0 0.0
    %7220 = vmatpush.msra.mxu0 0.0
    %7221 = vmatpush.msra.mxu0 0.0
    %7222 = vmatpush.msra.mxu0 0.0
    %7223 = vmatpush.msra.mxu0 0.0
    %7224 = vmatpush.msra.mxu0 0.0
    %7225 = vmatpush.msra.mxu0 0.0
    %7226 = vmatpush.msra.mxu0 0.0
    %7227 = vmatpush.msra.mxu0 0.0
    %7228 = vmatpush.msra.mxu0 0.0
    %7229 = vmatpush.msra.mxu0 0.0
    %7230 = vmatpush.msra.mxu0 0.0
    %7231 = vmatpush.msra.mxu0 0.0
    %v7232 = vand.u32 %v4684, 4294901760
    %7233 = vmatpush.msra.mxu0 %v7232
    %v7234 = vand.u32 %v7139, 4294901760
    %v7235 = vsub.f32 %v7139, %v7234
    %v7236 = vand.u32 %v7235, 4294901760
    %7237 = vmatmul.f32.gmra.mxu0 %v7236
    %v7238 = vpop.f32.mrf.mxu0
    %v7239 = vadd.f32 %v7215, %v7238
    %7240 = vdwg.mxu0
    %7241 = vmatpush.msra.mxu0 0.0
    %7242 = vmatpush.msra.mxu0 0.0
    %7243 = vmatpush.msra.mxu0 0.0
    %7244 = vmatpush.msra.mxu0 0.0
    %7245 = vmatpush.msra.mxu0 0.0
    %7246 = vmatpush.msra.mxu0 0.0
    %7247 = vmatpush.msra.mxu0 0.0
    %7248 = vmatpush.msra.mxu0 0.0
    %7249 = vmatpush.msra.mxu0 0.0
    %7250 = vmatpush.msra.mxu0 0.0
    %7251 = vmatpush.msra.mxu0 0.0
    %7252 = vmatpush.msra.mxu0 0.0
    %7253 = vmatpush.msra.mxu0 0.0
    %7254 = vmatpush.msra.mxu0 0.0
    %7255 = vmatpush.msra.mxu0 0.0
    %v7256 = vand.u32 %v4684, 4294901760
    %v7257 = vsub.f32 %v4684, %v7256
    %v7258 = vand.u32 %v7257, 4294901760
    %7259 = vmatpush.msra.mxu0 %v7258
    %v7260 = vand.u32 %v7139, 4294901760
    %7261 = vmatmul.f32.gmra.mxu0 %v7260
    %v7262 = vpop.f32.mrf.mxu0
    %v7263 = vadd.f32 %v7239, %v7262
    %7264 = vdwg.mxu0
    %7265 = vmatpush.msra.mxu0 0.0
    %7266 = vmatpush.msra.mxu0 0.0
    %7267 = vmatpush.msra.mxu0 0.0
    %7268 = vmatpush.msra.mxu0 0.0
    %7269 = vmatpush.msra.mxu0 0.0
    %7270 = vmatpush.msra.mxu0 0.0
    %7271 = vmatpush.msra.mxu0 0.0
    %7272 = vmatpush.msra.mxu0 0.0
    %7273 = vmatpush.msra.mxu0 0.0
    %7274 = vmatpush.msra.mxu0 0.0
    %7275 = vmatpush.msra.mxu0 0.0
    %7276 = vmatpush.msra.mxu0 0.0
    %7277 = vmatpush.msra.mxu0 0.0
    %7278 = vmatpush.msra.mxu0 0.0
    %7279 = vmatpush.msra.mxu0 0.0
    %v7280 = vand.u32 %v4684, 4294901760
    %7281 = vmatpush.msra.mxu0 %v7280
    %v7282 = vand.u32 %v7139, 4294901760
    %7283 = vmatmul.f32.gmra.mxu0 %v7282
    %v7284 = vpop.f32.mrf.mxu0
    %v7285 = vadd.f32 %v7263, %v7284
    %7286 = vdwg.mxu0
    %v7288 = vsel %vm4686, %v6242, 0
    %7290 = vmatpush.msra.mxu0 0.0
    %7291 = vmatpush.msra.mxu0 0.0
    %7292 = vmatpush.msra.mxu0 0.0
    %7293 = vmatpush.msra.mxu0 0.0
    %7294 = vmatpush.msra.mxu0 0.0
    %7295 = vmatpush.msra.mxu0 0.0
    %7296 = vmatpush.msra.mxu0 0.0
    %7297 = vmatpush.msra.mxu0 0.0
    %7298 = vmatpush.msra.mxu0 0.0
    %7299 = vmatpush.msra.mxu0 0.0
    %7300 = vmatpush.msra.mxu0 0.0
    %7301 = vmatpush.msra.mxu0 0.0
    %7302 = vmatpush.msra.mxu0 0.0
    %7303 = vmatpush.msra.mxu0 0.0
    %7304 = vmatpush.msra.mxu0 0.0
    %v7305 = vand.u32 %v158, 4294901760
    %7306 = vmatpush.msra.mxu0 %v7305
    %v7307 = vand.u32 %v7288, 4294901760
    %v7308 = vsub.f32 %v7288, %v7307
    %v7309 = vand.u32 %v7308, 4294901760
    %v7310 = vsub.f32 %v7308, %v7309
    %v7311 = vand.u32 %v7310, 4294901760
    %7312 = vmatmul.f32.gmra.mxu0 %v7311
    %v7313 = vpop.f32.mrf.mxu0
    %v7314 = vadd.f32 0.0, %v7313
    %7315 = vdwg.mxu0
    %7316 = vmatpush.msra.mxu0 0.0
    %7317 = vmatpush.msra.mxu0 0.0
    %7318 = vmatpush.msra.mxu0 0.0
    %7319 = vmatpush.msra.mxu0 0.0
    %7320 = vmatpush.msra.mxu0 0.0
    %7321 = vmatpush.msra.mxu0 0.0
    %7322 = vmatpush.msra.mxu0 0.0
    %7323 = vmatpush.msra.mxu0 0.0
    %7324 = vmatpush.msra.mxu0 0.0
    %7325 = vmatpush.msra.mxu0 0.0
    %7326 = vmatpush.msra.mxu0 0.0
    %7327 = vmatpush.msra.mxu0 0.0
    %7328 = vmatpush.msra.mxu0 0.0
    %7329 = vmatpush.msra.mxu0 0.0
    %7330 = vmatpush.msra.mxu0 0.0
    %v7331 = vand.u32 %v158, 4294901760
    %v7332 = vsub.f32 %v158, %v7331
    %v7333 = vand.u32 %v7332, 4294901760
    %v7334 = vsub.f32 %v7332, %v7333
    %v7335 = vand.u32 %v7334, 4294901760
    %7336 = vmatpush.msra.mxu0 %v7335
    %v7337 = vand.u32 %v7288, 4294901760
    %7338 = vmatmul.f32.gmra.mxu0 %v7337
    %v7339 = vpop.f32.mrf.mxu0
    %v7340 = vadd.f32 %v7314, %v7339
    %7341 = vdwg.mxu0
    %7342 = vmatpush.msra.mxu0 0.0
    %7343 = vmatpush.msra.mxu0 0.0
    %7344 = vmatpush.msra.mxu0 0.0
    %7345 = vmatpush.msra.mxu0 0.0
    %7346 = vmatpush.msra.mxu0 0.0
    %7347 = vmatpush.msra.mxu0 0.0
    %7348 = vmatpush.msra.mxu0 0.0
    %7349 = vmatpush.msra.mxu0 0.0
    %7350 = vmatpush.msra.mxu0 0.0
    %7351 = vmatpush.msra.mxu0 0.0
    %7352 = vmatpush.msra.mxu0 0.0
    %7353 = vmatpush.msra.mxu0 0.0
    %7354 = vmatpush.msra.mxu0 0.0
    %7355 = vmatpush.msra.mxu0 0.0
    %7356 = vmatpush.msra.mxu0 0.0
    %v7357 = vand.u32 %v158, 4294901760
    %v7358 = vsub.f32 %v158, %v7357
    %7359 = vmatpush.msra.mxu0 %v7358
    %v7360 = vand.u32 %v7288, 4294901760
    %v7361 = vsub.f32 %v7288, %v7360
    %7362 = vmatmul.f32.gmra.mxu0 %v7361
    %v7363 = vpop.f32.mrf.mxu0
    %v7364 = vadd.f32 %v7340, %v7363
    %7365 = vdwg.mxu0
    %7366 = vmatpush.msra.mxu0 0.0
    %7367 = vmatpush.msra.mxu0 0.0
    %7368 = vmatpush.msra.mxu0 0.0
    %7369 = vmatpush.msra.mxu0 0.0
    %7370 = vmatpush.msra.mxu0 0.0
    %7371 = vmatpush.msra.mxu0 0.0
    %7372 = vmatpush.msra.mxu0 0.0
    %7373 = vmatpush.msra.mxu0 0.0
    %7374 = vmatpush.msra.mxu0 0.0
    %7375 = vmatpush.msra.mxu0 0.0
    %7376 = vmatpush.msra.mxu0 0.0
    %7377 = vmatpush.msra.mxu0 0.0
    %7378 = vmatpush.msra.mxu0 0.0
    %7379 = vmatpush.msra.mxu0 0.0
    %7380 = vmatpush.msra.mxu0 0.0
    %v7381 = vand.u32 %v158, 4294901760
    %7382 = vmatpush.msra.mxu0 %v7381
    %v7383 = vand.u32 %v7288, 4294901760
    %v7384 = vsub.f32 %v7288, %v7383
    %v7385 = vand.u32 %v7384, 4294901760
    %7386 = vmatmul.f32.gmra.mxu0 %v7385
    %v7387 = vpop.f32.mrf.mxu0
    %v7388 = vadd.f32 %v7364, %v7387
    %7389 = vdwg.mxu0
    %7390 = vmatpush.msra.mxu0 0.0
    %7391 = vmatpush.msra.mxu0 0.0
    %7392 = vmatpush.msra.mxu0 0.0
    %7393 = vmatpush.msra.mxu0 0.0
    %7394 = vmatpush.msra.mxu0 0.0
    %7395 = vmatpush.msra.mxu0 0.0
    %7396 = vmatpush.msra.mxu0 0.0
    %7397 = vmatpush.msra.mxu0 0.0
    %7398 = vmatpush.msra.mxu0 0.0
    %7399 = vmatpush.msra.mxu0 0.0
    %7400 = vmatpush.msra.mxu0 0.0
    %7401 = vmatpush.msra.mxu0 0.0
    %7402 = vmatpush.msra.mxu0 0.0
    %7403 = vmatpush.msra.mxu0 0.0
    %7404 = vmatpush.msra.mxu0 0.0
    %v7405 = vand.u32 %v158, 4294901760
    %v7406 = vsub.f32 %v158, %v7405
    %v7407 = vand.u32 %v7406, 4294901760
    %7408 = vmatpush.msra.mxu0 %v7407
    %v7409 = vand.u32 %v7288, 4294901760
    %7410 = vmatmul.f32.gmra.mxu0 %v7409
    %v7411 = vpop.f32.mrf.mxu0
    %v7412 = vadd.f32 %v7388, %v7411
    %7413 = vdwg.mxu0
    %7414 = vmatpush.msra.mxu0 0.0
    %7415 = vmatpush.msra.mxu0 0.0
    %7416 = vmatpush.msra.mxu0 0.0
    %7417 = vmatpush.msra.mxu0 0.0
    %7418 = vmatpush.msra.mxu0 0.0
    %7419 = vmatpush.msra.mxu0 0.0
    %7420 = vmatpush.msra.mxu0 0.0
    %7421 = vmatpush.msra.mxu0 0.0
    %7422 = vmatpush.msra.mxu0 0.0
    %7423 = vmatpush.msra.mxu0 0.0
    %7424 = vmatpush.msra.mxu0 0.0
    %7425 = vmatpush.msra.mxu0 0.0
    %7426 = vmatpush.msra.mxu0 0.0
    %7427 = vmatpush.msra.mxu0 0.0
    %7428 = vmatpush.msra.mxu0 0.0
    %v7429 = vand.u32 %v158, 4294901760
    %7430 = vmatpush.msra.mxu0 %v7429
    %v7431 = vand.u32 %v7288, 4294901760
    %7432 = vmatmul.f32.gmra.mxu0 %v7431
    %v7433 = vpop.f32.mrf.mxu0
    %v7434 = vadd.f32 %v7412, %v7433
    %7435 = vdwg.mxu0
    %v7437 = vsel %vm4686, %v6391, 0
    %7439 = vmatpush.msra.mxu0 0.0
    %7440 = vmatpush.msra.mxu0 0.0
    %7441 = vmatpush.msra.mxu0 0.0
    %7442 = vmatpush.msra.mxu0 0.0
    %7443 = vmatpush.msra.mxu0 0.0
    %7444 = vmatpush.msra.mxu0 0.0
    %7445 = vmatpush.msra.mxu0 0.0
    %7446 = vmatpush.msra.mxu0 0.0
    %7447 = vmatpush.msra.mxu0 0.0
    %7448 = vmatpush.msra.mxu0 0.0
    %7449 = vmatpush.msra.mxu0 0.0
    %7450 = vmatpush.msra.mxu0 0.0
    %7451 = vmatpush.msra.mxu0 0.0
    %7452 = vmatpush.msra.mxu0 0.0
    %7453 = vmatpush.msra.mxu0 0.0
    %v7454 = vand.u32 %v159, 4294901760
    %7455 = vmatpush.msra.mxu0 %v7454
    %v7456 = vand.u32 %v7437, 4294901760
    %v7457 = vsub.f32 %v7437, %v7456
    %v7458 = vand.u32 %v7457, 4294901760
    %v7459 = vsub.f32 %v7457, %v7458
    %v7460 = vand.u32 %v7459, 4294901760
    %7461 = vmatmul.f32.gmra.mxu0 %v7460
    %v7462 = vpop.f32.mrf.mxu0
    %v7463 = vadd.f32 0.0, %v7462
    %7464 = vdwg.mxu0
    %7465 = vmatpush.msra.mxu0 0.0
    %7466 = vmatpush.msra.mxu0 0.0
    %7467 = vmatpush.msra.mxu0 0.0
    %7468 = vmatpush.msra.mxu0 0.0
    %7469 = vmatpush.msra.mxu0 0.0
    %7470 = vmatpush.msra.mxu0 0.0
    %7471 = vmatpush.msra.mxu0 0.0
    %7472 = vmatpush.msra.mxu0 0.0
    %7473 = vmatpush.msra.mxu0 0.0
    %7474 = vmatpush.msra.mxu0 0.0
    %7475 = vmatpush.msra.mxu0 0.0
    %7476 = vmatpush.msra.mxu0 0.0
    %7477 = vmatpush.msra.mxu0 0.0
    %7478 = vmatpush.msra.mxu0 0.0
    %7479 = vmatpush.msra.mxu0 0.0
    %v7480 = vand.u32 %v159, 4294901760
    %v7481 = vsub.f32 %v159, %v7480
    %v7482 = vand.u32 %v7481, 4294901760
    %v7483 = vsub.f32 %v7481, %v7482
    %v7484 = vand.u32 %v7483, 4294901760
    %7485 = vmatpush.msra.mxu0 %v7484
    %v7486 = vand.u32 %v7437, 4294901760
    %7487 = vmatmul.f32.gmra.mxu0 %v7486
    %v7488 = vpop.f32.mrf.mxu0
    %v7489 = vadd.f32 %v7463, %v7488
    %7490 = vdwg.mxu0
    %7491 = vmatpush.msra.mxu0 0.0
    %7492 = vmatpush.msra.mxu0 0.0
    %7493 = vmatpush.msra.mxu0 0.0
    %7494 = vmatpush.msra.mxu0 0.0
    %7495 = vmatpush.msra.mxu0 0.0
    %7496 = vmatpush.msra.mxu0 0.0
    %7497 = vmatpush.msra.mxu0 0.0
    %7498 = vmatpush.msra.mxu0 0.0
    %7499 = vmatpush.msra.mxu0 0.0
    %7500 = vmatpush.msra.mxu0 0.0
    %7501 = vmatpush.msra.mxu0 0.0
    %7502 = vmatpush.msra.mxu0 0.0
    %7503 = vmatpush.msra.mxu0 0.0
    %7504 = vmatpush.msra.mxu0 0.0
    %7505 = vmatpush.msra.mxu0 0.0
    %v7506 = vand.u32 %v159, 4294901760
    %v7507 = vsub.f32 %v159, %v7506
    %7508 = vmatpush.msra.mxu0 %v7507
    %v7509 = vand.u32 %v7437, 4294901760
    %v7510 = vsub.f32 %v7437, %v7509
    %7511 = vmatmul.f32.gmra.mxu0 %v7510
    %v7512 = vpop.f32.mrf.mxu0
    %v7513 = vadd.f32 %v7489, %v7512
    %7514 = vdwg.mxu0
    %7515 = vmatpush.msra.mxu0 0.0
    %7516 = vmatpush.msra.mxu0 0.0
    %7517 = vmatpush.msra.mxu0 0.0
    %7518 = vmatpush.msra.mxu0 0.0
    %7519 = vmatpush.msra.mxu0 0.0
    %7520 = vmatpush.msra.mxu0 0.0
    %7521 = vmatpush.msra.mxu0 0.0
    %7522 = vmatpush.msra.mxu0 0.0
    %7523 = vmatpush.msra.mxu0 0.0
    %7524 = vmatpush.msra.mxu0 0.0
    %7525 = vmatpush.msra.mxu0 0.0
    %7526 = vmatpush.msra.mxu0 0.0
    %7527 = vmatpush.msra.mxu0 0.0
    %7528 = vmatpush.msra.mxu0 0.0
    %7529 = vmatpush.msra.mxu0 0.0
    %v7530 = vand.u32 %v159, 4294901760
    %7531 = vmatpush.msra.mxu0 %v7530
    %v7532 = vand.u32 %v7437, 4294901760
    %v7533 = vsub.f32 %v7437, %v7532
    %v7534 = vand.u32 %v7533, 4294901760
    %7535 = vmatmul.f32.gmra.mxu0 %v7534
    %v7536 = vpop.f32.mrf.mxu0
    %v7537 = vadd.f32 %v7513, %v7536
    %7538 = vdwg.mxu0
    %7539 = vmatpush.msra.mxu0 0.0
    %7540 = vmatpush.msra.mxu0 0.0
    %7541 = vmatpush.msra.mxu0 0.0
    %7542 = vmatpush.msra.mxu0 0.0
    %7543 = vmatpush.msra.mxu0 0.0
    %7544 = vmatpush.msra.mxu0 0.0
    %7545 = vmatpush.msra.mxu0 0.0
    %7546 = vmatpush.msra.mxu0 0.0
    %7547 = vmatpush.msra.mxu0 0.0
    %7548 = vmatpush.msra.mxu0 0.0
    %7549 = vmatpush.msra.mxu0 0.0
    %7550 = vmatpush.msra.mxu0 0.0
    %7551 = vmatpush.msra.mxu0 0.0
    %7552 = vmatpush.msra.mxu0 0.0
    %7553 = vmatpush.msra.mxu0 0.0
    %v7554 = vand.u32 %v159, 4294901760
    %v7555 = vsub.f32 %v159, %v7554
    %v7556 = vand.u32 %v7555, 4294901760
    %7557 = vmatpush.msra.mxu0 %v7556
    %v7558 = vand.u32 %v7437, 4294901760
    %7559 = vmatmul.f32.gmra.mxu0 %v7558
    %v7560 = vpop.f32.mrf.mxu0
    %v7561 = vadd.f32 %v7537, %v7560
    %7562 = vdwg.mxu0
    %7563 = vmatpush.msra.mxu0 0.0
    %7564 = vmatpush.msra.mxu0 0.0
    %7565 = vmatpush.msra.mxu0 0.0
    %7566 = vmatpush.msra.mxu0 0.0
    %7567 = vmatpush.msra.mxu0 0.0
    %7568 = vmatpush.msra.mxu0 0.0
    %7569 = vmatpush.msra.mxu0 0.0
    %7570 = vmatpush.msra.mxu0 0.0
    %7571 = vmatpush.msra.mxu0 0.0
    %7572 = vmatpush.msra.mxu0 0.0
    %7573 = vmatpush.msra.mxu0 0.0
    %7574 = vmatpush.msra.mxu0 0.0
    %7575 = vmatpush.msra.mxu0 0.0
    %7576 = vmatpush.msra.mxu0 0.0
    %7577 = vmatpush.msra.mxu0 0.0
    %v7578 = vand.u32 %v159, 4294901760
    %7579 = vmatpush.msra.mxu0 %v7578
    %v7580 = vand.u32 %v7437, 4294901760
    %7581 = vmatmul.f32.gmra.mxu0 %v7580
    %v7582 = vpop.f32.mrf.mxu0
    %v7583 = vadd.f32 %v7561, %v7582
    %7584 = vdwg.mxu0
    %v7586 = vsel %vm4686, %v6540, 0
    %7588 = vmatpush.msra.mxu0 0.0
    %7589 = vmatpush.msra.mxu0 0.0
    %7590 = vmatpush.msra.mxu0 0.0
    %7591 = vmatpush.msra.mxu0 0.0
    %7592 = vmatpush.msra.mxu0 0.0
    %7593 = vmatpush.msra.mxu0 0.0
    %7594 = vmatpush.msra.mxu0 0.0
    %7595 = vmatpush.msra.mxu0 0.0
    %7596 = vmatpush.msra.mxu0 0.0
    %7597 = vmatpush.msra.mxu0 0.0
    %7598 = vmatpush.msra.mxu0 0.0
    %7599 = vmatpush.msra.mxu0 0.0
    %7600 = vmatpush.msra.mxu0 0.0
    %7601 = vmatpush.msra.mxu0 0.0
    %7602 = vmatpush.msra.mxu0 0.0
    %v7603 = vand.u32 %v160, 4294901760
    %7604 = vmatpush.msra.mxu0 %v7603
    %v7605 = vand.u32 %v7586, 4294901760
    %v7606 = vsub.f32 %v7586, %v7605
    %v7607 = vand.u32 %v7606, 4294901760
    %v7608 = vsub.f32 %v7606, %v7607
    %v7609 = vand.u32 %v7608, 4294901760
    %7610 = vmatmul.f32.gmra.mxu0 %v7609
    %v7611 = vpop.f32.mrf.mxu0
    %v7612 = vadd.f32 0.0, %v7611
    %7613 = vdwg.mxu0
    %7614 = vmatpush.msra.mxu0 0.0
    %7615 = vmatpush.msra.mxu0 0.0
    %7616 = vmatpush.msra.mxu0 0.0
    %7617 = vmatpush.msra.mxu0 0.0
    %7618 = vmatpush.msra.mxu0 0.0
    %7619 = vmatpush.msra.mxu0 0.0
    %7620 = vmatpush.msra.mxu0 0.0
    %7621 = vmatpush.msra.mxu0 0.0
    %7622 = vmatpush.msra.mxu0 0.0
    %7623 = vmatpush.msra.mxu0 0.0
    %7624 = vmatpush.msra.mxu0 0.0
    %7625 = vmatpush.msra.mxu0 0.0
    %7626 = vmatpush.msra.mxu0 0.0
    %7627 = vmatpush.msra.mxu0 0.0
    %7628 = vmatpush.msra.mxu0 0.0
    %v7629 = vand.u32 %v160, 4294901760
    %v7630 = vsub.f32 %v160, %v7629
    %v7631 = vand.u32 %v7630, 4294901760
    %v7632 = vsub.f32 %v7630, %v7631
    %v7633 = vand.u32 %v7632, 4294901760
    %7634 = vmatpush.msra.mxu0 %v7633
    %v7635 = vand.u32 %v7586, 4294901760
    %7636 = vmatmul.f32.gmra.mxu0 %v7635
    %v7637 = vpop.f32.mrf.mxu0
    %v7638 = vadd.f32 %v7612, %v7637
    %7639 = vdwg.mxu0
    %7640 = vmatpush.msra.mxu0 0.0
    %7641 = vmatpush.msra.mxu0 0.0
    %7642 = vmatpush.msra.mxu0 0.0
    %7643 = vmatpush.msra.mxu0 0.0
    %7644 = vmatpush.msra.mxu0 0.0
    %7645 = vmatpush.msra.mxu0 0.0
    %7646 = vmatpush.msra.mxu0 0.0
    %7647 = vmatpush.msra.mxu0 0.0
    %7648 = vmatpush.msra.mxu0 0.0
    %7649 = vmatpush.msra.mxu0 0.0
    %7650 = vmatpush.msra.mxu0 0.0
    %7651 = vmatpush.msra.mxu0 0.0
    %7652 = vmatpush.msra.mxu0 0.0
    %7653 = vmatpush.msra.mxu0 0.0
    %7654 = vmatpush.msra.mxu0 0.0
    %v7655 = vand.u32 %v160, 4294901760
    %v7656 = vsub.f32 %v160, %v7655
    %7657 = vmatpush.msra.mxu0 %v7656
    %v7658 = vand.u32 %v7586, 4294901760
    %v7659 = vsub.f32 %v7586, %v7658
    %7660 = vmatmul.f32.gmra.mxu0 %v7659
    %v7661 = vpop.f32.mrf.mxu0
    %v7662 = vadd.f32 %v7638, %v7661
    %7663 = vdwg.mxu0
    %7664 = vmatpush.msra.mxu0 0.0
    %7665 = vmatpush.msra.mxu0 0.0
    %7666 = vmatpush.msra.mxu0 0.0
    %7667 = vmatpush.msra.mxu0 0.0
    %7668 = vmatpush.msra.mxu0 0.0
    %7669 = vmatpush.msra.mxu0 0.0
    %7670 = vmatpush.msra.mxu0 0.0
    %7671 = vmatpush.msra.mxu0 0.0
    %7672 = vmatpush.msra.mxu0 0.0
    %7673 = vmatpush.msra.mxu0 0.0
    %7674 = vmatpush.msra.mxu0 0.0
    %7675 = vmatpush.msra.mxu0 0.0
    %7676 = vmatpush.msra.mxu0 0.0
    %7677 = vmatpush.msra.mxu0 0.0
    %7678 = vmatpush.msra.mxu0 0.0
    %v7679 = vand.u32 %v160, 4294901760
    %7680 = vmatpush.msra.mxu0 %v7679
    %v7681 = vand.u32 %v7586, 4294901760
    %v7682 = vsub.f32 %v7586, %v7681
    %v7683 = vand.u32 %v7682, 4294901760
    %7684 = vmatmul.f32.gmra.mxu0 %v7683
    %v7685 = vpop.f32.mrf.mxu0
    %v7686 = vadd.f32 %v7662, %v7685
    %7687 = vdwg.mxu0
    %7688 = vmatpush.msra.mxu0 0.0
    %7689 = vmatpush.msra.mxu0 0.0
    %7690 = vmatpush.msra.mxu0 0.0
    %7691 = vmatpush.msra.mxu0 0.0
    %7692 = vmatpush.msra.mxu0 0.0
    %7693 = vmatpush.msra.mxu0 0.0
    %7694 = vmatpush.msra.mxu0 0.0
    %7695 = vmatpush.msra.mxu0 0.0
    %7696 = vmatpush.msra.mxu0 0.0
    %7697 = vmatpush.msra.mxu0 0.0
    %7698 = vmatpush.msra.mxu0 0.0
    %7699 = vmatpush.msra.mxu0 0.0
    %7700 = vmatpush.msra.mxu0 0.0
    %7701 = vmatpush.msra.mxu0 0.0
    %7702 = vmatpush.msra.mxu0 0.0
    %v7703 = vand.u32 %v160, 4294901760
    %v7704 = vsub.f32 %v160, %v7703
    %v7705 = vand.u32 %v7704, 4294901760
    %7706 = vmatpush.msra.mxu0 %v7705
    %v7707 = vand.u32 %v7586, 4294901760
    %7708 = vmatmul.f32.gmra.mxu0 %v7707
    %v7709 = vpop.f32.mrf.mxu0
    %v7710 = vadd.f32 %v7686, %v7709
    %7711 = vdwg.mxu0
    %7712 = vmatpush.msra.mxu0 0.0
    %7713 = vmatpush.msra.mxu0 0.0
    %7714 = vmatpush.msra.mxu0 0.0
    %7715 = vmatpush.msra.mxu0 0.0
    %7716 = vmatpush.msra.mxu0 0.0
    %7717 = vmatpush.msra.mxu0 0.0
    %7718 = vmatpush.msra.mxu0 0.0
    %7719 = vmatpush.msra.mxu0 0.0
    %7720 = vmatpush.msra.mxu0 0.0
    %7721 = vmatpush.msra.mxu0 0.0
    %7722 = vmatpush.msra.mxu0 0.0
    %7723 = vmatpush.msra.mxu0 0.0
    %7724 = vmatpush.msra.mxu0 0.0
    %7725 = vmatpush.msra.mxu0 0.0
    %7726 = vmatpush.msra.mxu0 0.0
    %v7727 = vand.u32 %v160, 4294901760
    %7728 = vmatpush.msra.mxu0 %v7727
    %v7729 = vand.u32 %v7586, 4294901760
    %7730 = vmatmul.f32.gmra.mxu0 %v7729
    %v7731 = vpop.f32.mrf.mxu0
    %v7732 = vadd.f32 %v7710, %v7731
    %7733 = vdwg.mxu0
    %v7735 = vsel %vm4686, %v6689, 0
    %7737 = vmatpush.msra.mxu0 0.0
    %7738 = vmatpush.msra.mxu0 0.0
    %7739 = vmatpush.msra.mxu0 0.0
    %7740 = vmatpush.msra.mxu0 0.0
    %7741 = vmatpush.msra.mxu0 0.0
    %7742 = vmatpush.msra.mxu0 0.0
    %7743 = vmatpush.msra.mxu0 0.0
    %7744 = vmatpush.msra.mxu0 0.0
    %7745 = vmatpush.msra.mxu0 0.0
    %7746 = vmatpush.msra.mxu0 0.0
    %7747 = vmatpush.msra.mxu0 0.0
    %7748 = vmatpush.msra.mxu0 0.0
    %7749 = vmatpush.msra.mxu0 0.0
    %7750 = vmatpush.msra.mxu0 0.0
    %7751 = vmatpush.msra.mxu0 0.0
    %v7752 = vand.u32 %v161, 4294901760
    %7753 = vmatpush.msra.mxu0 %v7752
    %v7754 = vand.u32 %v7735, 4294901760
    %v7755 = vsub.f32 %v7735, %v7754
    %v7756 = vand.u32 %v7755, 4294901760
    %v7757 = vsub.f32 %v7755, %v7756
    %v7758 = vand.u32 %v7757, 4294901760
    %7759 = vmatmul.f32.gmra.mxu0 %v7758
    %v7760 = vpop.f32.mrf.mxu0
    %v7761 = vadd.f32 0.0, %v7760
    %7762 = vdwg.mxu0
    %7763 = vmatpush.msra.mxu0 0.0
    %7764 = vmatpush.msra.mxu0 0.0
    %7765 = vmatpush.msra.mxu0 0.0
    %7766 = vmatpush.msra.mxu0 0.0
    %7767 = vmatpush.msra.mxu0 0.0
    %7768 = vmatpush.msra.mxu0 0.0
    %7769 = vmatpush.msra.mxu0 0.0
    %7770 = vmatpush.msra.mxu0 0.0
    %7771 = vmatpush.msra.mxu0 0.0
    %7772 = vmatpush.msra.mxu0 0.0
    %7773 = vmatpush.msra.mxu0 0.0
    %7774 = vmatpush.msra.mxu0 0.0
    %7775 = vmatpush.msra.mxu0 0.0
    %7776 = vmatpush.msra.mxu0 0.0
    %7777 = vmatpush.msra.mxu0 0.0
    %v7778 = vand.u32 %v161, 4294901760
    %v7779 = vsub.f32 %v161, %v7778
    %v7780 = vand.u32 %v7779, 4294901760
    %v7781 = vsub.f32 %v7779, %v7780
    %v7782 = vand.u32 %v7781, 4294901760
    %7783 = vmatpush.msra.mxu0 %v7782
    %v7784 = vand.u32 %v7735, 4294901760
    %7785 = vmatmul.f32.gmra.mxu0 %v7784
    %v7786 = vpop.f32.mrf.mxu0
    %v7787 = vadd.f32 %v7761, %v7786
    %7788 = vdwg.mxu0
    %7789 = vmatpush.msra.mxu0 0.0
    %7790 = vmatpush.msra.mxu0 0.0
    %7791 = vmatpush.msra.mxu0 0.0
    %7792 = vmatpush.msra.mxu0 0.0
    %7793 = vmatpush.msra.mxu0 0.0
    %7794 = vmatpush.msra.mxu0 0.0
    %7795 = vmatpush.msra.mxu0 0.0
    %7796 = vmatpush.msra.mxu0 0.0
    %7797 = vmatpush.msra.mxu0 0.0
    %7798 = vmatpush.msra.mxu0 0.0
    %7799 = vmatpush.msra.mxu0 0.0
    %7800 = vmatpush.msra.mxu0 0.0
    %7801 = vmatpush.msra.mxu0 0.0
    %7802 = vmatpush.msra.mxu0 0.0
    %7803 = vmatpush.msra.mxu0 0.0
    %v7804 = vand.u32 %v161, 4294901760
    %v7805 = vsub.f32 %v161, %v7804
    %7806 = vmatpush.msra.mxu0 %v7805
    %v7807 = vand.u32 %v7735, 4294901760
    %v7808 = vsub.f32 %v7735, %v7807
    %7809 = vmatmul.f32.gmra.mxu0 %v7808
    %v7810 = vpop.f32.mrf.mxu0
    %v7811 = vadd.f32 %v7787, %v7810
    %7812 = vdwg.mxu0
    %7813 = vmatpush.msra.mxu0 0.0
    %7814 = vmatpush.msra.mxu0 0.0
    %7815 = vmatpush.msra.mxu0 0.0
    %7816 = vmatpush.msra.mxu0 0.0
    %7817 = vmatpush.msra.mxu0 0.0
    %7818 = vmatpush.msra.mxu0 0.0
    %7819 = vmatpush.msra.mxu0 0.0
    %7820 = vmatpush.msra.mxu0 0.0
    %7821 = vmatpush.msra.mxu0 0.0
    %7822 = vmatpush.msra.mxu0 0.0
    %7823 = vmatpush.msra.mxu0 0.0
    %7824 = vmatpush.msra.mxu0 0.0
    %7825 = vmatpush.msra.mxu0 0.0
    %7826 = vmatpush.msra.mxu0 0.0
    %7827 = vmatpush.msra.mxu0 0.0
    %v7828 = vand.u32 %v161, 4294901760
    %7829 = vmatpush.msra.mxu0 %v7828
    %v7830 = vand.u32 %v7735, 4294901760
    %v7831 = vsub.f32 %v7735, %v7830
    %v7832 = vand.u32 %v7831, 4294901760
    %7833 = vmatmul.f32.gmra.mxu0 %v7832
    %v7834 = vpop.f32.mrf.mxu0
    %v7835 = vadd.f32 %v7811, %v7834
    %7836 = vdwg.mxu0
    %7837 = vmatpush.msra.mxu0 0.0
    %7838 = vmatpush.msra.mxu0 0.0
    %7839 = vmatpush.msra.mxu0 0.0
    %7840 = vmatpush.msra.mxu0 0.0
    %7841 = vmatpush.msra.mxu0 0.0
    %7842 = vmatpush.msra.mxu0 0.0
    %7843 = vmatpush.msra.mxu0 0.0
    %7844 = vmatpush.msra.mxu0 0.0
    %7845 = vmatpush.msra.mxu0 0.0
    %7846 = vmatpush.msra.mxu0 0.0
    %7847 = vmatpush.msra.mxu0 0.0
    %7848 = vmatpush.msra.mxu0 0.0
    %7849 = vmatpush.msra.mxu0 0.0
    %7850 = vmatpush.msra.mxu0 0.0
    %7851 = vmatpush.msra.mxu0 0.0
    %v7852 = vand.u32 %v161, 4294901760
    %v7853 = vsub.f32 %v161, %v7852
    %v7854 = vand.u32 %v7853, 4294901760
    %7855 = vmatpush.msra.mxu0 %v7854
    %v7856 = vand.u32 %v7735, 4294901760
    %7857 = vmatmul.f32.gmra.mxu0 %v7856
    %v7858 = vpop.f32.mrf.mxu0
    %v7859 = vadd.f32 %v7835, %v7858
    %7860 = vdwg.mxu0
    %7861 = vmatpush.msra.mxu0 0.0
    %7862 = vmatpush.msra.mxu0 0.0
    %7863 = vmatpush.msra.mxu0 0.0
    %7864 = vmatpush.msra.mxu0 0.0
    %7865 = vmatpush.msra.mxu0 0.0
    %7866 = vmatpush.msra.mxu0 0.0
    %7867 = vmatpush.msra.mxu0 0.0
    %7868 = vmatpush.msra.mxu0 0.0
    %7869 = vmatpush.msra.mxu0 0.0
    %7870 = vmatpush.msra.mxu0 0.0
    %7871 = vmatpush.msra.mxu0 0.0
    %7872 = vmatpush.msra.mxu0 0.0
    %7873 = vmatpush.msra.mxu0 0.0
    %7874 = vmatpush.msra.mxu0 0.0
    %7875 = vmatpush.msra.mxu0 0.0
    %v7876 = vand.u32 %v161, 4294901760
    %7877 = vmatpush.msra.mxu0 %v7876
    %v7878 = vand.u32 %v7735, 4294901760
    %7879 = vmatmul.f32.gmra.mxu0 %v7878
    %v7880 = vpop.f32.mrf.mxu0
    %v7881 = vadd.f32 %v7859, %v7880
    %7882 = vdwg.mxu0
    %v7884 = vsel %vm4686, %v6838, 0
    %7886 = vmatpush.msra.mxu0 0.0
    %7887 = vmatpush.msra.mxu0 0.0
    %7888 = vmatpush.msra.mxu0 0.0
    %7889 = vmatpush.msra.mxu0 0.0
    %7890 = vmatpush.msra.mxu0 0.0
    %7891 = vmatpush.msra.mxu0 0.0
    %7892 = vmatpush.msra.mxu0 0.0
    %7893 = vmatpush.msra.mxu0 0.0
    %7894 = vmatpush.msra.mxu0 0.0
    %7895 = vmatpush.msra.mxu0 0.0
    %7896 = vmatpush.msra.mxu0 0.0
    %7897 = vmatpush.msra.mxu0 0.0
    %7898 = vmatpush.msra.mxu0 0.0
    %7899 = vmatpush.msra.mxu0 0.0
    %7900 = vmatpush.msra.mxu0 0.0
    %v7901 = vand.u32 %v162, 4294901760
    %7902 = vmatpush.msra.mxu0 %v7901
    %v7903 = vand.u32 %v7884, 4294901760
    %v7904 = vsub.f32 %v7884, %v7903
    %v7905 = vand.u32 %v7904, 4294901760
    %v7906 = vsub.f32 %v7904, %v7905
    %v7907 = vand.u32 %v7906, 4294901760
    %7908 = vmatmul.f32.gmra.mxu0 %v7907
    %v7909 = vpop.f32.mrf.mxu0
    %v7910 = vadd.f32 0.0, %v7909
    %7911 = vdwg.mxu0
    %7912 = vmatpush.msra.mxu0 0.0
    %7913 = vmatpush.msra.mxu0 0.0
    %7914 = vmatpush.msra.mxu0 0.0
    %7915 = vmatpush.msra.mxu0 0.0
    %7916 = vmatpush.msra.mxu0 0.0
    %7917 = vmatpush.msra.mxu0 0.0
    %7918 = vmatpush.msra.mxu0 0.0
    %7919 = vmatpush.msra.mxu0 0.0
    %7920 = vmatpush.msra.mxu0 0.0
    %7921 = vmatpush.msra.mxu0 0.0
    %7922 = vmatpush.msra.mxu0 0.0
    %7923 = vmatpush.msra.mxu0 0.0
    %7924 = vmatpush.msra.mxu0 0.0
    %7925 = vmatpush.msra.mxu0 0.0
    %7926 = vmatpush.msra.mxu0 0.0
    %v7927 = vand.u32 %v162, 4294901760
    %v7928 = vsub.f32 %v162, %v7927
    %v7929 = vand.u32 %v7928, 4294901760
    %v7930 = vsub.f32 %v7928, %v7929
    %v7931 = vand.u32 %v7930, 4294901760
    %7932 = vmatpush.msra.mxu0 %v7931
    %v7933 = vand.u32 %v7884, 4294901760
    %7934 = vmatmul.f32.gmra.mxu0 %v7933
    %v7935 = vpop.f32.mrf.mxu0
    %v7936 = vadd.f32 %v7910, %v7935
    %7937 = vdwg.mxu0
    %7938 = vmatpush.msra.mxu0 0.0
    %7939 = vmatpush.msra.mxu0 0.0
    %7940 = vmatpush.msra.mxu0 0.0
    %7941 = vmatpush.msra.mxu0 0.0
    %7942 = vmatpush.msra.mxu0 0.0
    %7943 = vmatpush.msra.mxu0 0.0
    %7944 = vmatpush.msra.mxu0 0.0
    %7945 = vmatpush.msra.mxu0 0.0
    %7946 = vmatpush.msra.mxu0 0.0
    %7947 = vmatpush.msra.mxu0 0.0
    %7948 = vmatpush.msra.mxu0 0.0
    %7949 = vmatpush.msra.mxu0 0.0
    %7950 = vmatpush.msra.mxu0 0.0
    %7951 = vmatpush.msra.mxu0 0.0
    %7952 = vmatpush.msra.mxu0 0.0
    %v7953 = vand.u32 %v162, 4294901760
    %v7954 = vsub.f32 %v162, %v7953
    %7955 = vmatpush.msra.mxu0 %v7954
    %v7956 = vand.u32 %v7884, 4294901760
    %v7957 = vsub.f32 %v7884, %v7956
    %7958 = vmatmul.f32.gmra.mxu0 %v7957
    %v7959 = vpop.f32.mrf.mxu0
    %v7960 = vadd.f32 %v7936, %v7959
    %7961 = vdwg.mxu0
    %7962 = vmatpush.msra.mxu0 0.0
    %7963 = vmatpush.msra.mxu0 0.0
    %7964 = vmatpush.msra.mxu0 0.0
    %7965 = vmatpush.msra.mxu0 0.0
    %7966 = vmatpush.msra.mxu0 0.0
    %7967 = vmatpush.msra.mxu0 0.0
    %7968 = vmatpush.msra.mxu0 0.0
    %7969 = vmatpush.msra.mxu0 0.0
    %7970 = vmatpush.msra.mxu0 0.0
    %7971 = vmatpush.msra.mxu0 0.0
    %7972 = vmatpush.msra.mxu0 0.0
    %7973 = vmatpush.msra.mxu0 0.0
    %7974 = vmatpush.msra.mxu0 0.0
    %7975 = vmatpush.msra.mxu0 0.0
    %7976 = vmatpush.msra.mxu0 0.0
    %v7977 = vand.u32 %v162, 4294901760
    %7978 = vmatpush.msra.mxu0 %v7977
    %v7979 = vand.u32 %v7884, 4294901760
    %v7980 = vsub.f32 %v7884, %v7979
    %v7981 = vand.u32 %v7980, 4294901760
    %7982 = vmatmul.f32.gmra.mxu0 %v7981
    %v7983 = vpop.f32.mrf.mxu0
    %v7984 = vadd.f32 %v7960, %v7983
    %7985 = vdwg.mxu0
    %7986 = vmatpush.msra.mxu0 0.0
    %7987 = vmatpush.msra.mxu0 0.0
    %7988 = vmatpush.msra.mxu0 0.0
    %7989 = vmatpush.msra.mxu0 0.0
    %7990 = vmatpush.msra.mxu0 0.0
    %7991 = vmatpush.msra.mxu0 0.0
    %7992 = vmatpush.msra.mxu0 0.0
    %7993 = vmatpush.msra.mxu0 0.0
    %7994 = vmatpush.msra.mxu0 0.0
    %7995 = vmatpush.msra.mxu0 0.0
    %7996 = vmatpush.msra.mxu0 0.0
    %7997 = vmatpush.msra.mxu0 0.0
    %7998 = vmatpush.msra.mxu0 0.0
    %7999 = vmatpush.msra.mxu0 0.0
    %8000 = vmatpush.msra.mxu0 0.0
    %v8001 = vand.u32 %v162, 4294901760
    %v8002 = vsub.f32 %v162, %v8001
    %v8003 = vand.u32 %v8002, 4294901760
    %8004 = vmatpush.msra.mxu0 %v8003
    %v8005 = vand.u32 %v7884, 4294901760
    %8006 = vmatmul.f32.gmra.mxu0 %v8005
    %v8007 = vpop.f32.mrf.mxu0
    %v8008 = vadd.f32 %v7984, %v8007
    %8009 = vdwg.mxu0
    %8010 = vmatpush.msra.mxu0 0.0
    %8011 = vmatpush.msra.mxu0 0.0
    %8012 = vmatpush.msra.mxu0 0.0
    %8013 = vmatpush.msra.mxu0 0.0
    %8014 = vmatpush.msra.mxu0 0.0
    %8015 = vmatpush.msra.mxu0 0.0
    %8016 = vmatpush.msra.mxu0 0.0
    %8017 = vmatpush.msra.mxu0 0.0
    %8018 = vmatpush.msra.mxu0 0.0
    %8019 = vmatpush.msra.mxu0 0.0
    %8020 = vmatpush.msra.mxu0 0.0
    %8021 = vmatpush.msra.mxu0 0.0
    %8022 = vmatpush.msra.mxu0 0.0
    %8023 = vmatpush.msra.mxu0 0.0
    %8024 = vmatpush.msra.mxu0 0.0
    %v8025 = vand.u32 %v162, 4294901760
    %8026 = vmatpush.msra.mxu0 %v8025
    %v8027 = vand.u32 %v7884, 4294901760
    %8028 = vmatmul.f32.gmra.mxu0 %v8027
    %v8029 = vpop.f32.mrf.mxu0
    %v8030 = vadd.f32 %v8008, %v8029
    %8031 = vdwg.mxu0
    %v8033 = vsel %vm4686, %v6987, 0
    %8035 = vmatpush.msra.mxu0 0.0
    %8036 = vmatpush.msra.mxu0 0.0
    %8037 = vmatpush.msra.mxu0 0.0
    %8038 = vmatpush.msra.mxu0 0.0
    %8039 = vmatpush.msra.mxu0 0.0
    %8040 = vmatpush.msra.mxu0 0.0
    %8041 = vmatpush.msra.mxu0 0.0
    %8042 = vmatpush.msra.mxu0 0.0
    %8043 = vmatpush.msra.mxu0 0.0
    %8044 = vmatpush.msra.mxu0 0.0
    %8045 = vmatpush.msra.mxu0 0.0
    %8046 = vmatpush.msra.mxu0 0.0
    %8047 = vmatpush.msra.mxu0 0.0
    %8048 = vmatpush.msra.mxu0 0.0
    %8049 = vmatpush.msra.mxu0 0.0
    %v8050 = vand.u32 %v163, 4294901760
    %8051 = vmatpush.msra.mxu0 %v8050
    %v8052 = vand.u32 %v8033, 4294901760
    %v8053 = vsub.f32 %v8033, %v8052
    %v8054 = vand.u32 %v8053, 4294901760
    %v8055 = vsub.f32 %v8053, %v8054
    %v8056 = vand.u32 %v8055, 4294901760
    %8057 = vmatmul.f32.gmra.mxu0 %v8056
    %v8058 = vpop.f32.mrf.mxu0
    %v8059 = vadd.f32 0.0, %v8058
    %8060 = vdwg.mxu0
    %8061 = vmatpush.msra.mxu0 0.0
    %8062 = vmatpush.msra.mxu0 0.0
    %8063 = vmatpush.msra.mxu0 0.0
    %8064 = vmatpush.msra.mxu0 0.0
    %8065 = vmatpush.msra.mxu0 0.0
    %8066 = vmatpush.msra.mxu0 0.0
    %8067 = vmatpush.msra.mxu0 0.0
    %8068 = vmatpush.msra.mxu0 0.0
    %8069 = vmatpush.msra.mxu0 0.0
    %8070 = vmatpush.msra.mxu0 0.0
    %8071 = vmatpush.msra.mxu0 0.0
    %8072 = vmatpush.msra.mxu0 0.0
    %8073 = vmatpush.msra.mxu0 0.0
    %8074 = vmatpush.msra.mxu0 0.0
    %8075 = vmatpush.msra.mxu0 0.0
    %v8076 = vand.u32 %v163, 4294901760
    %v8077 = vsub.f32 %v163, %v8076
    %v8078 = vand.u32 %v8077, 4294901760
    %v8079 = vsub.f32 %v8077, %v8078
    %v8080 = vand.u32 %v8079, 4294901760
    %8081 = vmatpush.msra.mxu0 %v8080
    %v8082 = vand.u32 %v8033, 4294901760
    %8083 = vmatmul.f32.gmra.mxu0 %v8082
    %v8084 = vpop.f32.mrf.mxu0
    %v8085 = vadd.f32 %v8059, %v8084
    %8086 = vdwg.mxu0
    %8087 = vmatpush.msra.mxu0 0.0
    %8088 = vmatpush.msra.mxu0 0.0
    %8089 = vmatpush.msra.mxu0 0.0
    %8090 = vmatpush.msra.mxu0 0.0
    %8091 = vmatpush.msra.mxu0 0.0
    %8092 = vmatpush.msra.mxu0 0.0
    %8093 = vmatpush.msra.mxu0 0.0
    %8094 = vmatpush.msra.mxu0 0.0
    %8095 = vmatpush.msra.mxu0 0.0
    %8096 = vmatpush.msra.mxu0 0.0
    %8097 = vmatpush.msra.mxu0 0.0
    %8098 = vmatpush.msra.mxu0 0.0
    %8099 = vmatpush.msra.mxu0 0.0
    %8100 = vmatpush.msra.mxu0 0.0
    %8101 = vmatpush.msra.mxu0 0.0
    %v8102 = vand.u32 %v163, 4294901760
    %v8103 = vsub.f32 %v163, %v8102
    %8104 = vmatpush.msra.mxu0 %v8103
    %v8105 = vand.u32 %v8033, 4294901760
    %v8106 = vsub.f32 %v8033, %v8105
    %8107 = vmatmul.f32.gmra.mxu0 %v8106
    %v8108 = vpop.f32.mrf.mxu0
    %v8109 = vadd.f32 %v8085, %v8108
    %8110 = vdwg.mxu0
    %8111 = vmatpush.msra.mxu0 0.0
    %8112 = vmatpush.msra.mxu0 0.0
    %8113 = vmatpush.msra.mxu0 0.0
    %8114 = vmatpush.msra.mxu0 0.0
    %8115 = vmatpush.msra.mxu0 0.0
    %8116 = vmatpush.msra.mxu0 0.0
    %8117 = vmatpush.msra.mxu0 0.0
    %8118 = vmatpush.msra.mxu0 0.0
    %8119 = vmatpush.msra.mxu0 0.0
    %8120 = vmatpush.msra.mxu0 0.0
    %8121 = vmatpush.msra.mxu0 0.0
    %8122 = vmatpush.msra.mxu0 0.0
    %8123 = vmatpush.msra.mxu0 0.0
    %8124 = vmatpush.msra.mxu0 0.0
    %8125 = vmatpush.msra.mxu0 0.0
    %v8126 = vand.u32 %v163, 4294901760
    %8127 = vmatpush.msra.mxu0 %v8126
    %v8128 = vand.u32 %v8033, 4294901760
    %v8129 = vsub.f32 %v8033, %v8128
    %v8130 = vand.u32 %v8129, 4294901760
    %8131 = vmatmul.f32.gmra.mxu0 %v8130
    %v8132 = vpop.f32.mrf.mxu0
    %v8133 = vadd.f32 %v8109, %v8132
    %8134 = vdwg.mxu0
    %8135 = vmatpush.msra.mxu0 0.0
    %8136 = vmatpush.msra.mxu0 0.0
    %8137 = vmatpush.msra.mxu0 0.0
    %8138 = vmatpush.msra.mxu0 0.0
    %8139 = vmatpush.msra.mxu0 0.0
    %8140 = vmatpush.msra.mxu0 0.0
    %8141 = vmatpush.msra.mxu0 0.0
    %8142 = vmatpush.msra.mxu0 0.0
    %8143 = vmatpush.msra.mxu0 0.0
    %8144 = vmatpush.msra.mxu0 0.0
    %8145 = vmatpush.msra.mxu0 0.0
    %8146 = vmatpush.msra.mxu0 0.0
    %8147 = vmatpush.msra.mxu0 0.0
    %8148 = vmatpush.msra.mxu0 0.0
    %8149 = vmatpush.msra.mxu0 0.0
    %v8150 = vand.u32 %v163, 4294901760
    %v8151 = vsub.f32 %v163, %v8150
    %v8152 = vand.u32 %v8151, 4294901760
    %8153 = vmatpush.msra.mxu0 %v8152
    %v8154 = vand.u32 %v8033, 4294901760
    %8155 = vmatmul.f32.gmra.mxu0 %v8154
    %v8156 = vpop.f32.mrf.mxu0
    %v8157 = vadd.f32 %v8133, %v8156
    %8158 = vdwg.mxu0
    %8159 = vmatpush.msra.mxu0 0.0
    %8160 = vmatpush.msra.mxu0 0.0
    %8161 = vmatpush.msra.mxu0 0.0
    %8162 = vmatpush.msra.mxu0 0.0
    %8163 = vmatpush.msra.mxu0 0.0
    %8164 = vmatpush.msra.mxu0 0.0
    %8165 = vmatpush.msra.mxu0 0.0
    %8166 = vmatpush.msra.mxu0 0.0
    %8167 = vmatpush.msra.mxu0 0.0
    %8168 = vmatpush.msra.mxu0 0.0
    %8169 = vmatpush.msra.mxu0 0.0
    %8170 = vmatpush.msra.mxu0 0.0
    %8171 = vmatpush.msra.mxu0 0.0
    %8172 = vmatpush.msra.mxu0 0.0
    %8173 = vmatpush.msra.mxu0 0.0
    %v8174 = vand.u32 %v163, 4294901760
    %8175 = vmatpush.msra.mxu0 %v8174
    %v8176 = vand.u32 %v8033, 4294901760
    %8177 = vmatmul.f32.gmra.mxu0 %v8176
    %v8178 = vpop.f32.mrf.mxu0
    %v8179 = vadd.f32 %v8157, %v8178
    %8180 = vdwg.mxu0
    %v8182 = vsel %vm4686, %v7136, 0
    %8184 = vmatpush.msra.mxu0 0.0
    %8185 = vmatpush.msra.mxu0 0.0
    %8186 = vmatpush.msra.mxu0 0.0
    %8187 = vmatpush.msra.mxu0 0.0
    %8188 = vmatpush.msra.mxu0 0.0
    %8189 = vmatpush.msra.mxu0 0.0
    %8190 = vmatpush.msra.mxu0 0.0
    %8191 = vmatpush.msra.mxu0 0.0
    %8192 = vmatpush.msra.mxu0 0.0
    %8193 = vmatpush.msra.mxu0 0.0
    %8194 = vmatpush.msra.mxu0 0.0
    %8195 = vmatpush.msra.mxu0 0.0
    %8196 = vmatpush.msra.mxu0 0.0
    %8197 = vmatpush.msra.mxu0 0.0
    %8198 = vmatpush.msra.mxu0 0.0
    %v8199 = vand.u32 %v164, 4294901760
    %8200 = vmatpush.msra.mxu0 %v8199
    %v8201 = vand.u32 %v8182, 4294901760
    %v8202 = vsub.f32 %v8182, %v8201
    %v8203 = vand.u32 %v8202, 4294901760
    %v8204 = vsub.f32 %v8202, %v8203
    %v8205 = vand.u32 %v8204, 4294901760
    %8206 = vmatmul.f32.gmra.mxu0 %v8205
    %v8207 = vpop.f32.mrf.mxu0
    %v8208 = vadd.f32 0.0, %v8207
    %8209 = vdwg.mxu0
    %8210 = vmatpush.msra.mxu0 0.0
    %8211 = vmatpush.msra.mxu0 0.0
    %8212 = vmatpush.msra.mxu0 0.0
    %8213 = vmatpush.msra.mxu0 0.0
    %8214 = vmatpush.msra.mxu0 0.0
    %8215 = vmatpush.msra.mxu0 0.0
    %8216 = vmatpush.msra.mxu0 0.0
    %8217 = vmatpush.msra.mxu0 0.0
    %8218 = vmatpush.msra.mxu0 0.0
    %8219 = vmatpush.msra.mxu0 0.0
    %8220 = vmatpush.msra.mxu0 0.0
    %8221 = vmatpush.msra.mxu0 0.0
    %8222 = vmatpush.msra.mxu0 0.0
    %8223 = vmatpush.msra.mxu0 0.0
    %8224 = vmatpush.msra.mxu0 0.0
    %v8225 = vand.u32 %v164, 4294901760
    %v8226 = vsub.f32 %v164, %v8225
    %v8227 = vand.u32 %v8226, 4294901760
    %v8228 = vsub.f32 %v8226, %v8227
    %v8229 = vand.u32 %v8228, 4294901760
    %8230 = vmatpush.msra.mxu0 %v8229
    %v8231 = vand.u32 %v8182, 4294901760
    %8232 = vmatmul.f32.gmra.mxu0 %v8231
    %v8233 = vpop.f32.mrf.mxu0
    %v8234 = vadd.f32 %v8208, %v8233
    %8235 = vdwg.mxu0
    %8236 = vmatpush.msra.mxu0 0.0
    %8237 = vmatpush.msra.mxu0 0.0
    %8238 = vmatpush.msra.mxu0 0.0
    %8239 = vmatpush.msra.mxu0 0.0
    %8240 = vmatpush.msra.mxu0 0.0
    %8241 = vmatpush.msra.mxu0 0.0
    %8242 = vmatpush.msra.mxu0 0.0
    %8243 = vmatpush.msra.mxu0 0.0
    %8244 = vmatpush.msra.mxu0 0.0
    %8245 = vmatpush.msra.mxu0 0.0
    %8246 = vmatpush.msra.mxu0 0.0
    %8247 = vmatpush.msra.mxu0 0.0
    %8248 = vmatpush.msra.mxu0 0.0
    %8249 = vmatpush.msra.mxu0 0.0
    %8250 = vmatpush.msra.mxu0 0.0
    %v8251 = vand.u32 %v164, 4294901760
    %v8252 = vsub.f32 %v164, %v8251
    %8253 = vmatpush.msra.mxu0 %v8252
    %v8254 = vand.u32 %v8182, 4294901760
    %v8255 = vsub.f32 %v8182, %v8254
    %8256 = vmatmul.f32.gmra.mxu0 %v8255
    %v8257 = vpop.f32.mrf.mxu0
    %v8258 = vadd.f32 %v8234, %v8257
    %8259 = vdwg.mxu0
    %8260 = vmatpush.msra.mxu0 0.0
    %8261 = vmatpush.msra.mxu0 0.0
    %8262 = vmatpush.msra.mxu0 0.0
    %8263 = vmatpush.msra.mxu0 0.0
    %8264 = vmatpush.msra.mxu0 0.0
    %8265 = vmatpush.msra.mxu0 0.0
    %8266 = vmatpush.msra.mxu0 0.0
    %8267 = vmatpush.msra.mxu0 0.0
    %8268 = vmatpush.msra.mxu0 0.0
    %8269 = vmatpush.msra.mxu0 0.0
    %8270 = vmatpush.msra.mxu0 0.0
    %8271 = vmatpush.msra.mxu0 0.0
    %8272 = vmatpush.msra.mxu0 0.0
    %8273 = vmatpush.msra.mxu0 0.0
    %8274 = vmatpush.msra.mxu0 0.0
    %v8275 = vand.u32 %v164, 4294901760
    %8276 = vmatpush.msra.mxu0 %v8275
    %v8277 = vand.u32 %v8182, 4294901760
    %v8278 = vsub.f32 %v8182, %v8277
    %v8279 = vand.u32 %v8278, 4294901760
    %8280 = vmatmul.f32.gmra.mxu0 %v8279
    %v8281 = vpop.f32.mrf.mxu0
    %v8282 = vadd.f32 %v8258, %v8281
    %8283 = vdwg.mxu0
    %8284 = vmatpush.msra.mxu0 0.0
    %8285 = vmatpush.msra.mxu0 0.0
    %8286 = vmatpush.msra.mxu0 0.0
    %8287 = vmatpush.msra.mxu0 0.0
    %8288 = vmatpush.msra.mxu0 0.0
    %8289 = vmatpush.msra.mxu0 0.0
    %8290 = vmatpush.msra.mxu0 0.0
    %8291 = vmatpush.msra.mxu0 0.0
    %8292 = vmatpush.msra.mxu0 0.0
    %8293 = vmatpush.msra.mxu0 0.0
    %8294 = vmatpush.msra.mxu0 0.0
    %8295 = vmatpush.msra.mxu0 0.0
    %8296 = vmatpush.msra.mxu0 0.0
    %8297 = vmatpush.msra.mxu0 0.0
    %8298 = vmatpush.msra.mxu0 0.0
    %v8299 = vand.u32 %v164, 4294901760
    %v8300 = vsub.f32 %v164, %v8299
    %v8301 = vand.u32 %v8300, 4294901760
    %8302 = vmatpush.msra.mxu0 %v8301
    %v8303 = vand.u32 %v8182, 4294901760
    %8304 = vmatmul.f32.gmra.mxu0 %v8303
    %v8305 = vpop.f32.mrf.mxu0
    %v8306 = vadd.f32 %v8282, %v8305
    %8307 = vdwg.mxu0
    %8308 = vmatpush.msra.mxu0 0.0
    %8309 = vmatpush.msra.mxu0 0.0
    %8310 = vmatpush.msra.mxu0 0.0
    %8311 = vmatpush.msra.mxu0 0.0
    %8312 = vmatpush.msra.mxu0 0.0
    %8313 = vmatpush.msra.mxu0 0.0
    %8314 = vmatpush.msra.mxu0 0.0
    %8315 = vmatpush.msra.mxu0 0.0
    %8316 = vmatpush.msra.mxu0 0.0
    %8317 = vmatpush.msra.mxu0 0.0
    %8318 = vmatpush.msra.mxu0 0.0
    %8319 = vmatpush.msra.mxu0 0.0
    %8320 = vmatpush.msra.mxu0 0.0
    %8321 = vmatpush.msra.mxu0 0.0
    %8322 = vmatpush.msra.mxu0 0.0
    %v8323 = vand.u32 %v164, 4294901760
    %8324 = vmatpush.msra.mxu0 %v8323
    %v8325 = vand.u32 %v8182, 4294901760
    %8326 = vmatmul.f32.gmra.mxu0 %v8325
    %v8327 = vpop.f32.mrf.mxu0
    %v8328 = vadd.f32 %v8306, %v8327
    %8329 = vdwg.mxu0
    %v8331 = vsel %vm4686, %v7285, 0
    %8333 = vmatpush.msra.mxu0 0.0
    %8334 = vmatpush.msra.mxu0 0.0
    %8335 = vmatpush.msra.mxu0 0.0
    %8336 = vmatpush.msra.mxu0 0.0
    %8337 = vmatpush.msra.mxu0 0.0
    %8338 = vmatpush.msra.mxu0 0.0
    %8339 = vmatpush.msra.mxu0 0.0
    %8340 = vmatpush.msra.mxu0 0.0
    %8341 = vmatpush.msra.mxu0 0.0
    %8342 = vmatpush.msra.mxu0 0.0
    %8343 = vmatpush.msra.mxu0 0.0
    %8344 = vmatpush.msra.mxu0 0.0
    %8345 = vmatpush.msra.mxu0 0.0
    %8346 = vmatpush.msra.mxu0 0.0
    %8347 = vmatpush.msra.mxu0 0.0
    %v8348 = vand.u32 %v165, 4294901760
    %8349 = vmatpush.msra.mxu0 %v8348
    %v8350 = vand.u32 %v8331, 4294901760
    %v8351 = vsub.f32 %v8331, %v8350
    %v8352 = vand.u32 %v8351, 4294901760
    %v8353 = vsub.f32 %v8351, %v8352
    %v8354 = vand.u32 %v8353, 4294901760
    %8355 = vmatmul.f32.gmra.mxu0 %v8354
    %v8356 = vpop.f32.mrf.mxu0
    %v8357 = vadd.f32 0.0, %v8356
    %8358 = vdwg.mxu0
    %8359 = vmatpush.msra.mxu0 0.0
    %8360 = vmatpush.msra.mxu0 0.0
    %8361 = vmatpush.msra.mxu0 0.0
    %8362 = vmatpush.msra.mxu0 0.0
    %8363 = vmatpush.msra.mxu0 0.0
    %8364 = vmatpush.msra.mxu0 0.0
    %8365 = vmatpush.msra.mxu0 0.0
    %8366 = vmatpush.msra.mxu0 0.0
    %8367 = vmatpush.msra.mxu0 0.0
    %8368 = vmatpush.msra.mxu0 0.0
    %8369 = vmatpush.msra.mxu0 0.0
    %8370 = vmatpush.msra.mxu0 0.0
    %8371 = vmatpush.msra.mxu0 0.0
    %8372 = vmatpush.msra.mxu0 0.0
    %8373 = vmatpush.msra.mxu0 0.0
    %v8374 = vand.u32 %v165, 4294901760
    %v8375 = vsub.f32 %v165, %v8374
    %v8376 = vand.u32 %v8375, 4294901760
    %v8377 = vsub.f32 %v8375, %v8376
    %v8378 = vand.u32 %v8377, 4294901760
    %8379 = vmatpush.msra.mxu0 %v8378
    %v8380 = vand.u32 %v8331, 4294901760
    %8381 = vmatmul.f32.gmra.mxu0 %v8380
    %v8382 = vpop.f32.mrf.mxu0
    %v8383 = vadd.f32 %v8357, %v8382
    %8384 = vdwg.mxu0
    %8385 = vmatpush.msra.mxu0 0.0
    %8386 = vmatpush.msra.mxu0 0.0
    %8387 = vmatpush.msra.mxu0 0.0
    %8388 = vmatpush.msra.mxu0 0.0
    %8389 = vmatpush.msra.mxu0 0.0
    %8390 = vmatpush.msra.mxu0 0.0
    %8391 = vmatpush.msra.mxu0 0.0
    %8392 = vmatpush.msra.mxu0 0.0
    %8393 = vmatpush.msra.mxu0 0.0
    %8394 = vmatpush.msra.mxu0 0.0
    %8395 = vmatpush.msra.mxu0 0.0
    %8396 = vmatpush.msra.mxu0 0.0
    %8397 = vmatpush.msra.mxu0 0.0
    %8398 = vmatpush.msra.mxu0 0.0
    %8399 = vmatpush.msra.mxu0 0.0
    %v8400 = vand.u32 %v165, 4294901760
    %v8401 = vsub.f32 %v165, %v8400
    %8402 = vmatpush.msra.mxu0 %v8401
    %v8403 = vand.u32 %v8331, 4294901760
    %v8404 = vsub.f32 %v8331, %v8403
    %8405 = vmatmul.f32.gmra.mxu0 %v8404
    %v8406 = vpop.f32.mrf.mxu0
    %v8407 = vadd.f32 %v8383, %v8406
    %8408 = vdwg.mxu0
    %8409 = vmatpush.msra.mxu0 0.0
    %8410 = vmatpush.msra.mxu0 0.0
    %8411 = vmatpush.msra.mxu0 0.0
    %8412 = vmatpush.msra.mxu0 0.0
    %8413 = vmatpush.msra.mxu0 0.0
    %8414 = vmatpush.msra.mxu0 0.0
    %8415 = vmatpush.msra.mxu0 0.0
    %8416 = vmatpush.msra.mxu0 0.0
    %8417 = vmatpush.msra.mxu0 0.0
    %8418 = vmatpush.msra.mxu0 0.0
    %8419 = vmatpush.msra.mxu0 0.0
    %8420 = vmatpush.msra.mxu0 0.0
    %8421 = vmatpush.msra.mxu0 0.0
    %8422 = vmatpush.msra.mxu0 0.0
    %8423 = vmatpush.msra.mxu0 0.0
    %v8424 = vand.u32 %v165, 4294901760
    %8425 = vmatpush.msra.mxu0 %v8424
    %v8426 = vand.u32 %v8331, 4294901760
    %v8427 = vsub.f32 %v8331, %v8426
    %v8428 = vand.u32 %v8427, 4294901760
    %8429 = vmatmul.f32.gmra.mxu0 %v8428
    %v8430 = vpop.f32.mrf.mxu0
    %v8431 = vadd.f32 %v8407, %v8430
    %8432 = vdwg.mxu0
    %8433 = vmatpush.msra.mxu0 0.0
    %8434 = vmatpush.msra.mxu0 0.0
    %8435 = vmatpush.msra.mxu0 0.0
    %8436 = vmatpush.msra.mxu0 0.0
    %8437 = vmatpush.msra.mxu0 0.0
    %8438 = vmatpush.msra.mxu0 0.0
    %8439 = vmatpush.msra.mxu0 0.0
    %8440 = vmatpush.msra.mxu0 0.0
    %8441 = vmatpush.msra.mxu0 0.0
    %8442 = vmatpush.msra.mxu0 0.0
    %8443 = vmatpush.msra.mxu0 0.0
    %8444 = vmatpush.msra.mxu0 0.0
    %8445 = vmatpush.msra.mxu0 0.0
    %8446 = vmatpush.msra.mxu0 0.0
    %8447 = vmatpush.msra.mxu0 0.0
    %v8448 = vand.u32 %v165, 4294901760
    %v8449 = vsub.f32 %v165, %v8448
    %v8450 = vand.u32 %v8449, 4294901760
    %8451 = vmatpush.msra.mxu0 %v8450
    %v8452 = vand.u32 %v8331, 4294901760
    %8453 = vmatmul.f32.gmra.mxu0 %v8452
    %v8454 = vpop.f32.mrf.mxu0
    %v8455 = vadd.f32 %v8431, %v8454
    %8456 = vdwg.mxu0
    %8457 = vmatpush.msra.mxu0 0.0
    %8458 = vmatpush.msra.mxu0 0.0
    %8459 = vmatpush.msra.mxu0 0.0
    %8460 = vmatpush.msra.mxu0 0.0
    %8461 = vmatpush.msra.mxu0 0.0
    %8462 = vmatpush.msra.mxu0 0.0
    %8463 = vmatpush.msra.mxu0 0.0
    %8464 = vmatpush.msra.mxu0 0.0
    %8465 = vmatpush.msra.mxu0 0.0
    %8466 = vmatpush.msra.mxu0 0.0
    %8467 = vmatpush.msra.mxu0 0.0
    %8468 = vmatpush.msra.mxu0 0.0
    %8469 = vmatpush.msra.mxu0 0.0
    %8470 = vmatpush.msra.mxu0 0.0
    %8471 = vmatpush.msra.mxu0 0.0
    %v8472 = vand.u32 %v165, 4294901760
    %8473 = vmatpush.msra.mxu0 %v8472
    %v8474 = vand.u32 %v8331, 4294901760
    %8475 = vmatmul.f32.gmra.mxu0 %v8474
    %v8476 = vpop.f32.mrf.mxu0
    %v8477 = vadd.f32 %v8455, %v8476
    %8478 = vdwg.mxu0
    %v8479 = vsel %vm191, %v7434, 0.0
    %v8480 = vsel %vm191, %v7732, 0.0
    %v8481 = vadd.f32 %v8479, %v8480
    %v8482 = vsel %vm191, %v8030, 0.0
    %v8483 = vadd.f32 %v8481, %v8482
    %v8484 = vsel %vm191, %v8328, 0.0
    %v8485 = vadd.f32 %v8483, %v8484
    %v8486 = vsel %vm191, %v7583, 0.0
    %v8487 = vsel %vm191, %v7881, 0.0
    %v8488 = vadd.f32 %v8486, %v8487
    %v8489 = vsel %vm191, %v8179, 0.0
    %v8490 = vadd.f32 %v8488, %v8489
    %v8491 = vsel %vm191, %v8477, 0.0
    %v8492 = vadd.f32 %v8490, %v8491
    %v8494 = vperm.slane %v166, 0
    %v8496 = vadd.f32 %v8485, %v8494
    %v8497 = vadd.f32 %v8492, %v8494
    %8498 = vst.msk [vmem:[#allocation2] sm:$0xff] %vm191, %v8496
    %8499 = vst.msk [vmem:[#allocation2 + $0x8] sm:$0xff] %vm191, %v8497
    %8500 = vst.msk [vmem:[#allocation4] sm:$0xff] %vm4686, %v5989
    %8501 = vst.msk [vmem:[#allocation4 + $0x8] sm:$0xff] %vm4686, %v6004
    %8502 = vst.msk [vmem:[#allocation4 + $0x10] sm:$0xff] %vm4686, %v6019
    %8503 = vst.msk [vmem:[#allocation4 + $0x18] sm:$0xff] %vm4686, %v6034
    %8504 = vst.msk [vmem:[#allocation4 + $0x20] sm:$0xff] %vm4686, %v6049
    %8505 = vst.msk [vmem:[#allocation4 + $0x28] sm:$0xff] %vm4686, %v6064
    %8506 = vst.msk [vmem:[#allocation4 + $0x30] sm:$0xff] %vm4686, %v6079
    %8507 = vst.msk [vmem:[#allocation4 + $0x38] sm:$0xff] %vm4686, %v6094
    // Predicated region
    $region38: #{tpu_custom_call.1} parent=1 // pred_check
      _
    $region39: #{tpu_custom_call.1} parent=1 // pred_check_branch
      %8509 = sbr.rel (0) target = $region41
    $region40: #{tpu_custom_call.1} parent=1 // pred_region
      %8511 = vsyncadd [#allocation3], 0
      %s8512 = sshll.u32 [#allocation2], 4
      %s8513 = int_to_ptr.vmem [resolvable:$true] %s8512
      %s8514 = sshll.u32 %s9, 4
      %s8515 = int_to_ptr.hbm [resolvable:$true] %s8514
      %8520 = dma.vmem_to_hbm [thread:$0]  %s8513, 256, %s8515, [#allocation3], 128, 128, 8
    $region41: #{tpu_custom_call.1} parent=1 // pred_fallthru
      _
    // Predicated region
    $region42: #{tpu_custom_call.1} parent=1 // pred_check
      _
    $region43: #{tpu_custom_call.1} parent=1 // pred_check_branch
      %8522 = sbr.rel (0) target = $region45
    $region44: #{tpu_custom_call.1} parent=1 // pred_region
      %8524 = vsyncadd [#allocation5], 0
      %s8525 = sshll.u32 [#allocation4], 4
      %s8526 = int_to_ptr.vmem [resolvable:$true] %s8525
      %s8527 = sshll.u32 %s10, 4
      %s8528 = int_to_ptr.hbm [resolvable:$true] %s8527
      %8533 = dma.vmem_to_hbm [thread:$0]  %s8526, 1024, %s8528, [#allocation5], 128, 128, 8
    $region45: #{tpu_custom_call.1} parent=1 // pred_fallthru
      _
    // Predicated region
    $region46: #{tpu_custom_call.1} parent=1 // pred_check
      _
    $region47: #{tpu_custom_call.1} parent=1 // pred_check_branch
      %8535 = sbr.rel (0) target = $region49
    $region48: #{tpu_custom_call.1} parent=1 // pred_region
      %8537 = dma.done [#allocation3], 256
    $region49: #{tpu_custom_call.1} parent=1 // pred_fallthru
      _
    // Predicated region
    $region50: #{tpu_custom_call.1} parent=1 // pred_check
      _
    $region51: #{tpu_custom_call.1} parent=1 // pred_check_branch
      %8539 = sbr.rel (0) target = $region53
    $region52: #{tpu_custom_call.1} parent=1 // pred_region
      %8541 = dma.done [#allocation5], 1024
    $region53: #{tpu_custom_call.1} parent=1 // pred_fallthru
      _
    %8542 = vsyncpa [#allocation3], 1
    %8543 = vsyncpa [#allocation5], 1

</llo_original>
